<compile_context>
chip_gen: v6e
topology: v6e:2x2x1
jax: 0.10.0
libtpu: 0.0.40
codegen_flags: <defaults>
</compile_context>

<pallas_src>
import functools

import jax
import jax.numpy as jnp
from jax.experimental import pallas as pl
from jax.experimental.pallas import tpu as pltpu


def _round_up(x, m):
    return (x + m - 1) // m * m


# ----------------------------------------------------------------------------
# Fused kernel: one full inter-iteration per grid step, x carried in VMEM.
#   x = relu(conv0([inp, x_prev]))
#   repeat intra_iter times:
#       x = relu(relu(conv1b(relu(conv1a(x)))) + x)
#       x = relu(relu(conv2b(relu(conv2a(x)))) + x)
#   out[n, it] = conv_f(x) + inp ; x_prev <- out[n, it]
# ----------------------------------------------------------------------------
def _drn_kernel(inp_ref, w0_ref, wff_ref, wf_ref, b_ref, out_ref,
                xprev_ref, padc_ref, padf_ref,
                *, H, W, C, F, intra_iter):
    HW = H * W
    PAD = W + 1                       # flat zero-pad width on each side
    f32 = jnp.float32
    it = pl.program_id(1)

    # Column masks for the horizontally-wrapping taps (dx==0 zeroes output
    # column w==0, dx==2 zeroes w==W-1).  Shape (1, HW), broadcast on sublanes.
    col = jax.lax.broadcasted_iota(jnp.int32, (1, HW), 1) % W
    mask_l = (col != 0).astype(f32)
    mask_r = (col != W - 1).astype(f32)

    # Zero pad buffers: conv0 buffer fully (its two padded input channels must
    # stay zero), feature buffer borders only (interior is overwritten by every
    # conv, so the W+1-lane borders stay zero).
    padc_ref[...] = jnp.zeros_like(padc_ref)
    padf_ref[:, pl.ds(0, PAD)] = jnp.zeros((F, PAD), f32)
    padf_ref[:, pl.ds(PAD + HW, PAD)] = jnp.zeros((F, PAD), f32)

    def conv_from_pad(pad_ref, wtap, bcol, relu):
        """3x3 'SAME' conv read from a flat-padded buffer -> (Cout, H*W).

        pad_ref[:, PAD + p] holds the activation at flat index p; the tap
        (dy, dx) window is the contiguous lane slice starting at dy*W + dx.
        wtap(t) -> (Cout, Cin) weight for tap t = dy*3 + dx; bcol is (Cout, 1).
        """
        acc = []
        for dx in range(3):
            a = None
            for dy in range(3):
                win = pad_ref[:, pl.ds(dy * W + dx, HW)]          # (Cin, HW)
                part = jnp.dot(wtap(dy * 3 + dx), win,
                               preferred_element_type=f32)        # (Cout, HW)
                a = part if a is None else a + part
            acc.append(a)
        y = acc[0] * mask_l + acc[1] + acc[2] * mask_r + bcol
        return jnp.maximum(y, 0.0) if relu else y

    def conv3x3(x, wtap, bcol, relu):
        padf_ref[:, pl.ds(PAD, HW)] = x                           # (F, HW)
        return conv_from_pad(padf_ref, wtap, bcol, relu)

    # Carry of the previous inter-iteration output (reset to inp at it == 0).
    @pl.when(it == 0)
    def _():
        xprev_ref[...] = inp_ref[0]

    inp = inp_ref[0]                                              # (C, HW)
    b_all = b_ref[...]                                            # (F, 6)

    # conv0 on [inp, x_prev]: write the two pieces into disjoint sublane
    # ranges of the conv0 pad buffer (no channel concat anywhere).
    padc_ref[pl.ds(0, C), pl.ds(PAD, HW)] = inp
    padc_ref[pl.ds(C, C), pl.ds(PAD, HW)] = xprev_ref[...]
    x = conv_from_pad(padc_ref, lambda t: w0_ref[t], b_all[:, 0:1], relu=True)

    # Intra-iteration residual blocks (resx == x at every loop boundary, so
    # only x needs to be carried).
    def intra_body(_, x):
        h = conv3x3(x, lambda t: wff_ref[t], b_all[:, 1:2], relu=True)
        h = conv3x3(h, lambda t: wff_ref[9 + t], b_all[:, 2:3], relu=True)
        x = jnp.maximum(h + x, 0.0)
        h = conv3x3(x, lambda t: wff_ref[18 + t], b_all[:, 3:4], relu=True)
        h = conv3x3(h, lambda t: wff_ref[27 + t], b_all[:, 4:5], relu=True)
        return jnp.maximum(h + x, 0.0)

    x = jax.lax.fori_loop(0, intra_iter, intra_body, x)

    # Final conv (no ReLU, Cout padded 3->8) + input skip connection.
    cfp = wf_ref.shape[1]
    yp = conv3x3(x, lambda t: wf_ref[t], b_all[0:cfp, 5:6], relu=False)
    y = yp[0:C, :] + inp
    out_ref[0, 0] = y
    xprev_ref[...] = y


# ----------------------------------------------------------------------------
# Driver: weight packing + single pallas_call over grid (N, inter_iter)
# ----------------------------------------------------------------------------
def _taps(w, cout_pad, cin_pad):
    """OIHW (Cout, Cin, 3, 3) -> (9, Cout_p, Cin_p) with tap index t=dy*3+dx."""
    cout, cin = int(w.shape[0]), int(w.shape[1])
    t = jnp.transpose(w, (2, 3, 0, 1)).reshape(9, cout, cin)
    return jnp.pad(t, ((0, 0), (0, cout_pad - cout), (0, cin_pad - cin)))


def drn_forward(x_nchw, params, inter_iter=7, intra_iter=7):
    """x_nchw: (N, C, H, W) f32.  Returns (x, x_list) like the PyTorch module."""
    p = params
    N, C, H, W = x_nchw.shape
    F = int(p["w0"].shape[0])
    HW = H * W
    C0P = _round_up(2 * C, 8)         # conv0 in-channels, sublane aligned
    CFP = _round_up(C, 8)             # final-conv out-channels, sublane aligned
    PADN = HW + 2 * (W + 1)

    w0 = _taps(p["w0"], F, C0P)                                    # (9, F, C0P)
    wff = jnp.concatenate([_taps(p["w1a"], F, F), _taps(p["w1b"], F, F),
                           _taps(p["w2a"], F, F), _taps(p["w2b"], F, F)],
                          axis=0)                                  # (36, F, F)
    wf = _taps(p["wf"], CFP, F)                                    # (9, CFP, F)
    bias = jnp.stack([p["b0"], p["b1a"], p["b1b"], p["b2a"], p["b2b"],
                      jnp.pad(p["bf"], (0, F - C))], axis=1)       # (F, 6)

    kernel = functools.partial(_drn_kernel, H=H, W=W, C=C, F=F,
                               intra_iter=intra_iter)

    fused = pl.pallas_call(
        kernel,
        out_shape=jax.ShapeDtypeStruct((N, inter_iter, C, HW), jnp.float32),
        grid=(N, inter_iter),
        in_specs=[
            pl.BlockSpec((1, C, HW), lambda n, it: (n, 0, 0)),
            pl.BlockSpec((9, F, C0P), lambda n, it: (0, 0, 0)),
            pl.BlockSpec((36, F, F), lambda n, it: (0, 0, 0)),
            pl.BlockSpec((9, CFP, F), lambda n, it: (0, 0, 0)),
            pl.BlockSpec((F, 6), lambda n, it: (0, 0)),
        ],
        out_specs=pl.BlockSpec((1, 1, C, HW), lambda n, it: (n, it, 0, 0)),
        scratch_shapes=[
            pltpu.VMEM((C, HW), jnp.float32),       # x_prev carry (inter axis)
            pltpu.VMEM((C0P, PADN), jnp.float32),   # conv0 flat-pad buffer
            pltpu.VMEM((F, PADN), jnp.float32),     # feature flat-pad buffer
        ],
        compiler_params=pltpu.CompilerParams(
            dimension_semantics=("parallel", "arbitrary")),
    )

    out = fused(x_nchw.reshape(N, C, HW), w0, wff, wf, bias)
    out = out.reshape(N, inter_iter, C, H, W)
    x_list = [out[:, i] for i in range(inter_iter)]
    return x_list[-1], x_list


# ----------------------------------------------------------------------------
# Pure-JAX reference (NCHW, mirrors the PyTorch module exactly)
# ----------------------------------------------------------------------------
def _conv3x3_ref(x, w, b):
    y = jax.lax.conv_general_dilated(
        x, w, window_strides=(1, 1), padding="SAME",
        dimension_numbers=("NCHW", "OIHW", "NCHW"))
    return y + b[None, :, None, None]


def drn_forward_ref(inp, params, inter_iter=7, intra_iter=7):
    p = params
    relu = lambda t: jnp.maximum(t, 0.0)
    x = inp
    x_list = []
    for _ in range(inter_iter):
        xc = jnp.concatenate([inp, x], axis=1)
        x = relu(_conv3x3_ref(xc, p["w0"], p["b0"]))
        resx = x
        for _ in range(intra_iter):
            h = relu(_conv3x3_ref(x, p["w1a"], p["b1a"]))
            h = relu(_conv3x3_ref(h, p["w1b"], p["b1b"]))
            x = relu(h + resx)
            resx = x
            h = relu(_conv3x3_ref(x, p["w2a"], p["b2a"]))
            h = relu(_conv3x3_ref(h, p["w2b"], p["b2b"]))
            x = relu(h + resx)
            resx = x
        x = inp + _conv3x3_ref(x, p["wf"], p["bf"])
        x_list.append(x)
    return x, x_list


# ----------------------------------------------------------------------------
# Deterministic parameter init (DRN.__init__: channel=3, channel_feature=16)
# ----------------------------------------------------------------------------
def init_params(key, channel=3, channel_feature=16):
    ks = jax.random.split(key, 6)
    f = channel_feature
    w = lambda k, s: 0.1 * jax.random.normal(k, s, dtype=jnp.float32)
    b = lambda n, v: jnp.full((n,), v, jnp.float32)
    return {
        "w0":  w(ks[0], (f, channel * 2, 3, 3)), "b0":  b(f, 0.01),
        "w1a": w(ks[1], (f, f, 3, 3)),           "b1a": b(f, 0.02),
        "w1b": w(ks[2], (f, f, 3, 3)),           "b1b": b(f, -0.01),
        "w2a": w(ks[3], (f, f, 3, 3)),           "b2a": b(f, 0.015),
        "w2b": w(ks[4], (f, f, 3, 3)),           "b2b": b(f, -0.02),
        "wf":  w(ks[5], (channel, f, 3, 3)),     "bf":  b(channel, 0.01),
    }


if __name__ == "__main__":
    channel = 3
    N, H, W = 2, 16, 16
    # Small iteration counts for the demo (module defaults are 7 / 7; the loop
    # structure is identical -- inter is a grid axis, intra is a fori_loop).
    inter_iter, intra_iter = 3, 2

    key = jax.random.PRNGKey(0)
    k_in, k_par = jax.random.split(key)
    params = init_params(k_par, channel=channel)

    # PyTorch-style NCHW input (the kernel's (C, H*W) layout is a free reshape).
    x = jax.random.normal(k_in, (N, channel, H, W), dtype=jnp.float32)

    fwd = jax.jit(functools.partial(drn_forward,
                                    inter_iter=inter_iter,
                                    intra_iter=intra_iter))
    out, out_list = fwd(x, params)
    out = jax.block_until_ready(out)

    # Correctness check against a pure-JAX reference.
    ref_out, ref_list = drn_forward_ref(x, params,
                                        inter_iter=inter_iter,
                                        intra_iter=intra_iter)
    assert len(out_list) == inter_iter
    assert bool(jnp.allclose(out, ref_out, atol=2e-3, rtol=2e-3)), \
        "final output mismatch"
    for a, b in zip(out_list, ref_list):
        assert bool(jnp.allclose(a, b, atol=2e-3, rtol=2e-3)), "x_list mismatch"

    print("KERNEL_OK")
</pallas_src>

<mosaic_0001>
module attributes {stable_mosaic.version = 11 : i64} {
  func.func @_drn_kernel(%arg0: i32, %arg1: i32, %arg2: memref<1x3x256xf32, #tpu.memory_space<vmem>>, %arg3: memref<9x16x8xf32, #tpu.memory_space<vmem>>, %arg4: memref<36x16x16xf32, #tpu.memory_space<vmem>>, %arg5: memref<9x8x16xf32, #tpu.memory_space<vmem>>, %arg6: memref<16x6xf32, #tpu.memory_space<vmem>>, %arg7: memref<1x1x3x256xf32, #tpu.memory_space<vmem>>, %arg8: memref<3x256xf32, #tpu.memory_space<vmem>>, %arg9: memref<8x290xf32, #tpu.memory_space<vmem>>, %arg10: memref<16x290xf32, #tpu.memory_space<vmem>>) attributes {dimension_semantics = [#tpu.dimension_semantics<parallel>, #tpu.dimension_semantics<arbitrary>], iteration_bounds = array<i64: 2, 3>, scalar_prefetch = 0 : i64, scratch_operands = 3 : i64, tpu.core_type = #tpu.core_type<tc>, window_params = [{transform_indices = @transform_0, window_bounds = array<i64: 1, 3, 256>}, {pipeline_mode = #tpu.pipeline_mode<synchronous>, transform_indices = @transform_1, window_bounds = array<i64: 9, 16, 8>}, {pipeline_mode = #tpu.pipeline_mode<synchronous>, transform_indices = @transform_2, window_bounds = array<i64: 36, 16, 16>}, {pipeline_mode = #tpu.pipeline_mode<synchronous>, transform_indices = @transform_3, window_bounds = array<i64: 9, 8, 16>}, {pipeline_mode = #tpu.pipeline_mode<synchronous>, transform_indices = @transform_4, window_bounds = array<i64: 16, 6>}, {transform_indices = @transform_5, window_bounds = array<i64: 1, 1, 3, 256>}]} {
    %0 = tpu.iota {dimensions = array<i32: 1>} : vector<1x256xi32>
    %c16_i32 = arith.constant 16 : i32
    %c0_i32 = arith.constant 0 : i32
    %1 = arith.cmpi eq, %c16_i32, %c0_i32 : i32
    %c1_i32 = arith.constant 1 : i32
    %2 = arith.select %1, %c1_i32, %c16_i32 : i32
    %3 = vector.broadcast %2 : i32 to vector<1x256xi32>
    %4 = arith.remsi %0, %3 : vector<1x256xi32>
    %c0_i32_0 = arith.constant 0 : i32
    %5 = vector.broadcast %c0_i32_0 : i32 to vector<1x256xi32>
    %6 = arith.cmpi ne, %4, %5 : vector<1x256xi32>
    %c0_i32_1 = arith.constant 0 : i32
    %7 = vector.broadcast %c0_i32_1 : i32 to vector<1x256xi32>
    %8 = arith.cmpi slt, %4, %7 : vector<1x256xi32>
    %c0_i32_2 = arith.constant 0 : i32
    %9 = arith.cmpi slt, %2, %c0_i32_2 : i32
    %10 = vector.broadcast %9 : i1 to vector<1x256xi1>
    %11 = vector.broadcast %10 : vector<1x256xi1> to vector<1x256xi1>
    %12 = arith.xori %8, %11 : vector<1x256xi1>
    %13 = arith.andi %12, %6 : vector<1x256xi1>
    %14 = vector.broadcast %2 : i32 to vector<1x256xi32>
    %15 = arith.addi %4, %14 : vector<1x256xi32>
    %16 = arith.select %13, %15, %4 : vector<1x256xi1>, vector<1x256xi32>
    %c0_i32_3 = arith.constant 0 : i32
    %17 = vector.broadcast %c0_i32_3 : i32 to vector<1x256xi32>
    %18 = arith.cmpi ne, %16, %17 : vector<1x256xi32>
    %19 = arith.extui %18 : vector<1x256xi1> to vector<1x256xi32>
    %20 = arith.sitofp %19 : vector<1x256xi32> to vector<1x256xf32>
    %c15_i32 = arith.constant 15 : i32
    %21 = vector.broadcast %c15_i32 : i32 to vector<1x256xi32>
    %22 = arith.cmpi ne, %16, %21 : vector<1x256xi32>
    %23 = arith.extui %22 : vector<1x256xi1> to vector<1x256xi32>
    %24 = arith.sitofp %23 : vector<1x256xi32> to vector<1x256xf32>
    %cst = arith.constant 0.000000e+00 : f32
    %25 = vector.broadcast %cst : f32 to vector<8x290xf32>
    %c0 = arith.constant 0 : index
    %c0_4 = arith.constant 0 : index
    %26 = vector.load %arg9[%c0, %c0_4] : memref<8x290xf32, #tpu.memory_space<vmem>>, vector<8x290xf32>
    tpu.vector_store %arg9[%c0, %c0_4], %25 {strides = array<i32>} : memref<8x290xf32, #tpu.memory_space<vmem>>, vector<8x290xf32>,
    %cst_5 = arith.constant 0.000000e+00 : f32
    %27 = vector.broadcast %cst_5 : f32 to vector<16x17xf32>
    %c0_6 = arith.constant 0 : index
    %c0_7 = arith.constant 0 : index
    %28 = vector.load %arg10[%c0_6, %c0_7] : memref<16x290xf32, #tpu.memory_space<vmem>>, vector<16x17xf32>
    tpu.vector_store %arg10[%c0_6, %c0_7], %27 {strides = array<i32>} : memref<16x290xf32, #tpu.memory_space<vmem>>, vector<16x17xf32>,
    %cst_8 = arith.constant 0.000000e+00 : f32
    %29 = vector.broadcast %cst_8 : f32 to vector<16x17xf32>
    %c0_9 = arith.constant 0 : index
    %c273 = arith.constant 273 : index
    %30 = vector.load %arg10[%c0_9, %c273] : memref<16x290xf32, #tpu.memory_space<vmem>>, vector<16x17xf32>
    tpu.vector_store %arg10[%c0_9, %c273], %29 {strides = array<i32>} : memref<16x290xf32, #tpu.memory_space<vmem>>, vector<16x17xf32>,
    %c0_i32_10 = arith.constant 0 : i32
    %31 = arith.cmpi eq, %arg1, %c0_i32_10 : i32
    %32 = arith.extui %31 : i1 to i32
    %c0_i32_11 = arith.constant 0 : i32
    %33 = arith.cmpi ne, %32, %c0_i32_11 : i32
    scf.if %33 {
      %c0_128 = arith.constant 0 : index
      %c0_129 = arith.constant 0 : index
      %c0_130 = arith.constant 0 : index
      %153 = vector.load %arg2[%c0_128, %c0_129, %c0_130] : memref<1x3x256xf32, #tpu.memory_space<vmem>>, vector<1x3x256xf32>
      %154 = vector.shape_cast %153 : vector<1x3x256xf32> to vector<3x256xf32>
      %c0_131 = arith.constant 0 : index
      %c0_132 = arith.constant 0 : index
      %155 = vector.load %arg8[%c0_131, %c0_132] : memref<3x256xf32, #tpu.memory_space<vmem>>, vector<3x256xf32>
      tpu.vector_store %arg8[%c0_131, %c0_132], %154 {strides = array<i32>} : memref<3x256xf32, #tpu.memory_space<vmem>>, vector<3x256xf32>,
    } else {
    }
    %c0_12 = arith.constant 0 : index
    %c0_13 = arith.constant 0 : index
    %c0_14 = arith.constant 0 : index
    %34 = vector.load %arg2[%c0_12, %c0_13, %c0_14] : memref<1x3x256xf32, #tpu.memory_space<vmem>>, vector<1x3x256xf32>
    %35 = vector.shape_cast %34 : vector<1x3x256xf32> to vector<3x256xf32>
    %c0_15 = arith.constant 0 : index
    %c0_16 = arith.constant 0 : index
    %36 = vector.load %arg6[%c0_15, %c0_16] : memref<16x6xf32, #tpu.memory_space<vmem>>, vector<16x6xf32>
    %c0_17 = arith.constant 0 : index
    %c17 = arith.constant 17 : index
    %37 = vector.load %arg9[%c0_17, %c17] : memref<8x290xf32, #tpu.memory_space<vmem>>, vector<3x256xf32>
    tpu.vector_store %arg9[%c0_17, %c17], %35 {strides = array<i32>} : memref<8x290xf32, #tpu.memory_space<vmem>>, vector<3x256xf32>,
    %c0_18 = arith.constant 0 : index
    %c0_19 = arith.constant 0 : index
    %38 = vector.load %arg8[%c0_18, %c0_19] : memref<3x256xf32, #tpu.memory_space<vmem>>, vector<3x256xf32>
    %c3 = arith.constant 3 : index
    %c17_20 = arith.constant 17 : index
    %39 = vector.load %arg9[%c3, %c17_20] : memref<8x290xf32, #tpu.memory_space<vmem>>, vector<3x256xf32>
    tpu.vector_store %arg9[%c3, %c17_20], %38 {strides = array<i32>} : memref<8x290xf32, #tpu.memory_space<vmem>>, vector<3x256xf32>,
    %40 = vector.extract_strided_slice %36 {offsets = [0, 0], sizes = [16, 1], strides = [1, 1]} : vector<16x6xf32> to vector<16x1xf32>
    %c0_21 = arith.constant 0 : index
    %c0_22 = arith.constant 0 : index
    %41 = vector.load %arg9[%c0_21, %c0_22] : memref<8x290xf32, #tpu.memory_space<vmem>>, vector<8x256xf32>
    %c0_23 = arith.constant 0 : index
    %c0_24 = arith.constant 0 : index
    %c0_25 = arith.constant 0 : index
    %42 = vector.load %arg3[%c0_23, %c0_24, %c0_25] : memref<9x16x8xf32, #tpu.memory_space<vmem>>, vector<1x16x8xf32>
    %43 = vector.shape_cast %42 : vector<1x16x8xf32> to vector<16x8xf32>
    %cst_26 = arith.constant dense<0.000000e+00> : vector<16x256xf32>
    %44 = tpu.matmul %43, %41, %cst_26 {dimension_numbers = #tpu.dot_dimension_numbers<[1], [0], [0], [1], [0, 0, 1, 1], [], []>} : vector<16x8xf32>, vector<8x256xf32>, vector<16x256xf32> -> vector<16x256xf32>
    %c0_27 = arith.constant 0 : index
    %c16 = arith.constant 16 : index
    %45 = vector.load %arg9[%c0_27, %c16] : memref<8x290xf32, #tpu.memory_space<vmem>>, vector<8x256xf32>
    %c3_28 = arith.constant 3 : index
    %c0_29 = arith.constant 0 : index
    %c0_30 = arith.constant 0 : index
    %46 = vector.load %arg3[%c3_28, %c0_29, %c0_30] : memref<9x16x8xf32, #tpu.memory_space<vmem>>, vector<1x16x8xf32>
    %47 = vector.shape_cast %46 : vector<1x16x8xf32> to vector<16x8xf32>
    %cst_31 = arith.constant dense<0.000000e+00> : vector<16x256xf32>
    %48 = tpu.matmul %47, %45, %cst_31 {dimension_numbers = #tpu.dot_dimension_numbers<[1], [0], [0], [1], [0, 0, 1, 1], [], []>} : vector<16x8xf32>, vector<8x256xf32>, vector<16x256xf32> -> vector<16x256xf32>
    %49 = arith.addf %44, %48 : vector<16x256xf32>
    %c0_32 = arith.constant 0 : index
    %c32 = arith.constant 32 : index
    %50 = vector.load %arg9[%c0_32, %c32] : memref<8x290xf32, #tpu.memory_space<vmem>>, vector<8x256xf32>
    %c6 = arith.constant 6 : index
    %c0_33 = arith.constant 0 : index
    %c0_34 = arith.constant 0 : index
    %51 = vector.load %arg3[%c6, %c0_33, %c0_34] : memref<9x16x8xf32, #tpu.memory_space<vmem>>, vector<1x16x8xf32>
    %52 = vector.shape_cast %51 : vector<1x16x8xf32> to vector<16x8xf32>
    %cst_35 = arith.constant dense<0.000000e+00> : vector<16x256xf32>
    %53 = tpu.matmul %52, %50, %cst_35 {dimension_numbers = #tpu.dot_dimension_numbers<[1], [0], [0], [1], [0, 0, 1, 1], [], []>} : vector<16x8xf32>, vector<8x256xf32>, vector<16x256xf32> -> vector<16x256xf32>
    %54 = arith.addf %49, %53 : vector<16x256xf32>
    %c0_36 = arith.constant 0 : index
    %c1 = arith.constant 1 : index
    %55 = vector.load %arg9[%c0_36, %c1] : memref<8x290xf32, #tpu.memory_space<vmem>>, vector<8x256xf32>
    %c1_37 = arith.constant 1 : index
    %c0_38 = arith.constant 0 : index
    %c0_39 = arith.constant 0 : index
    %56 = vector.load %arg3[%c1_37, %c0_38, %c0_39] : memref<9x16x8xf32, #tpu.memory_space<vmem>>, vector<1x16x8xf32>
    %57 = vector.shape_cast %56 : vector<1x16x8xf32> to vector<16x8xf32>
    %cst_40 = arith.constant dense<0.000000e+00> : vector<16x256xf32>
    %58 = tpu.matmul %57, %55, %cst_40 {dimension_numbers = #tpu.dot_dimension_numbers<[1], [0], [0], [1], [0, 0, 1, 1], [], []>} : vector<16x8xf32>, vector<8x256xf32>, vector<16x256xf32> -> vector<16x256xf32>
    %c0_41 = arith.constant 0 : index
    %c17_42 = arith.constant 17 : index
    %59 = vector.load %arg9[%c0_41, %c17_42] : memref<8x290xf32, #tpu.memory_space<vmem>>, vector<8x256xf32>
    %c4 = arith.constant 4 : index
    %c0_43 = arith.constant 0 : index
    %c0_44 = arith.constant 0 : index
    %60 = vector.load %arg3[%c4, %c0_43, %c0_44] : memref<9x16x8xf32, #tpu.memory_space<vmem>>, vector<1x16x8xf32>
    %61 = vector.shape_cast %60 : vector<1x16x8xf32> to vector<16x8xf32>
    %cst_45 = arith.constant dense<0.000000e+00> : vector<16x256xf32>
    %62 = tpu.matmul %61, %59, %cst_45 {dimension_numbers = #tpu.dot_dimension_numbers<[1], [0], [0], [1], [0, 0, 1, 1], [], []>} : vector<16x8xf32>, vector<8x256xf32>, vector<16x256xf32> -> vector<16x256xf32>
    %63 = arith.addf %58, %62 : vector<16x256xf32>
    %c0_46 = arith.constant 0 : index
    %c33 = arith.constant 33 : index
    %64 = vector.load %arg9[%c0_46, %c33] : memref<8x290xf32, #tpu.memory_space<vmem>>, vector<8x256xf32>
    %c7 = arith.constant 7 : index
    %c0_47 = arith.constant 0 : index
    %c0_48 = arith.constant 0 : index
    %65 = vector.load %arg3[%c7, %c0_47, %c0_48] : memref<9x16x8xf32, #tpu.memory_space<vmem>>, vector<1x16x8xf32>
    %66 = vector.shape_cast %65 : vector<1x16x8xf32> to vector<16x8xf32>
    %cst_49 = arith.constant dense<0.000000e+00> : vector<16x256xf32>
    %67 = tpu.matmul %66, %64, %cst_49 {dimension_numbers = #tpu.dot_dimension_numbers<[1], [0], [0], [1], [0, 0, 1, 1], [], []>} : vector<16x8xf32>, vector<8x256xf32>, vector<16x256xf32> -> vector<16x256xf32>
    %68 = arith.addf %63, %67 : vector<16x256xf32>
    %c0_50 = arith.constant 0 : index
    %c2 = arith.constant 2 : index
    %69 = vector.load %arg9[%c0_50, %c2] : memref<8x290xf32, #tpu.memory_space<vmem>>, vector<8x256xf32>
    %c2_51 = arith.constant 2 : index
    %c0_52 = arith.constant 0 : index
    %c0_53 = arith.constant 0 : index
    %70 = vector.load %arg3[%c2_51, %c0_52, %c0_53] : memref<9x16x8xf32, #tpu.memory_space<vmem>>, vector<1x16x8xf32>
    %71 = vector.shape_cast %70 : vector<1x16x8xf32> to vector<16x8xf32>
    %cst_54 = arith.constant dense<0.000000e+00> : vector<16x256xf32>
    %72 = tpu.matmul %71, %69, %cst_54 {dimension_numbers = #tpu.dot_dimension_numbers<[1], [0], [0], [1], [0, 0, 1, 1], [], []>} : vector<16x8xf32>, vector<8x256xf32>, vector<16x256xf32> -> vector<16x256xf32>
    %c0_55 = arith.constant 0 : index
    %c18 = arith.constant 18 : index
    %73 = vector.load %arg9[%c0_55, %c18] : memref<8x290xf32, #tpu.memory_space<vmem>>, vector<8x256xf32>
    %c5 = arith.constant 5 : index
    %c0_56 = arith.constant 0 : index
    %c0_57 = arith.constant 0 : index
    %74 = vector.load %arg3[%c5, %c0_56, %c0_57] : memref<9x16x8xf32, #tpu.memory_space<vmem>>, vector<1x16x8xf32>
    %75 = vector.shape_cast %74 : vector<1x16x8xf32> to vector<16x8xf32>
    %cst_58 = arith.constant dense<0.000000e+00> : vector<16x256xf32>
    %76 = tpu.matmul %75, %73, %cst_58 {dimension_numbers = #tpu.dot_dimension_numbers<[1], [0], [0], [1], [0, 0, 1, 1], [], []>} : vector<16x8xf32>, vector<8x256xf32>, vector<16x256xf32> -> vector<16x256xf32>
    %77 = arith.addf %72, %76 : vector<16x256xf32>
    %c0_59 = arith.constant 0 : index
    %c34 = arith.constant 34 : index
    %78 = vector.load %arg9[%c0_59, %c34] : memref<8x290xf32, #tpu.memory_space<vmem>>, vector<8x256xf32>
    %c8 = arith.constant 8 : index
    %c0_60 = arith.constant 0 : index
    %c0_61 = arith.constant 0 : index
    %79 = vector.load %arg3[%c8, %c0_60, %c0_61] : memref<9x16x8xf32, #tpu.memory_space<vmem>>, vector<1x16x8xf32>
    %80 = vector.shape_cast %79 : vector<1x16x8xf32> to vector<16x8xf32>
    %cst_62 = arith.constant dense<0.000000e+00> : vector<16x256xf32>
    %81 = tpu.matmul %80, %78, %cst_62 {dimension_numbers = #tpu.dot_dimension_numbers<[1], [0], [0], [1], [0, 0, 1, 1], [], []>} : vector<16x8xf32>, vector<8x256xf32>, vector<16x256xf32> -> vector<16x256xf32>
    %82 = arith.addf %77, %81 : vector<16x256xf32>
    %83 = vector.broadcast %20 : vector<1x256xf32> to vector<16x256xf32>
    %84 = arith.mulf %54, %83 : vector<16x256xf32>
    %85 = arith.addf %84, %68 : vector<16x256xf32>
    %86 = vector.broadcast %24 : vector<1x256xf32> to vector<16x256xf32>
    %87 = arith.mulf %82, %86 : vector<16x256xf32>
    %88 = arith.addf %85, %87 : vector<16x256xf32>
    %89 = vector.broadcast %40 : vector<16x1xf32> to vector<16x256xf32>
    %90 = arith.addf %88, %89 : vector<16x256xf32>
    %cst_63 = arith.constant 0.000000e+00 : f32
    %91 = vector.broadcast %cst_63 : f32 to vector<16x256xf32>
    %92 = arith.maximumf %90, %91 : vector<16x256xf32>
    %c0_i32_64 = arith.constant 0 : i32
    %c2_i32 = arith.constant 2 : i32
    %93 = arith.addi %c0_i32_64, %c2_i32 : i32
    %c1_i32_65 = arith.constant 1 : i32
    %94 = scf.for %arg11 = %c0_i32_64 to %93 step %c1_i32_65 iter_args(%arg12 = %92) -> (vector<16x256xf32>)  : i32 {
      %153 = vector.extract_strided_slice %36 {offsets = [0, 1], sizes = [16, 1], strides = [1, 1]} : vector<16x6xf32> to vector<16x1xf32>
      %c0_128 = arith.constant 0 : index
      %c17_129 = arith.constant 17 : index
      %154 = vector.load %arg10[%c0_128, %c17_129] : memref<16x290xf32, #tpu.memory_space<vmem>>, vector<16x256xf32>
      tpu.vector_store %arg10[%c0_128, %c17_129], %arg12 {strides = array<i32>} : memref<16x290xf32, #tpu.memory_space<vmem>>, vector<16x256xf32>,
      %c0_130 = arith.constant 0 : index
      %c0_131 = arith.constant 0 : index
      %155 = vector.load %arg10[%c0_130, %c0_131] : memref<16x290xf32, #tpu.memory_space<vmem>>, vector<16x256xf32>
      %c0_132 = arith.constant 0 : index
      %c0_133 = arith.constant 0 : index
      %c0_134 = arith.constant 0 : index
      %156 = vector.load %arg4[%c0_132, %c0_133, %c0_134] : memref<36x16x16xf32, #tpu.memory_space<vmem>>, vector<1x16x16xf32>
      %157 = vector.shape_cast %156 : vector<1x16x16xf32> to vector<16x16xf32>
      %cst_135 = arith.constant dense<0.000000e+00> : vector<16x256xf32>
      %158 = tpu.matmul %157, %155, %cst_135 {dimension_numbers = #tpu.dot_dimension_numbers<[1], [0], [0], [1], [0, 0, 1, 1], [], []>} : vector<16x16xf32>, vector<16x256xf32>, vector<16x256xf32> -> vector<16x256xf32>
      %c0_136 = arith.constant 0 : index
      %c16_137 = arith.constant 16 : index
      %159 = vector.load %arg10[%c0_136, %c16_137] : memref<16x290xf32, #tpu.memory_space<vmem>>, vector<16x256xf32>
      %c3_138 = arith.constant 3 : index
      %c0_139 = arith.constant 0 : index
      %c0_140 = arith.constant 0 : index
      %160 = vector.load %arg4[%c3_138, %c0_139, %c0_140] : memref<36x16x16xf32, #tpu.memory_space<vmem>>, vector<1x16x16xf32>
      %161 = vector.shape_cast %160 : vector<1x16x16xf32> to vector<16x16xf32>
      %cst_141 = arith.constant dense<0.000000e+00> : vector<16x256xf32>
      %162 = tpu.matmul %161, %159, %cst_141 {dimension_numbers = #tpu.dot_dimension_numbers<[1], [0], [0], [1], [0, 0, 1, 1], [], []>} : vector<16x16xf32>, vector<16x256xf32>, vector<16x256xf32> -> vector<16x256xf32>
      %163 = arith.addf %158, %162 : vector<16x256xf32>
      %c0_142 = arith.constant 0 : index
      %c32_143 = arith.constant 32 : index
      %164 = vector.load %arg10[%c0_142, %c32_143] : memref<16x290xf32, #tpu.memory_space<vmem>>, vector<16x256xf32>
      %c6_144 = arith.constant 6 : index
      %c0_145 = arith.constant 0 : index
      %c0_146 = arith.constant 0 : index
      %165 = vector.load %arg4[%c6_144, %c0_145, %c0_146] : memref<36x16x16xf32, #tpu.memory_space<vmem>>, vector<1x16x16xf32>
      %166 = vector.shape_cast %165 : vector<1x16x16xf32> to vector<16x16xf32>
      %cst_147 = arith.constant dense<0.000000e+00> : vector<16x256xf32>
      %167 = tpu.matmul %166, %164, %cst_147 {dimension_numbers = #tpu.dot_dimension_numbers<[1], [0], [0], [1], [0, 0, 1, 1], [], []>} : vector<16x16xf32>, vector<16x256xf32>, vector<16x256xf32> -> vector<16x256xf32>
      %168 = arith.addf %163, %167 : vector<16x256xf32>
      %c0_148 = arith.constant 0 : index
      %c1_149 = arith.constant 1 : index
      %169 = vector.load %arg10[%c0_148, %c1_149] : memref<16x290xf32, #tpu.memory_space<vmem>>, vector<16x256xf32>
      %c1_150 = arith.constant 1 : index
      %c0_151 = arith.constant 0 : index
      %c0_152 = arith.constant 0 : index
      %170 = vector.load %arg4[%c1_150, %c0_151, %c0_152] : memref<36x16x16xf32, #tpu.memory_space<vmem>>, vector<1x16x16xf32>
      %171 = vector.shape_cast %170 : vector<1x16x16xf32> to vector<16x16xf32>
      %cst_153 = arith.constant dense<0.000000e+00> : vector<16x256xf32>
      %172 = tpu.matmul %171, %169, %cst_153 {dimension_numbers = #tpu.dot_dimension_numbers<[1], [0], [0], [1], [0, 0, 1, 1], [], []>} : vector<16x16xf32>, vector<16x256xf32>, vector<16x256xf32> -> vector<16x256xf32>
      %c0_154 = arith.constant 0 : index
      %c17_155 = arith.constant 17 : index
      %173 = vector.load %arg10[%c0_154, %c17_155] : memref<16x290xf32, #tpu.memory_space<vmem>>, vector<16x256xf32>
      %c4_156 = arith.constant 4 : index
      %c0_157 = arith.constant 0 : index
      %c0_158 = arith.constant 0 : index
      %174 = vector.load %arg4[%c4_156, %c0_157, %c0_158] : memref<36x16x16xf32, #tpu.memory_space<vmem>>, vector<1x16x16xf32>
      %175 = vector.shape_cast %174 : vector<1x16x16xf32> to vector<16x16xf32>
      %cst_159 = arith.constant dense<0.000000e+00> : vector<16x256xf32>
      %176 = tpu.matmul %175, %173, %cst_159 {dimension_numbers = #tpu.dot_dimension_numbers<[1], [0], [0], [1], [0, 0, 1, 1], [], []>} : vector<16x16xf32>, vector<16x256xf32>, vector<16x256xf32> -> vector<16x256xf32>
      %177 = arith.addf %172, %176 : vector<16x256xf32>
      %c0_160 = arith.constant 0 : index
      %c33_161 = arith.constant 33 : index
      %178 = vector.load %arg10[%c0_160, %c33_161] : memref<16x290xf32, #tpu.memory_space<vmem>>, vector<16x256xf32>
      %c7_162 = arith.constant 7 : index
      %c0_163 = arith.constant 0 : index
      %c0_164 = arith.constant 0 : index
      %179 = vector.load %arg4[%c7_162, %c0_163, %c0_164] : memref<36x16x16xf32, #tpu.memory_space<vmem>>, vector<1x16x16xf32>
      %180 = vector.shape_cast %179 : vector<1x16x16xf32> to vector<16x16xf32>
      %cst_165 = arith.constant dense<0.000000e+00> : vector<16x256xf32>
      %181 = tpu.matmul %180, %178, %cst_165 {dimension_numbers = #tpu.dot_dimension_numbers<[1], [0], [0], [1], [0, 0, 1, 1], [], []>} : vector<16x16xf32>, vector<16x256xf32>, vector<16x256xf32> -> vector<16x256xf32>
      %182 = arith.addf %177, %181 : vector<16x256xf32>
      %c0_166 = arith.constant 0 : index
      %c2_167 = arith.constant 2 : index
      %183 = vector.load %arg10[%c0_166, %c2_167] : memref<16x290xf32, #tpu.memory_space<vmem>>, vector<16x256xf32>
      %c2_168 = arith.constant 2 : index
      %c0_169 = arith.constant 0 : index
      %c0_170 = arith.constant 0 : index
      %184 = vector.load %arg4[%c2_168, %c0_169, %c0_170] : memref<36x16x16xf32, #tpu.memory_space<vmem>>, vector<1x16x16xf32>
      %185 = vector.shape_cast %184 : vector<1x16x16xf32> to vector<16x16xf32>
      %cst_171 = arith.constant dense<0.000000e+00> : vector<16x256xf32>
      %186 = tpu.matmul %185, %183, %cst_171 {dimension_numbers = #tpu.dot_dimension_numbers<[1], [0], [0], [1], [0, 0, 1, 1], [], []>} : vector<16x16xf32>, vector<16x256xf32>, vector<16x256xf32> -> vector<16x256xf32>
      %c0_172 = arith.constant 0 : index
      %c18_173 = arith.constant 18 : index
      %187 = vector.load %arg10[%c0_172, %c18_173] : memref<16x290xf32, #tpu.memory_space<vmem>>, vector<16x256xf32>
      %c5_174 = arith.constant 5 : index
      %c0_175 = arith.constant 0 : index
      %c0_176 = arith.constant 0 : index
      %188 = vector.load %arg4[%c5_174, %c0_175, %c0_176] : memref<36x16x16xf32, #tpu.memory_space<vmem>>, vector<1x16x16xf32>
      %189 = vector.shape_cast %188 : vector<1x16x16xf32> to vector<16x16xf32>
      %cst_177 = arith.constant dense<0.000000e+00> : vector<16x256xf32>
      %190 = tpu.matmul %189, %187, %cst_177 {dimension_numbers = #tpu.dot_dimension_numbers<[1], [0], [0], [1], [0, 0, 1, 1], [], []>} : vector<16x16xf32>, vector<16x256xf32>, vector<16x256xf32> -> vector<16x256xf32>
      %191 = arith.addf %186, %190 : vector<16x256xf32>
      %c0_178 = arith.constant 0 : index
      %c34_179 = arith.constant 34 : index
      %192 = vector.load %arg10[%c0_178, %c34_179] : memref<16x290xf32, #tpu.memory_space<vmem>>, vector<16x256xf32>
      %c8_180 = arith.constant 8 : index
      %c0_181 = arith.constant 0 : index
      %c0_182 = arith.constant 0 : index
      %193 = vector.load %arg4[%c8_180, %c0_181, %c0_182] : memref<36x16x16xf32, #tpu.memory_space<vmem>>, vector<1x16x16xf32>
      %194 = vector.shape_cast %193 : vector<1x16x16xf32> to vector<16x16xf32>
      %cst_183 = arith.constant dense<0.000000e+00> : vector<16x256xf32>
      %195 = tpu.matmul %194, %192, %cst_183 {dimension_numbers = #tpu.dot_dimension_numbers<[1], [0], [0], [1], [0, 0, 1, 1], [], []>} : vector<16x16xf32>, vector<16x256xf32>, vector<16x256xf32> -> vector<16x256xf32>
      %196 = arith.addf %191, %195 : vector<16x256xf32>
      %197 = vector.broadcast %20 : vector<1x256xf32> to vector<16x256xf32>
      %198 = arith.mulf %168, %197 : vector<16x256xf32>
      %199 = arith.addf %198, %182 : vector<16x256xf32>
      %200 = vector.broadcast %24 : vector<1x256xf32> to vector<16x256xf32>
      %201 = arith.mulf %196, %200 : vector<16x256xf32>
      %202 = arith.addf %199, %201 : vector<16x256xf32>
      %203 = vector.broadcast %153 : vector<16x1xf32> to vector<16x256xf32>
      %204 = arith.addf %202, %203 : vector<16x256xf32>
      %cst_184 = arith.constant 0.000000e+00 : f32
      %205 = vector.broadcast %cst_184 : f32 to vector<16x256xf32>
      %206 = arith.maximumf %204, %205 : vector<16x256xf32>
      %207 = vector.extract_strided_slice %36 {offsets = [0, 2], sizes = [16, 1], strides = [1, 1]} : vector<16x6xf32> to vector<16x1xf32>
      %c0_185 = arith.constant 0 : index
      %c17_186 = arith.constant 17 : index
      %208 = vector.load %arg10[%c0_185, %c17_186] : memref<16x290xf32, #tpu.memory_space<vmem>>, vector<16x256xf32>
      tpu.vector_store %arg10[%c0_185, %c17_186], %206 {strides = array<i32>} : memref<16x290xf32, #tpu.memory_space<vmem>>, vector<16x256xf32>,
      %c0_187 = arith.constant 0 : index
      %c0_188 = arith.constant 0 : index
      %209 = vector.load %arg10[%c0_187, %c0_188] : memref<16x290xf32, #tpu.memory_space<vmem>>, vector<16x256xf32>
      %c9 = arith.constant 9 : index
      %c0_189 = arith.constant 0 : index
      %c0_190 = arith.constant 0 : index
      %210 = vector.load %arg4[%c9, %c0_189, %c0_190] : memref<36x16x16xf32, #tpu.memory_space<vmem>>, vector<1x16x16xf32>
      %211 = vector.shape_cast %210 : vector<1x16x16xf32> to vector<16x16xf32>
      %cst_191 = arith.constant dense<0.000000e+00> : vector<16x256xf32>
      %212 = tpu.matmul %211, %209, %cst_191 {dimension_numbers = #tpu.dot_dimension_numbers<[1], [0], [0], [1], [0, 0, 1, 1], [], []>} : vector<16x16xf32>, vector<16x256xf32>, vector<16x256xf32> -> vector<16x256xf32>
      %c0_192 = arith.constant 0 : index
      %c16_193 = arith.constant 16 : index
      %213 = vector.load %arg10[%c0_192, %c16_193] : memref<16x290xf32, #tpu.memory_space<vmem>>, vector<16x256xf32>
      %c12 = arith.constant 12 : index
      %c0_194 = arith.constant 0 : index
      %c0_195 = arith.constant 0 : index
      %214 = vector.load %arg4[%c12, %c0_194, %c0_195] : memref<36x16x16xf32, #tpu.memory_space<vmem>>, vector<1x16x16xf32>
      %215 = vector.shape_cast %214 : vector<1x16x16xf32> to vector<16x16xf32>
      %cst_196 = arith.constant dense<0.000000e+00> : vector<16x256xf32>
      %216 = tpu.matmul %215, %213, %cst_196 {dimension_numbers = #tpu.dot_dimension_numbers<[1], [0], [0], [1], [0, 0, 1, 1], [], []>} : vector<16x16xf32>, vector<16x256xf32>, vector<16x256xf32> -> vector<16x256xf32>
      %217 = arith.addf %212, %216 : vector<16x256xf32>
      %c0_197 = arith.constant 0 : index
      %c32_198 = arith.constant 32 : index
      %218 = vector.load %arg10[%c0_197, %c32_198] : memref<16x290xf32, #tpu.memory_space<vmem>>, vector<16x256xf32>
      %c15 = arith.constant 15 : index
      %c0_199 = arith.constant 0 : index
      %c0_200 = arith.constant 0 : index
      %219 = vector.load %arg4[%c15, %c0_199, %c0_200] : memref<36x16x16xf32, #tpu.memory_space<vmem>>, vector<1x16x16xf32>
      %220 = vector.shape_cast %219 : vector<1x16x16xf32> to vector<16x16xf32>
      %cst_201 = arith.constant dense<0.000000e+00> : vector<16x256xf32>
      %221 = tpu.matmul %220, %218, %cst_201 {dimension_numbers = #tpu.dot_dimension_numbers<[1], [0], [0], [1], [0, 0, 1, 1], [], []>} : vector<16x16xf32>, vector<16x256xf32>, vector<16x256xf32> -> vector<16x256xf32>
      %222 = arith.addf %217, %221 : vector<16x256xf32>
      %c0_202 = arith.constant 0 : index
      %c1_203 = arith.constant 1 : index
      %223 = vector.load %arg10[%c0_202, %c1_203] : memref<16x290xf32, #tpu.memory_space<vmem>>, vector<16x256xf32>
      %c10 = arith.constant 10 : index
      %c0_204 = arith.constant 0 : index
      %c0_205 = arith.constant 0 : index
      %224 = vector.load %arg4[%c10, %c0_204, %c0_205] : memref<36x16x16xf32, #tpu.memory_space<vmem>>, vector<1x16x16xf32>
      %225 = vector.shape_cast %224 : vector<1x16x16xf32> to vector<16x16xf32>
      %cst_206 = arith.constant dense<0.000000e+00> : vector<16x256xf32>
      %226 = tpu.matmul %225, %223, %cst_206 {dimension_numbers = #tpu.dot_dimension_numbers<[1], [0], [0], [1], [0, 0, 1, 1], [], []>} : vector<16x16xf32>, vector<16x256xf32>, vector<16x256xf32> -> vector<16x256xf32>
      %c0_207 = arith.constant 0 : index
      %c17_208 = arith.constant 17 : index
      %227 = vector.load %arg10[%c0_207, %c17_208] : memref<16x290xf32, #tpu.memory_space<vmem>>, vector<16x256xf32>
      %c13 = arith.constant 13 : index
      %c0_209 = arith.constant 0 : index
      %c0_210 = arith.constant 0 : index
      %228 = vector.load %arg4[%c13, %c0_209, %c0_210] : memref<36x16x16xf32, #tpu.memory_space<vmem>>, vector<1x16x16xf32>
      %229 = vector.shape_cast %228 : vector<1x16x16xf32> to vector<16x16xf32>
      %cst_211 = arith.constant dense<0.000000e+00> : vector<16x256xf32>
      %230 = tpu.matmul %229, %227, %cst_211 {dimension_numbers = #tpu.dot_dimension_numbers<[1], [0], [0], [1], [0, 0, 1, 1], [], []>} : vector<16x16xf32>, vector<16x256xf32>, vector<16x256xf32> -> vector<16x256xf32>
      %231 = arith.addf %226, %230 : vector<16x256xf32>
      %c0_212 = arith.constant 0 : index
      %c33_213 = arith.constant 33 : index
      %232 = vector.load %arg10[%c0_212, %c33_213] : memref<16x290xf32, #tpu.memory_space<vmem>>, vector<16x256xf32>
      %c16_214 = arith.constant 16 : index
      %c0_215 = arith.constant 0 : index
      %c0_216 = arith.constant 0 : index
      %233 = vector.load %arg4[%c16_214, %c0_215, %c0_216] : memref<36x16x16xf32, #tpu.memory_space<vmem>>, vector<1x16x16xf32>
      %234 = vector.shape_cast %233 : vector<1x16x16xf32> to vector<16x16xf32>
      %cst_217 = arith.constant dense<0.000000e+00> : vector<16x256xf32>
      %235 = tpu.matmul %234, %232, %cst_217 {dimension_numbers = #tpu.dot_dimension_numbers<[1], [0], [0], [1], [0, 0, 1, 1], [], []>} : vector<16x16xf32>, vector<16x256xf32>, vector<16x256xf32> -> vector<16x256xf32>
      %236 = arith.addf %231, %235 : vector<16x256xf32>
      %c0_218 = arith.constant 0 : index
      %c2_219 = arith.constant 2 : index
      %237 = vector.load %arg10[%c0_218, %c2_219] : memref<16x290xf32, #tpu.memory_space<vmem>>, vector<16x256xf32>
      %c11 = arith.constant 11 : index
      %c0_220 = arith.constant 0 : index
      %c0_221 = arith.constant 0 : index
      %238 = vector.load %arg4[%c11, %c0_220, %c0_221] : memref<36x16x16xf32, #tpu.memory_space<vmem>>, vector<1x16x16xf32>
      %239 = vector.shape_cast %238 : vector<1x16x16xf32> to vector<16x16xf32>
      %cst_222 = arith.constant dense<0.000000e+00> : vector<16x256xf32>
      %240 = tpu.matmul %239, %237, %cst_222 {dimension_numbers = #tpu.dot_dimension_numbers<[1], [0], [0], [1], [0, 0, 1, 1], [], []>} : vector<16x16xf32>, vector<16x256xf32>, vector<16x256xf32> -> vector<16x256xf32>
      %c0_223 = arith.constant 0 : index
      %c18_224 = arith.constant 18 : index
      %241 = vector.load %arg10[%c0_223, %c18_224] : memref<16x290xf32, #tpu.memory_space<vmem>>, vector<16x256xf32>
      %c14 = arith.constant 14 : index
      %c0_225 = arith.constant 0 : index
      %c0_226 = arith.constant 0 : index
      %242 = vector.load %arg4[%c14, %c0_225, %c0_226] : memref<36x16x16xf32, #tpu.memory_space<vmem>>, vector<1x16x16xf32>
      %243 = vector.shape_cast %242 : vector<1x16x16xf32> to vector<16x16xf32>
      %cst_227 = arith.constant dense<0.000000e+00> : vector<16x256xf32>
      %244 = tpu.matmul %243, %241, %cst_227 {dimension_numbers = #tpu.dot_dimension_numbers<[1], [0], [0], [1], [0, 0, 1, 1], [], []>} : vector<16x16xf32>, vector<16x256xf32>, vector<16x256xf32> -> vector<16x256xf32>
      %245 = arith.addf %240, %244 : vector<16x256xf32>
      %c0_228 = arith.constant 0 : index
      %c34_229 = arith.constant 34 : index
      %246 = vector.load %arg10[%c0_228, %c34_229] : memref<16x290xf32, #tpu.memory_space<vmem>>, vector<16x256xf32>
      %c17_230 = arith.constant 17 : index
      %c0_231 = arith.constant 0 : index
      %c0_232 = arith.constant 0 : index
      %247 = vector.load %arg4[%c17_230, %c0_231, %c0_232] : memref<36x16x16xf32, #tpu.memory_space<vmem>>, vector<1x16x16xf32>
      %248 = vector.shape_cast %247 : vector<1x16x16xf32> to vector<16x16xf32>
      %cst_233 = arith.constant dense<0.000000e+00> : vector<16x256xf32>
      %249 = tpu.matmul %248, %246, %cst_233 {dimension_numbers = #tpu.dot_dimension_numbers<[1], [0], [0], [1], [0, 0, 1, 1], [], []>} : vector<16x16xf32>, vector<16x256xf32>, vector<16x256xf32> -> vector<16x256xf32>
      %250 = arith.addf %245, %249 : vector<16x256xf32>
      %251 = vector.broadcast %20 : vector<1x256xf32> to vector<16x256xf32>
      %252 = arith.mulf %222, %251 : vector<16x256xf32>
      %253 = arith.addf %252, %236 : vector<16x256xf32>
      %254 = vector.broadcast %24 : vector<1x256xf32> to vector<16x256xf32>
      %255 = arith.mulf %250, %254 : vector<16x256xf32>
      %256 = arith.addf %253, %255 : vector<16x256xf32>
      %257 = vector.broadcast %207 : vector<16x1xf32> to vector<16x256xf32>
      %258 = arith.addf %256, %257 : vector<16x256xf32>
      %cst_234 = arith.constant 0.000000e+00 : f32
      %259 = vector.broadcast %cst_234 : f32 to vector<16x256xf32>
      %260 = arith.maximumf %258, %259 : vector<16x256xf32>
      %261 = arith.addf %260, %arg12 : vector<16x256xf32>
      %cst_235 = arith.constant 0.000000e+00 : f32
      %262 = vector.broadcast %cst_235 : f32 to vector<16x256xf32>
      %263 = arith.maximumf %261, %262 : vector<16x256xf32>
      %264 = vector.extract_strided_slice %36 {offsets = [0, 3], sizes = [16, 1], strides = [1, 1]} : vector<16x6xf32> to vector<16x1xf32>
      %c0_236 = arith.constant 0 : index
      %c17_237 = arith.constant 17 : index
      %265 = vector.load %arg10[%c0_236, %c17_237] : memref<16x290xf32, #tpu.memory_space<vmem>>, vector<16x256xf32>
      tpu.vector_store %arg10[%c0_236, %c17_237], %263 {strides = array<i32>} : memref<16x290xf32, #tpu.memory_space<vmem>>, vector<16x256xf32>,
      %c0_238 = arith.constant 0 : index
      %c0_239 = arith.constant 0 : index
      %266 = vector.load %arg10[%c0_238, %c0_239] : memref<16x290xf32, #tpu.memory_space<vmem>>, vector<16x256xf32>
      %c18_240 = arith.constant 18 : index
      %c0_241 = arith.constant 0 : index
      %c0_242 = arith.constant 0 : index
      %267 = vector.load %arg4[%c18_240, %c0_241, %c0_242] : memref<36x16x16xf32, #tpu.memory_space<vmem>>, vector<1x16x16xf32>
      %268 = vector.shape_cast %267 : vector<1x16x16xf32> to vector<16x16xf32>
      %cst_243 = arith.constant dense<0.000000e+00> : vector<16x256xf32>
      %269 = tpu.matmul %268, %266, %cst_243 {dimension_numbers = #tpu.dot_dimension_numbers<[1], [0], [0], [1], [0, 0, 1, 1], [], []>} : vector<16x16xf32>, vector<16x256xf32>, vector<16x256xf32> -> vector<16x256xf32>
      %c0_244 = arith.constant 0 : index
      %c16_245 = arith.constant 16 : index
      %270 = vector.load %arg10[%c0_244, %c16_245] : memref<16x290xf32, #tpu.memory_space<vmem>>, vector<16x256xf32>
      %c21 = arith.constant 21 : index
      %c0_246 = arith.constant 0 : index
      %c0_247 = arith.constant 0 : index
      %271 = vector.load %arg4[%c21, %c0_246, %c0_247] : memref<36x16x16xf32, #tpu.memory_space<vmem>>, vector<1x16x16xf32>
      %272 = vector.shape_cast %271 : vector<1x16x16xf32> to vector<16x16xf32>
      %cst_248 = arith.constant dense<0.000000e+00> : vector<16x256xf32>
      %273 = tpu.matmul %272, %270, %cst_248 {dimension_numbers = #tpu.dot_dimension_numbers<[1], [0], [0], [1], [0, 0, 1, 1], [], []>} : vector<16x16xf32>, vector<16x256xf32>, vector<16x256xf32> -> vector<16x256xf32>
      %274 = arith.addf %269, %273 : vector<16x256xf32>
      %c0_249 = arith.constant 0 : index
      %c32_250 = arith.constant 32 : index
      %275 = vector.load %arg10[%c0_249, %c32_250] : memref<16x290xf32, #tpu.memory_space<vmem>>, vector<16x256xf32>
      %c24 = arith.constant 24 : index
      %c0_251 = arith.constant 0 : index
      %c0_252 = arith.constant 0 : index
      %276 = vector.load %arg4[%c24, %c0_251, %c0_252] : memref<36x16x16xf32, #tpu.memory_space<vmem>>, vector<1x16x16xf32>
      %277 = vector.shape_cast %276 : vector<1x16x16xf32> to vector<16x16xf32>
      %cst_253 = arith.constant dense<0.000000e+00> : vector<16x256xf32>
      %278 = tpu.matmul %277, %275, %cst_253 {dimension_numbers = #tpu.dot_dimension_numbers<[1], [0], [0], [1], [0, 0, 1, 1], [], []>} : vector<16x16xf32>, vector<16x256xf32>, vector<16x256xf32> -> vector<16x256xf32>
      %279 = arith.addf %274, %278 : vector<16x256xf32>
      %c0_254 = arith.constant 0 : index
      %c1_255 = arith.constant 1 : index
      %280 = vector.load %arg10[%c0_254, %c1_255] : memref<16x290xf32, #tpu.memory_space<vmem>>, vector<16x256xf32>
      %c19 = arith.constant 19 : index
      %c0_256 = arith.constant 0 : index
      %c0_257 = arith.constant 0 : index
      %281 = vector.load %arg4[%c19, %c0_256, %c0_257] : memref<36x16x16xf32, #tpu.memory_space<vmem>>, vector<1x16x16xf32>
      %282 = vector.shape_cast %281 : vector<1x16x16xf32> to vector<16x16xf32>
      %cst_258 = arith.constant dense<0.000000e+00> : vector<16x256xf32>
      %283 = tpu.matmul %282, %280, %cst_258 {dimension_numbers = #tpu.dot_dimension_numbers<[1], [0], [0], [1], [0, 0, 1, 1], [], []>} : vector<16x16xf32>, vector<16x256xf32>, vector<16x256xf32> -> vector<16x256xf32>
      %c0_259 = arith.constant 0 : index
      %c17_260 = arith.constant 17 : index
      %284 = vector.load %arg10[%c0_259, %c17_260] : memref<16x290xf32, #tpu.memory_space<vmem>>, vector<16x256xf32>
      %c22 = arith.constant 22 : index
      %c0_261 = arith.constant 0 : index
      %c0_262 = arith.constant 0 : index
      %285 = vector.load %arg4[%c22, %c0_261, %c0_262] : memref<36x16x16xf32, #tpu.memory_space<vmem>>, vector<1x16x16xf32>
      %286 = vector.shape_cast %285 : vector<1x16x16xf32> to vector<16x16xf32>
      %cst_263 = arith.constant dense<0.000000e+00> : vector<16x256xf32>
      %287 = tpu.matmul %286, %284, %cst_263 {dimension_numbers = #tpu.dot_dimension_numbers<[1], [0], [0], [1], [0, 0, 1, 1], [], []>} : vector<16x16xf32>, vector<16x256xf32>, vector<16x256xf32> -> vector<16x256xf32>
      %288 = arith.addf %283, %287 : vector<16x256xf32>
      %c0_264 = arith.constant 0 : index
      %c33_265 = arith.constant 33 : index
      %289 = vector.load %arg10[%c0_264, %c33_265] : memref<16x290xf32, #tpu.memory_space<vmem>>, vector<16x256xf32>
      %c25 = arith.constant 25 : index
      %c0_266 = arith.constant 0 : index
      %c0_267 = arith.constant 0 : index
      %290 = vector.load %arg4[%c25, %c0_266, %c0_267] : memref<36x16x16xf32, #tpu.memory_space<vmem>>, vector<1x16x16xf32>
      %291 = vector.shape_cast %290 : vector<1x16x16xf32> to vector<16x16xf32>
      %cst_268 = arith.constant dense<0.000000e+00> : vector<16x256xf32>
      %292 = tpu.matmul %291, %289, %cst_268 {dimension_numbers = #tpu.dot_dimension_numbers<[1], [0], [0], [1], [0, 0, 1, 1], [], []>} : vector<16x16xf32>, vector<16x256xf32>, vector<16x256xf32> -> vector<16x256xf32>
      %293 = arith.addf %288, %292 : vector<16x256xf32>
      %c0_269 = arith.constant 0 : index
      %c2_270 = arith.constant 2 : index
      %294 = vector.load %arg10[%c0_269, %c2_270] : memref<16x290xf32, #tpu.memory_space<vmem>>, vector<16x256xf32>
      %c20 = arith.constant 20 : index
      %c0_271 = arith.constant 0 : index
      %c0_272 = arith.constant 0 : index
      %295 = vector.load %arg4[%c20, %c0_271, %c0_272] : memref<36x16x16xf32, #tpu.memory_space<vmem>>, vector<1x16x16xf32>
      %296 = vector.shape_cast %295 : vector<1x16x16xf32> to vector<16x16xf32>
      %cst_273 = arith.constant dense<0.000000e+00> : vector<16x256xf32>
      %297 = tpu.matmul %296, %294, %cst_273 {dimension_numbers = #tpu.dot_dimension_numbers<[1], [0], [0], [1], [0, 0, 1, 1], [], []>} : vector<16x16xf32>, vector<16x256xf32>, vector<16x256xf32> -> vector<16x256xf32>
      %c0_274 = arith.constant 0 : index
      %c18_275 = arith.constant 18 : index
      %298 = vector.load %arg10[%c0_274, %c18_275] : memref<16x290xf32, #tpu.memory_space<vmem>>, vector<16x256xf32>
      %c23 = arith.constant 23 : index
      %c0_276 = arith.constant 0 : index
      %c0_277 = arith.constant 0 : index
      %299 = vector.load %arg4[%c23, %c0_276, %c0_277] : memref<36x16x16xf32, #tpu.memory_space<vmem>>, vector<1x16x16xf32>
      %300 = vector.shape_cast %299 : vector<1x16x16xf32> to vector<16x16xf32>
      %cst_278 = arith.constant dense<0.000000e+00> : vector<16x256xf32>
      %301 = tpu.matmul %300, %298, %cst_278 {dimension_numbers = #tpu.dot_dimension_numbers<[1], [0], [0], [1], [0, 0, 1, 1], [], []>} : vector<16x16xf32>, vector<16x256xf32>, vector<16x256xf32> -> vector<16x256xf32>
      %302 = arith.addf %297, %301 : vector<16x256xf32>
      %c0_279 = arith.constant 0 : index
      %c34_280 = arith.constant 34 : index
      %303 = vector.load %arg10[%c0_279, %c34_280] : memref<16x290xf32, #tpu.memory_space<vmem>>, vector<16x256xf32>
      %c26 = arith.constant 26 : index
      %c0_281 = arith.constant 0 : index
      %c0_282 = arith.constant 0 : index
      %304 = vector.load %arg4[%c26, %c0_281, %c0_282] : memref<36x16x16xf32, #tpu.memory_space<vmem>>, vector<1x16x16xf32>
      %305 = vector.shape_cast %304 : vector<1x16x16xf32> to vector<16x16xf32>
      %cst_283 = arith.constant dense<0.000000e+00> : vector<16x256xf32>
      %306 = tpu.matmul %305, %303, %cst_283 {dimension_numbers = #tpu.dot_dimension_numbers<[1], [0], [0], [1], [0, 0, 1, 1], [], []>} : vector<16x16xf32>, vector<16x256xf32>, vector<16x256xf32> -> vector<16x256xf32>
      %307 = arith.addf %302, %306 : vector<16x256xf32>
      %308 = vector.broadcast %20 : vector<1x256xf32> to vector<16x256xf32>
      %309 = arith.mulf %279, %308 : vector<16x256xf32>
      %310 = arith.addf %309, %293 : vector<16x256xf32>
      %311 = vector.broadcast %24 : vector<1x256xf32> to vector<16x256xf32>
      %312 = arith.mulf %307, %311 : vector<16x256xf32>
      %313 = arith.addf %310, %312 : vector<16x256xf32>
      %314 = vector.broadcast %264 : vector<16x1xf32> to vector<16x256xf32>
      %315 = arith.addf %313, %314 : vector<16x256xf32>
      %cst_284 = arith.constant 0.000000e+00 : f32
      %316 = vector.broadcast %cst_284 : f32 to vector<16x256xf32>
      %317 = arith.maximumf %315, %316 : vector<16x256xf32>
      %318 = vector.extract_strided_slice %36 {offsets = [0, 4], sizes = [16, 1], strides = [1, 1]} : vector<16x6xf32> to vector<16x1xf32>
      %c0_285 = arith.constant 0 : index
      %c17_286 = arith.constant 17 : index
      %319 = vector.load %arg10[%c0_285, %c17_286] : memref<16x290xf32, #tpu.memory_space<vmem>>, vector<16x256xf32>
      tpu.vector_store %arg10[%c0_285, %c17_286], %317 {strides = array<i32>} : memref<16x290xf32, #tpu.memory_space<vmem>>, vector<16x256xf32>,
      %c0_287 = arith.constant 0 : index
      %c0_288 = arith.constant 0 : index
      %320 = vector.load %arg10[%c0_287, %c0_288] : memref<16x290xf32, #tpu.memory_space<vmem>>, vector<16x256xf32>
      %c27 = arith.constant 27 : index
      %c0_289 = arith.constant 0 : index
      %c0_290 = arith.constant 0 : index
      %321 = vector.load %arg4[%c27, %c0_289, %c0_290] : memref<36x16x16xf32, #tpu.memory_space<vmem>>, vector<1x16x16xf32>
      %322 = vector.shape_cast %321 : vector<1x16x16xf32> to vector<16x16xf32>
      %cst_291 = arith.constant dense<0.000000e+00> : vector<16x256xf32>
      %323 = tpu.matmul %322, %320, %cst_291 {dimension_numbers = #tpu.dot_dimension_numbers<[1], [0], [0], [1], [0, 0, 1, 1], [], []>} : vector<16x16xf32>, vector<16x256xf32>, vector<16x256xf32> -> vector<16x256xf32>
      %c0_292 = arith.constant 0 : index
      %c16_293 = arith.constant 16 : index
      %324 = vector.load %arg10[%c0_292, %c16_293] : memref<16x290xf32, #tpu.memory_space<vmem>>, vector<16x256xf32>
      %c30 = arith.constant 30 : index
      %c0_294 = arith.constant 0 : index
      %c0_295 = arith.constant 0 : index
      %325 = vector.load %arg4[%c30, %c0_294, %c0_295] : memref<36x16x16xf32, #tpu.memory_space<vmem>>, vector<1x16x16xf32>
      %326 = vector.shape_cast %325 : vector<1x16x16xf32> to vector<16x16xf32>
      %cst_296 = arith.constant dense<0.000000e+00> : vector<16x256xf32>
      %327 = tpu.matmul %326, %324, %cst_296 {dimension_numbers = #tpu.dot_dimension_numbers<[1], [0], [0], [1], [0, 0, 1, 1], [], []>} : vector<16x16xf32>, vector<16x256xf32>, vector<16x256xf32> -> vector<16x256xf32>
      %328 = arith.addf %323, %327 : vector<16x256xf32>
      %c0_297 = arith.constant 0 : index
      %c32_298 = arith.constant 32 : index
      %329 = vector.load %arg10[%c0_297, %c32_298] : memref<16x290xf32, #tpu.memory_space<vmem>>, vector<16x256xf32>
      %c33_299 = arith.constant 33 : index
      %c0_300 = arith.constant 0 : index
      %c0_301 = arith.constant 0 : index
      %330 = vector.load %arg4[%c33_299, %c0_300, %c0_301] : memref<36x16x16xf32, #tpu.memory_space<vmem>>, vector<1x16x16xf32>
      %331 = vector.shape_cast %330 : vector<1x16x16xf32> to vector<16x16xf32>
      %cst_302 = arith.constant dense<0.000000e+00> : vector<16x256xf32>
      %332 = tpu.matmul %331, %329, %cst_302 {dimension_numbers = #tpu.dot_dimension_numbers<[1], [0], [0], [1], [0, 0, 1, 1], [], []>} : vector<16x16xf32>, vector<16x256xf32>, vector<16x256xf32> -> vector<16x256xf32>
      %333 = arith.addf %328, %332 : vector<16x256xf32>
      %c0_303 = arith.constant 0 : index
      %c1_304 = arith.constant 1 : index
      %334 = vector.load %arg10[%c0_303, %c1_304] : memref<16x290xf32, #tpu.memory_space<vmem>>, vector<16x256xf32>
      %c28 = arith.constant 28 : index
      %c0_305 = arith.constant 0 : index
      %c0_306 = arith.constant 0 : index
      %335 = vector.load %arg4[%c28, %c0_305, %c0_306] : memref<36x16x16xf32, #tpu.memory_space<vmem>>, vector<1x16x16xf32>
      %336 = vector.shape_cast %335 : vector<1x16x16xf32> to vector<16x16xf32>
      %cst_307 = arith.constant dense<0.000000e+00> : vector<16x256xf32>
      %337 = tpu.matmul %336, %334, %cst_307 {dimension_numbers = #tpu.dot_dimension_numbers<[1], [0], [0], [1], [0, 0, 1, 1], [], []>} : vector<16x16xf32>, vector<16x256xf32>, vector<16x256xf32> -> vector<16x256xf32>
      %c0_308 = arith.constant 0 : index
      %c17_309 = arith.constant 17 : index
      %338 = vector.load %arg10[%c0_308, %c17_309] : memref<16x290xf32, #tpu.memory_space<vmem>>, vector<16x256xf32>
      %c31 = arith.constant 31 : index
      %c0_310 = arith.constant 0 : index
      %c0_311 = arith.constant 0 : index
      %339 = vector.load %arg4[%c31, %c0_310, %c0_311] : memref<36x16x16xf32, #tpu.memory_space<vmem>>, vector<1x16x16xf32>
      %340 = vector.shape_cast %339 : vector<1x16x16xf32> to vector<16x16xf32>
      %cst_312 = arith.constant dense<0.000000e+00> : vector<16x256xf32>
      %341 = tpu.matmul %340, %338, %cst_312 {dimension_numbers = #tpu.dot_dimension_numbers<[1], [0], [0], [1], [0, 0, 1, 1], [], []>} : vector<16x16xf32>, vector<16x256xf32>, vector<16x256xf32> -> vector<16x256xf32>
      %342 = arith.addf %337, %341 : vector<16x256xf32>
      %c0_313 = arith.constant 0 : index
      %c33_314 = arith.constant 33 : index
      %343 = vector.load %arg10[%c0_313, %c33_314] : memref<16x290xf32, #tpu.memory_space<vmem>>, vector<16x256xf32>
      %c34_315 = arith.constant 34 : index
      %c0_316 = arith.constant 0 : index
      %c0_317 = arith.constant 0 : index
      %344 = vector.load %arg4[%c34_315, %c0_316, %c0_317] : memref<36x16x16xf32, #tpu.memory_space<vmem>>, vector<1x16x16xf32>
      %345 = vector.shape_cast %344 : vector<1x16x16xf32> to vector<16x16xf32>
      %cst_318 = arith.constant dense<0.000000e+00> : vector<16x256xf32>
      %346 = tpu.matmul %345, %343, %cst_318 {dimension_numbers = #tpu.dot_dimension_numbers<[1], [0], [0], [1], [0, 0, 1, 1], [], []>} : vector<16x16xf32>, vector<16x256xf32>, vector<16x256xf32> -> vector<16x256xf32>
      %347 = arith.addf %342, %346 : vector<16x256xf32>
      %c0_319 = arith.constant 0 : index
      %c2_320 = arith.constant 2 : index
      %348 = vector.load %arg10[%c0_319, %c2_320] : memref<16x290xf32, #tpu.memory_space<vmem>>, vector<16x256xf32>
      %c29 = arith.constant 29 : index
      %c0_321 = arith.constant 0 : index
      %c0_322 = arith.constant 0 : index
      %349 = vector.load %arg4[%c29, %c0_321, %c0_322] : memref<36x16x16xf32, #tpu.memory_space<vmem>>, vector<1x16x16xf32>
      %350 = vector.shape_cast %349 : vector<1x16x16xf32> to vector<16x16xf32>
      %cst_323 = arith.constant dense<0.000000e+00> : vector<16x256xf32>
      %351 = tpu.matmul %350, %348, %cst_323 {dimension_numbers = #tpu.dot_dimension_numbers<[1], [0], [0], [1], [0, 0, 1, 1], [], []>} : vector<16x16xf32>, vector<16x256xf32>, vector<16x256xf32> -> vector<16x256xf32>
      %c0_324 = arith.constant 0 : index
      %c18_325 = arith.constant 18 : index
      %352 = vector.load %arg10[%c0_324, %c18_325] : memref<16x290xf32, #tpu.memory_space<vmem>>, vector<16x256xf32>
      %c32_326 = arith.constant 32 : index
      %c0_327 = arith.constant 0 : index
      %c0_328 = arith.constant 0 : index
      %353 = vector.load %arg4[%c32_326, %c0_327, %c0_328] : memref<36x16x16xf32, #tpu.memory_space<vmem>>, vector<1x16x16xf32>
      %354 = vector.shape_cast %353 : vector<1x16x16xf32> to vector<16x16xf32>
      %cst_329 = arith.constant dense<0.000000e+00> : vector<16x256xf32>
      %355 = tpu.matmul %354, %352, %cst_329 {dimension_numbers = #tpu.dot_dimension_numbers<[1], [0], [0], [1], [0, 0, 1, 1], [], []>} : vector<16x16xf32>, vector<16x256xf32>, vector<16x256xf32> -> vector<16x256xf32>
      %356 = arith.addf %351, %355 : vector<16x256xf32>
      %c0_330 = arith.constant 0 : index
      %c34_331 = arith.constant 34 : index
      %357 = vector.load %arg10[%c0_330, %c34_331] : memref<16x290xf32, #tpu.memory_space<vmem>>, vector<16x256xf32>
      %c35 = arith.constant 35 : index
      %c0_332 = arith.constant 0 : index
      %c0_333 = arith.constant 0 : index
      %358 = vector.load %arg4[%c35, %c0_332, %c0_333] : memref<36x16x16xf32, #tpu.memory_space<vmem>>, vector<1x16x16xf32>
      %359 = vector.shape_cast %358 : vector<1x16x16xf32> to vector<16x16xf32>
      %cst_334 = arith.constant dense<0.000000e+00> : vector<16x256xf32>
      %360 = tpu.matmul %359, %357, %cst_334 {dimension_numbers = #tpu.dot_dimension_numbers<[1], [0], [0], [1], [0, 0, 1, 1], [], []>} : vector<16x16xf32>, vector<16x256xf32>, vector<16x256xf32> -> vector<16x256xf32>
      %361 = arith.addf %356, %360 : vector<16x256xf32>
      %362 = vector.broadcast %20 : vector<1x256xf32> to vector<16x256xf32>
      %363 = arith.mulf %333, %362 : vector<16x256xf32>
      %364 = arith.addf %363, %347 : vector<16x256xf32>
      %365 = vector.broadcast %24 : vector<1x256xf32> to vector<16x256xf32>
      %366 = arith.mulf %361, %365 : vector<16x256xf32>
      %367 = arith.addf %364, %366 : vector<16x256xf32>
      %368 = vector.broadcast %318 : vector<16x1xf32> to vector<16x256xf32>
      %369 = arith.addf %367, %368 : vector<16x256xf32>
      %cst_335 = arith.constant 0.000000e+00 : f32
      %370 = vector.broadcast %cst_335 : f32 to vector<16x256xf32>
      %371 = arith.maximumf %369, %370 : vector<16x256xf32>
      %372 = arith.addf %371, %263 : vector<16x256xf32>
      %cst_336 = arith.constant 0.000000e+00 : f32
      %373 = vector.broadcast %cst_336 : f32 to vector<16x256xf32>
      %374 = arith.maximumf %372, %373 : vector<16x256xf32>
      scf.yield %374 : vector<16x256xf32>
    }
    %95 = vector.extract_strided_slice %36 {offsets = [0, 5], sizes = [8, 1], strides = [1, 1]} : vector<16x6xf32> to vector<8x1xf32>
    %c0_66 = arith.constant 0 : index
    %c17_67 = arith.constant 17 : index
    %96 = vector.load %arg10[%c0_66, %c17_67] : memref<16x290xf32, #tpu.memory_space<vmem>>, vector<16x256xf32>
    tpu.vector_store %arg10[%c0_66, %c17_67], %94 {strides = array<i32>} : memref<16x290xf32, #tpu.memory_space<vmem>>, vector<16x256xf32>,
    %c0_68 = arith.constant 0 : index
    %c0_69 = arith.constant 0 : index
    %97 = vector.load %arg10[%c0_68, %c0_69] : memref<16x290xf32, #tpu.memory_space<vmem>>, vector<16x256xf32>
    %c0_70 = arith.constant 0 : index
    %c0_71 = arith.constant 0 : index
    %c0_72 = arith.constant 0 : index
    %98 = vector.load %arg5[%c0_70, %c0_71, %c0_72] : memref<9x8x16xf32, #tpu.memory_space<vmem>>, vector<1x8x16xf32>
    %99 = vector.shape_cast %98 : vector<1x8x16xf32> to vector<8x16xf32>
    %cst_73 = arith.constant dense<0.000000e+00> : vector<8x256xf32>
    %100 = tpu.matmul %99, %97, %cst_73 {dimension_numbers = #tpu.dot_dimension_numbers<[1], [0], [0], [1], [0, 0, 1, 1], [], []>} : vector<8x16xf32>, vector<16x256xf32>, vector<8x256xf32> -> vector<8x256xf32>
    %c0_74 = arith.constant 0 : index
    %c16_75 = arith.constant 16 : index
    %101 = vector.load %arg10[%c0_74, %c16_75] : memref<16x290xf32, #tpu.memory_space<vmem>>, vector<16x256xf32>
    %c3_76 = arith.constant 3 : index
    %c0_77 = arith.constant 0 : index
    %c0_78 = arith.constant 0 : index
    %102 = vector.load %arg5[%c3_76, %c0_77, %c0_78] : memref<9x8x16xf32, #tpu.memory_space<vmem>>, vector<1x8x16xf32>
    %103 = vector.shape_cast %102 : vector<1x8x16xf32> to vector<8x16xf32>
    %cst_79 = arith.constant dense<0.000000e+00> : vector<8x256xf32>
    %104 = tpu.matmul %103, %101, %cst_79 {dimension_numbers = #tpu.dot_dimension_numbers<[1], [0], [0], [1], [0, 0, 1, 1], [], []>} : vector<8x16xf32>, vector<16x256xf32>, vector<8x256xf32> -> vector<8x256xf32>
    %105 = arith.addf %100, %104 : vector<8x256xf32>
    %c0_80 = arith.constant 0 : index
    %c32_81 = arith.constant 32 : index
    %106 = vector.load %arg10[%c0_80, %c32_81] : memref<16x290xf32, #tpu.memory_space<vmem>>, vector<16x256xf32>
    %c6_82 = arith.constant 6 : index
    %c0_83 = arith.constant 0 : index
    %c0_84 = arith.constant 0 : index
    %107 = vector.load %arg5[%c6_82, %c0_83, %c0_84] : memref<9x8x16xf32, #tpu.memory_space<vmem>>, vector<1x8x16xf32>
    %108 = vector.shape_cast %107 : vector<1x8x16xf32> to vector<8x16xf32>
    %cst_85 = arith.constant dense<0.000000e+00> : vector<8x256xf32>
    %109 = tpu.matmul %108, %106, %cst_85 {dimension_numbers = #tpu.dot_dimension_numbers<[1], [0], [0], [1], [0, 0, 1, 1], [], []>} : vector<8x16xf32>, vector<16x256xf32>, vector<8x256xf32> -> vector<8x256xf32>
    %110 = arith.addf %105, %109 : vector<8x256xf32>
    %c0_86 = arith.constant 0 : index
    %c1_87 = arith.constant 1 : index
    %111 = vector.load %arg10[%c0_86, %c1_87] : memref<16x290xf32, #tpu.memory_space<vmem>>, vector<16x256xf32>
    %c1_88 = arith.constant 1 : index
    %c0_89 = arith.constant 0 : index
    %c0_90 = arith.constant 0 : index
    %112 = vector.load %arg5[%c1_88, %c0_89, %c0_90] : memref<9x8x16xf32, #tpu.memory_space<vmem>>, vector<1x8x16xf32>
    %113 = vector.shape_cast %112 : vector<1x8x16xf32> to vector<8x16xf32>
    %cst_91 = arith.constant dense<0.000000e+00> : vector<8x256xf32>
    %114 = tpu.matmul %113, %111, %cst_91 {dimension_numbers = #tpu.dot_dimension_numbers<[1], [0], [0], [1], [0, 0, 1, 1], [], []>} : vector<8x16xf32>, vector<16x256xf32>, vector<8x256xf32> -> vector<8x256xf32>
    %c0_92 = arith.constant 0 : index
    %c17_93 = arith.constant 17 : index
    %115 = vector.load %arg10[%c0_92, %c17_93] : memref<16x290xf32, #tpu.memory_space<vmem>>, vector<16x256xf32>
    %c4_94 = arith.constant 4 : index
    %c0_95 = arith.constant 0 : index
    %c0_96 = arith.constant 0 : index
    %116 = vector.load %arg5[%c4_94, %c0_95, %c0_96] : memref<9x8x16xf32, #tpu.memory_space<vmem>>, vector<1x8x16xf32>
    %117 = vector.shape_cast %116 : vector<1x8x16xf32> to vector<8x16xf32>
    %cst_97 = arith.constant dense<0.000000e+00> : vector<8x256xf32>
    %118 = tpu.matmul %117, %115, %cst_97 {dimension_numbers = #tpu.dot_dimension_numbers<[1], [0], [0], [1], [0, 0, 1, 1], [], []>} : vector<8x16xf32>, vector<16x256xf32>, vector<8x256xf32> -> vector<8x256xf32>
    %119 = arith.addf %114, %118 : vector<8x256xf32>
    %c0_98 = arith.constant 0 : index
    %c33_99 = arith.constant 33 : index
    %120 = vector.load %arg10[%c0_98, %c33_99] : memref<16x290xf32, #tpu.memory_space<vmem>>, vector<16x256xf32>
    %c7_100 = arith.constant 7 : index
    %c0_101 = arith.constant 0 : index
    %c0_102 = arith.constant 0 : index
    %121 = vector.load %arg5[%c7_100, %c0_101, %c0_102] : memref<9x8x16xf32, #tpu.memory_space<vmem>>, vector<1x8x16xf32>
    %122 = vector.shape_cast %121 : vector<1x8x16xf32> to vector<8x16xf32>
    %cst_103 = arith.constant dense<0.000000e+00> : vector<8x256xf32>
    %123 = tpu.matmul %122, %120, %cst_103 {dimension_numbers = #tpu.dot_dimension_numbers<[1], [0], [0], [1], [0, 0, 1, 1], [], []>} : vector<8x16xf32>, vector<16x256xf32>, vector<8x256xf32> -> vector<8x256xf32>
    %124 = arith.addf %119, %123 : vector<8x256xf32>
    %c0_104 = arith.constant 0 : index
    %c2_105 = arith.constant 2 : index
    %125 = vector.load %arg10[%c0_104, %c2_105] : memref<16x290xf32, #tpu.memory_space<vmem>>, vector<16x256xf32>
    %c2_106 = arith.constant 2 : index
    %c0_107 = arith.constant 0 : index
    %c0_108 = arith.constant 0 : index
    %126 = vector.load %arg5[%c2_106, %c0_107, %c0_108] : memref<9x8x16xf32, #tpu.memory_space<vmem>>, vector<1x8x16xf32>
    %127 = vector.shape_cast %126 : vector<1x8x16xf32> to vector<8x16xf32>
    %cst_109 = arith.constant dense<0.000000e+00> : vector<8x256xf32>
    %128 = tpu.matmul %127, %125, %cst_109 {dimension_numbers = #tpu.dot_dimension_numbers<[1], [0], [0], [1], [0, 0, 1, 1], [], []>} : vector<8x16xf32>, vector<16x256xf32>, vector<8x256xf32> -> vector<8x256xf32>
    %c0_110 = arith.constant 0 : index
    %c18_111 = arith.constant 18 : index
    %129 = vector.load %arg10[%c0_110, %c18_111] : memref<16x290xf32, #tpu.memory_space<vmem>>, vector<16x256xf32>
    %c5_112 = arith.constant 5 : index
    %c0_113 = arith.constant 0 : index
    %c0_114 = arith.constant 0 : index
    %130 = vector.load %arg5[%c5_112, %c0_113, %c0_114] : memref<9x8x16xf32, #tpu.memory_space<vmem>>, vector<1x8x16xf32>
    %131 = vector.shape_cast %130 : vector<1x8x16xf32> to vector<8x16xf32>
    %cst_115 = arith.constant dense<0.000000e+00> : vector<8x256xf32>
    %132 = tpu.matmul %131, %129, %cst_115 {dimension_numbers = #tpu.dot_dimension_numbers<[1], [0], [0], [1], [0, 0, 1, 1], [], []>} : vector<8x16xf32>, vector<16x256xf32>, vector<8x256xf32> -> vector<8x256xf32>
    %133 = arith.addf %128, %132 : vector<8x256xf32>
    %c0_116 = arith.constant 0 : index
    %c34_117 = arith.constant 34 : index
    %134 = vector.load %arg10[%c0_116, %c34_117] : memref<16x290xf32, #tpu.memory_space<vmem>>, vector<16x256xf32>
    %c8_118 = arith.constant 8 : index
    %c0_119 = arith.constant 0 : index
    %c0_120 = arith.constant 0 : index
    %135 = vector.load %arg5[%c8_118, %c0_119, %c0_120] : memref<9x8x16xf32, #tpu.memory_space<vmem>>, vector<1x8x16xf32>
    %136 = vector.shape_cast %135 : vector<1x8x16xf32> to vector<8x16xf32>
    %cst_121 = arith.constant dense<0.000000e+00> : vector<8x256xf32>
    %137 = tpu.matmul %136, %134, %cst_121 {dimension_numbers = #tpu.dot_dimension_numbers<[1], [0], [0], [1], [0, 0, 1, 1], [], []>} : vector<8x16xf32>, vector<16x256xf32>, vector<8x256xf32> -> vector<8x256xf32>
    %138 = arith.addf %133, %137 : vector<8x256xf32>
    %139 = vector.broadcast %20 : vector<1x256xf32> to vector<8x256xf32>
    %140 = arith.mulf %110, %139 : vector<8x256xf32>
    %141 = arith.addf %140, %124 : vector<8x256xf32>
    %142 = vector.broadcast %24 : vector<1x256xf32> to vector<8x256xf32>
    %143 = arith.mulf %138, %142 : vector<8x256xf32>
    %144 = arith.addf %141, %143 : vector<8x256xf32>
    %145 = vector.broadcast %95 : vector<8x1xf32> to vector<8x256xf32>
    %146 = arith.addf %144, %145 : vector<8x256xf32>
    %147 = vector.extract_strided_slice %146 {offsets = [0, 0], sizes = [3, 256], strides = [1, 1]} : vector<8x256xf32> to vector<3x256xf32>
    %148 = arith.addf %147, %35 : vector<3x256xf32>
    %c0_122 = arith.constant 0 : index
    %c0_123 = arith.constant 0 : index
    %c0_124 = arith.constant 0 : index
    %c0_125 = arith.constant 0 : index
    %149 = vector.load %arg7[%c0_122, %c0_123, %c0_124, %c0_125] : memref<1x1x3x256xf32, #tpu.memory_space<vmem>>, vector<1x1x3x256xf32>
    %150 = vector.shape_cast %149 : vector<1x1x3x256xf32> to vector<3x256xf32>
    %151 = vector.shape_cast %148 : vector<3x256xf32> to vector<1x1x3x256xf32>
    tpu.vector_store %arg7[%c0_122, %c0_123, %c0_124, %c0_125], %151 {strides = array<i32>} : memref<1x1x3x256xf32, #tpu.memory_space<vmem>>, vector<1x1x3x256xf32>,
    %c0_126 = arith.constant 0 : index
    %c0_127 = arith.constant 0 : index
    %152 = vector.load %arg8[%c0_126, %c0_127] : memref<3x256xf32, #tpu.memory_space<vmem>>, vector<3x256xf32>
    tpu.vector_store %arg8[%c0_126, %c0_127], %148 {strides = array<i32>} : memref<3x256xf32, #tpu.memory_space<vmem>>, vector<3x256xf32>,
    return
  }
  func.func @transform_0(%arg0: i32, %arg1: i32) -> (i32, i32, i32) {
    %c0_i32 = arith.constant 0 : i32
    %c0_i32_0 = arith.constant 0 : i32
    %c0_i32_1 = arith.constant 0 : i32
    return %arg0, %c0_i32, %c0_i32_0 : i32, i32, i32
  }
  func.func @transform_1(%arg0: i32, %arg1: i32) -> (i32, i32, i32) {
    %c0_i32 = arith.constant 0 : i32
    %c0_i32_0 = arith.constant 0 : i32
    %c0_i32_1 = arith.constant 0 : i32
    %c0_i32_2 = arith.constant 0 : i32
    return %c0_i32, %c0_i32_0, %c0_i32_1 : i32, i32, i32
  }
  func.func @transform_2(%arg0: i32, %arg1: i32) -> (i32, i32, i32) {
    %c0_i32 = arith.constant 0 : i32
    %c0_i32_0 = arith.constant 0 : i32
    %c0_i32_1 = arith.constant 0 : i32
    %c0_i32_2 = arith.constant 0 : i32
    return %c0_i32, %c0_i32_0, %c0_i32_1 : i32, i32, i32
  }
  func.func @transform_3(%arg0: i32, %arg1: i32) -> (i32, i32, i32) {
    %c0_i32 = arith.constant 0 : i32
    %c0_i32_0 = arith.constant 0 : i32
    %c0_i32_1 = arith.constant 0 : i32
    %c0_i32_2 = arith.constant 0 : i32
    return %c0_i32, %c0_i32_0, %c0_i32_1 : i32, i32, i32
  }
  func.func @transform_4(%arg0: i32, %arg1: i32) -> (i32, i32) {
    %c0_i32 = arith.constant 0 : i32
    %c0_i32_0 = arith.constant 0 : i32
    %c0_i32_1 = arith.constant 0 : i32
    return %c0_i32, %c0_i32_0 : i32, i32
  }
  func.func @transform_5(%arg0: i32, %arg1: i32) -> (i32, i32, i32, i32) {
    %c0_i32 = arith.constant 0 : i32
    %c0_i32_0 = arith.constant 0 : i32
    %c0_i32_1 = arith.constant 0 : i32
    return %arg0, %arg1, %c0_i32, %c0_i32_0 : i32, i32, i32, i32
  }
}

</mosaic_0001>

<llo_original>
// kernel: drn_forward.1
$region0: #{drn_forward.1}
  #allocation0 [shape = 'u32[]', space=smem, size = 0x4, offset = 0x4, fixed_abs, tag = 'smem constant byte address 0x4 - core index']
  #allocation1 [shape = 'u32[144,128]{1,0:T(1,128)}', space=vmem, size = 0x12000, scoped, tag = 'internal scratch']
  #allocation2 [shape = 'f32[3,256]{1,0:T(4,128)}', space=vmem, size = 0x1000, scoped, tag = 'scratch operand']
  #allocation3 [shape = 'f32[8,290]{1,0:T(8,128)}', space=vmem, size = 0x3000, scoped, tag = 'scratch operand']
  #allocation4 [shape = 'f32[16,290]{1,0:T(8,128)}', space=vmem, size = 0x6000, scoped, tag = 'scratch operand']
  %s0 = inlined_call_operand.vmem [shape: f32[2,3,256], index: 0, kind: input, shape index: {}]
  %s1 = inlined_call_operand.vmem [shape: f32[9,16,8], index: 1, kind: input, shape index: {}]
  %s2 = inlined_call_operand.vmem [shape: f32[36,16,16], index: 2, kind: input, shape index: {}]
  %s3 = inlined_call_operand.vmem [shape: f32[9,8,16], index: 3, kind: input, shape index: {}]
  %s4 = inlined_call_operand.vmem [shape: f32[16,6], index: 4, kind: input, shape index: {}]
  %s5 = inlined_call_operand.vmem [shape: f32[2,3,3,256], index: 5, kind: output, shape index: {}]
  %s6 = sld [smem:[#allocation0]]
  $region64: #{drn_forward.1} parent=0
    _
  %s8 = ssub.s32 1, %s6
  %s9 = scalar_select 0, %s8, %s6
  loop: start=0, step=1, limit=8
  $region2: #{drn_forward.1} parent=0 // loop_pre_header
    _
  $region3: #{drn_forward.1} parent=0 // loop_header
    %s11 = sphi 0, %s15
    %p12 = scmp.ge.s32.totalorder %s11, 8
    %s18 = sphi 0, %s30
    %s19 = sphi 0, %s26
    %s20 = sphi 0, %s18
    %s21 = sphi 0, %s19
    %s22 = sphi 0, %s20
    %s23 = sphi 0, %s21
    %s33 = sphi 0, %s35
    %s36 = sphi 0, %s33
    %s37 = sphi 0, %s36
    %s53 = sphi 0, %s37
    %s57 = sphi 0, %s57
    %s59 = sphi 0, %s57
    %s60 = sphi 0, %s59
    %s74 = sphi 0, %s60
    %s78 = sphi 0, %s78
    %s80 = sphi 0, %s78
    %s81 = sphi 0, %s80
    %s95 = sphi 0, %s81
    %s99 = sphi 0, %s99
    %s101 = sphi 0, %s99
    %s102 = sphi 0, %s101
    %s116 = sphi 0, %s102
    %s120 = sphi 0, %s120
    %s122 = sphi 0, %s120
    %s123 = sphi 0, %s122
    %s137 = sphi 0, %s123
    %s145 = sphi 0, %s147
    %s148 = sphi 0, %s145
    %s149 = sphi 0, %s148
    %s165 = sphi 0, %s149
  $region4: #{drn_forward.1} parent=0 // loop_header_branch
    %14 = sbr.rel (%p12) target = $region8
  $region5: #{drn_forward.1} parent=0 // loop_body
    %s16 = ssub.s32 %s11, 1
    %s17 = ssub.s32 %s11, 2
    %s24 = sadd.s32 1, %s19
    %p25 = scmp.ge.s32.totalorder %s24, 3
    %s26 = scalar_select %p25, 0, %s24
    %s27 = sadd.s32 1, %s18
    %s28 = scalar_select %p25, %s27, %s18
    %p29 = scmp.ge.s32.totalorder %s28, 2
    %s30 = scalar_select %p29, 0, %s28
    %s31 = ssub.s32 %s18, %s30
    %p32 = scmp.eq.s32.totalorder %s31, 0
    %s34 = sadd.s32 %s33, 1
    %s35 = scalar_select %p32, %s33, %s34
    %p38 = pneg %p32
    %p39 = scmp.eq.s32.totalorder %s11, 5
    %p40 = por %p38, %p39
    %p41 = scmp.ne.s32.totalorder %s33, %s36
    %p42 = scmp.eq.s32.totalorder %s11, 0
    %p43 = por %p41, %p42
    %p44 = scmp.ne.s32.totalorder %s33, %s36
    %p45 = scmp.eq.s32.totalorder %s16, 5
    %p46 = por %p44, %p45
    %p47 = scmp.ne.s32.totalorder %s36, %s37
    %p48 = scmp.eq.s32.totalorder %s16, 0
    %p49 = por %p47, %p48
    %p50 = scmp.ne.s32.totalorder %s36, %s37
    %p51 = scmp.eq.s32.totalorder %s17, 5
    %p52 = por %p50, %p51
    %p54 = scmp.ne.s32.totalorder %s37, %s53
    %p55 = scmp.eq.s32.totalorder %s17, 0
    %p56 = por %p54, %p55
    %s58 = sadd.s32 %s57, 1
    %p61 = scmp.eq.s32.totalorder %s11, 5
    %p62 = scmp.ne.s32.totalorder %s57, %s59
    %p63 = scmp.eq.s32.totalorder %s11, 0
    %p64 = por %p62, %p63
    %p65 = scmp.ne.s32.totalorder %s57, %s59
    %p66 = scmp.eq.s32.totalorder %s16, 5
    %p67 = por %p65, %p66
    %p68 = scmp.ne.s32.totalorder %s59, %s60
    %p69 = scmp.eq.s32.totalorder %s16, 0
    %p70 = por %p68, %p69
    %p71 = scmp.ne.s32.totalorder %s59, %s60
    %p72 = scmp.eq.s32.totalorder %s17, 5
    %p73 = por %p71, %p72
    %p75 = scmp.ne.s32.totalorder %s60, %s74
    %p76 = scmp.eq.s32.totalorder %s17, 0
    %p77 = por %p75, %p76
    %s79 = sadd.s32 %s78, 1
    %p82 = scmp.eq.s32.totalorder %s11, 5
    %p83 = scmp.ne.s32.totalorder %s78, %s80
    %p84 = scmp.eq.s32.totalorder %s11, 0
    %p85 = por %p83, %p84
    %p86 = scmp.ne.s32.totalorder %s78, %s80
    %p87 = scmp.eq.s32.totalorder %s16, 5
    %p88 = por %p86, %p87
    %p89 = scmp.ne.s32.totalorder %s80, %s81
    %p90 = scmp.eq.s32.totalorder %s16, 0
    %p91 = por %p89, %p90
    %p92 = scmp.ne.s32.totalorder %s80, %s81
    %p93 = scmp.eq.s32.totalorder %s17, 5
    %p94 = por %p92, %p93
    %p96 = scmp.ne.s32.totalorder %s81, %s95
    %p97 = scmp.eq.s32.totalorder %s17, 0
    %p98 = por %p96, %p97
    %s100 = sadd.s32 %s99, 1
    %p103 = scmp.eq.s32.totalorder %s11, 5
    %p104 = scmp.ne.s32.totalorder %s99, %s101
    %p105 = scmp.eq.s32.totalorder %s11, 0
    %p106 = por %p104, %p105
    %p107 = scmp.ne.s32.totalorder %s99, %s101
    %p108 = scmp.eq.s32.totalorder %s16, 5
    %p109 = por %p107, %p108
    %p110 = scmp.ne.s32.totalorder %s101, %s102
    %p111 = scmp.eq.s32.totalorder %s16, 0
    %p112 = por %p110, %p111
    %p113 = scmp.ne.s32.totalorder %s101, %s102
    %p114 = scmp.eq.s32.totalorder %s17, 5
    %p115 = por %p113, %p114
    %p117 = scmp.ne.s32.totalorder %s102, %s116
    %p118 = scmp.eq.s32.totalorder %s17, 0
    %p119 = por %p117, %p118
    %s121 = sadd.s32 %s120, 1
    %p124 = scmp.eq.s32.totalorder %s11, 5
    %p125 = scmp.ne.s32.totalorder %s120, %s122
    %p126 = scmp.eq.s32.totalorder %s11, 0
    %p127 = por %p125, %p126
    %p128 = scmp.ne.s32.totalorder %s120, %s122
    %p129 = scmp.eq.s32.totalorder %s16, 5
    %p130 = por %p128, %p129
    %p131 = scmp.ne.s32.totalorder %s122, %s123
    %p132 = scmp.eq.s32.totalorder %s16, 0
    %p133 = por %p131, %p132
    %p134 = scmp.ne.s32.totalorder %s122, %s123
    %p135 = scmp.eq.s32.totalorder %s17, 5
    %p136 = por %p134, %p135
    %p138 = scmp.ne.s32.totalorder %s123, %s137
    %p139 = scmp.eq.s32.totalorder %s17, 0
    %p140 = por %p138, %p139
    %s141 = ssub.s32 %s18, %s30
    %s142 = ssub.s32 %s19, %s26
    %s143 = sor.u32 %s141, %s142
    %p144 = scmp.eq.s32.totalorder %s143, 0
    %s146 = sadd.s32 %s145, 1
    %s147 = scalar_select %p144, %s145, %s146
    %p150 = pneg %p144
    %p151 = scmp.eq.s32.totalorder %s11, 5
    %p152 = por %p150, %p151
    %p153 = scmp.ne.s32.totalorder %s145, %s148
    %p154 = scmp.eq.s32.totalorder %s11, 0
    %p155 = por %p153, %p154
    %p156 = scmp.ne.s32.totalorder %s145, %s148
    %p157 = scmp.eq.s32.totalorder %s16, 5
    %p158 = por %p156, %p157
    %p159 = scmp.ne.s32.totalorder %s148, %s149
    %p160 = scmp.eq.s32.totalorder %s16, 0
    %p161 = por %p159, %p160
    %p162 = scmp.ne.s32.totalorder %s148, %s149
    %p163 = scmp.eq.s32.totalorder %s17, 5
    %p164 = por %p162, %p163
    %p166 = scmp.ne.s32.totalorder %s149, %s165
    %p167 = scmp.eq.s32.totalorder %s17, 0
    %p168 = por %p166, %p167
    %p169 = scmp.le.s32.totalorder 1, %s11
    %p170 = scmp.lt.s32.totalorder %s11, 7
    %p171 = pnand %p169, %p170
    %p172 = pneg %p171
    // Predicated region
    $region9: #{drn_forward.1} parent=5 // pred_check
      _
    $region10: #{drn_forward.1} parent=5 // pred_check_branch
      %174 = sbr.rel (%p171) target = $region12
    $region11: #{drn_forward.1} parent=5 // pred_region
      %s175 = ssub.s32 %s11, 1
      // Predicated region
      $region13: #{drn_forward.1} parent=11 // pred_check
        %p176 = pneg %p70
      $region14: #{drn_forward.1} parent=11 // pred_check_branch
        %178 = sbr.rel (%p176) target = $region16
      $region15: #{drn_forward.1} parent=11 // pred_region
        _
      $region16: #{drn_forward.1} parent=11 // pred_fallthru
        _
      // Predicated region
      $region17: #{drn_forward.1} parent=11 // pred_check
        %p179 = pneg %p91
      $region18: #{drn_forward.1} parent=11 // pred_check_branch
        %181 = sbr.rel (%p179) target = $region20
      $region19: #{drn_forward.1} parent=11 // pred_region
        _
      $region20: #{drn_forward.1} parent=11 // pred_fallthru
        _
      // Predicated region
      $region21: #{drn_forward.1} parent=11 // pred_check
        %p182 = pneg %p112
      $region22: #{drn_forward.1} parent=11 // pred_check_branch
        %184 = sbr.rel (%p182) target = $region24
      $region23: #{drn_forward.1} parent=11 // pred_region
        _
      $region24: #{drn_forward.1} parent=11 // pred_fallthru
        _
      // Predicated region
      $region25: #{drn_forward.1} parent=11 // pred_check
        %p185 = pneg %p133
      $region26: #{drn_forward.1} parent=11 // pred_check_branch
        %187 = sbr.rel (%p185) target = $region28
      $region27: #{drn_forward.1} parent=11 // pred_region
        _
      $region28: #{drn_forward.1} parent=11 // pred_fallthru
        _
    $region12: #{drn_forward.1} parent=5 // pred_fallthru
      _
    %p188 = scmp.lt.s32.totalorder %s11, 6
    // Predicated region
    $region29: #{drn_forward.1} parent=5 // pred_check
      %p189 = pneg %p188
    $region30: #{drn_forward.1} parent=5 // pred_check_branch
      %191 = sbr.rel (%p189) target = $region32
    $region31: #{drn_forward.1} parent=5 // pred_region
      // Predicated region
      $region33: #{drn_forward.1} parent=31 // pred_check
        %p192 = pneg %p43
      $region34: #{drn_forward.1} parent=31 // pred_check_branch
        %194 = sbr.rel (%p192) target = $region36
      $region35: #{drn_forward.1} parent=31 // pred_region
        %p195 = scmp.lt.s32.totalorder %s18, 1
        %s196 = scalar_select %p195, %s18, 1
        %s197 = smul.addr %s196, 2
        %s198 = smul.addr %s197, 4
        %s199 = scalar_lea.vmem %s0, %s198
      $region36: #{drn_forward.1} parent=31 // pred_fallthru
        _
    $region32: #{drn_forward.1} parent=5 // pred_fallthru
      _
    %p200 = scmp.le.s32.totalorder 1, %s11
    %p201 = scmp.lt.s32.totalorder %s11, 7
    %p202 = pnand %p200, %p201
    %p203 = pneg %p202
    // Predicated region
    $region37: #{drn_forward.1} parent=5 // pred_check
      _
    $region38: #{drn_forward.1} parent=5 // pred_check_branch
      %205 = sbr.rel (%p202) target = $region40
    $region39: #{drn_forward.1} parent=5 // pred_region
      %s206 = ssub.s32 %s11, 1
      %p207 = scmp.lt.s32.totalorder %s20, 1
      %s208 = scalar_select %p207, %s20, 1
      %s209 = smul.addr %s208, 2
      %s210 = smul.addr %s209, 4
      %s211 = scalar_lea.vmem %s0, %s210
      %p212 = pneg %p49
      %p213 = pneg %p46
      %p214 = pneg %p70
      %p215 = pneg %p67
      %p216 = pneg %p91
      %p217 = pneg %p88
      %p218 = pneg %p112
      %p219 = pneg %p109
      %p220 = pneg %p133
      %p221 = pneg %p130
      %p222 = pneg %p161
      %p223 = pneg %p158
      %p224 = scmp.lt.s32.totalorder %s20, 1
      %s225 = scalar_select %p224, %s20, 1
      %p226 = scmp.lt.s32.totalorder %s21, 2
      %s227 = scalar_select %p226, %s21, 2
      %s228 = smul.addr %s227, 2
      %s229 = smul.addr %s225, 6
      %s230 = sadd.s32 %s228, %s229
      %s231 = smul.addr %s230, 4
      %s232 = scalar_lea.vmem %s5, %s231
      %p233 = scmp.lt.s32.totalorder %s20, 1
      %s234 = scalar_select %p233, %s20, 1
      %s235 = smul.addr %s234, 2
      %s236 = smul.addr %s235, 4
      %s237 = scalar_lea.vmem %s0, %s236
      %p238 = scmp.lt.s32.totalorder %s20, 1
      %s239 = scalar_select %p238, %s20, 1
      %p240 = scmp.lt.s32.totalorder %s21, 2
      %s241 = scalar_select %p240, %s21, 2
      %s242 = smul.addr %s241, 2
      %s243 = smul.addr %s239, 6
      %s244 = sadd.s32 %s242, %s243
      %s245 = smul.addr %s244, 4
      %s246 = scalar_lea.vmem %s5, %s245
      %v247 = vlaneseq
      %v248 = vand.u32 %v247, 127
      %v249 = vadd.s32 %v248, 128
      %vm250 = vcmp.lt.s32.totalorder %v248, 0
      %v251 = vsub.s32 0, %v248
      %v252 = vsel %vm250, %v251, %v248
      %v253 = vshrl.u32 %v252, 4
      %v254 = vand.u32 %v252, 15
      %v255 = vsub.s32 0, %v254
      %v256 = vsel %vm250, %v255, %v254
      %vm257 = vcmp.lt.s32.totalorder %v249, 0
      %v258 = vsub.s32 0, %v249
      %v259 = vsel %vm257, %v258, %v249
      %v260 = vshrl.u32 %v259, 4
      %v261 = vand.u32 %v259, 15
      %v262 = vsub.s32 0, %v261
      %v263 = vsel %vm257, %v262, %v261
      %vm264 = vcmp.ne.s32.totalorder %v256, 0
      %vm265 = vcmp.ne.s32.totalorder %v263, 0
      %vm266 = vcmp.lt.s32.totalorder %v256, 0
      %vm267 = vcmp.lt.s32.totalorder %v263, 0
      %vm268 = vmand %vm266, %vm264
      %vm269 = vmand %vm267, %vm265
      %v270 = vadd.s32 %v256, 16
      %v271 = vadd.s32 %v263, 16
      %v272 = vsel %vm268, %v270, %v256
      %v273 = vsel %vm269, %v271, %v263
      %vm274 = vcmp.ne.s32.totalorder %v272, 0
      %vm275 = vcmp.ne.s32.totalorder %v273, 0
      %v276 = vsel %vm274, 1, 0
      %v277 = vsel %vm275, 1, 0
      %v278 = vcvt.s32.f32 %v276
      %v279 = vcvt.s32.f32 %v277
      %vm280 = vcmp.ne.s32.totalorder %v272, 15
      %vm281 = vcmp.ne.s32.totalorder %v273, 15
      %v282 = vsel %vm280, 1, 0
      %v283 = vsel %vm281, 1, 0
      %v284 = vcvt.s32.f32 %v282
      %v285 = vcvt.s32.f32 %v283
      %286 = vst [vmem:[#allocation3] sm:$0xff] 0.0
      %287 = vst [vmem:[#allocation3 + $0x8] sm:$0xff] 0.0
      %vm288 = vcmask 277504
      %289 = vst.msk [vmem:[#allocation3 + $0x10] sm:$0xff] %vm288, 0.0
      %vm290 = vcmask 138240
      %291 = vst.msk [vmem:[#allocation4] sm:$0xff] %vm290, 0.0
      %292 = vst.msk [vmem:[#allocation4 + $0x18] sm:$0xff] %vm290, 0.0
      %vm293 = vcmask 277640
      %294 = vst.msk [vmem:[#allocation4 + $0x10] sm:$0xff] %vm293, 0.0
      %295 = vst.msk [vmem:[#allocation4 + $0x28] sm:$0xff] %vm293, 0.0
      %p296 = scmp.eq.s32.totalorder %s21, 0
      // Predicated region
      $region41: #{drn_forward.1} parent=39 // pred_check
        %p297 = pneg %p296
      $region42: #{drn_forward.1} parent=39 // pred_check_branch
        %299 = sbr.rel (%p297) target = $region44
      $region43: #{drn_forward.1} parent=39 // pred_region
        %v300 = vld [vmem:[%s237] sm:$0x77]
        %301 = vst [vmem:[#allocation2] sm:$0x77] %v300
      $region44: #{drn_forward.1} parent=39 // pred_fallthru
        _
      %v302 = vld [vmem:[%s237] sm:$0x77]
      %v303 = vld [vmem:[%s4] sm:$0xff]
      %v304 = vld [vmem:[%s4 + $0x8] sm:$0xff]
      %v306 = vcombine.high %v302, %v302
      %307 = vrot.lane.b32.xlu0 %v302, 17
      %v308 = vpop.permute.xlu0 %307
      %309 = vrot.lane.b32.xlu0 %v306, 17
      %v310 = vpop.permute.xlu0 %309
      %v311 = vsel %vm290, %v308, %v310
      %vm315 = vcmask 1042568
      %316 = vst.msk [vmem:[#allocation3] sm:$0x7] %vm315, %v308
      %317 = vst [vmem:[#allocation3 + $0x8] sm:$0x7] %v311
      %vm318 = vcmask 133120
      %319 = vst.msk [vmem:[#allocation3 + $0x10] sm:$0x7] %vm318, %v310
      %v320 = vld [vmem:[#allocation2] sm:$0x77]
      %v322 = vcombine.high %v320, %v320
      %v323 = vrot.slane %v320, 5
      %v324 = vrot.slane %v322, 5
      %325 = vrot.lane.b32.xlu0 %v323, 17
      %v326 = vpop.permute.xlu0 %325
      %327 = vrot.lane.b32.xlu0 %v324, 17
      %v328 = vpop.permute.xlu0 %327
      %v329 = vsel %vm290, %v326, %v328
      %vm333 = vcmask 1045643
      %334 = vst.msk [vmem:[#allocation3] sm:$0x38] %vm333, %v326
      %335 = vst [vmem:[#allocation3 + $0x8] sm:$0x38] %v329
      %vm336 = vcmask 136195
      %337 = vst.msk [vmem:[#allocation3 + $0x10] sm:$0x38] %vm336, %v328
      %v338 = vld [vmem:[#allocation3] sm:$0xff]
      %v339 = vld [vmem:[#allocation3 + $0x8] sm:$0xff]
      %v340 = vld [vmem:[%s1] sm:$0xff]
      %v341 = vld [vmem:[%s1 + $0x8] sm:$0xff]
      %v342 = vld [vmem:[#allocation3 + $0x10] sm:$0xff]
      %s343 = scalar_lea.vmem %s1, 48
      %v344 = vld [vmem:[%s343] sm:$0xff]
      %v345 = vld [vmem:[%s343 + $0x8] sm:$0xff]
      %349 = vrot.lane.b32.xlu0 %v338, 112
      %v350 = vpop.permute.xlu0 %349
      %351 = vrot.lane.b32.xlu0 %v339, 112
      %v352 = vpop.permute.xlu0 %351
      %353 = vrot.lane.b32.xlu0 %v342, 112
      %v354 = vpop.permute.xlu0 %353
      %vm355 = vcmask 916480
      %v356 = vsel %vm355, %v350, %v352
      %v357 = vsel %vm355, %v352, %v354
      %vm360 = vcmask 64512
      %v362 = vsel %vm360, %v344, 0
      %v365 = vsel %vm360, %v345, 0
      %367 = vmatprep.subr.mxu0 0.0
      %368 = vmatpush1.msra.mxu0 0.0
      %369 = vmatprep.subr.mxu0 0.0
      %370 = vmatpush1.msra.mxu0 0.0
      %371 = vmatprep.subr.mxu0 0.0
      %372 = vmatpush1.msra.mxu0 0.0
      %373 = vmatprep.subr.mxu0 0.0
      %374 = vmatpush1.msra.mxu0 0.0
      %375 = vmatprep.subr.mxu0 0.0
      %376 = vmatpush1.msra.mxu0 0.0
      %377 = vmatprep.subr.mxu0 0.0
      %378 = vmatpush1.msra.mxu0 0.0
      %379 = vmatprep.subr.mxu0 0.0
      %380 = vmatpush1.msra.mxu0 0.0
      %381 = vmatprep.subr.mxu0 0.0
      %382 = vmatpush1.msra.mxu0 0.0
      %383 = vmatprep.subr.mxu0 0.0
      %384 = vmatpush1.msra.mxu0 0.0
      %385 = vmatprep.subr.mxu0 0.0
      %386 = vmatpush1.msra.mxu0 0.0
      %387 = vmatprep.subr.mxu0 0.0
      %388 = vmatpush1.msra.mxu0 0.0
      %389 = vmatprep.subr.mxu0 0.0
      %390 = vmatpush1.msra.mxu0 0.0
      %391 = vmatprep.subr.mxu0 0.0
      %392 = vmatpush1.msra.mxu0 0.0
      %393 = vmatprep.subr.mxu0 0.0
      %394 = vmatpush1.msra.mxu0 0.0
      %395 = vmatprep.subr.mxu0 0.0
      %396 = vmatpush1.msra.mxu0 0.0
      %397 = vmatprep.subr.mxu0 %v357
      %398 = vmatpush1.msra.mxu0 %v356
      %399 = vmatprep.subr.mxu0 0.0
      %400 = vmatpush2.msra.mxu0 0.0
      %401 = vmatprep.subr.mxu0 0.0
      %402 = vmatpush2.msra.mxu0 0.0
      %403 = vmatprep.subr.mxu0 0.0
      %404 = vmatpush2.msra.mxu0 0.0
      %405 = vmatprep.subr.mxu0 0.0
      %406 = vmatpush2.msra.mxu0 0.0
      %407 = vmatprep.subr.mxu0 0.0
      %408 = vmatpush2.msra.mxu0 0.0
      %409 = vmatprep.subr.mxu0 0.0
      %410 = vmatpush2.msra.mxu0 0.0
      %411 = vmatprep.subr.mxu0 0.0
      %412 = vmatpush2.msra.mxu0 0.0
      %413 = vmatprep.subr.mxu0 0.0
      %414 = vmatpush2.msra.mxu0 0.0
      %415 = vmatprep.subr.mxu0 0.0
      %416 = vmatpush2.msra.mxu0 0.0
      %417 = vmatprep.subr.mxu0 0.0
      %418 = vmatpush2.msra.mxu0 0.0
      %419 = vmatprep.subr.mxu0 0.0
      %420 = vmatpush2.msra.mxu0 0.0
      %421 = vmatprep.subr.mxu0 0.0
      %422 = vmatpush2.msra.mxu0 0.0
      %423 = vmatprep.subr.mxu0 0.0
      %424 = vmatpush2.msra.mxu0 0.0
      %425 = vmatprep.subr.mxu0 0.0
      %426 = vmatpush2.msra.mxu0 0.0
      %427 = vmatprep.subr.mxu0 0.0
      %428 = vmatpush2.msra.mxu0 0.0
      %429 = vmatprep.subr.mxu0 0.0
      %430 = vmatpush2.msra.mxu0 0.0
      %431 = vmatprep.mubr.f32.mxu0 0.0
      %432 = vmatmul.mubr.f32.gmra.mxu0 %v362
      %v433 = vpop.f32.mrf.mxu0
      %v434 = vadd.f32 0.0, %v433
      %v435 = vpop.f32.mrf.mxu0
      %v436 = vadd.f32 0.0, %v435
      %437 = vmatprep.mubr.f32.mxu0 0.0
      %438 = vmatmul.mubr.f32.gmra.mxu0 %v365
      %v439 = vpop.f32.mrf.mxu0
      %v440 = vadd.f32 0.0, %v439
      %v441 = vpop.f32.mrf.mxu0
      %v442 = vadd.f32 0.0, %v441
      %443 = vdwg.mxu0
      %v445 = vsel %vm360, %v340, 0
      %v448 = vsel %vm360, %v341, 0
      %450 = vmatprep.subr.mxu0 0.0
      %451 = vmatpush1.msra.mxu0 0.0
      %452 = vmatprep.subr.mxu0 0.0
      %453 = vmatpush1.msra.mxu0 0.0
      %454 = vmatprep.subr.mxu0 0.0
      %455 = vmatpush1.msra.mxu0 0.0
      %456 = vmatprep.subr.mxu0 0.0
      %457 = vmatpush1.msra.mxu0 0.0
      %458 = vmatprep.subr.mxu0 0.0
      %459 = vmatpush1.msra.mxu0 0.0
      %460 = vmatprep.subr.mxu0 0.0
      %461 = vmatpush1.msra.mxu0 0.0
      %462 = vmatprep.subr.mxu0 0.0
      %463 = vmatpush1.msra.mxu0 0.0
      %464 = vmatprep.subr.mxu0 0.0
      %465 = vmatpush1.msra.mxu0 0.0
      %466 = vmatprep.subr.mxu0 0.0
      %467 = vmatpush1.msra.mxu0 0.0
      %468 = vmatprep.subr.mxu0 0.0
      %469 = vmatpush1.msra.mxu0 0.0
      %470 = vmatprep.subr.mxu0 0.0
      %471 = vmatpush1.msra.mxu0 0.0
      %472 = vmatprep.subr.mxu0 0.0
      %473 = vmatpush1.msra.mxu0 0.0
      %474 = vmatprep.subr.mxu0 0.0
      %475 = vmatpush1.msra.mxu0 0.0
      %476 = vmatprep.subr.mxu0 0.0
      %477 = vmatpush1.msra.mxu0 0.0
      %478 = vmatprep.subr.mxu0 0.0
      %479 = vmatpush1.msra.mxu0 0.0
      %480 = vmatprep.subr.mxu0 %v339
      %481 = vmatpush1.msra.mxu0 %v338
      %482 = vmatprep.subr.mxu0 0.0
      %483 = vmatpush2.msra.mxu0 0.0
      %484 = vmatprep.subr.mxu0 0.0
      %485 = vmatpush2.msra.mxu0 0.0
      %486 = vmatprep.subr.mxu0 0.0
      %487 = vmatpush2.msra.mxu0 0.0
      %488 = vmatprep.subr.mxu0 0.0
      %489 = vmatpush2.msra.mxu0 0.0
      %490 = vmatprep.subr.mxu0 0.0
      %491 = vmatpush2.msra.mxu0 0.0
      %492 = vmatprep.subr.mxu0 0.0
      %493 = vmatpush2.msra.mxu0 0.0
      %494 = vmatprep.subr.mxu0 0.0
      %495 = vmatpush2.msra.mxu0 0.0
      %496 = vmatprep.subr.mxu0 0.0
      %497 = vmatpush2.msra.mxu0 0.0
      %498 = vmatprep.subr.mxu0 0.0
      %499 = vmatpush2.msra.mxu0 0.0
      %500 = vmatprep.subr.mxu0 0.0
      %501 = vmatpush2.msra.mxu0 0.0
      %502 = vmatprep.subr.mxu0 0.0
      %503 = vmatpush2.msra.mxu0 0.0
      %504 = vmatprep.subr.mxu0 0.0
      %505 = vmatpush2.msra.mxu0 0.0
      %506 = vmatprep.subr.mxu0 0.0
      %507 = vmatpush2.msra.mxu0 0.0
      %508 = vmatprep.subr.mxu0 0.0
      %509 = vmatpush2.msra.mxu0 0.0
      %510 = vmatprep.subr.mxu0 0.0
      %511 = vmatpush2.msra.mxu0 0.0
      %512 = vmatprep.subr.mxu0 0.0
      %513 = vmatpush2.msra.mxu0 0.0
      %514 = vmatprep.mubr.f32.mxu0 0.0
      %515 = vmatmul.mubr.f32.gmra.mxu0 %v445
      %v516 = vpop.f32.mrf.mxu0
      %v517 = vadd.f32 %v434, %v516
      %v518 = vpop.f32.mrf.mxu0
      %v519 = vadd.f32 %v436, %v518
      %520 = vmatprep.mubr.f32.mxu0 0.0
      %521 = vmatmul.mubr.f32.gmra.mxu0 %v448
      %v522 = vpop.f32.mrf.mxu0
      %v523 = vadd.f32 %v440, %v522
      %v524 = vpop.f32.mrf.mxu0
      %v525 = vadd.f32 %v442, %v524
      %526 = vdwg.mxu0
      %s527 = scalar_lea.vmem %s1, 96
      %v528 = vld [vmem:[%s527] sm:$0xff]
      %v529 = vld [vmem:[%s527 + $0x8] sm:$0xff]
      %530 = vrot.lane.b32.xlu0 %v338, 96
      %v531 = vpop.permute.xlu0 %530
      %532 = vrot.lane.b32.xlu0 %v339, 96
      %v533 = vpop.permute.xlu0 %532
      %534 = vrot.lane.b32.xlu0 %v342, 96
      %v535 = vpop.permute.xlu0 %534
      %vm536 = vcmask 785408
      %v537 = vsel %vm536, %v531, %v533
      %v538 = vsel %vm536, %v533, %v535
      %v542 = vsel %vm360, %v528, 0
      %v545 = vsel %vm360, %v529, 0
      %547 = vmatprep.subr.mxu0 0.0
      %548 = vmatpush1.msra.mxu0 0.0
      %549 = vmatprep.subr.mxu0 0.0
      %550 = vmatpush1.msra.mxu0 0.0
      %551 = vmatprep.subr.mxu0 0.0
      %552 = vmatpush1.msra.mxu0 0.0
      %553 = vmatprep.subr.mxu0 0.0
      %554 = vmatpush1.msra.mxu0 0.0
      %555 = vmatprep.subr.mxu0 0.0
      %556 = vmatpush1.msra.mxu0 0.0
      %557 = vmatprep.subr.mxu0 0.0
      %558 = vmatpush1.msra.mxu0 0.0
      %559 = vmatprep.subr.mxu0 0.0
      %560 = vmatpush1.msra.mxu0 0.0
      %561 = vmatprep.subr.mxu0 0.0
      %562 = vmatpush1.msra.mxu0 0.0
      %563 = vmatprep.subr.mxu0 0.0
      %564 = vmatpush1.msra.mxu0 0.0
      %565 = vmatprep.subr.mxu0 0.0
      %566 = vmatpush1.msra.mxu0 0.0
      %567 = vmatprep.subr.mxu0 0.0
      %568 = vmatpush1.msra.mxu0 0.0
      %569 = vmatprep.subr.mxu0 0.0
      %570 = vmatpush1.msra.mxu0 0.0
      %571 = vmatprep.subr.mxu0 0.0
      %572 = vmatpush1.msra.mxu0 0.0
      %573 = vmatprep.subr.mxu0 0.0
      %574 = vmatpush1.msra.mxu0 0.0
      %575 = vmatprep.subr.mxu0 0.0
      %576 = vmatpush1.msra.mxu0 0.0
      %577 = vmatprep.subr.mxu0 %v538
      %578 = vmatpush1.msra.mxu0 %v537
      %579 = vmatprep.subr.mxu0 0.0
      %580 = vmatpush2.msra.mxu0 0.0
      %581 = vmatprep.subr.mxu0 0.0
      %582 = vmatpush2.msra.mxu0 0.0
      %583 = vmatprep.subr.mxu0 0.0
      %584 = vmatpush2.msra.mxu0 0.0
      %585 = vmatprep.subr.mxu0 0.0
      %586 = vmatpush2.msra.mxu0 0.0
      %587 = vmatprep.subr.mxu0 0.0
      %588 = vmatpush2.msra.mxu0 0.0
      %589 = vmatprep.subr.mxu0 0.0
      %590 = vmatpush2.msra.mxu0 0.0
      %591 = vmatprep.subr.mxu0 0.0
      %592 = vmatpush2.msra.mxu0 0.0
      %593 = vmatprep.subr.mxu0 0.0
      %594 = vmatpush2.msra.mxu0 0.0
      %595 = vmatprep.subr.mxu0 0.0
      %596 = vmatpush2.msra.mxu0 0.0
      %597 = vmatprep.subr.mxu0 0.0
      %598 = vmatpush2.msra.mxu0 0.0
      %599 = vmatprep.subr.mxu0 0.0
      %600 = vmatpush2.msra.mxu0 0.0
      %601 = vmatprep.subr.mxu0 0.0
      %602 = vmatpush2.msra.mxu0 0.0
      %603 = vmatprep.subr.mxu0 0.0
      %604 = vmatpush2.msra.mxu0 0.0
      %605 = vmatprep.subr.mxu0 0.0
      %606 = vmatpush2.msra.mxu0 0.0
      %607 = vmatprep.subr.mxu0 0.0
      %608 = vmatpush2.msra.mxu0 0.0
      %609 = vmatprep.subr.mxu0 0.0
      %610 = vmatpush2.msra.mxu0 0.0
      %611 = vmatprep.mubr.f32.mxu0 0.0
      %612 = vmatmul.mubr.f32.gmra.mxu0 %v542
      %v613 = vpop.f32.mrf.mxu0
      %v614 = vadd.f32 0.0, %v613
      %v615 = vpop.f32.mrf.mxu0
      %v616 = vadd.f32 0.0, %v615
      %617 = vmatprep.mubr.f32.mxu0 0.0
      %618 = vmatmul.mubr.f32.gmra.mxu0 %v545
      %v619 = vpop.f32.mrf.mxu0
      %v620 = vadd.f32 0.0, %v619
      %v621 = vpop.f32.mrf.mxu0
      %v622 = vadd.f32 0.0, %v621
      %623 = vdwg.mxu0
      %v624 = vadd.f32 %v517, %v614
      %v625 = vadd.f32 %v519, %v616
      %v626 = vadd.f32 %v523, %v620
      %v627 = vadd.f32 %v525, %v622
      %s628 = scalar_lea.vmem %s1, 16
      %v629 = vld [vmem:[%s628] sm:$0xff]
      %v630 = vld [vmem:[%s628 + $0x8] sm:$0xff]
      %s631 = scalar_lea.vmem %s1, 64
      %v632 = vld [vmem:[%s631] sm:$0xff]
      %v633 = vld [vmem:[%s631 + $0x8] sm:$0xff]
      %634 = vrot.lane.b32.xlu0 %v338, 111
      %v635 = vpop.permute.xlu0 %634
      %636 = vrot.lane.b32.xlu0 %v339, 111
      %v637 = vpop.permute.xlu0 %636
      %638 = vrot.lane.b32.xlu0 %v342, 111
      %v639 = vpop.permute.xlu0 %638
      %vm640 = vcmask 908288
      %v641 = vsel %vm640, %v635, %v637
      %v642 = vsel %vm640, %v637, %v639
      %v646 = vsel %vm360, %v632, 0
      %v649 = vsel %vm360, %v633, 0
      %651 = vmatprep.subr.mxu0 0.0
      %652 = vmatpush1.msra.mxu0 0.0
      %653 = vmatprep.subr.mxu0 0.0
      %654 = vmatpush1.msra.mxu0 0.0
      %655 = vmatprep.subr.mxu0 0.0
      %656 = vmatpush1.msra.mxu0 0.0
      %657 = vmatprep.subr.mxu0 0.0
      %658 = vmatpush1.msra.mxu0 0.0
      %659 = vmatprep.subr.mxu0 0.0
      %660 = vmatpush1.msra.mxu0 0.0
      %661 = vmatprep.subr.mxu0 0.0
      %662 = vmatpush1.msra.mxu0 0.0
      %663 = vmatprep.subr.mxu0 0.0
      %664 = vmatpush1.msra.mxu0 0.0
      %665 = vmatprep.subr.mxu0 0.0
      %666 = vmatpush1.msra.mxu0 0.0
      %667 = vmatprep.subr.mxu0 0.0
      %668 = vmatpush1.msra.mxu0 0.0
      %669 = vmatprep.subr.mxu0 0.0
      %670 = vmatpush1.msra.mxu0 0.0
      %671 = vmatprep.subr.mxu0 0.0
      %672 = vmatpush1.msra.mxu0 0.0
      %673 = vmatprep.subr.mxu0 0.0
      %674 = vmatpush1.msra.mxu0 0.0
      %675 = vmatprep.subr.mxu0 0.0
      %676 = vmatpush1.msra.mxu0 0.0
      %677 = vmatprep.subr.mxu0 0.0
      %678 = vmatpush1.msra.mxu0 0.0
      %679 = vmatprep.subr.mxu0 0.0
      %680 = vmatpush1.msra.mxu0 0.0
      %681 = vmatprep.subr.mxu0 %v642
      %682 = vmatpush1.msra.mxu0 %v641
      %683 = vmatprep.subr.mxu0 0.0
      %684 = vmatpush2.msra.mxu0 0.0
      %685 = vmatprep.subr.mxu0 0.0
      %686 = vmatpush2.msra.mxu0 0.0
      %687 = vmatprep.subr.mxu0 0.0
      %688 = vmatpush2.msra.mxu0 0.0
      %689 = vmatprep.subr.mxu0 0.0
      %690 = vmatpush2.msra.mxu0 0.0
      %691 = vmatprep.subr.mxu0 0.0
      %692 = vmatpush2.msra.mxu0 0.0
      %693 = vmatprep.subr.mxu0 0.0
      %694 = vmatpush2.msra.mxu0 0.0
      %695 = vmatprep.subr.mxu0 0.0
      %696 = vmatpush2.msra.mxu0 0.0
      %697 = vmatprep.subr.mxu0 0.0
      %698 = vmatpush2.msra.mxu0 0.0
      %699 = vmatprep.subr.mxu0 0.0
      %700 = vmatpush2.msra.mxu0 0.0
      %701 = vmatprep.subr.mxu0 0.0
      %702 = vmatpush2.msra.mxu0 0.0
      %703 = vmatprep.subr.mxu0 0.0
      %704 = vmatpush2.msra.mxu0 0.0
      %705 = vmatprep.subr.mxu0 0.0
      %706 = vmatpush2.msra.mxu0 0.0
      %707 = vmatprep.subr.mxu0 0.0
      %708 = vmatpush2.msra.mxu0 0.0
      %709 = vmatprep.subr.mxu0 0.0
      %710 = vmatpush2.msra.mxu0 0.0
      %711 = vmatprep.subr.mxu0 0.0
      %712 = vmatpush2.msra.mxu0 0.0
      %713 = vmatprep.subr.mxu0 0.0
      %714 = vmatpush2.msra.mxu0 0.0
      %715 = vmatprep.mubr.f32.mxu0 0.0
      %716 = vmatmul.mubr.f32.gmra.mxu0 %v646
      %v717 = vpop.f32.mrf.mxu0
      %v718 = vadd.f32 0.0, %v717
      %v719 = vpop.f32.mrf.mxu0
      %v720 = vadd.f32 0.0, %v719
      %721 = vmatprep.mubr.f32.mxu0 0.0
      %722 = vmatmul.mubr.f32.gmra.mxu0 %v649
      %v723 = vpop.f32.mrf.mxu0
      %v724 = vadd.f32 0.0, %v723
      %v725 = vpop.f32.mrf.mxu0
      %v726 = vadd.f32 0.0, %v725
      %727 = vdwg.mxu0
      %728 = vrot.lane.b32.xlu0 %v338, 127
      %v729 = vpop.permute.xlu0 %728
      %730 = vrot.lane.b32.xlu0 %v339, 127
      %v731 = vpop.permute.xlu0 %730
      %732 = vrot.lane.b32.xlu0 %v342, 127
      %v733 = vpop.permute.xlu0 %732
      %vm734 = vcmask 1039360
      %v735 = vsel %vm734, %v729, %v731
      %v736 = vsel %vm734, %v731, %v733
      %v740 = vsel %vm360, %v629, 0
      %v743 = vsel %vm360, %v630, 0
      %745 = vmatprep.subr.mxu0 0.0
      %746 = vmatpush1.msra.mxu0 0.0
      %747 = vmatprep.subr.mxu0 0.0
      %748 = vmatpush1.msra.mxu0 0.0
      %749 = vmatprep.subr.mxu0 0.0
      %750 = vmatpush1.msra.mxu0 0.0
      %751 = vmatprep.subr.mxu0 0.0
      %752 = vmatpush1.msra.mxu0 0.0
      %753 = vmatprep.subr.mxu0 0.0
      %754 = vmatpush1.msra.mxu0 0.0
      %755 = vmatprep.subr.mxu0 0.0
      %756 = vmatpush1.msra.mxu0 0.0
      %757 = vmatprep.subr.mxu0 0.0
      %758 = vmatpush1.msra.mxu0 0.0
      %759 = vmatprep.subr.mxu0 0.0
      %760 = vmatpush1.msra.mxu0 0.0
      %761 = vmatprep.subr.mxu0 0.0
      %762 = vmatpush1.msra.mxu0 0.0
      %763 = vmatprep.subr.mxu0 0.0
      %764 = vmatpush1.msra.mxu0 0.0
      %765 = vmatprep.subr.mxu0 0.0
      %766 = vmatpush1.msra.mxu0 0.0
      %767 = vmatprep.subr.mxu0 0.0
      %768 = vmatpush1.msra.mxu0 0.0
      %769 = vmatprep.subr.mxu0 0.0
      %770 = vmatpush1.msra.mxu0 0.0
      %771 = vmatprep.subr.mxu0 0.0
      %772 = vmatpush1.msra.mxu0 0.0
      %773 = vmatprep.subr.mxu0 0.0
      %774 = vmatpush1.msra.mxu0 0.0
      %775 = vmatprep.subr.mxu0 %v736
      %776 = vmatpush1.msra.mxu0 %v735
      %777 = vmatprep.subr.mxu0 0.0
      %778 = vmatpush2.msra.mxu0 0.0
      %779 = vmatprep.subr.mxu0 0.0
      %780 = vmatpush2.msra.mxu0 0.0
      %781 = vmatprep.subr.mxu0 0.0
      %782 = vmatpush2.msra.mxu0 0.0
      %783 = vmatprep.subr.mxu0 0.0
      %784 = vmatpush2.msra.mxu0 0.0
      %785 = vmatprep.subr.mxu0 0.0
      %786 = vmatpush2.msra.mxu0 0.0
      %787 = vmatprep.subr.mxu0 0.0
      %788 = vmatpush2.msra.mxu0 0.0
      %789 = vmatprep.subr.mxu0 0.0
      %790 = vmatpush2.msra.mxu0 0.0
      %791 = vmatprep.subr.mxu0 0.0
      %792 = vmatpush2.msra.mxu0 0.0
      %793 = vmatprep.subr.mxu0 0.0
      %794 = vmatpush2.msra.mxu0 0.0
      %795 = vmatprep.subr.mxu0 0.0
      %796 = vmatpush2.msra.mxu0 0.0
      %797 = vmatprep.subr.mxu0 0.0
      %798 = vmatpush2.msra.mxu0 0.0
      %799 = vmatprep.subr.mxu0 0.0
      %800 = vmatpush2.msra.mxu0 0.0
      %801 = vmatprep.subr.mxu0 0.0
      %802 = vmatpush2.msra.mxu0 0.0
      %803 = vmatprep.subr.mxu0 0.0
      %804 = vmatpush2.msra.mxu0 0.0
      %805 = vmatprep.subr.mxu0 0.0
      %806 = vmatpush2.msra.mxu0 0.0
      %807 = vmatprep.subr.mxu0 0.0
      %808 = vmatpush2.msra.mxu0 0.0
      %809 = vmatprep.mubr.f32.mxu0 0.0
      %810 = vmatmul.mubr.f32.gmra.mxu0 %v740
      %v811 = vpop.f32.mrf.mxu0
      %v812 = vadd.f32 %v718, %v811
      %v813 = vpop.f32.mrf.mxu0
      %v814 = vadd.f32 %v720, %v813
      %815 = vmatprep.mubr.f32.mxu0 0.0
      %816 = vmatmul.mubr.f32.gmra.mxu0 %v743
      %v817 = vpop.f32.mrf.mxu0
      %v818 = vadd.f32 %v724, %v817
      %v819 = vpop.f32.mrf.mxu0
      %v820 = vadd.f32 %v726, %v819
      %821 = vdwg.mxu0
      %s822 = scalar_lea.vmem %s1, 112
      %v823 = vld [vmem:[%s822] sm:$0xff]
      %v824 = vld [vmem:[%s822 + $0x8] sm:$0xff]
      %825 = vrot.lane.b32.xlu0 %v338, 95
      %v826 = vpop.permute.xlu0 %825
      %827 = vrot.lane.b32.xlu0 %v339, 95
      %v828 = vpop.permute.xlu0 %827
      %829 = vrot.lane.b32.xlu0 %v342, 95
      %v830 = vpop.permute.xlu0 %829
      %vm831 = vcmask 777216
      %v832 = vsel %vm831, %v826, %v828
      %v833 = vsel %vm831, %v828, %v830
      %v837 = vsel %vm360, %v823, 0
      %v840 = vsel %vm360, %v824, 0
      %842 = vmatprep.subr.mxu0 0.0
      %843 = vmatpush1.msra.mxu0 0.0
      %844 = vmatprep.subr.mxu0 0.0
      %845 = vmatpush1.msra.mxu0 0.0
      %846 = vmatprep.subr.mxu0 0.0
      %847 = vmatpush1.msra.mxu0 0.0
      %848 = vmatprep.subr.mxu0 0.0
      %849 = vmatpush1.msra.mxu0 0.0
      %850 = vmatprep.subr.mxu0 0.0
      %851 = vmatpush1.msra.mxu0 0.0
      %852 = vmatprep.subr.mxu0 0.0
      %853 = vmatpush1.msra.mxu0 0.0
      %854 = vmatprep.subr.mxu0 0.0
      %855 = vmatpush1.msra.mxu0 0.0
      %856 = vmatprep.subr.mxu0 0.0
      %857 = vmatpush1.msra.mxu0 0.0
      %858 = vmatprep.subr.mxu0 0.0
      %859 = vmatpush1.msra.mxu0 0.0
      %860 = vmatprep.subr.mxu0 0.0
      %861 = vmatpush1.msra.mxu0 0.0
      %862 = vmatprep.subr.mxu0 0.0
      %863 = vmatpush1.msra.mxu0 0.0
      %864 = vmatprep.subr.mxu0 0.0
      %865 = vmatpush1.msra.mxu0 0.0
      %866 = vmatprep.subr.mxu0 0.0
      %867 = vmatpush1.msra.mxu0 0.0
      %868 = vmatprep.subr.mxu0 0.0
      %869 = vmatpush1.msra.mxu0 0.0
      %870 = vmatprep.subr.mxu0 0.0
      %871 = vmatpush1.msra.mxu0 0.0
      %872 = vmatprep.subr.mxu0 %v833
      %873 = vmatpush1.msra.mxu0 %v832
      %874 = vmatprep.subr.mxu0 0.0
      %875 = vmatpush2.msra.mxu0 0.0
      %876 = vmatprep.subr.mxu0 0.0
      %877 = vmatpush2.msra.mxu0 0.0
      %878 = vmatprep.subr.mxu0 0.0
      %879 = vmatpush2.msra.mxu0 0.0
      %880 = vmatprep.subr.mxu0 0.0
      %881 = vmatpush2.msra.mxu0 0.0
      %882 = vmatprep.subr.mxu0 0.0
      %883 = vmatpush2.msra.mxu0 0.0
      %884 = vmatprep.subr.mxu0 0.0
      %885 = vmatpush2.msra.mxu0 0.0
      %886 = vmatprep.subr.mxu0 0.0
      %887 = vmatpush2.msra.mxu0 0.0
      %888 = vmatprep.subr.mxu0 0.0
      %889 = vmatpush2.msra.mxu0 0.0
      %890 = vmatprep.subr.mxu0 0.0
      %891 = vmatpush2.msra.mxu0 0.0
      %892 = vmatprep.subr.mxu0 0.0
      %893 = vmatpush2.msra.mxu0 0.0
      %894 = vmatprep.subr.mxu0 0.0
      %895 = vmatpush2.msra.mxu0 0.0
      %896 = vmatprep.subr.mxu0 0.0
      %897 = vmatpush2.msra.mxu0 0.0
      %898 = vmatprep.subr.mxu0 0.0
      %899 = vmatpush2.msra.mxu0 0.0
      %900 = vmatprep.subr.mxu0 0.0
      %901 = vmatpush2.msra.mxu0 0.0
      %902 = vmatprep.subr.mxu0 0.0
      %903 = vmatpush2.msra.mxu0 0.0
      %904 = vmatprep.subr.mxu0 0.0
      %905 = vmatpush2.msra.mxu0 0.0
      %906 = vmatprep.mubr.f32.mxu0 0.0
      %907 = vmatmul.mubr.f32.gmra.mxu0 %v837
      %v908 = vpop.f32.mrf.mxu0
      %v909 = vadd.f32 0.0, %v908
      %v910 = vpop.f32.mrf.mxu0
      %v911 = vadd.f32 0.0, %v910
      %912 = vmatprep.mubr.f32.mxu0 0.0
      %913 = vmatmul.mubr.f32.gmra.mxu0 %v840
      %v914 = vpop.f32.mrf.mxu0
      %v915 = vadd.f32 0.0, %v914
      %v916 = vpop.f32.mrf.mxu0
      %v917 = vadd.f32 0.0, %v916
      %918 = vdwg.mxu0
      %v919 = vadd.f32 %v812, %v909
      %v920 = vadd.f32 %v814, %v911
      %v921 = vadd.f32 %v818, %v915
      %v922 = vadd.f32 %v820, %v917
      %s923 = scalar_lea.vmem %s1, 32
      %v924 = vld [vmem:[%s923] sm:$0xff]
      %v925 = vld [vmem:[%s923 + $0x8] sm:$0xff]
      %s926 = scalar_lea.vmem %s1, 80
      %v927 = vld [vmem:[%s926] sm:$0xff]
      %v928 = vld [vmem:[%s926 + $0x8] sm:$0xff]
      %929 = vrot.lane.b32.xlu0 %v338, 110
      %v930 = vpop.permute.xlu0 %929
      %931 = vrot.lane.b32.xlu0 %v339, 110
      %v932 = vpop.permute.xlu0 %931
      %933 = vrot.lane.b32.xlu0 %v342, 110
      %v934 = vpop.permute.xlu0 %933
      %vm935 = vcmask 900096
      %v936 = vsel %vm935, %v930, %v932
      %v937 = vsel %vm935, %v932, %v934
      %v941 = vsel %vm360, %v927, 0
      %v944 = vsel %vm360, %v928, 0
      %946 = vmatprep.subr.mxu0 0.0
      %947 = vmatpush1.msra.mxu0 0.0
      %948 = vmatprep.subr.mxu0 0.0
      %949 = vmatpush1.msra.mxu0 0.0
      %950 = vmatprep.subr.mxu0 0.0
      %951 = vmatpush1.msra.mxu0 0.0
      %952 = vmatprep.subr.mxu0 0.0
      %953 = vmatpush1.msra.mxu0 0.0
      %954 = vmatprep.subr.mxu0 0.0
      %955 = vmatpush1.msra.mxu0 0.0
      %956 = vmatprep.subr.mxu0 0.0
      %957 = vmatpush1.msra.mxu0 0.0
      %958 = vmatprep.subr.mxu0 0.0
      %959 = vmatpush1.msra.mxu0 0.0
      %960 = vmatprep.subr.mxu0 0.0
      %961 = vmatpush1.msra.mxu0 0.0
      %962 = vmatprep.subr.mxu0 0.0
      %963 = vmatpush1.msra.mxu0 0.0
      %964 = vmatprep.subr.mxu0 0.0
      %965 = vmatpush1.msra.mxu0 0.0
      %966 = vmatprep.subr.mxu0 0.0
      %967 = vmatpush1.msra.mxu0 0.0
      %968 = vmatprep.subr.mxu0 0.0
      %969 = vmatpush1.msra.mxu0 0.0
      %970 = vmatprep.subr.mxu0 0.0
      %971 = vmatpush1.msra.mxu0 0.0
      %972 = vmatprep.subr.mxu0 0.0
      %973 = vmatpush1.msra.mxu0 0.0
      %974 = vmatprep.subr.mxu0 0.0
      %975 = vmatpush1.msra.mxu0 0.0
      %976 = vmatprep.subr.mxu0 %v937
      %977 = vmatpush1.msra.mxu0 %v936
      %978 = vmatprep.subr.mxu0 0.0
      %979 = vmatpush2.msra.mxu0 0.0
      %980 = vmatprep.subr.mxu0 0.0
      %981 = vmatpush2.msra.mxu0 0.0
      %982 = vmatprep.subr.mxu0 0.0
      %983 = vmatpush2.msra.mxu0 0.0
      %984 = vmatprep.subr.mxu0 0.0
      %985 = vmatpush2.msra.mxu0 0.0
      %986 = vmatprep.subr.mxu0 0.0
      %987 = vmatpush2.msra.mxu0 0.0
      %988 = vmatprep.subr.mxu0 0.0
      %989 = vmatpush2.msra.mxu0 0.0
      %990 = vmatprep.subr.mxu0 0.0
      %991 = vmatpush2.msra.mxu0 0.0
      %992 = vmatprep.subr.mxu0 0.0
      %993 = vmatpush2.msra.mxu0 0.0
      %994 = vmatprep.subr.mxu0 0.0
      %995 = vmatpush2.msra.mxu0 0.0
      %996 = vmatprep.subr.mxu0 0.0
      %997 = vmatpush2.msra.mxu0 0.0
      %998 = vmatprep.subr.mxu0 0.0
      %999 = vmatpush2.msra.mxu0 0.0
      %1000 = vmatprep.subr.mxu0 0.0
      %1001 = vmatpush2.msra.mxu0 0.0
      %1002 = vmatprep.subr.mxu0 0.0
      %1003 = vmatpush2.msra.mxu0 0.0
      %1004 = vmatprep.subr.mxu0 0.0
      %1005 = vmatpush2.msra.mxu0 0.0
      %1006 = vmatprep.subr.mxu0 0.0
      %1007 = vmatpush2.msra.mxu0 0.0
      %1008 = vmatprep.subr.mxu0 0.0
      %1009 = vmatpush2.msra.mxu0 0.0
      %1010 = vmatprep.mubr.f32.mxu0 0.0
      %1011 = vmatmul.mubr.f32.gmra.mxu0 %v941
      %v1012 = vpop.f32.mrf.mxu0
      %v1013 = vadd.f32 0.0, %v1012
      %v1014 = vpop.f32.mrf.mxu0
      %v1015 = vadd.f32 0.0, %v1014
      %1016 = vmatprep.mubr.f32.mxu0 0.0
      %1017 = vmatmul.mubr.f32.gmra.mxu0 %v944
      %v1018 = vpop.f32.mrf.mxu0
      %v1019 = vadd.f32 0.0, %v1018
      %v1020 = vpop.f32.mrf.mxu0
      %v1021 = vadd.f32 0.0, %v1020
      %1022 = vdwg.mxu0
      %1023 = vrot.lane.b32.xlu0 %v338, 126
      %v1024 = vpop.permute.xlu0 %1023
      %1025 = vrot.lane.b32.xlu0 %v339, 126
      %v1026 = vpop.permute.xlu0 %1025
      %1027 = vrot.lane.b32.xlu0 %v342, 126
      %v1028 = vpop.permute.xlu0 %1027
      %vm1029 = vcmask 1031168
      %v1030 = vsel %vm1029, %v1024, %v1026
      %v1031 = vsel %vm1029, %v1026, %v1028
      %v1035 = vsel %vm360, %v924, 0
      %v1038 = vsel %vm360, %v925, 0
      %1040 = vmatprep.subr.mxu0 0.0
      %1041 = vmatpush1.msra.mxu0 0.0
      %1042 = vmatprep.subr.mxu0 0.0
      %1043 = vmatpush1.msra.mxu0 0.0
      %1044 = vmatprep.subr.mxu0 0.0
      %1045 = vmatpush1.msra.mxu0 0.0
      %1046 = vmatprep.subr.mxu0 0.0
      %1047 = vmatpush1.msra.mxu0 0.0
      %1048 = vmatprep.subr.mxu0 0.0
      %1049 = vmatpush1.msra.mxu0 0.0
      %1050 = vmatprep.subr.mxu0 0.0
      %1051 = vmatpush1.msra.mxu0 0.0
      %1052 = vmatprep.subr.mxu0 0.0
      %1053 = vmatpush1.msra.mxu0 0.0
      %1054 = vmatprep.subr.mxu0 0.0
      %1055 = vmatpush1.msra.mxu0 0.0
      %1056 = vmatprep.subr.mxu0 0.0
      %1057 = vmatpush1.msra.mxu0 0.0
      %1058 = vmatprep.subr.mxu0 0.0
      %1059 = vmatpush1.msra.mxu0 0.0
      %1060 = vmatprep.subr.mxu0 0.0
      %1061 = vmatpush1.msra.mxu0 0.0
      %1062 = vmatprep.subr.mxu0 0.0
      %1063 = vmatpush1.msra.mxu0 0.0
      %1064 = vmatprep.subr.mxu0 0.0
      %1065 = vmatpush1.msra.mxu0 0.0
      %1066 = vmatprep.subr.mxu0 0.0
      %1067 = vmatpush1.msra.mxu0 0.0
      %1068 = vmatprep.subr.mxu0 0.0
      %1069 = vmatpush1.msra.mxu0 0.0
      %1070 = vmatprep.subr.mxu0 %v1031
      %1071 = vmatpush1.msra.mxu0 %v1030
      %1072 = vmatprep.subr.mxu0 0.0
      %1073 = vmatpush2.msra.mxu0 0.0
      %1074 = vmatprep.subr.mxu0 0.0
      %1075 = vmatpush2.msra.mxu0 0.0
      %1076 = vmatprep.subr.mxu0 0.0
      %1077 = vmatpush2.msra.mxu0 0.0
      %1078 = vmatprep.subr.mxu0 0.0
      %1079 = vmatpush2.msra.mxu0 0.0
      %1080 = vmatprep.subr.mxu0 0.0
      %1081 = vmatpush2.msra.mxu0 0.0
      %1082 = vmatprep.subr.mxu0 0.0
      %1083 = vmatpush2.msra.mxu0 0.0
      %1084 = vmatprep.subr.mxu0 0.0
      %1085 = vmatpush2.msra.mxu0 0.0
      %1086 = vmatprep.subr.mxu0 0.0
      %1087 = vmatpush2.msra.mxu0 0.0
      %1088 = vmatprep.subr.mxu0 0.0
      %1089 = vmatpush2.msra.mxu0 0.0
      %1090 = vmatprep.subr.mxu0 0.0
      %1091 = vmatpush2.msra.mxu0 0.0
      %1092 = vmatprep.subr.mxu0 0.0
      %1093 = vmatpush2.msra.mxu0 0.0
      %1094 = vmatprep.subr.mxu0 0.0
      %1095 = vmatpush2.msra.mxu0 0.0
      %1096 = vmatprep.subr.mxu0 0.0
      %1097 = vmatpush2.msra.mxu0 0.0
      %1098 = vmatprep.subr.mxu0 0.0
      %1099 = vmatpush2.msra.mxu0 0.0
      %1100 = vmatprep.subr.mxu0 0.0
      %1101 = vmatpush2.msra.mxu0 0.0
      %1102 = vmatprep.subr.mxu0 0.0
      %1103 = vmatpush2.msra.mxu0 0.0
      %1104 = vmatprep.mubr.f32.mxu0 0.0
      %1105 = vmatmul.mubr.f32.gmra.mxu0 %v1035
      %v1106 = vpop.f32.mrf.mxu0
      %v1107 = vadd.f32 %v1013, %v1106
      %v1108 = vpop.f32.mrf.mxu0
      %v1109 = vadd.f32 %v1015, %v1108
      %1110 = vmatprep.mubr.f32.mxu0 0.0
      %1111 = vmatmul.mubr.f32.gmra.mxu0 %v1038
      %v1112 = vpop.f32.mrf.mxu0
      %v1113 = vadd.f32 %v1019, %v1112
      %v1114 = vpop.f32.mrf.mxu0
      %v1115 = vadd.f32 %v1021, %v1114
      %1116 = vdwg.mxu0
      %s1117 = scalar_lea.vmem %s1, 128
      %v1118 = vld [vmem:[%s1117] sm:$0xff]
      %v1119 = vld [vmem:[%s1117 + $0x8] sm:$0xff]
      %1120 = vrot.lane.b32.xlu0 %v338, 94
      %v1121 = vpop.permute.xlu0 %1120
      %1122 = vrot.lane.b32.xlu0 %v339, 94
      %v1123 = vpop.permute.xlu0 %1122
      %1124 = vrot.lane.b32.xlu0 %v342, 94
      %v1125 = vpop.permute.xlu0 %1124
      %vm1126 = vcmask 769024
      %v1127 = vsel %vm1126, %v1121, %v1123
      %v1128 = vsel %vm1126, %v1123, %v1125
      %v1132 = vsel %vm360, %v1118, 0
      %v1135 = vsel %vm360, %v1119, 0
      %1137 = vmatprep.subr.mxu0 0.0
      %1138 = vmatpush1.msra.mxu0 0.0
      %1139 = vmatprep.subr.mxu0 0.0
      %1140 = vmatpush1.msra.mxu0 0.0
      %1141 = vmatprep.subr.mxu0 0.0
      %1142 = vmatpush1.msra.mxu0 0.0
      %1143 = vmatprep.subr.mxu0 0.0
      %1144 = vmatpush1.msra.mxu0 0.0
      %1145 = vmatprep.subr.mxu0 0.0
      %1146 = vmatpush1.msra.mxu0 0.0
      %1147 = vmatprep.subr.mxu0 0.0
      %1148 = vmatpush1.msra.mxu0 0.0
      %1149 = vmatprep.subr.mxu0 0.0
      %1150 = vmatpush1.msra.mxu0 0.0
      %1151 = vmatprep.subr.mxu0 0.0
      %1152 = vmatpush1.msra.mxu0 0.0
      %1153 = vmatprep.subr.mxu0 0.0
      %1154 = vmatpush1.msra.mxu0 0.0
      %1155 = vmatprep.subr.mxu0 0.0
      %1156 = vmatpush1.msra.mxu0 0.0
      %1157 = vmatprep.subr.mxu0 0.0
      %1158 = vmatpush1.msra.mxu0 0.0
      %1159 = vmatprep.subr.mxu0 0.0
      %1160 = vmatpush1.msra.mxu0 0.0
      %1161 = vmatprep.subr.mxu0 0.0
      %1162 = vmatpush1.msra.mxu0 0.0
      %1163 = vmatprep.subr.mxu0 0.0
      %1164 = vmatpush1.msra.mxu0 0.0
      %1165 = vmatprep.subr.mxu0 0.0
      %1166 = vmatpush1.msra.mxu0 0.0
      %1167 = vmatprep.subr.mxu0 %v1128
      %1168 = vmatpush1.msra.mxu0 %v1127
      %1169 = vmatprep.subr.mxu0 0.0
      %1170 = vmatpush2.msra.mxu0 0.0
      %1171 = vmatprep.subr.mxu0 0.0
      %1172 = vmatpush2.msra.mxu0 0.0
      %1173 = vmatprep.subr.mxu0 0.0
      %1174 = vmatpush2.msra.mxu0 0.0
      %1175 = vmatprep.subr.mxu0 0.0
      %1176 = vmatpush2.msra.mxu0 0.0
      %1177 = vmatprep.subr.mxu0 0.0
      %1178 = vmatpush2.msra.mxu0 0.0
      %1179 = vmatprep.subr.mxu0 0.0
      %1180 = vmatpush2.msra.mxu0 0.0
      %1181 = vmatprep.subr.mxu0 0.0
      %1182 = vmatpush2.msra.mxu0 0.0
      %1183 = vmatprep.subr.mxu0 0.0
      %1184 = vmatpush2.msra.mxu0 0.0
      %1185 = vmatprep.subr.mxu0 0.0
      %1186 = vmatpush2.msra.mxu0 0.0
      %1187 = vmatprep.subr.mxu0 0.0
      %1188 = vmatpush2.msra.mxu0 0.0
      %1189 = vmatprep.subr.mxu0 0.0
      %1190 = vmatpush2.msra.mxu0 0.0
      %1191 = vmatprep.subr.mxu0 0.0
      %1192 = vmatpush2.msra.mxu0 0.0
      %1193 = vmatprep.subr.mxu0 0.0
      %1194 = vmatpush2.msra.mxu0 0.0
      %1195 = vmatprep.subr.mxu0 0.0
      %1196 = vmatpush2.msra.mxu0 0.0
      %1197 = vmatprep.subr.mxu0 0.0
      %1198 = vmatpush2.msra.mxu0 0.0
      %1199 = vmatprep.subr.mxu0 0.0
      %1200 = vmatpush2.msra.mxu0 0.0
      %1201 = vmatprep.mubr.f32.mxu0 0.0
      %1202 = vmatmul.mubr.f32.gmra.mxu0 %v1132
      %v1203 = vpop.f32.mrf.mxu0
      %v1204 = vadd.f32 0.0, %v1203
      %v1205 = vpop.f32.mrf.mxu0
      %v1206 = vadd.f32 0.0, %v1205
      %1207 = vmatprep.mubr.f32.mxu0 0.0
      %1208 = vmatmul.mubr.f32.gmra.mxu0 %v1135
      %v1209 = vpop.f32.mrf.mxu0
      %v1210 = vadd.f32 0.0, %v1209
      %v1211 = vpop.f32.mrf.mxu0
      %v1212 = vadd.f32 0.0, %v1211
      %1213 = vdwg.mxu0
      %v1214 = vadd.f32 %v1107, %v1204
      %v1215 = vadd.f32 %v1109, %v1206
      %v1216 = vadd.f32 %v1113, %v1210
      %v1217 = vadd.f32 %v1115, %v1212
      %v1218 = vmul.f32 %v624, %v278
      %v1219 = vmul.f32 %v625, %v279
      %v1220 = vmul.f32 %v626, %v278
      %v1221 = vmul.f32 %v627, %v279
      %v1222 = vadd.f32 %v1218, %v919
      %v1223 = vadd.f32 %v1219, %v920
      %v1224 = vadd.f32 %v1220, %v921
      %v1225 = vadd.f32 %v1221, %v922
      %v1226 = vmul.f32 %v1214, %v284
      %v1227 = vmul.f32 %v1215, %v285
      %v1228 = vmul.f32 %v1216, %v284
      %v1229 = vmul.f32 %v1217, %v285
      %v1230 = vadd.f32 %v1222, %v1226
      %v1231 = vadd.f32 %v1223, %v1227
      %v1232 = vadd.f32 %v1224, %v1228
      %v1233 = vadd.f32 %v1225, %v1229
      %1235 = vset.pattern.permute.xlu0 0
      %1236 = vperm.xlu0 %1235, %v303
      %v1237 = vpop.permute.xlu0 %1236
      %1240 = vset.pattern.permute.xlu0 0
      %1241 = vperm.xlu0 %1240, %v304
      %v1242 = vpop.permute.xlu0 %1241
      %v1244 = vadd.f32 %v1230, %v1237
      %v1245 = vadd.f32 %v1231, %v1237
      %v1246 = vadd.f32 %v1232, %v1242
      %v1247 = vadd.f32 %v1233, %v1242
      %v1248 = vmax.f32 %v1244, 0.0
      %v1249 = vmax.f32 %v1245, 0.0
      %v1250 = vmax.f32 %v1246, 0.0
      %v1251 = vmax.f32 %v1247, 0.0
      loop: start=0, step=1, limit=2
      $region45: #{drn_forward.1} parent=39 // loop_pre_header
        _
      $region46: #{drn_forward.1} parent=39 // loop_header
        %s1253 = sphi 0, %s1257
        %p1254 = scmp.ge.s32.totalorder %s1253, 2
        %v1258 = vphi %v1248, %v5339
        %v1259 = vphi %v1249, %v5340
        %v1260 = vphi %v1250, %v5341
        %v1261 = vphi %v1251, %v5342
      $region47: #{drn_forward.1} parent=39 // loop_header_branch
        %1256 = sbr.rel (%p1254) target = $region51
      $region48: #{drn_forward.1} parent=39 // loop_body
        %1266 = vrot.lane.b32.xlu0 %v1258, 17
        %v1267 = vpop.permute.xlu0 %1266
        %1268 = vrot.lane.b32.xlu0 %v1259, 17
        %v1269 = vpop.permute.xlu0 %1268
        %1270 = vrot.lane.b32.xlu0 %v1260, 17
        %v1271 = vpop.permute.xlu0 %1270
        %1272 = vrot.lane.b32.xlu0 %v1261, 17
        %v1273 = vpop.permute.xlu0 %1272
        %v1274 = vsel %vm290, %v1267, %v1269
        %v1275 = vsel %vm290, %v1271, %v1273
        %vm1282 = vcmask 1047688
        %1283 = vst.msk [vmem:[#allocation4] sm:$0xff] %vm1282, %v1267
        %1284 = vst [vmem:[#allocation4 + $0x8] sm:$0xff] %v1274
        %1285 = vst.msk [vmem:[#allocation4 + $0x10] sm:$0xff] %vm290, %v1269
        %1286 = vst.msk [vmem:[#allocation4 + $0x18] sm:$0xff] %vm1282, %v1271
        %1287 = vst [vmem:[#allocation4 + $0x20] sm:$0xff] %v1275
        %1288 = vst.msk [vmem:[#allocation4 + $0x28] sm:$0xff] %vm290, %v1273
        %v1289 = vld [vmem:[#allocation4] sm:$0xff]
        %v1290 = vld [vmem:[#allocation4 + $0x8] sm:$0xff]
        %v1291 = vld [vmem:[#allocation4 + $0x18] sm:$0xff]
        %v1292 = vld [vmem:[#allocation4 + $0x20] sm:$0xff]
        %v1293 = vld [vmem:[%s2] sm:$0xff]
        %v1294 = vld [vmem:[%s2 + $0x8] sm:$0xff]
        %v1295 = vld [vmem:[#allocation4 + $0x10] sm:$0xff]
        %v1296 = vld [vmem:[#allocation4 + $0x28] sm:$0xff]
        %s1297 = scalar_lea.vmem %s2, 48
        %v1298 = vld [vmem:[%s1297] sm:$0xff]
        %v1299 = vld [vmem:[%s1297 + $0x8] sm:$0xff]
        %1306 = vrot.lane.b32.xlu0 %v1289, 112
        %v1307 = vpop.permute.xlu0 %1306
        %1308 = vrot.lane.b32.xlu0 %v1290, 112
        %v1309 = vpop.permute.xlu0 %1308
        %1310 = vrot.lane.b32.xlu0 %v1295, 112
        %v1311 = vpop.permute.xlu0 %1310
        %1312 = vrot.lane.b32.xlu0 %v1291, 112
        %v1313 = vpop.permute.xlu0 %1312
        %1314 = vrot.lane.b32.xlu0 %v1292, 112
        %v1315 = vpop.permute.xlu0 %1314
        %1316 = vrot.lane.b32.xlu0 %v1296, 112
        %v1317 = vpop.permute.xlu0 %1316
        %v1318 = vsel %vm355, %v1307, %v1309
        %v1319 = vsel %vm355, %v1309, %v1311
        %v1320 = vsel %vm355, %v1313, %v1315
        %v1321 = vsel %vm355, %v1315, %v1317
        %vm1326 = vcmask 130048
        %v1328 = vsel %vm1326, %v1298, 0
        %v1331 = vsel %vm1326, %v1299, 0
        %1333 = vmatprep.subr.mxu0 0.0
        %1334 = vmatpush1.msra.mxu0 0.0
        %1335 = vmatprep.subr.mxu0 0.0
        %1336 = vmatpush1.msra.mxu0 0.0
        %1337 = vmatprep.subr.mxu0 0.0
        %1338 = vmatpush1.msra.mxu0 0.0
        %1339 = vmatprep.subr.mxu0 0.0
        %1340 = vmatpush1.msra.mxu0 0.0
        %1341 = vmatprep.subr.mxu0 0.0
        %1342 = vmatpush1.msra.mxu0 0.0
        %1343 = vmatprep.subr.mxu0 0.0
        %1344 = vmatpush1.msra.mxu0 0.0
        %1345 = vmatprep.subr.mxu0 0.0
        %1346 = vmatpush1.msra.mxu0 0.0
        %1347 = vmatprep.subr.mxu0 0.0
        %1348 = vmatpush1.msra.mxu0 0.0
        %1349 = vmatprep.subr.mxu0 0.0
        %1350 = vmatpush1.msra.mxu0 0.0
        %1351 = vmatprep.subr.mxu0 0.0
        %1352 = vmatpush1.msra.mxu0 0.0
        %1353 = vmatprep.subr.mxu0 0.0
        %1354 = vmatpush1.msra.mxu0 0.0
        %1355 = vmatprep.subr.mxu0 0.0
        %1356 = vmatpush1.msra.mxu0 0.0
        %1357 = vmatprep.subr.mxu0 0.0
        %1358 = vmatpush1.msra.mxu0 0.0
        %1359 = vmatprep.subr.mxu0 0.0
        %1360 = vmatpush1.msra.mxu0 0.0
        %1361 = vmatprep.subr.mxu0 %v1321
        %1362 = vmatpush1.msra.mxu0 %v1320
        %1363 = vmatprep.subr.mxu0 %v1319
        %1364 = vmatpush1.msra.mxu0 %v1318
        %1365 = vmatprep.subr.mxu0 0.0
        %1366 = vmatpush2.msra.mxu0 0.0
        %1367 = vmatprep.subr.mxu0 0.0
        %1368 = vmatpush2.msra.mxu0 0.0
        %1369 = vmatprep.subr.mxu0 0.0
        %1370 = vmatpush2.msra.mxu0 0.0
        %1371 = vmatprep.subr.mxu0 0.0
        %1372 = vmatpush2.msra.mxu0 0.0
        %1373 = vmatprep.subr.mxu0 0.0
        %1374 = vmatpush2.msra.mxu0 0.0
        %1375 = vmatprep.subr.mxu0 0.0
        %1376 = vmatpush2.msra.mxu0 0.0
        %1377 = vmatprep.subr.mxu0 0.0
        %1378 = vmatpush2.msra.mxu0 0.0
        %1379 = vmatprep.subr.mxu0 0.0
        %1380 = vmatpush2.msra.mxu0 0.0
        %1381 = vmatprep.subr.mxu0 0.0
        %1382 = vmatpush2.msra.mxu0 0.0
        %1383 = vmatprep.subr.mxu0 0.0
        %1384 = vmatpush2.msra.mxu0 0.0
        %1385 = vmatprep.subr.mxu0 0.0
        %1386 = vmatpush2.msra.mxu0 0.0
        %1387 = vmatprep.subr.mxu0 0.0
        %1388 = vmatpush2.msra.mxu0 0.0
        %1389 = vmatprep.subr.mxu0 0.0
        %1390 = vmatpush2.msra.mxu0 0.0
        %1391 = vmatprep.subr.mxu0 0.0
        %1392 = vmatpush2.msra.mxu0 0.0
        %1393 = vmatprep.subr.mxu0 0.0
        %1394 = vmatpush2.msra.mxu0 0.0
        %1395 = vmatprep.subr.mxu0 0.0
        %1396 = vmatpush2.msra.mxu0 0.0
        %1397 = vmatprep.mubr.f32.mxu0 0.0
        %1398 = vmatmul.mubr.f32.gmra.mxu0 %v1328
        %v1399 = vpop.f32.mrf.mxu0
        %v1400 = vadd.f32 0.0, %v1399
        %v1401 = vpop.f32.mrf.mxu0
        %v1402 = vadd.f32 0.0, %v1401
        %1403 = vmatprep.mubr.f32.mxu0 0.0
        %1404 = vmatmul.mubr.f32.gmra.mxu0 %v1331
        %v1405 = vpop.f32.mrf.mxu0
        %v1406 = vadd.f32 0.0, %v1405
        %v1407 = vpop.f32.mrf.mxu0
        %v1408 = vadd.f32 0.0, %v1407
        %1409 = vdwg.mxu0
        %v1411 = vsel %vm1326, %v1293, 0
        %v1414 = vsel %vm1326, %v1294, 0
        %1416 = vmatprep.subr.mxu0 0.0
        %1417 = vmatpush1.msra.mxu0 0.0
        %1418 = vmatprep.subr.mxu0 0.0
        %1419 = vmatpush1.msra.mxu0 0.0
        %1420 = vmatprep.subr.mxu0 0.0
        %1421 = vmatpush1.msra.mxu0 0.0
        %1422 = vmatprep.subr.mxu0 0.0
        %1423 = vmatpush1.msra.mxu0 0.0
        %1424 = vmatprep.subr.mxu0 0.0
        %1425 = vmatpush1.msra.mxu0 0.0
        %1426 = vmatprep.subr.mxu0 0.0
        %1427 = vmatpush1.msra.mxu0 0.0
        %1428 = vmatprep.subr.mxu0 0.0
        %1429 = vmatpush1.msra.mxu0 0.0
        %1430 = vmatprep.subr.mxu0 0.0
        %1431 = vmatpush1.msra.mxu0 0.0
        %1432 = vmatprep.subr.mxu0 0.0
        %1433 = vmatpush1.msra.mxu0 0.0
        %1434 = vmatprep.subr.mxu0 0.0
        %1435 = vmatpush1.msra.mxu0 0.0
        %1436 = vmatprep.subr.mxu0 0.0
        %1437 = vmatpush1.msra.mxu0 0.0
        %1438 = vmatprep.subr.mxu0 0.0
        %1439 = vmatpush1.msra.mxu0 0.0
        %1440 = vmatprep.subr.mxu0 0.0
        %1441 = vmatpush1.msra.mxu0 0.0
        %1442 = vmatprep.subr.mxu0 0.0
        %1443 = vmatpush1.msra.mxu0 0.0
        %1444 = vmatprep.subr.mxu0 %v1292
        %1445 = vmatpush1.msra.mxu0 %v1291
        %1446 = vmatprep.subr.mxu0 %v1290
        %1447 = vmatpush1.msra.mxu0 %v1289
        %1448 = vmatprep.subr.mxu0 0.0
        %1449 = vmatpush2.msra.mxu0 0.0
        %1450 = vmatprep.subr.mxu0 0.0
        %1451 = vmatpush2.msra.mxu0 0.0
        %1452 = vmatprep.subr.mxu0 0.0
        %1453 = vmatpush2.msra.mxu0 0.0
        %1454 = vmatprep.subr.mxu0 0.0
        %1455 = vmatpush2.msra.mxu0 0.0
        %1456 = vmatprep.subr.mxu0 0.0
        %1457 = vmatpush2.msra.mxu0 0.0
        %1458 = vmatprep.subr.mxu0 0.0
        %1459 = vmatpush2.msra.mxu0 0.0
        %1460 = vmatprep.subr.mxu0 0.0
        %1461 = vmatpush2.msra.mxu0 0.0
        %1462 = vmatprep.subr.mxu0 0.0
        %1463 = vmatpush2.msra.mxu0 0.0
        %1464 = vmatprep.subr.mxu0 0.0
        %1465 = vmatpush2.msra.mxu0 0.0
        %1466 = vmatprep.subr.mxu0 0.0
        %1467 = vmatpush2.msra.mxu0 0.0
        %1468 = vmatprep.subr.mxu0 0.0
        %1469 = vmatpush2.msra.mxu0 0.0
        %1470 = vmatprep.subr.mxu0 0.0
        %1471 = vmatpush2.msra.mxu0 0.0
        %1472 = vmatprep.subr.mxu0 0.0
        %1473 = vmatpush2.msra.mxu0 0.0
        %1474 = vmatprep.subr.mxu0 0.0
        %1475 = vmatpush2.msra.mxu0 0.0
        %1476 = vmatprep.subr.mxu0 0.0
        %1477 = vmatpush2.msra.mxu0 0.0
        %1478 = vmatprep.subr.mxu0 0.0
        %1479 = vmatpush2.msra.mxu0 0.0
        %1480 = vmatprep.mubr.f32.mxu0 0.0
        %1481 = vmatmul.mubr.f32.gmra.mxu0 %v1411
        %v1482 = vpop.f32.mrf.mxu0
        %v1483 = vadd.f32 %v1400, %v1482
        %v1484 = vpop.f32.mrf.mxu0
        %v1485 = vadd.f32 %v1402, %v1484
        %1486 = vmatprep.mubr.f32.mxu0 0.0
        %1487 = vmatmul.mubr.f32.gmra.mxu0 %v1414
        %v1488 = vpop.f32.mrf.mxu0
        %v1489 = vadd.f32 %v1406, %v1488
        %v1490 = vpop.f32.mrf.mxu0
        %v1491 = vadd.f32 %v1408, %v1490
        %1492 = vdwg.mxu0
        %s1493 = scalar_lea.vmem %s2, 96
        %v1494 = vld [vmem:[%s1493] sm:$0xff]
        %v1495 = vld [vmem:[%s1493 + $0x8] sm:$0xff]
        %1496 = vrot.lane.b32.xlu0 %v1289, 96
        %v1497 = vpop.permute.xlu0 %1496
        %1498 = vrot.lane.b32.xlu0 %v1290, 96
        %v1499 = vpop.permute.xlu0 %1498
        %1500 = vrot.lane.b32.xlu0 %v1295, 96
        %v1501 = vpop.permute.xlu0 %1500
        %1502 = vrot.lane.b32.xlu0 %v1291, 96
        %v1503 = vpop.permute.xlu0 %1502
        %1504 = vrot.lane.b32.xlu0 %v1292, 96
        %v1505 = vpop.permute.xlu0 %1504
        %1506 = vrot.lane.b32.xlu0 %v1296, 96
        %v1507 = vpop.permute.xlu0 %1506
        %v1508 = vsel %vm536, %v1497, %v1499
        %v1509 = vsel %vm536, %v1499, %v1501
        %v1510 = vsel %vm536, %v1503, %v1505
        %v1511 = vsel %vm536, %v1505, %v1507
        %v1517 = vsel %vm1326, %v1494, 0
        %v1520 = vsel %vm1326, %v1495, 0
        %1522 = vmatprep.subr.mxu0 0.0
        %1523 = vmatpush1.msra.mxu0 0.0
        %1524 = vmatprep.subr.mxu0 0.0
        %1525 = vmatpush1.msra.mxu0 0.0
        %1526 = vmatprep.subr.mxu0 0.0
        %1527 = vmatpush1.msra.mxu0 0.0
        %1528 = vmatprep.subr.mxu0 0.0
        %1529 = vmatpush1.msra.mxu0 0.0
        %1530 = vmatprep.subr.mxu0 0.0
        %1531 = vmatpush1.msra.mxu0 0.0
        %1532 = vmatprep.subr.mxu0 0.0
        %1533 = vmatpush1.msra.mxu0 0.0
        %1534 = vmatprep.subr.mxu0 0.0
        %1535 = vmatpush1.msra.mxu0 0.0
        %1536 = vmatprep.subr.mxu0 0.0
        %1537 = vmatpush1.msra.mxu0 0.0
        %1538 = vmatprep.subr.mxu0 0.0
        %1539 = vmatpush1.msra.mxu0 0.0
        %1540 = vmatprep.subr.mxu0 0.0
        %1541 = vmatpush1.msra.mxu0 0.0
        %1542 = vmatprep.subr.mxu0 0.0
        %1543 = vmatpush1.msra.mxu0 0.0
        %1544 = vmatprep.subr.mxu0 0.0
        %1545 = vmatpush1.msra.mxu0 0.0
        %1546 = vmatprep.subr.mxu0 0.0
        %1547 = vmatpush1.msra.mxu0 0.0
        %1548 = vmatprep.subr.mxu0 0.0
        %1549 = vmatpush1.msra.mxu0 0.0
        %1550 = vmatprep.subr.mxu0 %v1511
        %1551 = vmatpush1.msra.mxu0 %v1510
        %1552 = vmatprep.subr.mxu0 %v1509
        %1553 = vmatpush1.msra.mxu0 %v1508
        %1554 = vmatprep.subr.mxu0 0.0
        %1555 = vmatpush2.msra.mxu0 0.0
        %1556 = vmatprep.subr.mxu0 0.0
        %1557 = vmatpush2.msra.mxu0 0.0
        %1558 = vmatprep.subr.mxu0 0.0
        %1559 = vmatpush2.msra.mxu0 0.0
        %1560 = vmatprep.subr.mxu0 0.0
        %1561 = vmatpush2.msra.mxu0 0.0
        %1562 = vmatprep.subr.mxu0 0.0
        %1563 = vmatpush2.msra.mxu0 0.0
        %1564 = vmatprep.subr.mxu0 0.0
        %1565 = vmatpush2.msra.mxu0 0.0
        %1566 = vmatprep.subr.mxu0 0.0
        %1567 = vmatpush2.msra.mxu0 0.0
        %1568 = vmatprep.subr.mxu0 0.0
        %1569 = vmatpush2.msra.mxu0 0.0
        %1570 = vmatprep.subr.mxu0 0.0
        %1571 = vmatpush2.msra.mxu0 0.0
        %1572 = vmatprep.subr.mxu0 0.0
        %1573 = vmatpush2.msra.mxu0 0.0
        %1574 = vmatprep.subr.mxu0 0.0
        %1575 = vmatpush2.msra.mxu0 0.0
        %1576 = vmatprep.subr.mxu0 0.0
        %1577 = vmatpush2.msra.mxu0 0.0
        %1578 = vmatprep.subr.mxu0 0.0
        %1579 = vmatpush2.msra.mxu0 0.0
        %1580 = vmatprep.subr.mxu0 0.0
        %1581 = vmatpush2.msra.mxu0 0.0
        %1582 = vmatprep.subr.mxu0 0.0
        %1583 = vmatpush2.msra.mxu0 0.0
        %1584 = vmatprep.subr.mxu0 0.0
        %1585 = vmatpush2.msra.mxu0 0.0
        %1586 = vmatprep.mubr.f32.mxu0 0.0
        %1587 = vmatmul.mubr.f32.gmra.mxu0 %v1517
        %v1588 = vpop.f32.mrf.mxu0
        %v1589 = vadd.f32 0.0, %v1588
        %v1590 = vpop.f32.mrf.mxu0
        %v1591 = vadd.f32 0.0, %v1590
        %1592 = vmatprep.mubr.f32.mxu0 0.0
        %1593 = vmatmul.mubr.f32.gmra.mxu0 %v1520
        %v1594 = vpop.f32.mrf.mxu0
        %v1595 = vadd.f32 0.0, %v1594
        %v1596 = vpop.f32.mrf.mxu0
        %v1597 = vadd.f32 0.0, %v1596
        %1598 = vdwg.mxu0
        %v1599 = vadd.f32 %v1483, %v1589
        %v1600 = vadd.f32 %v1485, %v1591
        %v1601 = vadd.f32 %v1489, %v1595
        %v1602 = vadd.f32 %v1491, %v1597
        %s1603 = scalar_lea.vmem %s2, 16
        %v1604 = vld [vmem:[%s1603] sm:$0xff]
        %v1605 = vld [vmem:[%s1603 + $0x8] sm:$0xff]
        %s1606 = scalar_lea.vmem %s2, 64
        %v1607 = vld [vmem:[%s1606] sm:$0xff]
        %v1608 = vld [vmem:[%s1606 + $0x8] sm:$0xff]
        %1609 = vrot.lane.b32.xlu0 %v1289, 111
        %v1610 = vpop.permute.xlu0 %1609
        %1611 = vrot.lane.b32.xlu0 %v1290, 111
        %v1612 = vpop.permute.xlu0 %1611
        %1613 = vrot.lane.b32.xlu0 %v1295, 111
        %v1614 = vpop.permute.xlu0 %1613
        %1615 = vrot.lane.b32.xlu0 %v1291, 111
        %v1616 = vpop.permute.xlu0 %1615
        %1617 = vrot.lane.b32.xlu0 %v1292, 111
        %v1618 = vpop.permute.xlu0 %1617
        %1619 = vrot.lane.b32.xlu0 %v1296, 111
        %v1620 = vpop.permute.xlu0 %1619
        %v1621 = vsel %vm640, %v1610, %v1612
        %v1622 = vsel %vm640, %v1612, %v1614
        %v1623 = vsel %vm640, %v1616, %v1618
        %v1624 = vsel %vm640, %v1618, %v1620
        %v1630 = vsel %vm1326, %v1607, 0
        %v1633 = vsel %vm1326, %v1608, 0
        %1635 = vmatprep.subr.mxu0 0.0
        %1636 = vmatpush1.msra.mxu0 0.0
        %1637 = vmatprep.subr.mxu0 0.0
        %1638 = vmatpush1.msra.mxu0 0.0
        %1639 = vmatprep.subr.mxu0 0.0
        %1640 = vmatpush1.msra.mxu0 0.0
        %1641 = vmatprep.subr.mxu0 0.0
        %1642 = vmatpush1.msra.mxu0 0.0
        %1643 = vmatprep.subr.mxu0 0.0
        %1644 = vmatpush1.msra.mxu0 0.0
        %1645 = vmatprep.subr.mxu0 0.0
        %1646 = vmatpush1.msra.mxu0 0.0
        %1647 = vmatprep.subr.mxu0 0.0
        %1648 = vmatpush1.msra.mxu0 0.0
        %1649 = vmatprep.subr.mxu0 0.0
        %1650 = vmatpush1.msra.mxu0 0.0
        %1651 = vmatprep.subr.mxu0 0.0
        %1652 = vmatpush1.msra.mxu0 0.0
        %1653 = vmatprep.subr.mxu0 0.0
        %1654 = vmatpush1.msra.mxu0 0.0
        %1655 = vmatprep.subr.mxu0 0.0
        %1656 = vmatpush1.msra.mxu0 0.0
        %1657 = vmatprep.subr.mxu0 0.0
        %1658 = vmatpush1.msra.mxu0 0.0
        %1659 = vmatprep.subr.mxu0 0.0
        %1660 = vmatpush1.msra.mxu0 0.0
        %1661 = vmatprep.subr.mxu0 0.0
        %1662 = vmatpush1.msra.mxu0 0.0
        %1663 = vmatprep.subr.mxu0 %v1624
        %1664 = vmatpush1.msra.mxu0 %v1623
        %1665 = vmatprep.subr.mxu0 %v1622
        %1666 = vmatpush1.msra.mxu0 %v1621
        %1667 = vmatprep.subr.mxu0 0.0
        %1668 = vmatpush2.msra.mxu0 0.0
        %1669 = vmatprep.subr.mxu0 0.0
        %1670 = vmatpush2.msra.mxu0 0.0
        %1671 = vmatprep.subr.mxu0 0.0
        %1672 = vmatpush2.msra.mxu0 0.0
        %1673 = vmatprep.subr.mxu0 0.0
        %1674 = vmatpush2.msra.mxu0 0.0
        %1675 = vmatprep.subr.mxu0 0.0
        %1676 = vmatpush2.msra.mxu0 0.0
        %1677 = vmatprep.subr.mxu0 0.0
        %1678 = vmatpush2.msra.mxu0 0.0
        %1679 = vmatprep.subr.mxu0 0.0
        %1680 = vmatpush2.msra.mxu0 0.0
        %1681 = vmatprep.subr.mxu0 0.0
        %1682 = vmatpush2.msra.mxu0 0.0
        %1683 = vmatprep.subr.mxu0 0.0
        %1684 = vmatpush2.msra.mxu0 0.0
        %1685 = vmatprep.subr.mxu0 0.0
        %1686 = vmatpush2.msra.mxu0 0.0
        %1687 = vmatprep.subr.mxu0 0.0
        %1688 = vmatpush2.msra.mxu0 0.0
        %1689 = vmatprep.subr.mxu0 0.0
        %1690 = vmatpush2.msra.mxu0 0.0
        %1691 = vmatprep.subr.mxu0 0.0
        %1692 = vmatpush2.msra.mxu0 0.0
        %1693 = vmatprep.subr.mxu0 0.0
        %1694 = vmatpush2.msra.mxu0 0.0
        %1695 = vmatprep.subr.mxu0 0.0
        %1696 = vmatpush2.msra.mxu0 0.0
        %1697 = vmatprep.subr.mxu0 0.0
        %1698 = vmatpush2.msra.mxu0 0.0
        %1699 = vmatprep.mubr.f32.mxu0 0.0
        %1700 = vmatmul.mubr.f32.gmra.mxu0 %v1630
        %v1701 = vpop.f32.mrf.mxu0
        %v1702 = vadd.f32 0.0, %v1701
        %v1703 = vpop.f32.mrf.mxu0
        %v1704 = vadd.f32 0.0, %v1703
        %1705 = vmatprep.mubr.f32.mxu0 0.0
        %1706 = vmatmul.mubr.f32.gmra.mxu0 %v1633
        %v1707 = vpop.f32.mrf.mxu0
        %v1708 = vadd.f32 0.0, %v1707
        %v1709 = vpop.f32.mrf.mxu0
        %v1710 = vadd.f32 0.0, %v1709
        %1711 = vdwg.mxu0
        %1712 = vrot.lane.b32.xlu0 %v1289, 127
        %v1713 = vpop.permute.xlu0 %1712
        %1714 = vrot.lane.b32.xlu0 %v1290, 127
        %v1715 = vpop.permute.xlu0 %1714
        %1716 = vrot.lane.b32.xlu0 %v1295, 127
        %v1717 = vpop.permute.xlu0 %1716
        %1718 = vrot.lane.b32.xlu0 %v1291, 127
        %v1719 = vpop.permute.xlu0 %1718
        %1720 = vrot.lane.b32.xlu0 %v1292, 127
        %v1721 = vpop.permute.xlu0 %1720
        %1722 = vrot.lane.b32.xlu0 %v1296, 127
        %v1723 = vpop.permute.xlu0 %1722
        %v1724 = vsel %vm734, %v1713, %v1715
        %v1725 = vsel %vm734, %v1715, %v1717
        %v1726 = vsel %vm734, %v1719, %v1721
        %v1727 = vsel %vm734, %v1721, %v1723
        %v1733 = vsel %vm1326, %v1604, 0
        %v1736 = vsel %vm1326, %v1605, 0
        %1738 = vmatprep.subr.mxu0 0.0
        %1739 = vmatpush1.msra.mxu0 0.0
        %1740 = vmatprep.subr.mxu0 0.0
        %1741 = vmatpush1.msra.mxu0 0.0
        %1742 = vmatprep.subr.mxu0 0.0
        %1743 = vmatpush1.msra.mxu0 0.0
        %1744 = vmatprep.subr.mxu0 0.0
        %1745 = vmatpush1.msra.mxu0 0.0
        %1746 = vmatprep.subr.mxu0 0.0
        %1747 = vmatpush1.msra.mxu0 0.0
        %1748 = vmatprep.subr.mxu0 0.0
        %1749 = vmatpush1.msra.mxu0 0.0
        %1750 = vmatprep.subr.mxu0 0.0
        %1751 = vmatpush1.msra.mxu0 0.0
        %1752 = vmatprep.subr.mxu0 0.0
        %1753 = vmatpush1.msra.mxu0 0.0
        %1754 = vmatprep.subr.mxu0 0.0
        %1755 = vmatpush1.msra.mxu0 0.0
        %1756 = vmatprep.subr.mxu0 0.0
        %1757 = vmatpush1.msra.mxu0 0.0
        %1758 = vmatprep.subr.mxu0 0.0
        %1759 = vmatpush1.msra.mxu0 0.0
        %1760 = vmatprep.subr.mxu0 0.0
        %1761 = vmatpush1.msra.mxu0 0.0
        %1762 = vmatprep.subr.mxu0 0.0
        %1763 = vmatpush1.msra.mxu0 0.0
        %1764 = vmatprep.subr.mxu0 0.0
        %1765 = vmatpush1.msra.mxu0 0.0
        %1766 = vmatprep.subr.mxu0 %v1727
        %1767 = vmatpush1.msra.mxu0 %v1726
        %1768 = vmatprep.subr.mxu0 %v1725
        %1769 = vmatpush1.msra.mxu0 %v1724
        %1770 = vmatprep.subr.mxu0 0.0
        %1771 = vmatpush2.msra.mxu0 0.0
        %1772 = vmatprep.subr.mxu0 0.0
        %1773 = vmatpush2.msra.mxu0 0.0
        %1774 = vmatprep.subr.mxu0 0.0
        %1775 = vmatpush2.msra.mxu0 0.0
        %1776 = vmatprep.subr.mxu0 0.0
        %1777 = vmatpush2.msra.mxu0 0.0
        %1778 = vmatprep.subr.mxu0 0.0
        %1779 = vmatpush2.msra.mxu0 0.0
        %1780 = vmatprep.subr.mxu0 0.0
        %1781 = vmatpush2.msra.mxu0 0.0
        %1782 = vmatprep.subr.mxu0 0.0
        %1783 = vmatpush2.msra.mxu0 0.0
        %1784 = vmatprep.subr.mxu0 0.0
        %1785 = vmatpush2.msra.mxu0 0.0
        %1786 = vmatprep.subr.mxu0 0.0
        %1787 = vmatpush2.msra.mxu0 0.0
        %1788 = vmatprep.subr.mxu0 0.0
        %1789 = vmatpush2.msra.mxu0 0.0
        %1790 = vmatprep.subr.mxu0 0.0
        %1791 = vmatpush2.msra.mxu0 0.0
        %1792 = vmatprep.subr.mxu0 0.0
        %1793 = vmatpush2.msra.mxu0 0.0
        %1794 = vmatprep.subr.mxu0 0.0
        %1795 = vmatpush2.msra.mxu0 0.0
        %1796 = vmatprep.subr.mxu0 0.0
        %1797 = vmatpush2.msra.mxu0 0.0
        %1798 = vmatprep.subr.mxu0 0.0
        %1799 = vmatpush2.msra.mxu0 0.0
        %1800 = vmatprep.subr.mxu0 0.0
        %1801 = vmatpush2.msra.mxu0 0.0
        %1802 = vmatprep.mubr.f32.mxu0 0.0
        %1803 = vmatmul.mubr.f32.gmra.mxu0 %v1733
        %v1804 = vpop.f32.mrf.mxu0
        %v1805 = vadd.f32 %v1702, %v1804
        %v1806 = vpop.f32.mrf.mxu0
        %v1807 = vadd.f32 %v1704, %v1806
        %1808 = vmatprep.mubr.f32.mxu0 0.0
        %1809 = vmatmul.mubr.f32.gmra.mxu0 %v1736
        %v1810 = vpop.f32.mrf.mxu0
        %v1811 = vadd.f32 %v1708, %v1810
        %v1812 = vpop.f32.mrf.mxu0
        %v1813 = vadd.f32 %v1710, %v1812
        %1814 = vdwg.mxu0
        %s1815 = scalar_lea.vmem %s2, 112
        %v1816 = vld [vmem:[%s1815] sm:$0xff]
        %v1817 = vld [vmem:[%s1815 + $0x8] sm:$0xff]
        %1818 = vrot.lane.b32.xlu0 %v1289, 95
        %v1819 = vpop.permute.xlu0 %1818
        %1820 = vrot.lane.b32.xlu0 %v1290, 95
        %v1821 = vpop.permute.xlu0 %1820
        %1822 = vrot.lane.b32.xlu0 %v1295, 95
        %v1823 = vpop.permute.xlu0 %1822
        %1824 = vrot.lane.b32.xlu0 %v1291, 95
        %v1825 = vpop.permute.xlu0 %1824
        %1826 = vrot.lane.b32.xlu0 %v1292, 95
        %v1827 = vpop.permute.xlu0 %1826
        %1828 = vrot.lane.b32.xlu0 %v1296, 95
        %v1829 = vpop.permute.xlu0 %1828
        %v1830 = vsel %vm831, %v1819, %v1821
        %v1831 = vsel %vm831, %v1821, %v1823
        %v1832 = vsel %vm831, %v1825, %v1827
        %v1833 = vsel %vm831, %v1827, %v1829
        %v1839 = vsel %vm1326, %v1816, 0
        %v1842 = vsel %vm1326, %v1817, 0
        %1844 = vmatprep.subr.mxu0 0.0
        %1845 = vmatpush1.msra.mxu0 0.0
        %1846 = vmatprep.subr.mxu0 0.0
        %1847 = vmatpush1.msra.mxu0 0.0
        %1848 = vmatprep.subr.mxu0 0.0
        %1849 = vmatpush1.msra.mxu0 0.0
        %1850 = vmatprep.subr.mxu0 0.0
        %1851 = vmatpush1.msra.mxu0 0.0
        %1852 = vmatprep.subr.mxu0 0.0
        %1853 = vmatpush1.msra.mxu0 0.0
        %1854 = vmatprep.subr.mxu0 0.0
        %1855 = vmatpush1.msra.mxu0 0.0
        %1856 = vmatprep.subr.mxu0 0.0
        %1857 = vmatpush1.msra.mxu0 0.0
        %1858 = vmatprep.subr.mxu0 0.0
        %1859 = vmatpush1.msra.mxu0 0.0
        %1860 = vmatprep.subr.mxu0 0.0
        %1861 = vmatpush1.msra.mxu0 0.0
        %1862 = vmatprep.subr.mxu0 0.0
        %1863 = vmatpush1.msra.mxu0 0.0
        %1864 = vmatprep.subr.mxu0 0.0
        %1865 = vmatpush1.msra.mxu0 0.0
        %1866 = vmatprep.subr.mxu0 0.0
        %1867 = vmatpush1.msra.mxu0 0.0
        %1868 = vmatprep.subr.mxu0 0.0
        %1869 = vmatpush1.msra.mxu0 0.0
        %1870 = vmatprep.subr.mxu0 0.0
        %1871 = vmatpush1.msra.mxu0 0.0
        %1872 = vmatprep.subr.mxu0 %v1833
        %1873 = vmatpush1.msra.mxu0 %v1832
        %1874 = vmatprep.subr.mxu0 %v1831
        %1875 = vmatpush1.msra.mxu0 %v1830
        %1876 = vmatprep.subr.mxu0 0.0
        %1877 = vmatpush2.msra.mxu0 0.0
        %1878 = vmatprep.subr.mxu0 0.0
        %1879 = vmatpush2.msra.mxu0 0.0
        %1880 = vmatprep.subr.mxu0 0.0
        %1881 = vmatpush2.msra.mxu0 0.0
        %1882 = vmatprep.subr.mxu0 0.0
        %1883 = vmatpush2.msra.mxu0 0.0
        %1884 = vmatprep.subr.mxu0 0.0
        %1885 = vmatpush2.msra.mxu0 0.0
        %1886 = vmatprep.subr.mxu0 0.0
        %1887 = vmatpush2.msra.mxu0 0.0
        %1888 = vmatprep.subr.mxu0 0.0
        %1889 = vmatpush2.msra.mxu0 0.0
        %1890 = vmatprep.subr.mxu0 0.0
        %1891 = vmatpush2.msra.mxu0 0.0
        %1892 = vmatprep.subr.mxu0 0.0
        %1893 = vmatpush2.msra.mxu0 0.0
        %1894 = vmatprep.subr.mxu0 0.0
        %1895 = vmatpush2.msra.mxu0 0.0
        %1896 = vmatprep.subr.mxu0 0.0
        %1897 = vmatpush2.msra.mxu0 0.0
        %1898 = vmatprep.subr.mxu0 0.0
        %1899 = vmatpush2.msra.mxu0 0.0
        %1900 = vmatprep.subr.mxu0 0.0
        %1901 = vmatpush2.msra.mxu0 0.0
        %1902 = vmatprep.subr.mxu0 0.0
        %1903 = vmatpush2.msra.mxu0 0.0
        %1904 = vmatprep.subr.mxu0 0.0
        %1905 = vmatpush2.msra.mxu0 0.0
        %1906 = vmatprep.subr.mxu0 0.0
        %1907 = vmatpush2.msra.mxu0 0.0
        %1908 = vmatprep.mubr.f32.mxu0 0.0
        %1909 = vmatmul.mubr.f32.gmra.mxu0 %v1839
        %v1910 = vpop.f32.mrf.mxu0
        %v1911 = vadd.f32 0.0, %v1910
        %v1912 = vpop.f32.mrf.mxu0
        %v1913 = vadd.f32 0.0, %v1912
        %1914 = vmatprep.mubr.f32.mxu0 0.0
        %1915 = vmatmul.mubr.f32.gmra.mxu0 %v1842
        %v1916 = vpop.f32.mrf.mxu0
        %v1917 = vadd.f32 0.0, %v1916
        %v1918 = vpop.f32.mrf.mxu0
        %v1919 = vadd.f32 0.0, %v1918
        %1920 = vdwg.mxu0
        %v1921 = vadd.f32 %v1805, %v1911
        %v1922 = vadd.f32 %v1807, %v1913
        %v1923 = vadd.f32 %v1811, %v1917
        %v1924 = vadd.f32 %v1813, %v1919
        %s1925 = scalar_lea.vmem %s2, 32
        %v1926 = vld [vmem:[%s1925] sm:$0xff]
        %v1927 = vld [vmem:[%s1925 + $0x8] sm:$0xff]
        %s1928 = scalar_lea.vmem %s2, 80
        %v1929 = vld [vmem:[%s1928] sm:$0xff]
        %v1930 = vld [vmem:[%s1928 + $0x8] sm:$0xff]
        %1931 = vrot.lane.b32.xlu0 %v1289, 110
        %v1932 = vpop.permute.xlu0 %1931
        %1933 = vrot.lane.b32.xlu0 %v1290, 110
        %v1934 = vpop.permute.xlu0 %1933
        %1935 = vrot.lane.b32.xlu0 %v1295, 110
        %v1936 = vpop.permute.xlu0 %1935
        %1937 = vrot.lane.b32.xlu0 %v1291, 110
        %v1938 = vpop.permute.xlu0 %1937
        %1939 = vrot.lane.b32.xlu0 %v1292, 110
        %v1940 = vpop.permute.xlu0 %1939
        %1941 = vrot.lane.b32.xlu0 %v1296, 110
        %v1942 = vpop.permute.xlu0 %1941
        %v1943 = vsel %vm935, %v1932, %v1934
        %v1944 = vsel %vm935, %v1934, %v1936
        %v1945 = vsel %vm935, %v1938, %v1940
        %v1946 = vsel %vm935, %v1940, %v1942
        %v1952 = vsel %vm1326, %v1929, 0
        %v1955 = vsel %vm1326, %v1930, 0
        %1957 = vmatprep.subr.mxu0 0.0
        %1958 = vmatpush1.msra.mxu0 0.0
        %1959 = vmatprep.subr.mxu0 0.0
        %1960 = vmatpush1.msra.mxu0 0.0
        %1961 = vmatprep.subr.mxu0 0.0
        %1962 = vmatpush1.msra.mxu0 0.0
        %1963 = vmatprep.subr.mxu0 0.0
        %1964 = vmatpush1.msra.mxu0 0.0
        %1965 = vmatprep.subr.mxu0 0.0
        %1966 = vmatpush1.msra.mxu0 0.0
        %1967 = vmatprep.subr.mxu0 0.0
        %1968 = vmatpush1.msra.mxu0 0.0
        %1969 = vmatprep.subr.mxu0 0.0
        %1970 = vmatpush1.msra.mxu0 0.0
        %1971 = vmatprep.subr.mxu0 0.0
        %1972 = vmatpush1.msra.mxu0 0.0
        %1973 = vmatprep.subr.mxu0 0.0
        %1974 = vmatpush1.msra.mxu0 0.0
        %1975 = vmatprep.subr.mxu0 0.0
        %1976 = vmatpush1.msra.mxu0 0.0
        %1977 = vmatprep.subr.mxu0 0.0
        %1978 = vmatpush1.msra.mxu0 0.0
        %1979 = vmatprep.subr.mxu0 0.0
        %1980 = vmatpush1.msra.mxu0 0.0
        %1981 = vmatprep.subr.mxu0 0.0
        %1982 = vmatpush1.msra.mxu0 0.0
        %1983 = vmatprep.subr.mxu0 0.0
        %1984 = vmatpush1.msra.mxu0 0.0
        %1985 = vmatprep.subr.mxu0 %v1946
        %1986 = vmatpush1.msra.mxu0 %v1945
        %1987 = vmatprep.subr.mxu0 %v1944
        %1988 = vmatpush1.msra.mxu0 %v1943
        %1989 = vmatprep.subr.mxu0 0.0
        %1990 = vmatpush2.msra.mxu0 0.0
        %1991 = vmatprep.subr.mxu0 0.0
        %1992 = vmatpush2.msra.mxu0 0.0
        %1993 = vmatprep.subr.mxu0 0.0
        %1994 = vmatpush2.msra.mxu0 0.0
        %1995 = vmatprep.subr.mxu0 0.0
        %1996 = vmatpush2.msra.mxu0 0.0
        %1997 = vmatprep.subr.mxu0 0.0
        %1998 = vmatpush2.msra.mxu0 0.0
        %1999 = vmatprep.subr.mxu0 0.0
        %2000 = vmatpush2.msra.mxu0 0.0
        %2001 = vmatprep.subr.mxu0 0.0
        %2002 = vmatpush2.msra.mxu0 0.0
        %2003 = vmatprep.subr.mxu0 0.0
        %2004 = vmatpush2.msra.mxu0 0.0
        %2005 = vmatprep.subr.mxu0 0.0
        %2006 = vmatpush2.msra.mxu0 0.0
        %2007 = vmatprep.subr.mxu0 0.0
        %2008 = vmatpush2.msra.mxu0 0.0
        %2009 = vmatprep.subr.mxu0 0.0
        %2010 = vmatpush2.msra.mxu0 0.0
        %2011 = vmatprep.subr.mxu0 0.0
        %2012 = vmatpush2.msra.mxu0 0.0
        %2013 = vmatprep.subr.mxu0 0.0
        %2014 = vmatpush2.msra.mxu0 0.0
        %2015 = vmatprep.subr.mxu0 0.0
        %2016 = vmatpush2.msra.mxu0 0.0
        %2017 = vmatprep.subr.mxu0 0.0
        %2018 = vmatpush2.msra.mxu0 0.0
        %2019 = vmatprep.subr.mxu0 0.0
        %2020 = vmatpush2.msra.mxu0 0.0
        %2021 = vmatprep.mubr.f32.mxu0 0.0
        %2022 = vmatmul.mubr.f32.gmra.mxu0 %v1952
        %v2023 = vpop.f32.mrf.mxu0
        %v2024 = vadd.f32 0.0, %v2023
        %v2025 = vpop.f32.mrf.mxu0
        %v2026 = vadd.f32 0.0, %v2025
        %2027 = vmatprep.mubr.f32.mxu0 0.0
        %2028 = vmatmul.mubr.f32.gmra.mxu0 %v1955
        %v2029 = vpop.f32.mrf.mxu0
        %v2030 = vadd.f32 0.0, %v2029
        %v2031 = vpop.f32.mrf.mxu0
        %v2032 = vadd.f32 0.0, %v2031
        %2033 = vdwg.mxu0
        %2034 = vrot.lane.b32.xlu0 %v1289, 126
        %v2035 = vpop.permute.xlu0 %2034
        %2036 = vrot.lane.b32.xlu0 %v1290, 126
        %v2037 = vpop.permute.xlu0 %2036
        %2038 = vrot.lane.b32.xlu0 %v1295, 126
        %v2039 = vpop.permute.xlu0 %2038
        %2040 = vrot.lane.b32.xlu0 %v1291, 126
        %v2041 = vpop.permute.xlu0 %2040
        %2042 = vrot.lane.b32.xlu0 %v1292, 126
        %v2043 = vpop.permute.xlu0 %2042
        %2044 = vrot.lane.b32.xlu0 %v1296, 126
        %v2045 = vpop.permute.xlu0 %2044
        %v2046 = vsel %vm1029, %v2035, %v2037
        %v2047 = vsel %vm1029, %v2037, %v2039
        %v2048 = vsel %vm1029, %v2041, %v2043
        %v2049 = vsel %vm1029, %v2043, %v2045
        %v2055 = vsel %vm1326, %v1926, 0
        %v2058 = vsel %vm1326, %v1927, 0
        %2060 = vmatprep.subr.mxu0 0.0
        %2061 = vmatpush1.msra.mxu0 0.0
        %2062 = vmatprep.subr.mxu0 0.0
        %2063 = vmatpush1.msra.mxu0 0.0
        %2064 = vmatprep.subr.mxu0 0.0
        %2065 = vmatpush1.msra.mxu0 0.0
        %2066 = vmatprep.subr.mxu0 0.0
        %2067 = vmatpush1.msra.mxu0 0.0
        %2068 = vmatprep.subr.mxu0 0.0
        %2069 = vmatpush1.msra.mxu0 0.0
        %2070 = vmatprep.subr.mxu0 0.0
        %2071 = vmatpush1.msra.mxu0 0.0
        %2072 = vmatprep.subr.mxu0 0.0
        %2073 = vmatpush1.msra.mxu0 0.0
        %2074 = vmatprep.subr.mxu0 0.0
        %2075 = vmatpush1.msra.mxu0 0.0
        %2076 = vmatprep.subr.mxu0 0.0
        %2077 = vmatpush1.msra.mxu0 0.0
        %2078 = vmatprep.subr.mxu0 0.0
        %2079 = vmatpush1.msra.mxu0 0.0
        %2080 = vmatprep.subr.mxu0 0.0
        %2081 = vmatpush1.msra.mxu0 0.0
        %2082 = vmatprep.subr.mxu0 0.0
        %2083 = vmatpush1.msra.mxu0 0.0
        %2084 = vmatprep.subr.mxu0 0.0
        %2085 = vmatpush1.msra.mxu0 0.0
        %2086 = vmatprep.subr.mxu0 0.0
        %2087 = vmatpush1.msra.mxu0 0.0
        %2088 = vmatprep.subr.mxu0 %v2049
        %2089 = vmatpush1.msra.mxu0 %v2048
        %2090 = vmatprep.subr.mxu0 %v2047
        %2091 = vmatpush1.msra.mxu0 %v2046
        %2092 = vmatprep.subr.mxu0 0.0
        %2093 = vmatpush2.msra.mxu0 0.0
        %2094 = vmatprep.subr.mxu0 0.0
        %2095 = vmatpush2.msra.mxu0 0.0
        %2096 = vmatprep.subr.mxu0 0.0
        %2097 = vmatpush2.msra.mxu0 0.0
        %2098 = vmatprep.subr.mxu0 0.0
        %2099 = vmatpush2.msra.mxu0 0.0
        %2100 = vmatprep.subr.mxu0 0.0
        %2101 = vmatpush2.msra.mxu0 0.0
        %2102 = vmatprep.subr.mxu0 0.0
        %2103 = vmatpush2.msra.mxu0 0.0
        %2104 = vmatprep.subr.mxu0 0.0
        %2105 = vmatpush2.msra.mxu0 0.0
        %2106 = vmatprep.subr.mxu0 0.0
        %2107 = vmatpush2.msra.mxu0 0.0
        %2108 = vmatprep.subr.mxu0 0.0
        %2109 = vmatpush2.msra.mxu0 0.0
        %2110 = vmatprep.subr.mxu0 0.0
        %2111 = vmatpush2.msra.mxu0 0.0
        %2112 = vmatprep.subr.mxu0 0.0
        %2113 = vmatpush2.msra.mxu0 0.0
        %2114 = vmatprep.subr.mxu0 0.0
        %2115 = vmatpush2.msra.mxu0 0.0
        %2116 = vmatprep.subr.mxu0 0.0
        %2117 = vmatpush2.msra.mxu0 0.0
        %2118 = vmatprep.subr.mxu0 0.0
        %2119 = vmatpush2.msra.mxu0 0.0
        %2120 = vmatprep.subr.mxu0 0.0
        %2121 = vmatpush2.msra.mxu0 0.0
        %2122 = vmatprep.subr.mxu0 0.0
        %2123 = vmatpush2.msra.mxu0 0.0
        %2124 = vmatprep.mubr.f32.mxu0 0.0
        %2125 = vmatmul.mubr.f32.gmra.mxu0 %v2055
        %v2126 = vpop.f32.mrf.mxu0
        %v2127 = vadd.f32 %v2024, %v2126
        %v2128 = vpop.f32.mrf.mxu0
        %v2129 = vadd.f32 %v2026, %v2128
        %2130 = vmatprep.mubr.f32.mxu0 0.0
        %2131 = vmatmul.mubr.f32.gmra.mxu0 %v2058
        %v2132 = vpop.f32.mrf.mxu0
        %v2133 = vadd.f32 %v2030, %v2132
        %v2134 = vpop.f32.mrf.mxu0
        %v2135 = vadd.f32 %v2032, %v2134
        %2136 = vdwg.mxu0
        %s2137 = scalar_lea.vmem %s2, 128
        %v2138 = vld [vmem:[%s2137] sm:$0xff]
        %v2139 = vld [vmem:[%s2137 + $0x8] sm:$0xff]
        %2140 = vrot.lane.b32.xlu0 %v1289, 94
        %v2141 = vpop.permute.xlu0 %2140
        %2142 = vrot.lane.b32.xlu0 %v1290, 94
        %v2143 = vpop.permute.xlu0 %2142
        %2144 = vrot.lane.b32.xlu0 %v1295, 94
        %v2145 = vpop.permute.xlu0 %2144
        %2146 = vrot.lane.b32.xlu0 %v1291, 94
        %v2147 = vpop.permute.xlu0 %2146
        %2148 = vrot.lane.b32.xlu0 %v1292, 94
        %v2149 = vpop.permute.xlu0 %2148
        %2150 = vrot.lane.b32.xlu0 %v1296, 94
        %v2151 = vpop.permute.xlu0 %2150
        %v2152 = vsel %vm1126, %v2141, %v2143
        %v2153 = vsel %vm1126, %v2143, %v2145
        %v2154 = vsel %vm1126, %v2147, %v2149
        %v2155 = vsel %vm1126, %v2149, %v2151
        %v2161 = vsel %vm1326, %v2138, 0
        %v2164 = vsel %vm1326, %v2139, 0
        %2166 = vmatprep.subr.mxu0 0.0
        %2167 = vmatpush1.msra.mxu0 0.0
        %2168 = vmatprep.subr.mxu0 0.0
        %2169 = vmatpush1.msra.mxu0 0.0
        %2170 = vmatprep.subr.mxu0 0.0
        %2171 = vmatpush1.msra.mxu0 0.0
        %2172 = vmatprep.subr.mxu0 0.0
        %2173 = vmatpush1.msra.mxu0 0.0
        %2174 = vmatprep.subr.mxu0 0.0
        %2175 = vmatpush1.msra.mxu0 0.0
        %2176 = vmatprep.subr.mxu0 0.0
        %2177 = vmatpush1.msra.mxu0 0.0
        %2178 = vmatprep.subr.mxu0 0.0
        %2179 = vmatpush1.msra.mxu0 0.0
        %2180 = vmatprep.subr.mxu0 0.0
        %2181 = vmatpush1.msra.mxu0 0.0
        %2182 = vmatprep.subr.mxu0 0.0
        %2183 = vmatpush1.msra.mxu0 0.0
        %2184 = vmatprep.subr.mxu0 0.0
        %2185 = vmatpush1.msra.mxu0 0.0
        %2186 = vmatprep.subr.mxu0 0.0
        %2187 = vmatpush1.msra.mxu0 0.0
        %2188 = vmatprep.subr.mxu0 0.0
        %2189 = vmatpush1.msra.mxu0 0.0
        %2190 = vmatprep.subr.mxu0 0.0
        %2191 = vmatpush1.msra.mxu0 0.0
        %2192 = vmatprep.subr.mxu0 0.0
        %2193 = vmatpush1.msra.mxu0 0.0
        %2194 = vmatprep.subr.mxu0 %v2155
        %2195 = vmatpush1.msra.mxu0 %v2154
        %2196 = vmatprep.subr.mxu0 %v2153
        %2197 = vmatpush1.msra.mxu0 %v2152
        %2198 = vmatprep.subr.mxu0 0.0
        %2199 = vmatpush2.msra.mxu0 0.0
        %2200 = vmatprep.subr.mxu0 0.0
        %2201 = vmatpush2.msra.mxu0 0.0
        %2202 = vmatprep.subr.mxu0 0.0
        %2203 = vmatpush2.msra.mxu0 0.0
        %2204 = vmatprep.subr.mxu0 0.0
        %2205 = vmatpush2.msra.mxu0 0.0
        %2206 = vmatprep.subr.mxu0 0.0
        %2207 = vmatpush2.msra.mxu0 0.0
        %2208 = vmatprep.subr.mxu0 0.0
        %2209 = vmatpush2.msra.mxu0 0.0
        %2210 = vmatprep.subr.mxu0 0.0
        %2211 = vmatpush2.msra.mxu0 0.0
        %2212 = vmatprep.subr.mxu0 0.0
        %2213 = vmatpush2.msra.mxu0 0.0
        %2214 = vmatprep.subr.mxu0 0.0
        %2215 = vmatpush2.msra.mxu0 0.0
        %2216 = vmatprep.subr.mxu0 0.0
        %2217 = vmatpush2.msra.mxu0 0.0
        %2218 = vmatprep.subr.mxu0 0.0
        %2219 = vmatpush2.msra.mxu0 0.0
        %2220 = vmatprep.subr.mxu0 0.0
        %2221 = vmatpush2.msra.mxu0 0.0
        %2222 = vmatprep.subr.mxu0 0.0
        %2223 = vmatpush2.msra.mxu0 0.0
        %2224 = vmatprep.subr.mxu0 0.0
        %2225 = vmatpush2.msra.mxu0 0.0
        %2226 = vmatprep.subr.mxu0 0.0
        %2227 = vmatpush2.msra.mxu0 0.0
        %2228 = vmatprep.subr.mxu0 0.0
        %2229 = vmatpush2.msra.mxu0 0.0
        %2230 = vmatprep.mubr.f32.mxu0 0.0
        %2231 = vmatmul.mubr.f32.gmra.mxu0 %v2161
        %v2232 = vpop.f32.mrf.mxu0
        %v2233 = vadd.f32 0.0, %v2232
        %v2234 = vpop.f32.mrf.mxu0
        %v2235 = vadd.f32 0.0, %v2234
        %2236 = vmatprep.mubr.f32.mxu0 0.0
        %2237 = vmatmul.mubr.f32.gmra.mxu0 %v2164
        %v2238 = vpop.f32.mrf.mxu0
        %v2239 = vadd.f32 0.0, %v2238
        %v2240 = vpop.f32.mrf.mxu0
        %v2241 = vadd.f32 0.0, %v2240
        %2242 = vdwg.mxu0
        %v2243 = vadd.f32 %v2127, %v2233
        %v2244 = vadd.f32 %v2129, %v2235
        %v2245 = vadd.f32 %v2133, %v2239
        %v2246 = vadd.f32 %v2135, %v2241
        %v2247 = vmul.f32 %v1599, %v278
        %v2248 = vmul.f32 %v1600, %v279
        %v2249 = vmul.f32 %v1601, %v278
        %v2250 = vmul.f32 %v1602, %v279
        %v2251 = vadd.f32 %v2247, %v1921
        %v2252 = vadd.f32 %v2248, %v1922
        %v2253 = vadd.f32 %v2249, %v1923
        %v2254 = vadd.f32 %v2250, %v1924
        %v2255 = vmul.f32 %v2243, %v284
        %v2256 = vmul.f32 %v2244, %v285
        %v2257 = vmul.f32 %v2245, %v284
        %v2258 = vmul.f32 %v2246, %v285
        %v2259 = vadd.f32 %v2251, %v2255
        %v2260 = vadd.f32 %v2252, %v2256
        %v2261 = vadd.f32 %v2253, %v2257
        %v2262 = vadd.f32 %v2254, %v2258
        %2263 = vset.pattern.permute.xlu0 1
        %2264 = vperm.xlu0 %2263, %v303
        %v2265 = vpop.permute.xlu0 %2264
        %2267 = vset.pattern.permute.xlu0 1
        %2268 = vperm.xlu0 %2267, %v304
        %v2269 = vpop.permute.xlu0 %2268
        %v2271 = vadd.f32 %v2259, %v2265
        %v2272 = vadd.f32 %v2260, %v2265
        %v2273 = vadd.f32 %v2261, %v2269
        %v2274 = vadd.f32 %v2262, %v2269
        %v2275 = vmax.f32 %v2271, 0.0
        %v2276 = vmax.f32 %v2272, 0.0
        %v2277 = vmax.f32 %v2273, 0.0
        %v2278 = vmax.f32 %v2274, 0.0
        %2283 = vrot.lane.b32.xlu0 %v2275, 17
        %v2284 = vpop.permute.xlu0 %2283
        %2285 = vrot.lane.b32.xlu0 %v2276, 17
        %v2286 = vpop.permute.xlu0 %2285
        %2287 = vrot.lane.b32.xlu0 %v2277, 17
        %v2288 = vpop.permute.xlu0 %2287
        %2289 = vrot.lane.b32.xlu0 %v2278, 17
        %v2290 = vpop.permute.xlu0 %2289
        %v2291 = vsel %vm290, %v2284, %v2286
        %v2292 = vsel %vm290, %v2288, %v2290
        %2299 = vst.msk [vmem:[#allocation4] sm:$0xff] %vm1282, %v2284
        %2300 = vst [vmem:[#allocation4 + $0x8] sm:$0xff] %v2291
        %2301 = vst.msk [vmem:[#allocation4 + $0x10] sm:$0xff] %vm290, %v2286
        %2302 = vst.msk [vmem:[#allocation4 + $0x18] sm:$0xff] %vm1282, %v2288
        %2303 = vst [vmem:[#allocation4 + $0x20] sm:$0xff] %v2292
        %2304 = vst.msk [vmem:[#allocation4 + $0x28] sm:$0xff] %vm290, %v2290
        %v2305 = vld [vmem:[#allocation4] sm:$0xff]
        %v2306 = vld [vmem:[#allocation4 + $0x8] sm:$0xff]
        %v2307 = vld [vmem:[#allocation4 + $0x18] sm:$0xff]
        %v2308 = vld [vmem:[#allocation4 + $0x20] sm:$0xff]
        %s2309 = scalar_lea.vmem %s2, 144
        %v2310 = vld [vmem:[%s2309] sm:$0xff]
        %v2311 = vld [vmem:[%s2309 + $0x8] sm:$0xff]
        %v2312 = vld [vmem:[#allocation4 + $0x10] sm:$0xff]
        %v2313 = vld [vmem:[#allocation4 + $0x28] sm:$0xff]
        %s2314 = scalar_lea.vmem %s2, 192
        %v2315 = vld [vmem:[%s2314] sm:$0xff]
        %v2316 = vld [vmem:[%s2314 + $0x8] sm:$0xff]
        %2323 = vrot.lane.b32.xlu0 %v2305, 112
        %v2324 = vpop.permute.xlu0 %2323
        %2325 = vrot.lane.b32.xlu0 %v2306, 112
        %v2326 = vpop.permute.xlu0 %2325
        %2327 = vrot.lane.b32.xlu0 %v2312, 112
        %v2328 = vpop.permute.xlu0 %2327
        %2329 = vrot.lane.b32.xlu0 %v2307, 112
        %v2330 = vpop.permute.xlu0 %2329
        %2331 = vrot.lane.b32.xlu0 %v2308, 112
        %v2332 = vpop.permute.xlu0 %2331
        %2333 = vrot.lane.b32.xlu0 %v2313, 112
        %v2334 = vpop.permute.xlu0 %2333
        %v2335 = vsel %vm355, %v2324, %v2326
        %v2336 = vsel %vm355, %v2326, %v2328
        %v2337 = vsel %vm355, %v2330, %v2332
        %v2338 = vsel %vm355, %v2332, %v2334
        %v2344 = vsel %vm1326, %v2315, 0
        %v2347 = vsel %vm1326, %v2316, 0
        %2349 = vmatprep.subr.mxu0 0.0
        %2350 = vmatpush1.msra.mxu0 0.0
        %2351 = vmatprep.subr.mxu0 0.0
        %2352 = vmatpush1.msra.mxu0 0.0
        %2353 = vmatprep.subr.mxu0 0.0
        %2354 = vmatpush1.msra.mxu0 0.0
        %2355 = vmatprep.subr.mxu0 0.0
        %2356 = vmatpush1.msra.mxu0 0.0
        %2357 = vmatprep.subr.mxu0 0.0
        %2358 = vmatpush1.msra.mxu0 0.0
        %2359 = vmatprep.subr.mxu0 0.0
        %2360 = vmatpush1.msra.mxu0 0.0
        %2361 = vmatprep.subr.mxu0 0.0
        %2362 = vmatpush1.msra.mxu0 0.0
        %2363 = vmatprep.subr.mxu0 0.0
        %2364 = vmatpush1.msra.mxu0 0.0
        %2365 = vmatprep.subr.mxu0 0.0
        %2366 = vmatpush1.msra.mxu0 0.0
        %2367 = vmatprep.subr.mxu0 0.0
        %2368 = vmatpush1.msra.mxu0 0.0
        %2369 = vmatprep.subr.mxu0 0.0
        %2370 = vmatpush1.msra.mxu0 0.0
        %2371 = vmatprep.subr.mxu0 0.0
        %2372 = vmatpush1.msra.mxu0 0.0
        %2373 = vmatprep.subr.mxu0 0.0
        %2374 = vmatpush1.msra.mxu0 0.0
        %2375 = vmatprep.subr.mxu0 0.0
        %2376 = vmatpush1.msra.mxu0 0.0
        %2377 = vmatprep.subr.mxu0 %v2338
        %2378 = vmatpush1.msra.mxu0 %v2337
        %2379 = vmatprep.subr.mxu0 %v2336
        %2380 = vmatpush1.msra.mxu0 %v2335
        %2381 = vmatprep.subr.mxu0 0.0
        %2382 = vmatpush2.msra.mxu0 0.0
        %2383 = vmatprep.subr.mxu0 0.0
        %2384 = vmatpush2.msra.mxu0 0.0
        %2385 = vmatprep.subr.mxu0 0.0
        %2386 = vmatpush2.msra.mxu0 0.0
        %2387 = vmatprep.subr.mxu0 0.0
        %2388 = vmatpush2.msra.mxu0 0.0
        %2389 = vmatprep.subr.mxu0 0.0
        %2390 = vmatpush2.msra.mxu0 0.0
        %2391 = vmatprep.subr.mxu0 0.0
        %2392 = vmatpush2.msra.mxu0 0.0
        %2393 = vmatprep.subr.mxu0 0.0
        %2394 = vmatpush2.msra.mxu0 0.0
        %2395 = vmatprep.subr.mxu0 0.0
        %2396 = vmatpush2.msra.mxu0 0.0
        %2397 = vmatprep.subr.mxu0 0.0
        %2398 = vmatpush2.msra.mxu0 0.0
        %2399 = vmatprep.subr.mxu0 0.0
        %2400 = vmatpush2.msra.mxu0 0.0
        %2401 = vmatprep.subr.mxu0 0.0
        %2402 = vmatpush2.msra.mxu0 0.0
        %2403 = vmatprep.subr.mxu0 0.0
        %2404 = vmatpush2.msra.mxu0 0.0
        %2405 = vmatprep.subr.mxu0 0.0
        %2406 = vmatpush2.msra.mxu0 0.0
        %2407 = vmatprep.subr.mxu0 0.0
        %2408 = vmatpush2.msra.mxu0 0.0
        %2409 = vmatprep.subr.mxu0 0.0
        %2410 = vmatpush2.msra.mxu0 0.0
        %2411 = vmatprep.subr.mxu0 0.0
        %2412 = vmatpush2.msra.mxu0 0.0
        %2413 = vmatprep.mubr.f32.mxu0 0.0
        %2414 = vmatmul.mubr.f32.gmra.mxu0 %v2344
        %v2415 = vpop.f32.mrf.mxu0
        %v2416 = vadd.f32 0.0, %v2415
        %v2417 = vpop.f32.mrf.mxu0
        %v2418 = vadd.f32 0.0, %v2417
        %2419 = vmatprep.mubr.f32.mxu0 0.0
        %2420 = vmatmul.mubr.f32.gmra.mxu0 %v2347
        %v2421 = vpop.f32.mrf.mxu0
        %v2422 = vadd.f32 0.0, %v2421
        %v2423 = vpop.f32.mrf.mxu0
        %v2424 = vadd.f32 0.0, %v2423
        %2425 = vdwg.mxu0
        %v2427 = vsel %vm1326, %v2310, 0
        %v2430 = vsel %vm1326, %v2311, 0
        %2432 = vmatprep.subr.mxu0 0.0
        %2433 = vmatpush1.msra.mxu0 0.0
        %2434 = vmatprep.subr.mxu0 0.0
        %2435 = vmatpush1.msra.mxu0 0.0
        %2436 = vmatprep.subr.mxu0 0.0
        %2437 = vmatpush1.msra.mxu0 0.0
        %2438 = vmatprep.subr.mxu0 0.0
        %2439 = vmatpush1.msra.mxu0 0.0
        %2440 = vmatprep.subr.mxu0 0.0
        %2441 = vmatpush1.msra.mxu0 0.0
        %2442 = vmatprep.subr.mxu0 0.0
        %2443 = vmatpush1.msra.mxu0 0.0
        %2444 = vmatprep.subr.mxu0 0.0
        %2445 = vmatpush1.msra.mxu0 0.0
        %2446 = vmatprep.subr.mxu0 0.0
        %2447 = vmatpush1.msra.mxu0 0.0
        %2448 = vmatprep.subr.mxu0 0.0
        %2449 = vmatpush1.msra.mxu0 0.0
        %2450 = vmatprep.subr.mxu0 0.0
        %2451 = vmatpush1.msra.mxu0 0.0
        %2452 = vmatprep.subr.mxu0 0.0
        %2453 = vmatpush1.msra.mxu0 0.0
        %2454 = vmatprep.subr.mxu0 0.0
        %2455 = vmatpush1.msra.mxu0 0.0
        %2456 = vmatprep.subr.mxu0 0.0
        %2457 = vmatpush1.msra.mxu0 0.0
        %2458 = vmatprep.subr.mxu0 0.0
        %2459 = vmatpush1.msra.mxu0 0.0
        %2460 = vmatprep.subr.mxu0 %v2308
        %2461 = vmatpush1.msra.mxu0 %v2307
        %2462 = vmatprep.subr.mxu0 %v2306
        %2463 = vmatpush1.msra.mxu0 %v2305
        %2464 = vmatprep.subr.mxu0 0.0
        %2465 = vmatpush2.msra.mxu0 0.0
        %2466 = vmatprep.subr.mxu0 0.0
        %2467 = vmatpush2.msra.mxu0 0.0
        %2468 = vmatprep.subr.mxu0 0.0
        %2469 = vmatpush2.msra.mxu0 0.0
        %2470 = vmatprep.subr.mxu0 0.0
        %2471 = vmatpush2.msra.mxu0 0.0
        %2472 = vmatprep.subr.mxu0 0.0
        %2473 = vmatpush2.msra.mxu0 0.0
        %2474 = vmatprep.subr.mxu0 0.0
        %2475 = vmatpush2.msra.mxu0 0.0
        %2476 = vmatprep.subr.mxu0 0.0
        %2477 = vmatpush2.msra.mxu0 0.0
        %2478 = vmatprep.subr.mxu0 0.0
        %2479 = vmatpush2.msra.mxu0 0.0
        %2480 = vmatprep.subr.mxu0 0.0
        %2481 = vmatpush2.msra.mxu0 0.0
        %2482 = vmatprep.subr.mxu0 0.0
        %2483 = vmatpush2.msra.mxu0 0.0
        %2484 = vmatprep.subr.mxu0 0.0
        %2485 = vmatpush2.msra.mxu0 0.0
        %2486 = vmatprep.subr.mxu0 0.0
        %2487 = vmatpush2.msra.mxu0 0.0
        %2488 = vmatprep.subr.mxu0 0.0
        %2489 = vmatpush2.msra.mxu0 0.0
        %2490 = vmatprep.subr.mxu0 0.0
        %2491 = vmatpush2.msra.mxu0 0.0
        %2492 = vmatprep.subr.mxu0 0.0
        %2493 = vmatpush2.msra.mxu0 0.0
        %2494 = vmatprep.subr.mxu0 0.0
        %2495 = vmatpush2.msra.mxu0 0.0
        %2496 = vmatprep.mubr.f32.mxu0 0.0
        %2497 = vmatmul.mubr.f32.gmra.mxu0 %v2427
        %v2498 = vpop.f32.mrf.mxu0
        %v2499 = vadd.f32 %v2416, %v2498
        %v2500 = vpop.f32.mrf.mxu0
        %v2501 = vadd.f32 %v2418, %v2500
        %2502 = vmatprep.mubr.f32.mxu0 0.0
        %2503 = vmatmul.mubr.f32.gmra.mxu0 %v2430
        %v2504 = vpop.f32.mrf.mxu0
        %v2505 = vadd.f32 %v2422, %v2504
        %v2506 = vpop.f32.mrf.mxu0
        %v2507 = vadd.f32 %v2424, %v2506
        %2508 = vdwg.mxu0
        %s2509 = scalar_lea.vmem %s2, 240
        %v2510 = vld [vmem:[%s2509] sm:$0xff]
        %v2511 = vld [vmem:[%s2509 + $0x8] sm:$0xff]
        %2512 = vrot.lane.b32.xlu0 %v2305, 96
        %v2513 = vpop.permute.xlu0 %2512
        %2514 = vrot.lane.b32.xlu0 %v2306, 96
        %v2515 = vpop.permute.xlu0 %2514
        %2516 = vrot.lane.b32.xlu0 %v2312, 96
        %v2517 = vpop.permute.xlu0 %2516
        %2518 = vrot.lane.b32.xlu0 %v2307, 96
        %v2519 = vpop.permute.xlu0 %2518
        %2520 = vrot.lane.b32.xlu0 %v2308, 96
        %v2521 = vpop.permute.xlu0 %2520
        %2522 = vrot.lane.b32.xlu0 %v2313, 96
        %v2523 = vpop.permute.xlu0 %2522
        %v2524 = vsel %vm536, %v2513, %v2515
        %v2525 = vsel %vm536, %v2515, %v2517
        %v2526 = vsel %vm536, %v2519, %v2521
        %v2527 = vsel %vm536, %v2521, %v2523
        %v2533 = vsel %vm1326, %v2510, 0
        %v2536 = vsel %vm1326, %v2511, 0
        %2538 = vmatprep.subr.mxu0 0.0
        %2539 = vmatpush1.msra.mxu0 0.0
        %2540 = vmatprep.subr.mxu0 0.0
        %2541 = vmatpush1.msra.mxu0 0.0
        %2542 = vmatprep.subr.mxu0 0.0
        %2543 = vmatpush1.msra.mxu0 0.0
        %2544 = vmatprep.subr.mxu0 0.0
        %2545 = vmatpush1.msra.mxu0 0.0
        %2546 = vmatprep.subr.mxu0 0.0
        %2547 = vmatpush1.msra.mxu0 0.0
        %2548 = vmatprep.subr.mxu0 0.0
        %2549 = vmatpush1.msra.mxu0 0.0
        %2550 = vmatprep.subr.mxu0 0.0
        %2551 = vmatpush1.msra.mxu0 0.0
        %2552 = vmatprep.subr.mxu0 0.0
        %2553 = vmatpush1.msra.mxu0 0.0
        %2554 = vmatprep.subr.mxu0 0.0
        %2555 = vmatpush1.msra.mxu0 0.0
        %2556 = vmatprep.subr.mxu0 0.0
        %2557 = vmatpush1.msra.mxu0 0.0
        %2558 = vmatprep.subr.mxu0 0.0
        %2559 = vmatpush1.msra.mxu0 0.0
        %2560 = vmatprep.subr.mxu0 0.0
        %2561 = vmatpush1.msra.mxu0 0.0
        %2562 = vmatprep.subr.mxu0 0.0
        %2563 = vmatpush1.msra.mxu0 0.0
        %2564 = vmatprep.subr.mxu0 0.0
        %2565 = vmatpush1.msra.mxu0 0.0
        %2566 = vmatprep.subr.mxu0 %v2527
        %2567 = vmatpush1.msra.mxu0 %v2526
        %2568 = vmatprep.subr.mxu0 %v2525
        %2569 = vmatpush1.msra.mxu0 %v2524
        %2570 = vmatprep.subr.mxu0 0.0
        %2571 = vmatpush2.msra.mxu0 0.0
        %2572 = vmatprep.subr.mxu0 0.0
        %2573 = vmatpush2.msra.mxu0 0.0
        %2574 = vmatprep.subr.mxu0 0.0
        %2575 = vmatpush2.msra.mxu0 0.0
        %2576 = vmatprep.subr.mxu0 0.0
        %2577 = vmatpush2.msra.mxu0 0.0
        %2578 = vmatprep.subr.mxu0 0.0
        %2579 = vmatpush2.msra.mxu0 0.0
        %2580 = vmatprep.subr.mxu0 0.0
        %2581 = vmatpush2.msra.mxu0 0.0
        %2582 = vmatprep.subr.mxu0 0.0
        %2583 = vmatpush2.msra.mxu0 0.0
        %2584 = vmatprep.subr.mxu0 0.0
        %2585 = vmatpush2.msra.mxu0 0.0
        %2586 = vmatprep.subr.mxu0 0.0
        %2587 = vmatpush2.msra.mxu0 0.0
        %2588 = vmatprep.subr.mxu0 0.0
        %2589 = vmatpush2.msra.mxu0 0.0
        %2590 = vmatprep.subr.mxu0 0.0
        %2591 = vmatpush2.msra.mxu0 0.0
        %2592 = vmatprep.subr.mxu0 0.0
        %2593 = vmatpush2.msra.mxu0 0.0
        %2594 = vmatprep.subr.mxu0 0.0
        %2595 = vmatpush2.msra.mxu0 0.0
        %2596 = vmatprep.subr.mxu0 0.0
        %2597 = vmatpush2.msra.mxu0 0.0
        %2598 = vmatprep.subr.mxu0 0.0
        %2599 = vmatpush2.msra.mxu0 0.0
        %2600 = vmatprep.subr.mxu0 0.0
        %2601 = vmatpush2.msra.mxu0 0.0
        %2602 = vmatprep.mubr.f32.mxu0 0.0
        %2603 = vmatmul.mubr.f32.gmra.mxu0 %v2533
        %v2604 = vpop.f32.mrf.mxu0
        %v2605 = vadd.f32 0.0, %v2604
        %v2606 = vpop.f32.mrf.mxu0
        %v2607 = vadd.f32 0.0, %v2606
        %2608 = vmatprep.mubr.f32.mxu0 0.0
        %2609 = vmatmul.mubr.f32.gmra.mxu0 %v2536
        %v2610 = vpop.f32.mrf.mxu0
        %v2611 = vadd.f32 0.0, %v2610
        %v2612 = vpop.f32.mrf.mxu0
        %v2613 = vadd.f32 0.0, %v2612
        %2614 = vdwg.mxu0
        %v2615 = vadd.f32 %v2499, %v2605
        %v2616 = vadd.f32 %v2501, %v2607
        %v2617 = vadd.f32 %v2505, %v2611
        %v2618 = vadd.f32 %v2507, %v2613
        %s2619 = scalar_lea.vmem %s2, 160
        %v2620 = vld [vmem:[%s2619] sm:$0xff]
        %v2621 = vld [vmem:[%s2619 + $0x8] sm:$0xff]
        %s2622 = scalar_lea.vmem %s2, 208
        %v2623 = vld [vmem:[%s2622] sm:$0xff]
        %v2624 = vld [vmem:[%s2622 + $0x8] sm:$0xff]
        %2625 = vrot.lane.b32.xlu0 %v2305, 111
        %v2626 = vpop.permute.xlu0 %2625
        %2627 = vrot.lane.b32.xlu0 %v2306, 111
        %v2628 = vpop.permute.xlu0 %2627
        %2629 = vrot.lane.b32.xlu0 %v2312, 111
        %v2630 = vpop.permute.xlu0 %2629
        %2631 = vrot.lane.b32.xlu0 %v2307, 111
        %v2632 = vpop.permute.xlu0 %2631
        %2633 = vrot.lane.b32.xlu0 %v2308, 111
        %v2634 = vpop.permute.xlu0 %2633
        %2635 = vrot.lane.b32.xlu0 %v2313, 111
        %v2636 = vpop.permute.xlu0 %2635
        %v2637 = vsel %vm640, %v2626, %v2628
        %v2638 = vsel %vm640, %v2628, %v2630
        %v2639 = vsel %vm640, %v2632, %v2634
        %v2640 = vsel %vm640, %v2634, %v2636
        %v2646 = vsel %vm1326, %v2623, 0
        %v2649 = vsel %vm1326, %v2624, 0
        %2651 = vmatprep.subr.mxu0 0.0
        %2652 = vmatpush1.msra.mxu0 0.0
        %2653 = vmatprep.subr.mxu0 0.0
        %2654 = vmatpush1.msra.mxu0 0.0
        %2655 = vmatprep.subr.mxu0 0.0
        %2656 = vmatpush1.msra.mxu0 0.0
        %2657 = vmatprep.subr.mxu0 0.0
        %2658 = vmatpush1.msra.mxu0 0.0
        %2659 = vmatprep.subr.mxu0 0.0
        %2660 = vmatpush1.msra.mxu0 0.0
        %2661 = vmatprep.subr.mxu0 0.0
        %2662 = vmatpush1.msra.mxu0 0.0
        %2663 = vmatprep.subr.mxu0 0.0
        %2664 = vmatpush1.msra.mxu0 0.0
        %2665 = vmatprep.subr.mxu0 0.0
        %2666 = vmatpush1.msra.mxu0 0.0
        %2667 = vmatprep.subr.mxu0 0.0
        %2668 = vmatpush1.msra.mxu0 0.0
        %2669 = vmatprep.subr.mxu0 0.0
        %2670 = vmatpush1.msra.mxu0 0.0
        %2671 = vmatprep.subr.mxu0 0.0
        %2672 = vmatpush1.msra.mxu0 0.0
        %2673 = vmatprep.subr.mxu0 0.0
        %2674 = vmatpush1.msra.mxu0 0.0
        %2675 = vmatprep.subr.mxu0 0.0
        %2676 = vmatpush1.msra.mxu0 0.0
        %2677 = vmatprep.subr.mxu0 0.0
        %2678 = vmatpush1.msra.mxu0 0.0
        %2679 = vmatprep.subr.mxu0 %v2640
        %2680 = vmatpush1.msra.mxu0 %v2639
        %2681 = vmatprep.subr.mxu0 %v2638
        %2682 = vmatpush1.msra.mxu0 %v2637
        %2683 = vmatprep.subr.mxu0 0.0
        %2684 = vmatpush2.msra.mxu0 0.0
        %2685 = vmatprep.subr.mxu0 0.0
        %2686 = vmatpush2.msra.mxu0 0.0
        %2687 = vmatprep.subr.mxu0 0.0
        %2688 = vmatpush2.msra.mxu0 0.0
        %2689 = vmatprep.subr.mxu0 0.0
        %2690 = vmatpush2.msra.mxu0 0.0
        %2691 = vmatprep.subr.mxu0 0.0
        %2692 = vmatpush2.msra.mxu0 0.0
        %2693 = vmatprep.subr.mxu0 0.0
        %2694 = vmatpush2.msra.mxu0 0.0
        %2695 = vmatprep.subr.mxu0 0.0
        %2696 = vmatpush2.msra.mxu0 0.0
        %2697 = vmatprep.subr.mxu0 0.0
        %2698 = vmatpush2.msra.mxu0 0.0
        %2699 = vmatprep.subr.mxu0 0.0
        %2700 = vmatpush2.msra.mxu0 0.0
        %2701 = vmatprep.subr.mxu0 0.0
        %2702 = vmatpush2.msra.mxu0 0.0
        %2703 = vmatprep.subr.mxu0 0.0
        %2704 = vmatpush2.msra.mxu0 0.0
        %2705 = vmatprep.subr.mxu0 0.0
        %2706 = vmatpush2.msra.mxu0 0.0
        %2707 = vmatprep.subr.mxu0 0.0
        %2708 = vmatpush2.msra.mxu0 0.0
        %2709 = vmatprep.subr.mxu0 0.0
        %2710 = vmatpush2.msra.mxu0 0.0
        %2711 = vmatprep.subr.mxu0 0.0
        %2712 = vmatpush2.msra.mxu0 0.0
        %2713 = vmatprep.subr.mxu0 0.0
        %2714 = vmatpush2.msra.mxu0 0.0
        %2715 = vmatprep.mubr.f32.mxu0 0.0
        %2716 = vmatmul.mubr.f32.gmra.mxu0 %v2646
        %v2717 = vpop.f32.mrf.mxu0
        %v2718 = vadd.f32 0.0, %v2717
        %v2719 = vpop.f32.mrf.mxu0
        %v2720 = vadd.f32 0.0, %v2719
        %2721 = vmatprep.mubr.f32.mxu0 0.0
        %2722 = vmatmul.mubr.f32.gmra.mxu0 %v2649
        %v2723 = vpop.f32.mrf.mxu0
        %v2724 = vadd.f32 0.0, %v2723
        %v2725 = vpop.f32.mrf.mxu0
        %v2726 = vadd.f32 0.0, %v2725
        %2727 = vdwg.mxu0
        %2728 = vrot.lane.b32.xlu0 %v2305, 127
        %v2729 = vpop.permute.xlu0 %2728
        %2730 = vrot.lane.b32.xlu0 %v2306, 127
        %v2731 = vpop.permute.xlu0 %2730
        %2732 = vrot.lane.b32.xlu0 %v2312, 127
        %v2733 = vpop.permute.xlu0 %2732
        %2734 = vrot.lane.b32.xlu0 %v2307, 127
        %v2735 = vpop.permute.xlu0 %2734
        %2736 = vrot.lane.b32.xlu0 %v2308, 127
        %v2737 = vpop.permute.xlu0 %2736
        %2738 = vrot.lane.b32.xlu0 %v2313, 127
        %v2739 = vpop.permute.xlu0 %2738
        %v2740 = vsel %vm734, %v2729, %v2731
        %v2741 = vsel %vm734, %v2731, %v2733
        %v2742 = vsel %vm734, %v2735, %v2737
        %v2743 = vsel %vm734, %v2737, %v2739
        %v2749 = vsel %vm1326, %v2620, 0
        %v2752 = vsel %vm1326, %v2621, 0
        %2754 = vmatprep.subr.mxu0 0.0
        %2755 = vmatpush1.msra.mxu0 0.0
        %2756 = vmatprep.subr.mxu0 0.0
        %2757 = vmatpush1.msra.mxu0 0.0
        %2758 = vmatprep.subr.mxu0 0.0
        %2759 = vmatpush1.msra.mxu0 0.0
        %2760 = vmatprep.subr.mxu0 0.0
        %2761 = vmatpush1.msra.mxu0 0.0
        %2762 = vmatprep.subr.mxu0 0.0
        %2763 = vmatpush1.msra.mxu0 0.0
        %2764 = vmatprep.subr.mxu0 0.0
        %2765 = vmatpush1.msra.mxu0 0.0
        %2766 = vmatprep.subr.mxu0 0.0
        %2767 = vmatpush1.msra.mxu0 0.0
        %2768 = vmatprep.subr.mxu0 0.0
        %2769 = vmatpush1.msra.mxu0 0.0
        %2770 = vmatprep.subr.mxu0 0.0
        %2771 = vmatpush1.msra.mxu0 0.0
        %2772 = vmatprep.subr.mxu0 0.0
        %2773 = vmatpush1.msra.mxu0 0.0
        %2774 = vmatprep.subr.mxu0 0.0
        %2775 = vmatpush1.msra.mxu0 0.0
        %2776 = vmatprep.subr.mxu0 0.0
        %2777 = vmatpush1.msra.mxu0 0.0
        %2778 = vmatprep.subr.mxu0 0.0
        %2779 = vmatpush1.msra.mxu0 0.0
        %2780 = vmatprep.subr.mxu0 0.0
        %2781 = vmatpush1.msra.mxu0 0.0
        %2782 = vmatprep.subr.mxu0 %v2743
        %2783 = vmatpush1.msra.mxu0 %v2742
        %2784 = vmatprep.subr.mxu0 %v2741
        %2785 = vmatpush1.msra.mxu0 %v2740
        %2786 = vmatprep.subr.mxu0 0.0
        %2787 = vmatpush2.msra.mxu0 0.0
        %2788 = vmatprep.subr.mxu0 0.0
        %2789 = vmatpush2.msra.mxu0 0.0
        %2790 = vmatprep.subr.mxu0 0.0
        %2791 = vmatpush2.msra.mxu0 0.0
        %2792 = vmatprep.subr.mxu0 0.0
        %2793 = vmatpush2.msra.mxu0 0.0
        %2794 = vmatprep.subr.mxu0 0.0
        %2795 = vmatpush2.msra.mxu0 0.0
        %2796 = vmatprep.subr.mxu0 0.0
        %2797 = vmatpush2.msra.mxu0 0.0
        %2798 = vmatprep.subr.mxu0 0.0
        %2799 = vmatpush2.msra.mxu0 0.0
        %2800 = vmatprep.subr.mxu0 0.0
        %2801 = vmatpush2.msra.mxu0 0.0
        %2802 = vmatprep.subr.mxu0 0.0
        %2803 = vmatpush2.msra.mxu0 0.0
        %2804 = vmatprep.subr.mxu0 0.0
        %2805 = vmatpush2.msra.mxu0 0.0
        %2806 = vmatprep.subr.mxu0 0.0
        %2807 = vmatpush2.msra.mxu0 0.0
        %2808 = vmatprep.subr.mxu0 0.0
        %2809 = vmatpush2.msra.mxu0 0.0
        %2810 = vmatprep.subr.mxu0 0.0
        %2811 = vmatpush2.msra.mxu0 0.0
        %2812 = vmatprep.subr.mxu0 0.0
        %2813 = vmatpush2.msra.mxu0 0.0
        %2814 = vmatprep.subr.mxu0 0.0
        %2815 = vmatpush2.msra.mxu0 0.0
        %2816 = vmatprep.subr.mxu0 0.0
        %2817 = vmatpush2.msra.mxu0 0.0
        %2818 = vmatprep.mubr.f32.mxu0 0.0
        %2819 = vmatmul.mubr.f32.gmra.mxu0 %v2749
        %v2820 = vpop.f32.mrf.mxu0
        %v2821 = vadd.f32 %v2718, %v2820
        %v2822 = vpop.f32.mrf.mxu0
        %v2823 = vadd.f32 %v2720, %v2822
        %2824 = vmatprep.mubr.f32.mxu0 0.0
        %2825 = vmatmul.mubr.f32.gmra.mxu0 %v2752
        %v2826 = vpop.f32.mrf.mxu0
        %v2827 = vadd.f32 %v2724, %v2826
        %v2828 = vpop.f32.mrf.mxu0
        %v2829 = vadd.f32 %v2726, %v2828
        %2830 = vdwg.mxu0
        %s2831 = scalar_lea.vmem %s2, 256
        %v2832 = vld [vmem:[%s2831] sm:$0xff]
        %v2833 = vld [vmem:[%s2831 + $0x8] sm:$0xff]
        %2834 = vrot.lane.b32.xlu0 %v2305, 95
        %v2835 = vpop.permute.xlu0 %2834
        %2836 = vrot.lane.b32.xlu0 %v2306, 95
        %v2837 = vpop.permute.xlu0 %2836
        %2838 = vrot.lane.b32.xlu0 %v2312, 95
        %v2839 = vpop.permute.xlu0 %2838
        %2840 = vrot.lane.b32.xlu0 %v2307, 95
        %v2841 = vpop.permute.xlu0 %2840
        %2842 = vrot.lane.b32.xlu0 %v2308, 95
        %v2843 = vpop.permute.xlu0 %2842
        %2844 = vrot.lane.b32.xlu0 %v2313, 95
        %v2845 = vpop.permute.xlu0 %2844
        %v2846 = vsel %vm831, %v2835, %v2837
        %v2847 = vsel %vm831, %v2837, %v2839
        %v2848 = vsel %vm831, %v2841, %v2843
        %v2849 = vsel %vm831, %v2843, %v2845
        %v2855 = vsel %vm1326, %v2832, 0
        %v2858 = vsel %vm1326, %v2833, 0
        %2860 = vmatprep.subr.mxu0 0.0
        %2861 = vmatpush1.msra.mxu0 0.0
        %2862 = vmatprep.subr.mxu0 0.0
        %2863 = vmatpush1.msra.mxu0 0.0
        %2864 = vmatprep.subr.mxu0 0.0
        %2865 = vmatpush1.msra.mxu0 0.0
        %2866 = vmatprep.subr.mxu0 0.0
        %2867 = vmatpush1.msra.mxu0 0.0
        %2868 = vmatprep.subr.mxu0 0.0
        %2869 = vmatpush1.msra.mxu0 0.0
        %2870 = vmatprep.subr.mxu0 0.0
        %2871 = vmatpush1.msra.mxu0 0.0
        %2872 = vmatprep.subr.mxu0 0.0
        %2873 = vmatpush1.msra.mxu0 0.0
        %2874 = vmatprep.subr.mxu0 0.0
        %2875 = vmatpush1.msra.mxu0 0.0
        %2876 = vmatprep.subr.mxu0 0.0
        %2877 = vmatpush1.msra.mxu0 0.0
        %2878 = vmatprep.subr.mxu0 0.0
        %2879 = vmatpush1.msra.mxu0 0.0
        %2880 = vmatprep.subr.mxu0 0.0
        %2881 = vmatpush1.msra.mxu0 0.0
        %2882 = vmatprep.subr.mxu0 0.0
        %2883 = vmatpush1.msra.mxu0 0.0
        %2884 = vmatprep.subr.mxu0 0.0
        %2885 = vmatpush1.msra.mxu0 0.0
        %2886 = vmatprep.subr.mxu0 0.0
        %2887 = vmatpush1.msra.mxu0 0.0
        %2888 = vmatprep.subr.mxu0 %v2849
        %2889 = vmatpush1.msra.mxu0 %v2848
        %2890 = vmatprep.subr.mxu0 %v2847
        %2891 = vmatpush1.msra.mxu0 %v2846
        %2892 = vmatprep.subr.mxu0 0.0
        %2893 = vmatpush2.msra.mxu0 0.0
        %2894 = vmatprep.subr.mxu0 0.0
        %2895 = vmatpush2.msra.mxu0 0.0
        %2896 = vmatprep.subr.mxu0 0.0
        %2897 = vmatpush2.msra.mxu0 0.0
        %2898 = vmatprep.subr.mxu0 0.0
        %2899 = vmatpush2.msra.mxu0 0.0
        %2900 = vmatprep.subr.mxu0 0.0
        %2901 = vmatpush2.msra.mxu0 0.0
        %2902 = vmatprep.subr.mxu0 0.0
        %2903 = vmatpush2.msra.mxu0 0.0
        %2904 = vmatprep.subr.mxu0 0.0
        %2905 = vmatpush2.msra.mxu0 0.0
        %2906 = vmatprep.subr.mxu0 0.0
        %2907 = vmatpush2.msra.mxu0 0.0
        %2908 = vmatprep.subr.mxu0 0.0
        %2909 = vmatpush2.msra.mxu0 0.0
        %2910 = vmatprep.subr.mxu0 0.0
        %2911 = vmatpush2.msra.mxu0 0.0
        %2912 = vmatprep.subr.mxu0 0.0
        %2913 = vmatpush2.msra.mxu0 0.0
        %2914 = vmatprep.subr.mxu0 0.0
        %2915 = vmatpush2.msra.mxu0 0.0
        %2916 = vmatprep.subr.mxu0 0.0
        %2917 = vmatpush2.msra.mxu0 0.0
        %2918 = vmatprep.subr.mxu0 0.0
        %2919 = vmatpush2.msra.mxu0 0.0
        %2920 = vmatprep.subr.mxu0 0.0
        %2921 = vmatpush2.msra.mxu0 0.0
        %2922 = vmatprep.subr.mxu0 0.0
        %2923 = vmatpush2.msra.mxu0 0.0
        %2924 = vmatprep.mubr.f32.mxu0 0.0
        %2925 = vmatmul.mubr.f32.gmra.mxu0 %v2855
        %v2926 = vpop.f32.mrf.mxu0
        %v2927 = vadd.f32 0.0, %v2926
        %v2928 = vpop.f32.mrf.mxu0
        %v2929 = vadd.f32 0.0, %v2928
        %2930 = vmatprep.mubr.f32.mxu0 0.0
        %2931 = vmatmul.mubr.f32.gmra.mxu0 %v2858
        %v2932 = vpop.f32.mrf.mxu0
        %v2933 = vadd.f32 0.0, %v2932
        %v2934 = vpop.f32.mrf.mxu0
        %v2935 = vadd.f32 0.0, %v2934
        %2936 = vdwg.mxu0
        %v2937 = vadd.f32 %v2821, %v2927
        %v2938 = vadd.f32 %v2823, %v2929
        %v2939 = vadd.f32 %v2827, %v2933
        %v2940 = vadd.f32 %v2829, %v2935
        %s2941 = scalar_lea.vmem %s2, 176
        %v2942 = vld [vmem:[%s2941] sm:$0xff]
        %v2943 = vld [vmem:[%s2941 + $0x8] sm:$0xff]
        %s2944 = scalar_lea.vmem %s2, 224
        %v2945 = vld [vmem:[%s2944] sm:$0xff]
        %v2946 = vld [vmem:[%s2944 + $0x8] sm:$0xff]
        %2947 = vrot.lane.b32.xlu0 %v2305, 110
        %v2948 = vpop.permute.xlu0 %2947
        %2949 = vrot.lane.b32.xlu0 %v2306, 110
        %v2950 = vpop.permute.xlu0 %2949
        %2951 = vrot.lane.b32.xlu0 %v2312, 110
        %v2952 = vpop.permute.xlu0 %2951
        %2953 = vrot.lane.b32.xlu0 %v2307, 110
        %v2954 = vpop.permute.xlu0 %2953
        %2955 = vrot.lane.b32.xlu0 %v2308, 110
        %v2956 = vpop.permute.xlu0 %2955
        %2957 = vrot.lane.b32.xlu0 %v2313, 110
        %v2958 = vpop.permute.xlu0 %2957
        %v2959 = vsel %vm935, %v2948, %v2950
        %v2960 = vsel %vm935, %v2950, %v2952
        %v2961 = vsel %vm935, %v2954, %v2956
        %v2962 = vsel %vm935, %v2956, %v2958
        %v2968 = vsel %vm1326, %v2945, 0
        %v2971 = vsel %vm1326, %v2946, 0
        %2973 = vmatprep.subr.mxu0 0.0
        %2974 = vmatpush1.msra.mxu0 0.0
        %2975 = vmatprep.subr.mxu0 0.0
        %2976 = vmatpush1.msra.mxu0 0.0
        %2977 = vmatprep.subr.mxu0 0.0
        %2978 = vmatpush1.msra.mxu0 0.0
        %2979 = vmatprep.subr.mxu0 0.0
        %2980 = vmatpush1.msra.mxu0 0.0
        %2981 = vmatprep.subr.mxu0 0.0
        %2982 = vmatpush1.msra.mxu0 0.0
        %2983 = vmatprep.subr.mxu0 0.0
        %2984 = vmatpush1.msra.mxu0 0.0
        %2985 = vmatprep.subr.mxu0 0.0
        %2986 = vmatpush1.msra.mxu0 0.0
        %2987 = vmatprep.subr.mxu0 0.0
        %2988 = vmatpush1.msra.mxu0 0.0
        %2989 = vmatprep.subr.mxu0 0.0
        %2990 = vmatpush1.msra.mxu0 0.0
        %2991 = vmatprep.subr.mxu0 0.0
        %2992 = vmatpush1.msra.mxu0 0.0
        %2993 = vmatprep.subr.mxu0 0.0
        %2994 = vmatpush1.msra.mxu0 0.0
        %2995 = vmatprep.subr.mxu0 0.0
        %2996 = vmatpush1.msra.mxu0 0.0
        %2997 = vmatprep.subr.mxu0 0.0
        %2998 = vmatpush1.msra.mxu0 0.0
        %2999 = vmatprep.subr.mxu0 0.0
        %3000 = vmatpush1.msra.mxu0 0.0
        %3001 = vmatprep.subr.mxu0 %v2962
        %3002 = vmatpush1.msra.mxu0 %v2961
        %3003 = vmatprep.subr.mxu0 %v2960
        %3004 = vmatpush1.msra.mxu0 %v2959
        %3005 = vmatprep.subr.mxu0 0.0
        %3006 = vmatpush2.msra.mxu0 0.0
        %3007 = vmatprep.subr.mxu0 0.0
        %3008 = vmatpush2.msra.mxu0 0.0
        %3009 = vmatprep.subr.mxu0 0.0
        %3010 = vmatpush2.msra.mxu0 0.0
        %3011 = vmatprep.subr.mxu0 0.0
        %3012 = vmatpush2.msra.mxu0 0.0
        %3013 = vmatprep.subr.mxu0 0.0
        %3014 = vmatpush2.msra.mxu0 0.0
        %3015 = vmatprep.subr.mxu0 0.0
        %3016 = vmatpush2.msra.mxu0 0.0
        %3017 = vmatprep.subr.mxu0 0.0
        %3018 = vmatpush2.msra.mxu0 0.0
        %3019 = vmatprep.subr.mxu0 0.0
        %3020 = vmatpush2.msra.mxu0 0.0
        %3021 = vmatprep.subr.mxu0 0.0
        %3022 = vmatpush2.msra.mxu0 0.0
        %3023 = vmatprep.subr.mxu0 0.0
        %3024 = vmatpush2.msra.mxu0 0.0
        %3025 = vmatprep.subr.mxu0 0.0
        %3026 = vmatpush2.msra.mxu0 0.0
        %3027 = vmatprep.subr.mxu0 0.0
        %3028 = vmatpush2.msra.mxu0 0.0
        %3029 = vmatprep.subr.mxu0 0.0
        %3030 = vmatpush2.msra.mxu0 0.0
        %3031 = vmatprep.subr.mxu0 0.0
        %3032 = vmatpush2.msra.mxu0 0.0
        %3033 = vmatprep.subr.mxu0 0.0
        %3034 = vmatpush2.msra.mxu0 0.0
        %3035 = vmatprep.subr.mxu0 0.0
        %3036 = vmatpush2.msra.mxu0 0.0
        %3037 = vmatprep.mubr.f32.mxu0 0.0
        %3038 = vmatmul.mubr.f32.gmra.mxu0 %v2968
        %v3039 = vpop.f32.mrf.mxu0
        %v3040 = vadd.f32 0.0, %v3039
        %v3041 = vpop.f32.mrf.mxu0
        %v3042 = vadd.f32 0.0, %v3041
        %3043 = vmatprep.mubr.f32.mxu0 0.0
        %3044 = vmatmul.mubr.f32.gmra.mxu0 %v2971
        %v3045 = vpop.f32.mrf.mxu0
        %v3046 = vadd.f32 0.0, %v3045
        %v3047 = vpop.f32.mrf.mxu0
        %v3048 = vadd.f32 0.0, %v3047
        %3049 = vdwg.mxu0
        %3050 = vrot.lane.b32.xlu0 %v2305, 126
        %v3051 = vpop.permute.xlu0 %3050
        %3052 = vrot.lane.b32.xlu0 %v2306, 126
        %v3053 = vpop.permute.xlu0 %3052
        %3054 = vrot.lane.b32.xlu0 %v2312, 126
        %v3055 = vpop.permute.xlu0 %3054
        %3056 = vrot.lane.b32.xlu0 %v2307, 126
        %v3057 = vpop.permute.xlu0 %3056
        %3058 = vrot.lane.b32.xlu0 %v2308, 126
        %v3059 = vpop.permute.xlu0 %3058
        %3060 = vrot.lane.b32.xlu0 %v2313, 126
        %v3061 = vpop.permute.xlu0 %3060
        %v3062 = vsel %vm1029, %v3051, %v3053
        %v3063 = vsel %vm1029, %v3053, %v3055
        %v3064 = vsel %vm1029, %v3057, %v3059
        %v3065 = vsel %vm1029, %v3059, %v3061
        %v3071 = vsel %vm1326, %v2942, 0
        %v3074 = vsel %vm1326, %v2943, 0
        %3076 = vmatprep.subr.mxu0 0.0
        %3077 = vmatpush1.msra.mxu0 0.0
        %3078 = vmatprep.subr.mxu0 0.0
        %3079 = vmatpush1.msra.mxu0 0.0
        %3080 = vmatprep.subr.mxu0 0.0
        %3081 = vmatpush1.msra.mxu0 0.0
        %3082 = vmatprep.subr.mxu0 0.0
        %3083 = vmatpush1.msra.mxu0 0.0
        %3084 = vmatprep.subr.mxu0 0.0
        %3085 = vmatpush1.msra.mxu0 0.0
        %3086 = vmatprep.subr.mxu0 0.0
        %3087 = vmatpush1.msra.mxu0 0.0
        %3088 = vmatprep.subr.mxu0 0.0
        %3089 = vmatpush1.msra.mxu0 0.0
        %3090 = vmatprep.subr.mxu0 0.0
        %3091 = vmatpush1.msra.mxu0 0.0
        %3092 = vmatprep.subr.mxu0 0.0
        %3093 = vmatpush1.msra.mxu0 0.0
        %3094 = vmatprep.subr.mxu0 0.0
        %3095 = vmatpush1.msra.mxu0 0.0
        %3096 = vmatprep.subr.mxu0 0.0
        %3097 = vmatpush1.msra.mxu0 0.0
        %3098 = vmatprep.subr.mxu0 0.0
        %3099 = vmatpush1.msra.mxu0 0.0
        %3100 = vmatprep.subr.mxu0 0.0
        %3101 = vmatpush1.msra.mxu0 0.0
        %3102 = vmatprep.subr.mxu0 0.0
        %3103 = vmatpush1.msra.mxu0 0.0
        %3104 = vmatprep.subr.mxu0 %v3065
        %3105 = vmatpush1.msra.mxu0 %v3064
        %3106 = vmatprep.subr.mxu0 %v3063
        %3107 = vmatpush1.msra.mxu0 %v3062
        %3108 = vmatprep.subr.mxu0 0.0
        %3109 = vmatpush2.msra.mxu0 0.0
        %3110 = vmatprep.subr.mxu0 0.0
        %3111 = vmatpush2.msra.mxu0 0.0
        %3112 = vmatprep.subr.mxu0 0.0
        %3113 = vmatpush2.msra.mxu0 0.0
        %3114 = vmatprep.subr.mxu0 0.0
        %3115 = vmatpush2.msra.mxu0 0.0
        %3116 = vmatprep.subr.mxu0 0.0
        %3117 = vmatpush2.msra.mxu0 0.0
        %3118 = vmatprep.subr.mxu0 0.0
        %3119 = vmatpush2.msra.mxu0 0.0
        %3120 = vmatprep.subr.mxu0 0.0
        %3121 = vmatpush2.msra.mxu0 0.0
        %3122 = vmatprep.subr.mxu0 0.0
        %3123 = vmatpush2.msra.mxu0 0.0
        %3124 = vmatprep.subr.mxu0 0.0
        %3125 = vmatpush2.msra.mxu0 0.0
        %3126 = vmatprep.subr.mxu0 0.0
        %3127 = vmatpush2.msra.mxu0 0.0
        %3128 = vmatprep.subr.mxu0 0.0
        %3129 = vmatpush2.msra.mxu0 0.0
        %3130 = vmatprep.subr.mxu0 0.0
        %3131 = vmatpush2.msra.mxu0 0.0
        %3132 = vmatprep.subr.mxu0 0.0
        %3133 = vmatpush2.msra.mxu0 0.0
        %3134 = vmatprep.subr.mxu0 0.0
        %3135 = vmatpush2.msra.mxu0 0.0
        %3136 = vmatprep.subr.mxu0 0.0
        %3137 = vmatpush2.msra.mxu0 0.0
        %3138 = vmatprep.subr.mxu0 0.0
        %3139 = vmatpush2.msra.mxu0 0.0
        %3140 = vmatprep.mubr.f32.mxu0 0.0
        %3141 = vmatmul.mubr.f32.gmra.mxu0 %v3071
        %v3142 = vpop.f32.mrf.mxu0
        %v3143 = vadd.f32 %v3040, %v3142
        %v3144 = vpop.f32.mrf.mxu0
        %v3145 = vadd.f32 %v3042, %v3144
        %3146 = vmatprep.mubr.f32.mxu0 0.0
        %3147 = vmatmul.mubr.f32.gmra.mxu0 %v3074
        %v3148 = vpop.f32.mrf.mxu0
        %v3149 = vadd.f32 %v3046, %v3148
        %v3150 = vpop.f32.mrf.mxu0
        %v3151 = vadd.f32 %v3048, %v3150
        %3152 = vdwg.mxu0
        %s3153 = scalar_lea.vmem %s2, 272
        %v3154 = vld [vmem:[%s3153] sm:$0xff]
        %v3155 = vld [vmem:[%s3153 + $0x8] sm:$0xff]
        %3156 = vrot.lane.b32.xlu0 %v2305, 94
        %v3157 = vpop.permute.xlu0 %3156
        %3158 = vrot.lane.b32.xlu0 %v2306, 94
        %v3159 = vpop.permute.xlu0 %3158
        %3160 = vrot.lane.b32.xlu0 %v2312, 94
        %v3161 = vpop.permute.xlu0 %3160
        %3162 = vrot.lane.b32.xlu0 %v2307, 94
        %v3163 = vpop.permute.xlu0 %3162
        %3164 = vrot.lane.b32.xlu0 %v2308, 94
        %v3165 = vpop.permute.xlu0 %3164
        %3166 = vrot.lane.b32.xlu0 %v2313, 94
        %v3167 = vpop.permute.xlu0 %3166
        %v3168 = vsel %vm1126, %v3157, %v3159
        %v3169 = vsel %vm1126, %v3159, %v3161
        %v3170 = vsel %vm1126, %v3163, %v3165
        %v3171 = vsel %vm1126, %v3165, %v3167
        %v3177 = vsel %vm1326, %v3154, 0
        %v3180 = vsel %vm1326, %v3155, 0
        %3182 = vmatprep.subr.mxu0 0.0
        %3183 = vmatpush1.msra.mxu0 0.0
        %3184 = vmatprep.subr.mxu0 0.0
        %3185 = vmatpush1.msra.mxu0 0.0
        %3186 = vmatprep.subr.mxu0 0.0
        %3187 = vmatpush1.msra.mxu0 0.0
        %3188 = vmatprep.subr.mxu0 0.0
        %3189 = vmatpush1.msra.mxu0 0.0
        %3190 = vmatprep.subr.mxu0 0.0
        %3191 = vmatpush1.msra.mxu0 0.0
        %3192 = vmatprep.subr.mxu0 0.0
        %3193 = vmatpush1.msra.mxu0 0.0
        %3194 = vmatprep.subr.mxu0 0.0
        %3195 = vmatpush1.msra.mxu0 0.0
        %3196 = vmatprep.subr.mxu0 0.0
        %3197 = vmatpush1.msra.mxu0 0.0
        %3198 = vmatprep.subr.mxu0 0.0
        %3199 = vmatpush1.msra.mxu0 0.0
        %3200 = vmatprep.subr.mxu0 0.0
        %3201 = vmatpush1.msra.mxu0 0.0
        %3202 = vmatprep.subr.mxu0 0.0
        %3203 = vmatpush1.msra.mxu0 0.0
        %3204 = vmatprep.subr.mxu0 0.0
        %3205 = vmatpush1.msra.mxu0 0.0
        %3206 = vmatprep.subr.mxu0 0.0
        %3207 = vmatpush1.msra.mxu0 0.0
        %3208 = vmatprep.subr.mxu0 0.0
        %3209 = vmatpush1.msra.mxu0 0.0
        %3210 = vmatprep.subr.mxu0 %v3171
        %3211 = vmatpush1.msra.mxu0 %v3170
        %3212 = vmatprep.subr.mxu0 %v3169
        %3213 = vmatpush1.msra.mxu0 %v3168
        %3214 = vmatprep.subr.mxu0 0.0
        %3215 = vmatpush2.msra.mxu0 0.0
        %3216 = vmatprep.subr.mxu0 0.0
        %3217 = vmatpush2.msra.mxu0 0.0
        %3218 = vmatprep.subr.mxu0 0.0
        %3219 = vmatpush2.msra.mxu0 0.0
        %3220 = vmatprep.subr.mxu0 0.0
        %3221 = vmatpush2.msra.mxu0 0.0
        %3222 = vmatprep.subr.mxu0 0.0
        %3223 = vmatpush2.msra.mxu0 0.0
        %3224 = vmatprep.subr.mxu0 0.0
        %3225 = vmatpush2.msra.mxu0 0.0
        %3226 = vmatprep.subr.mxu0 0.0
        %3227 = vmatpush2.msra.mxu0 0.0
        %3228 = vmatprep.subr.mxu0 0.0
        %3229 = vmatpush2.msra.mxu0 0.0
        %3230 = vmatprep.subr.mxu0 0.0
        %3231 = vmatpush2.msra.mxu0 0.0
        %3232 = vmatprep.subr.mxu0 0.0
        %3233 = vmatpush2.msra.mxu0 0.0
        %3234 = vmatprep.subr.mxu0 0.0
        %3235 = vmatpush2.msra.mxu0 0.0
        %3236 = vmatprep.subr.mxu0 0.0
        %3237 = vmatpush2.msra.mxu0 0.0
        %3238 = vmatprep.subr.mxu0 0.0
        %3239 = vmatpush2.msra.mxu0 0.0
        %3240 = vmatprep.subr.mxu0 0.0
        %3241 = vmatpush2.msra.mxu0 0.0
        %3242 = vmatprep.subr.mxu0 0.0
        %3243 = vmatpush2.msra.mxu0 0.0
        %3244 = vmatprep.subr.mxu0 0.0
        %3245 = vmatpush2.msra.mxu0 0.0
        %3246 = vmatprep.mubr.f32.mxu0 0.0
        %3247 = vmatmul.mubr.f32.gmra.mxu0 %v3177
        %v3248 = vpop.f32.mrf.mxu0
        %v3249 = vadd.f32 0.0, %v3248
        %v3250 = vpop.f32.mrf.mxu0
        %v3251 = vadd.f32 0.0, %v3250
        %3252 = vmatprep.mubr.f32.mxu0 0.0
        %3253 = vmatmul.mubr.f32.gmra.mxu0 %v3180
        %v3254 = vpop.f32.mrf.mxu0
        %v3255 = vadd.f32 0.0, %v3254
        %v3256 = vpop.f32.mrf.mxu0
        %v3257 = vadd.f32 0.0, %v3256
        %3258 = vdwg.mxu0
        %v3259 = vadd.f32 %v3143, %v3249
        %v3260 = vadd.f32 %v3145, %v3251
        %v3261 = vadd.f32 %v3149, %v3255
        %v3262 = vadd.f32 %v3151, %v3257
        %v3263 = vmul.f32 %v2615, %v278
        %v3264 = vmul.f32 %v2616, %v279
        %v3265 = vmul.f32 %v2617, %v278
        %v3266 = vmul.f32 %v2618, %v279
        %v3267 = vadd.f32 %v3263, %v2937
        %v3268 = vadd.f32 %v3264, %v2938
        %v3269 = vadd.f32 %v3265, %v2939
        %v3270 = vadd.f32 %v3266, %v2940
        %v3271 = vmul.f32 %v3259, %v284
        %v3272 = vmul.f32 %v3260, %v285
        %v3273 = vmul.f32 %v3261, %v284
        %v3274 = vmul.f32 %v3262, %v285
        %v3275 = vadd.f32 %v3267, %v3271
        %v3276 = vadd.f32 %v3268, %v3272
        %v3277 = vadd.f32 %v3269, %v3273
        %v3278 = vadd.f32 %v3270, %v3274
        %3279 = vset.pattern.permute.xlu0 2
        %3280 = vperm.xlu0 %3279, %v303
        %v3281 = vpop.permute.xlu0 %3280
        %3283 = vset.pattern.permute.xlu0 2
        %3284 = vperm.xlu0 %3283, %v304
        %v3285 = vpop.permute.xlu0 %3284
        %v3287 = vadd.f32 %v3275, %v3281
        %v3288 = vadd.f32 %v3276, %v3281
        %v3289 = vadd.f32 %v3277, %v3285
        %v3290 = vadd.f32 %v3278, %v3285
        %v3291 = vmax.f32 %v3287, 0.0
        %v3292 = vmax.f32 %v3288, 0.0
        %v3293 = vmax.f32 %v3289, 0.0
        %v3294 = vmax.f32 %v3290, 0.0
        %v3295 = vadd.f32 %v3291, %v1258
        %v3296 = vadd.f32 %v3292, %v1259
        %v3297 = vadd.f32 %v3293, %v1260
        %v3298 = vadd.f32 %v3294, %v1261
        %v3299 = vmax.f32 %v3295, 0.0
        %v3300 = vmax.f32 %v3296, 0.0
        %v3301 = vmax.f32 %v3297, 0.0
        %v3302 = vmax.f32 %v3298, 0.0
        %3307 = vrot.lane.b32.xlu0 %v3299, 17
        %v3308 = vpop.permute.xlu0 %3307
        %3309 = vrot.lane.b32.xlu0 %v3300, 17
        %v3310 = vpop.permute.xlu0 %3309
        %3311 = vrot.lane.b32.xlu0 %v3301, 17
        %v3312 = vpop.permute.xlu0 %3311
        %3313 = vrot.lane.b32.xlu0 %v3302, 17
        %v3314 = vpop.permute.xlu0 %3313
        %v3315 = vsel %vm290, %v3308, %v3310
        %v3316 = vsel %vm290, %v3312, %v3314
        %3323 = vst.msk [vmem:[#allocation4] sm:$0xff] %vm1282, %v3308
        %3324 = vst [vmem:[#allocation4 + $0x8] sm:$0xff] %v3315
        %3325 = vst.msk [vmem:[#allocation4 + $0x10] sm:$0xff] %vm290, %v3310
        %3326 = vst.msk [vmem:[#allocation4 + $0x18] sm:$0xff] %vm1282, %v3312
        %3327 = vst [vmem:[#allocation4 + $0x20] sm:$0xff] %v3316
        %3328 = vst.msk [vmem:[#allocation4 + $0x28] sm:$0xff] %vm290, %v3314
        %v3329 = vld [vmem:[#allocation4] sm:$0xff]
        %v3330 = vld [vmem:[#allocation4 + $0x8] sm:$0xff]
        %v3331 = vld [vmem:[#allocation4 + $0x18] sm:$0xff]
        %v3332 = vld [vmem:[#allocation4 + $0x20] sm:$0xff]
        %s3333 = scalar_lea.vmem %s2, 288
        %v3334 = vld [vmem:[%s3333] sm:$0xff]
        %v3335 = vld [vmem:[%s3333 + $0x8] sm:$0xff]
        %v3336 = vld [vmem:[#allocation4 + $0x10] sm:$0xff]
        %v3337 = vld [vmem:[#allocation4 + $0x28] sm:$0xff]
        %s3338 = scalar_lea.vmem %s2, 336
        %v3339 = vld [vmem:[%s3338] sm:$0xff]
        %v3340 = vld [vmem:[%s3338 + $0x8] sm:$0xff]
        %3347 = vrot.lane.b32.xlu0 %v3329, 112
        %v3348 = vpop.permute.xlu0 %3347
        %3349 = vrot.lane.b32.xlu0 %v3330, 112
        %v3350 = vpop.permute.xlu0 %3349
        %3351 = vrot.lane.b32.xlu0 %v3336, 112
        %v3352 = vpop.permute.xlu0 %3351
        %3353 = vrot.lane.b32.xlu0 %v3331, 112
        %v3354 = vpop.permute.xlu0 %3353
        %3355 = vrot.lane.b32.xlu0 %v3332, 112
        %v3356 = vpop.permute.xlu0 %3355
        %3357 = vrot.lane.b32.xlu0 %v3337, 112
        %v3358 = vpop.permute.xlu0 %3357
        %v3359 = vsel %vm355, %v3348, %v3350
        %v3360 = vsel %vm355, %v3350, %v3352
        %v3361 = vsel %vm355, %v3354, %v3356
        %v3362 = vsel %vm355, %v3356, %v3358
        %v3368 = vsel %vm1326, %v3339, 0
        %v3371 = vsel %vm1326, %v3340, 0
        %3373 = vmatprep.subr.mxu0 0.0
        %3374 = vmatpush1.msra.mxu0 0.0
        %3375 = vmatprep.subr.mxu0 0.0
        %3376 = vmatpush1.msra.mxu0 0.0
        %3377 = vmatprep.subr.mxu0 0.0
        %3378 = vmatpush1.msra.mxu0 0.0
        %3379 = vmatprep.subr.mxu0 0.0
        %3380 = vmatpush1.msra.mxu0 0.0
        %3381 = vmatprep.subr.mxu0 0.0
        %3382 = vmatpush1.msra.mxu0 0.0
        %3383 = vmatprep.subr.mxu0 0.0
        %3384 = vmatpush1.msra.mxu0 0.0
        %3385 = vmatprep.subr.mxu0 0.0
        %3386 = vmatpush1.msra.mxu0 0.0
        %3387 = vmatprep.subr.mxu0 0.0
        %3388 = vmatpush1.msra.mxu0 0.0
        %3389 = vmatprep.subr.mxu0 0.0
        %3390 = vmatpush1.msra.mxu0 0.0
        %3391 = vmatprep.subr.mxu0 0.0
        %3392 = vmatpush1.msra.mxu0 0.0
        %3393 = vmatprep.subr.mxu0 0.0
        %3394 = vmatpush1.msra.mxu0 0.0
        %3395 = vmatprep.subr.mxu0 0.0
        %3396 = vmatpush1.msra.mxu0 0.0
        %3397 = vmatprep.subr.mxu0 0.0
        %3398 = vmatpush1.msra.mxu0 0.0
        %3399 = vmatprep.subr.mxu0 0.0
        %3400 = vmatpush1.msra.mxu0 0.0
        %3401 = vmatprep.subr.mxu0 %v3362
        %3402 = vmatpush1.msra.mxu0 %v3361
        %3403 = vmatprep.subr.mxu0 %v3360
        %3404 = vmatpush1.msra.mxu0 %v3359
        %3405 = vmatprep.subr.mxu0 0.0
        %3406 = vmatpush2.msra.mxu0 0.0
        %3407 = vmatprep.subr.mxu0 0.0
        %3408 = vmatpush2.msra.mxu0 0.0
        %3409 = vmatprep.subr.mxu0 0.0
        %3410 = vmatpush2.msra.mxu0 0.0
        %3411 = vmatprep.subr.mxu0 0.0
        %3412 = vmatpush2.msra.mxu0 0.0
        %3413 = vmatprep.subr.mxu0 0.0
        %3414 = vmatpush2.msra.mxu0 0.0
        %3415 = vmatprep.subr.mxu0 0.0
        %3416 = vmatpush2.msra.mxu0 0.0
        %3417 = vmatprep.subr.mxu0 0.0
        %3418 = vmatpush2.msra.mxu0 0.0
        %3419 = vmatprep.subr.mxu0 0.0
        %3420 = vmatpush2.msra.mxu0 0.0
        %3421 = vmatprep.subr.mxu0 0.0
        %3422 = vmatpush2.msra.mxu0 0.0
        %3423 = vmatprep.subr.mxu0 0.0
        %3424 = vmatpush2.msra.mxu0 0.0
        %3425 = vmatprep.subr.mxu0 0.0
        %3426 = vmatpush2.msra.mxu0 0.0
        %3427 = vmatprep.subr.mxu0 0.0
        %3428 = vmatpush2.msra.mxu0 0.0
        %3429 = vmatprep.subr.mxu0 0.0
        %3430 = vmatpush2.msra.mxu0 0.0
        %3431 = vmatprep.subr.mxu0 0.0
        %3432 = vmatpush2.msra.mxu0 0.0
        %3433 = vmatprep.subr.mxu0 0.0
        %3434 = vmatpush2.msra.mxu0 0.0
        %3435 = vmatprep.subr.mxu0 0.0
        %3436 = vmatpush2.msra.mxu0 0.0
        %3437 = vmatprep.mubr.f32.mxu0 0.0
        %3438 = vmatmul.mubr.f32.gmra.mxu0 %v3368
        %v3439 = vpop.f32.mrf.mxu0
        %v3440 = vadd.f32 0.0, %v3439
        %v3441 = vpop.f32.mrf.mxu0
        %v3442 = vadd.f32 0.0, %v3441
        %3443 = vmatprep.mubr.f32.mxu0 0.0
        %3444 = vmatmul.mubr.f32.gmra.mxu0 %v3371
        %v3445 = vpop.f32.mrf.mxu0
        %v3446 = vadd.f32 0.0, %v3445
        %v3447 = vpop.f32.mrf.mxu0
        %v3448 = vadd.f32 0.0, %v3447
        %3449 = vdwg.mxu0
        %v3451 = vsel %vm1326, %v3334, 0
        %v3454 = vsel %vm1326, %v3335, 0
        %3456 = vmatprep.subr.mxu0 0.0
        %3457 = vmatpush1.msra.mxu0 0.0
        %3458 = vmatprep.subr.mxu0 0.0
        %3459 = vmatpush1.msra.mxu0 0.0
        %3460 = vmatprep.subr.mxu0 0.0
        %3461 = vmatpush1.msra.mxu0 0.0
        %3462 = vmatprep.subr.mxu0 0.0
        %3463 = vmatpush1.msra.mxu0 0.0
        %3464 = vmatprep.subr.mxu0 0.0
        %3465 = vmatpush1.msra.mxu0 0.0
        %3466 = vmatprep.subr.mxu0 0.0
        %3467 = vmatpush1.msra.mxu0 0.0
        %3468 = vmatprep.subr.mxu0 0.0
        %3469 = vmatpush1.msra.mxu0 0.0
        %3470 = vmatprep.subr.mxu0 0.0
        %3471 = vmatpush1.msra.mxu0 0.0
        %3472 = vmatprep.subr.mxu0 0.0
        %3473 = vmatpush1.msra.mxu0 0.0
        %3474 = vmatprep.subr.mxu0 0.0
        %3475 = vmatpush1.msra.mxu0 0.0
        %3476 = vmatprep.subr.mxu0 0.0
        %3477 = vmatpush1.msra.mxu0 0.0
        %3478 = vmatprep.subr.mxu0 0.0
        %3479 = vmatpush1.msra.mxu0 0.0
        %3480 = vmatprep.subr.mxu0 0.0
        %3481 = vmatpush1.msra.mxu0 0.0
        %3482 = vmatprep.subr.mxu0 0.0
        %3483 = vmatpush1.msra.mxu0 0.0
        %3484 = vmatprep.subr.mxu0 %v3332
        %3485 = vmatpush1.msra.mxu0 %v3331
        %3486 = vmatprep.subr.mxu0 %v3330
        %3487 = vmatpush1.msra.mxu0 %v3329
        %3488 = vmatprep.subr.mxu0 0.0
        %3489 = vmatpush2.msra.mxu0 0.0
        %3490 = vmatprep.subr.mxu0 0.0
        %3491 = vmatpush2.msra.mxu0 0.0
        %3492 = vmatprep.subr.mxu0 0.0
        %3493 = vmatpush2.msra.mxu0 0.0
        %3494 = vmatprep.subr.mxu0 0.0
        %3495 = vmatpush2.msra.mxu0 0.0
        %3496 = vmatprep.subr.mxu0 0.0
        %3497 = vmatpush2.msra.mxu0 0.0
        %3498 = vmatprep.subr.mxu0 0.0
        %3499 = vmatpush2.msra.mxu0 0.0
        %3500 = vmatprep.subr.mxu0 0.0
        %3501 = vmatpush2.msra.mxu0 0.0
        %3502 = vmatprep.subr.mxu0 0.0
        %3503 = vmatpush2.msra.mxu0 0.0
        %3504 = vmatprep.subr.mxu0 0.0
        %3505 = vmatpush2.msra.mxu0 0.0
        %3506 = vmatprep.subr.mxu0 0.0
        %3507 = vmatpush2.msra.mxu0 0.0
        %3508 = vmatprep.subr.mxu0 0.0
        %3509 = vmatpush2.msra.mxu0 0.0
        %3510 = vmatprep.subr.mxu0 0.0
        %3511 = vmatpush2.msra.mxu0 0.0
        %3512 = vmatprep.subr.mxu0 0.0
        %3513 = vmatpush2.msra.mxu0 0.0
        %3514 = vmatprep.subr.mxu0 0.0
        %3515 = vmatpush2.msra.mxu0 0.0
        %3516 = vmatprep.subr.mxu0 0.0
        %3517 = vmatpush2.msra.mxu0 0.0
        %3518 = vmatprep.subr.mxu0 0.0
        %3519 = vmatpush2.msra.mxu0 0.0
        %3520 = vmatprep.mubr.f32.mxu0 0.0
        %3521 = vmatmul.mubr.f32.gmra.mxu0 %v3451
        %v3522 = vpop.f32.mrf.mxu0
        %v3523 = vadd.f32 %v3440, %v3522
        %v3524 = vpop.f32.mrf.mxu0
        %v3525 = vadd.f32 %v3442, %v3524
        %3526 = vmatprep.mubr.f32.mxu0 0.0
        %3527 = vmatmul.mubr.f32.gmra.mxu0 %v3454
        %v3528 = vpop.f32.mrf.mxu0
        %v3529 = vadd.f32 %v3446, %v3528
        %v3530 = vpop.f32.mrf.mxu0
        %v3531 = vadd.f32 %v3448, %v3530
        %3532 = vdwg.mxu0
        %s3533 = scalar_lea.vmem %s2, 384
        %v3534 = vld [vmem:[%s3533] sm:$0xff]
        %v3535 = vld [vmem:[%s3533 + $0x8] sm:$0xff]
        %3536 = vrot.lane.b32.xlu0 %v3329, 96
        %v3537 = vpop.permute.xlu0 %3536
        %3538 = vrot.lane.b32.xlu0 %v3330, 96
        %v3539 = vpop.permute.xlu0 %3538
        %3540 = vrot.lane.b32.xlu0 %v3336, 96
        %v3541 = vpop.permute.xlu0 %3540
        %3542 = vrot.lane.b32.xlu0 %v3331, 96
        %v3543 = vpop.permute.xlu0 %3542
        %3544 = vrot.lane.b32.xlu0 %v3332, 96
        %v3545 = vpop.permute.xlu0 %3544
        %3546 = vrot.lane.b32.xlu0 %v3337, 96
        %v3547 = vpop.permute.xlu0 %3546
        %v3548 = vsel %vm536, %v3537, %v3539
        %v3549 = vsel %vm536, %v3539, %v3541
        %v3550 = vsel %vm536, %v3543, %v3545
        %v3551 = vsel %vm536, %v3545, %v3547
        %v3557 = vsel %vm1326, %v3534, 0
        %v3560 = vsel %vm1326, %v3535, 0
        %3562 = vmatprep.subr.mxu0 0.0
        %3563 = vmatpush1.msra.mxu0 0.0
        %3564 = vmatprep.subr.mxu0 0.0
        %3565 = vmatpush1.msra.mxu0 0.0
        %3566 = vmatprep.subr.mxu0 0.0
        %3567 = vmatpush1.msra.mxu0 0.0
        %3568 = vmatprep.subr.mxu0 0.0
        %3569 = vmatpush1.msra.mxu0 0.0
        %3570 = vmatprep.subr.mxu0 0.0
        %3571 = vmatpush1.msra.mxu0 0.0
        %3572 = vmatprep.subr.mxu0 0.0
        %3573 = vmatpush1.msra.mxu0 0.0
        %3574 = vmatprep.subr.mxu0 0.0
        %3575 = vmatpush1.msra.mxu0 0.0
        %3576 = vmatprep.subr.mxu0 0.0
        %3577 = vmatpush1.msra.mxu0 0.0
        %3578 = vmatprep.subr.mxu0 0.0
        %3579 = vmatpush1.msra.mxu0 0.0
        %3580 = vmatprep.subr.mxu0 0.0
        %3581 = vmatpush1.msra.mxu0 0.0
        %3582 = vmatprep.subr.mxu0 0.0
        %3583 = vmatpush1.msra.mxu0 0.0
        %3584 = vmatprep.subr.mxu0 0.0
        %3585 = vmatpush1.msra.mxu0 0.0
        %3586 = vmatprep.subr.mxu0 0.0
        %3587 = vmatpush1.msra.mxu0 0.0
        %3588 = vmatprep.subr.mxu0 0.0
        %3589 = vmatpush1.msra.mxu0 0.0
        %3590 = vmatprep.subr.mxu0 %v3551
        %3591 = vmatpush1.msra.mxu0 %v3550
        %3592 = vmatprep.subr.mxu0 %v3549
        %3593 = vmatpush1.msra.mxu0 %v3548
        %3594 = vmatprep.subr.mxu0 0.0
        %3595 = vmatpush2.msra.mxu0 0.0
        %3596 = vmatprep.subr.mxu0 0.0
        %3597 = vmatpush2.msra.mxu0 0.0
        %3598 = vmatprep.subr.mxu0 0.0
        %3599 = vmatpush2.msra.mxu0 0.0
        %3600 = vmatprep.subr.mxu0 0.0
        %3601 = vmatpush2.msra.mxu0 0.0
        %3602 = vmatprep.subr.mxu0 0.0
        %3603 = vmatpush2.msra.mxu0 0.0
        %3604 = vmatprep.subr.mxu0 0.0
        %3605 = vmatpush2.msra.mxu0 0.0
        %3606 = vmatprep.subr.mxu0 0.0
        %3607 = vmatpush2.msra.mxu0 0.0
        %3608 = vmatprep.subr.mxu0 0.0
        %3609 = vmatpush2.msra.mxu0 0.0
        %3610 = vmatprep.subr.mxu0 0.0
        %3611 = vmatpush2.msra.mxu0 0.0
        %3612 = vmatprep.subr.mxu0 0.0
        %3613 = vmatpush2.msra.mxu0 0.0
        %3614 = vmatprep.subr.mxu0 0.0
        %3615 = vmatpush2.msra.mxu0 0.0
        %3616 = vmatprep.subr.mxu0 0.0
        %3617 = vmatpush2.msra.mxu0 0.0
        %3618 = vmatprep.subr.mxu0 0.0
        %3619 = vmatpush2.msra.mxu0 0.0
        %3620 = vmatprep.subr.mxu0 0.0
        %3621 = vmatpush2.msra.mxu0 0.0
        %3622 = vmatprep.subr.mxu0 0.0
        %3623 = vmatpush2.msra.mxu0 0.0
        %3624 = vmatprep.subr.mxu0 0.0
        %3625 = vmatpush2.msra.mxu0 0.0
        %3626 = vmatprep.mubr.f32.mxu0 0.0
        %3627 = vmatmul.mubr.f32.gmra.mxu0 %v3557
        %v3628 = vpop.f32.mrf.mxu0
        %v3629 = vadd.f32 0.0, %v3628
        %v3630 = vpop.f32.mrf.mxu0
        %v3631 = vadd.f32 0.0, %v3630
        %3632 = vmatprep.mubr.f32.mxu0 0.0
        %3633 = vmatmul.mubr.f32.gmra.mxu0 %v3560
        %v3634 = vpop.f32.mrf.mxu0
        %v3635 = vadd.f32 0.0, %v3634
        %v3636 = vpop.f32.mrf.mxu0
        %v3637 = vadd.f32 0.0, %v3636
        %3638 = vdwg.mxu0
        %v3639 = vadd.f32 %v3523, %v3629
        %v3640 = vadd.f32 %v3525, %v3631
        %v3641 = vadd.f32 %v3529, %v3635
        %v3642 = vadd.f32 %v3531, %v3637
        %s3643 = scalar_lea.vmem %s2, 304
        %v3644 = vld [vmem:[%s3643] sm:$0xff]
        %v3645 = vld [vmem:[%s3643 + $0x8] sm:$0xff]
        %s3646 = scalar_lea.vmem %s2, 352
        %v3647 = vld [vmem:[%s3646] sm:$0xff]
        %v3648 = vld [vmem:[%s3646 + $0x8] sm:$0xff]
        %3649 = vrot.lane.b32.xlu0 %v3329, 111
        %v3650 = vpop.permute.xlu0 %3649
        %3651 = vrot.lane.b32.xlu0 %v3330, 111
        %v3652 = vpop.permute.xlu0 %3651
        %3653 = vrot.lane.b32.xlu0 %v3336, 111
        %v3654 = vpop.permute.xlu0 %3653
        %3655 = vrot.lane.b32.xlu0 %v3331, 111
        %v3656 = vpop.permute.xlu0 %3655
        %3657 = vrot.lane.b32.xlu0 %v3332, 111
        %v3658 = vpop.permute.xlu0 %3657
        %3659 = vrot.lane.b32.xlu0 %v3337, 111
        %v3660 = vpop.permute.xlu0 %3659
        %v3661 = vsel %vm640, %v3650, %v3652
        %v3662 = vsel %vm640, %v3652, %v3654
        %v3663 = vsel %vm640, %v3656, %v3658
        %v3664 = vsel %vm640, %v3658, %v3660
        %v3670 = vsel %vm1326, %v3647, 0
        %v3673 = vsel %vm1326, %v3648, 0
        %3675 = vmatprep.subr.mxu0 0.0
        %3676 = vmatpush1.msra.mxu0 0.0
        %3677 = vmatprep.subr.mxu0 0.0
        %3678 = vmatpush1.msra.mxu0 0.0
        %3679 = vmatprep.subr.mxu0 0.0
        %3680 = vmatpush1.msra.mxu0 0.0
        %3681 = vmatprep.subr.mxu0 0.0
        %3682 = vmatpush1.msra.mxu0 0.0
        %3683 = vmatprep.subr.mxu0 0.0
        %3684 = vmatpush1.msra.mxu0 0.0
        %3685 = vmatprep.subr.mxu0 0.0
        %3686 = vmatpush1.msra.mxu0 0.0
        %3687 = vmatprep.subr.mxu0 0.0
        %3688 = vmatpush1.msra.mxu0 0.0
        %3689 = vmatprep.subr.mxu0 0.0
        %3690 = vmatpush1.msra.mxu0 0.0
        %3691 = vmatprep.subr.mxu0 0.0
        %3692 = vmatpush1.msra.mxu0 0.0
        %3693 = vmatprep.subr.mxu0 0.0
        %3694 = vmatpush1.msra.mxu0 0.0
        %3695 = vmatprep.subr.mxu0 0.0
        %3696 = vmatpush1.msra.mxu0 0.0
        %3697 = vmatprep.subr.mxu0 0.0
        %3698 = vmatpush1.msra.mxu0 0.0
        %3699 = vmatprep.subr.mxu0 0.0
        %3700 = vmatpush1.msra.mxu0 0.0
        %3701 = vmatprep.subr.mxu0 0.0
        %3702 = vmatpush1.msra.mxu0 0.0
        %3703 = vmatprep.subr.mxu0 %v3664
        %3704 = vmatpush1.msra.mxu0 %v3663
        %3705 = vmatprep.subr.mxu0 %v3662
        %3706 = vmatpush1.msra.mxu0 %v3661
        %3707 = vmatprep.subr.mxu0 0.0
        %3708 = vmatpush2.msra.mxu0 0.0
        %3709 = vmatprep.subr.mxu0 0.0
        %3710 = vmatpush2.msra.mxu0 0.0
        %3711 = vmatprep.subr.mxu0 0.0
        %3712 = vmatpush2.msra.mxu0 0.0
        %3713 = vmatprep.subr.mxu0 0.0
        %3714 = vmatpush2.msra.mxu0 0.0
        %3715 = vmatprep.subr.mxu0 0.0
        %3716 = vmatpush2.msra.mxu0 0.0
        %3717 = vmatprep.subr.mxu0 0.0
        %3718 = vmatpush2.msra.mxu0 0.0
        %3719 = vmatprep.subr.mxu0 0.0
        %3720 = vmatpush2.msra.mxu0 0.0
        %3721 = vmatprep.subr.mxu0 0.0
        %3722 = vmatpush2.msra.mxu0 0.0
        %3723 = vmatprep.subr.mxu0 0.0
        %3724 = vmatpush2.msra.mxu0 0.0
        %3725 = vmatprep.subr.mxu0 0.0
        %3726 = vmatpush2.msra.mxu0 0.0
        %3727 = vmatprep.subr.mxu0 0.0
        %3728 = vmatpush2.msra.mxu0 0.0
        %3729 = vmatprep.subr.mxu0 0.0
        %3730 = vmatpush2.msra.mxu0 0.0
        %3731 = vmatprep.subr.mxu0 0.0
        %3732 = vmatpush2.msra.mxu0 0.0
        %3733 = vmatprep.subr.mxu0 0.0
        %3734 = vmatpush2.msra.mxu0 0.0
        %3735 = vmatprep.subr.mxu0 0.0
        %3736 = vmatpush2.msra.mxu0 0.0
        %3737 = vmatprep.subr.mxu0 0.0
        %3738 = vmatpush2.msra.mxu0 0.0
        %3739 = vmatprep.mubr.f32.mxu0 0.0
        %3740 = vmatmul.mubr.f32.gmra.mxu0 %v3670
        %v3741 = vpop.f32.mrf.mxu0
        %v3742 = vadd.f32 0.0, %v3741
        %v3743 = vpop.f32.mrf.mxu0
        %v3744 = vadd.f32 0.0, %v3743
        %3745 = vmatprep.mubr.f32.mxu0 0.0
        %3746 = vmatmul.mubr.f32.gmra.mxu0 %v3673
        %v3747 = vpop.f32.mrf.mxu0
        %v3748 = vadd.f32 0.0, %v3747
        %v3749 = vpop.f32.mrf.mxu0
        %v3750 = vadd.f32 0.0, %v3749
        %3751 = vdwg.mxu0
        %3752 = vrot.lane.b32.xlu0 %v3329, 127
        %v3753 = vpop.permute.xlu0 %3752
        %3754 = vrot.lane.b32.xlu0 %v3330, 127
        %v3755 = vpop.permute.xlu0 %3754
        %3756 = vrot.lane.b32.xlu0 %v3336, 127
        %v3757 = vpop.permute.xlu0 %3756
        %3758 = vrot.lane.b32.xlu0 %v3331, 127
        %v3759 = vpop.permute.xlu0 %3758
        %3760 = vrot.lane.b32.xlu0 %v3332, 127
        %v3761 = vpop.permute.xlu0 %3760
        %3762 = vrot.lane.b32.xlu0 %v3337, 127
        %v3763 = vpop.permute.xlu0 %3762
        %v3764 = vsel %vm734, %v3753, %v3755
        %v3765 = vsel %vm734, %v3755, %v3757
        %v3766 = vsel %vm734, %v3759, %v3761
        %v3767 = vsel %vm734, %v3761, %v3763
        %v3773 = vsel %vm1326, %v3644, 0
        %v3776 = vsel %vm1326, %v3645, 0
        %3778 = vmatprep.subr.mxu0 0.0
        %3779 = vmatpush1.msra.mxu0 0.0
        %3780 = vmatprep.subr.mxu0 0.0
        %3781 = vmatpush1.msra.mxu0 0.0
        %3782 = vmatprep.subr.mxu0 0.0
        %3783 = vmatpush1.msra.mxu0 0.0
        %3784 = vmatprep.subr.mxu0 0.0
        %3785 = vmatpush1.msra.mxu0 0.0
        %3786 = vmatprep.subr.mxu0 0.0
        %3787 = vmatpush1.msra.mxu0 0.0
        %3788 = vmatprep.subr.mxu0 0.0
        %3789 = vmatpush1.msra.mxu0 0.0
        %3790 = vmatprep.subr.mxu0 0.0
        %3791 = vmatpush1.msra.mxu0 0.0
        %3792 = vmatprep.subr.mxu0 0.0
        %3793 = vmatpush1.msra.mxu0 0.0
        %3794 = vmatprep.subr.mxu0 0.0
        %3795 = vmatpush1.msra.mxu0 0.0
        %3796 = vmatprep.subr.mxu0 0.0
        %3797 = vmatpush1.msra.mxu0 0.0
        %3798 = vmatprep.subr.mxu0 0.0
        %3799 = vmatpush1.msra.mxu0 0.0
        %3800 = vmatprep.subr.mxu0 0.0
        %3801 = vmatpush1.msra.mxu0 0.0
        %3802 = vmatprep.subr.mxu0 0.0
        %3803 = vmatpush1.msra.mxu0 0.0
        %3804 = vmatprep.subr.mxu0 0.0
        %3805 = vmatpush1.msra.mxu0 0.0
        %3806 = vmatprep.subr.mxu0 %v3767
        %3807 = vmatpush1.msra.mxu0 %v3766
        %3808 = vmatprep.subr.mxu0 %v3765
        %3809 = vmatpush1.msra.mxu0 %v3764
        %3810 = vmatprep.subr.mxu0 0.0
        %3811 = vmatpush2.msra.mxu0 0.0
        %3812 = vmatprep.subr.mxu0 0.0
        %3813 = vmatpush2.msra.mxu0 0.0
        %3814 = vmatprep.subr.mxu0 0.0
        %3815 = vmatpush2.msra.mxu0 0.0
        %3816 = vmatprep.subr.mxu0 0.0
        %3817 = vmatpush2.msra.mxu0 0.0
        %3818 = vmatprep.subr.mxu0 0.0
        %3819 = vmatpush2.msra.mxu0 0.0
        %3820 = vmatprep.subr.mxu0 0.0
        %3821 = vmatpush2.msra.mxu0 0.0
        %3822 = vmatprep.subr.mxu0 0.0
        %3823 = vmatpush2.msra.mxu0 0.0
        %3824 = vmatprep.subr.mxu0 0.0
        %3825 = vmatpush2.msra.mxu0 0.0
        %3826 = vmatprep.subr.mxu0 0.0
        %3827 = vmatpush2.msra.mxu0 0.0
        %3828 = vmatprep.subr.mxu0 0.0
        %3829 = vmatpush2.msra.mxu0 0.0
        %3830 = vmatprep.subr.mxu0 0.0
        %3831 = vmatpush2.msra.mxu0 0.0
        %3832 = vmatprep.subr.mxu0 0.0
        %3833 = vmatpush2.msra.mxu0 0.0
        %3834 = vmatprep.subr.mxu0 0.0
        %3835 = vmatpush2.msra.mxu0 0.0
        %3836 = vmatprep.subr.mxu0 0.0
        %3837 = vmatpush2.msra.mxu0 0.0
        %3838 = vmatprep.subr.mxu0 0.0
        %3839 = vmatpush2.msra.mxu0 0.0
        %3840 = vmatprep.subr.mxu0 0.0
        %3841 = vmatpush2.msra.mxu0 0.0
        %3842 = vmatprep.mubr.f32.mxu0 0.0
        %3843 = vmatmul.mubr.f32.gmra.mxu0 %v3773
        %v3844 = vpop.f32.mrf.mxu0
        %v3845 = vadd.f32 %v3742, %v3844
        %v3846 = vpop.f32.mrf.mxu0
        %v3847 = vadd.f32 %v3744, %v3846
        %3848 = vmatprep.mubr.f32.mxu0 0.0
        %3849 = vmatmul.mubr.f32.gmra.mxu0 %v3776
        %v3850 = vpop.f32.mrf.mxu0
        %v3851 = vadd.f32 %v3748, %v3850
        %v3852 = vpop.f32.mrf.mxu0
        %v3853 = vadd.f32 %v3750, %v3852
        %3854 = vdwg.mxu0
        %s3855 = scalar_lea.vmem %s2, 400
        %v3856 = vld [vmem:[%s3855] sm:$0xff]
        %v3857 = vld [vmem:[%s3855 + $0x8] sm:$0xff]
        %3858 = vrot.lane.b32.xlu0 %v3329, 95
        %v3859 = vpop.permute.xlu0 %3858
        %3860 = vrot.lane.b32.xlu0 %v3330, 95
        %v3861 = vpop.permute.xlu0 %3860
        %3862 = vrot.lane.b32.xlu0 %v3336, 95
        %v3863 = vpop.permute.xlu0 %3862
        %3864 = vrot.lane.b32.xlu0 %v3331, 95
        %v3865 = vpop.permute.xlu0 %3864
        %3866 = vrot.lane.b32.xlu0 %v3332, 95
        %v3867 = vpop.permute.xlu0 %3866
        %3868 = vrot.lane.b32.xlu0 %v3337, 95
        %v3869 = vpop.permute.xlu0 %3868
        %v3870 = vsel %vm831, %v3859, %v3861
        %v3871 = vsel %vm831, %v3861, %v3863
        %v3872 = vsel %vm831, %v3865, %v3867
        %v3873 = vsel %vm831, %v3867, %v3869
        %v3879 = vsel %vm1326, %v3856, 0
        %v3882 = vsel %vm1326, %v3857, 0
        %3884 = vmatprep.subr.mxu0 0.0
        %3885 = vmatpush1.msra.mxu0 0.0
        %3886 = vmatprep.subr.mxu0 0.0
        %3887 = vmatpush1.msra.mxu0 0.0
        %3888 = vmatprep.subr.mxu0 0.0
        %3889 = vmatpush1.msra.mxu0 0.0
        %3890 = vmatprep.subr.mxu0 0.0
        %3891 = vmatpush1.msra.mxu0 0.0
        %3892 = vmatprep.subr.mxu0 0.0
        %3893 = vmatpush1.msra.mxu0 0.0
        %3894 = vmatprep.subr.mxu0 0.0
        %3895 = vmatpush1.msra.mxu0 0.0
        %3896 = vmatprep.subr.mxu0 0.0
        %3897 = vmatpush1.msra.mxu0 0.0
        %3898 = vmatprep.subr.mxu0 0.0
        %3899 = vmatpush1.msra.mxu0 0.0
        %3900 = vmatprep.subr.mxu0 0.0
        %3901 = vmatpush1.msra.mxu0 0.0
        %3902 = vmatprep.subr.mxu0 0.0
        %3903 = vmatpush1.msra.mxu0 0.0
        %3904 = vmatprep.subr.mxu0 0.0
        %3905 = vmatpush1.msra.mxu0 0.0
        %3906 = vmatprep.subr.mxu0 0.0
        %3907 = vmatpush1.msra.mxu0 0.0
        %3908 = vmatprep.subr.mxu0 0.0
        %3909 = vmatpush1.msra.mxu0 0.0
        %3910 = vmatprep.subr.mxu0 0.0
        %3911 = vmatpush1.msra.mxu0 0.0
        %3912 = vmatprep.subr.mxu0 %v3873
        %3913 = vmatpush1.msra.mxu0 %v3872
        %3914 = vmatprep.subr.mxu0 %v3871
        %3915 = vmatpush1.msra.mxu0 %v3870
        %3916 = vmatprep.subr.mxu0 0.0
        %3917 = vmatpush2.msra.mxu0 0.0
        %3918 = vmatprep.subr.mxu0 0.0
        %3919 = vmatpush2.msra.mxu0 0.0
        %3920 = vmatprep.subr.mxu0 0.0
        %3921 = vmatpush2.msra.mxu0 0.0
        %3922 = vmatprep.subr.mxu0 0.0
        %3923 = vmatpush2.msra.mxu0 0.0
        %3924 = vmatprep.subr.mxu0 0.0
        %3925 = vmatpush2.msra.mxu0 0.0
        %3926 = vmatprep.subr.mxu0 0.0
        %3927 = vmatpush2.msra.mxu0 0.0
        %3928 = vmatprep.subr.mxu0 0.0
        %3929 = vmatpush2.msra.mxu0 0.0
        %3930 = vmatprep.subr.mxu0 0.0
        %3931 = vmatpush2.msra.mxu0 0.0
        %3932 = vmatprep.subr.mxu0 0.0
        %3933 = vmatpush2.msra.mxu0 0.0
        %3934 = vmatprep.subr.mxu0 0.0
        %3935 = vmatpush2.msra.mxu0 0.0
        %3936 = vmatprep.subr.mxu0 0.0
        %3937 = vmatpush2.msra.mxu0 0.0
        %3938 = vmatprep.subr.mxu0 0.0
        %3939 = vmatpush2.msra.mxu0 0.0
        %3940 = vmatprep.subr.mxu0 0.0
        %3941 = vmatpush2.msra.mxu0 0.0
        %3942 = vmatprep.subr.mxu0 0.0
        %3943 = vmatpush2.msra.mxu0 0.0
        %3944 = vmatprep.subr.mxu0 0.0
        %3945 = vmatpush2.msra.mxu0 0.0
        %3946 = vmatprep.subr.mxu0 0.0
        %3947 = vmatpush2.msra.mxu0 0.0
        %3948 = vmatprep.mubr.f32.mxu0 0.0
        %3949 = vmatmul.mubr.f32.gmra.mxu0 %v3879
        %v3950 = vpop.f32.mrf.mxu0
        %v3951 = vadd.f32 0.0, %v3950
        %v3952 = vpop.f32.mrf.mxu0
        %v3953 = vadd.f32 0.0, %v3952
        %3954 = vmatprep.mubr.f32.mxu0 0.0
        %3955 = vmatmul.mubr.f32.gmra.mxu0 %v3882
        %v3956 = vpop.f32.mrf.mxu0
        %v3957 = vadd.f32 0.0, %v3956
        %v3958 = vpop.f32.mrf.mxu0
        %v3959 = vadd.f32 0.0, %v3958
        %3960 = vdwg.mxu0
        %v3961 = vadd.f32 %v3845, %v3951
        %v3962 = vadd.f32 %v3847, %v3953
        %v3963 = vadd.f32 %v3851, %v3957
        %v3964 = vadd.f32 %v3853, %v3959
        %s3965 = scalar_lea.vmem %s2, 320
        %v3966 = vld [vmem:[%s3965] sm:$0xff]
        %v3967 = vld [vmem:[%s3965 + $0x8] sm:$0xff]
        %s3968 = scalar_lea.vmem %s2, 368
        %v3969 = vld [vmem:[%s3968] sm:$0xff]
        %v3970 = vld [vmem:[%s3968 + $0x8] sm:$0xff]
        %3971 = vrot.lane.b32.xlu0 %v3329, 110
        %v3972 = vpop.permute.xlu0 %3971
        %3973 = vrot.lane.b32.xlu0 %v3330, 110
        %v3974 = vpop.permute.xlu0 %3973
        %3975 = vrot.lane.b32.xlu0 %v3336, 110
        %v3976 = vpop.permute.xlu0 %3975
        %3977 = vrot.lane.b32.xlu0 %v3331, 110
        %v3978 = vpop.permute.xlu0 %3977
        %3979 = vrot.lane.b32.xlu0 %v3332, 110
        %v3980 = vpop.permute.xlu0 %3979
        %3981 = vrot.lane.b32.xlu0 %v3337, 110
        %v3982 = vpop.permute.xlu0 %3981
        %v3983 = vsel %vm935, %v3972, %v3974
        %v3984 = vsel %vm935, %v3974, %v3976
        %v3985 = vsel %vm935, %v3978, %v3980
        %v3986 = vsel %vm935, %v3980, %v3982
        %v3992 = vsel %vm1326, %v3969, 0
        %v3995 = vsel %vm1326, %v3970, 0
        %3997 = vmatprep.subr.mxu0 0.0
        %3998 = vmatpush1.msra.mxu0 0.0
        %3999 = vmatprep.subr.mxu0 0.0
        %4000 = vmatpush1.msra.mxu0 0.0
        %4001 = vmatprep.subr.mxu0 0.0
        %4002 = vmatpush1.msra.mxu0 0.0
        %4003 = vmatprep.subr.mxu0 0.0
        %4004 = vmatpush1.msra.mxu0 0.0
        %4005 = vmatprep.subr.mxu0 0.0
        %4006 = vmatpush1.msra.mxu0 0.0
        %4007 = vmatprep.subr.mxu0 0.0
        %4008 = vmatpush1.msra.mxu0 0.0
        %4009 = vmatprep.subr.mxu0 0.0
        %4010 = vmatpush1.msra.mxu0 0.0
        %4011 = vmatprep.subr.mxu0 0.0
        %4012 = vmatpush1.msra.mxu0 0.0
        %4013 = vmatprep.subr.mxu0 0.0
        %4014 = vmatpush1.msra.mxu0 0.0
        %4015 = vmatprep.subr.mxu0 0.0
        %4016 = vmatpush1.msra.mxu0 0.0
        %4017 = vmatprep.subr.mxu0 0.0
        %4018 = vmatpush1.msra.mxu0 0.0
        %4019 = vmatprep.subr.mxu0 0.0
        %4020 = vmatpush1.msra.mxu0 0.0
        %4021 = vmatprep.subr.mxu0 0.0
        %4022 = vmatpush1.msra.mxu0 0.0
        %4023 = vmatprep.subr.mxu0 0.0
        %4024 = vmatpush1.msra.mxu0 0.0
        %4025 = vmatprep.subr.mxu0 %v3986
        %4026 = vmatpush1.msra.mxu0 %v3985
        %4027 = vmatprep.subr.mxu0 %v3984
        %4028 = vmatpush1.msra.mxu0 %v3983
        %4029 = vmatprep.subr.mxu0 0.0
        %4030 = vmatpush2.msra.mxu0 0.0
        %4031 = vmatprep.subr.mxu0 0.0
        %4032 = vmatpush2.msra.mxu0 0.0
        %4033 = vmatprep.subr.mxu0 0.0
        %4034 = vmatpush2.msra.mxu0 0.0
        %4035 = vmatprep.subr.mxu0 0.0
        %4036 = vmatpush2.msra.mxu0 0.0
        %4037 = vmatprep.subr.mxu0 0.0
        %4038 = vmatpush2.msra.mxu0 0.0
        %4039 = vmatprep.subr.mxu0 0.0
        %4040 = vmatpush2.msra.mxu0 0.0
        %4041 = vmatprep.subr.mxu0 0.0
        %4042 = vmatpush2.msra.mxu0 0.0
        %4043 = vmatprep.subr.mxu0 0.0
        %4044 = vmatpush2.msra.mxu0 0.0
        %4045 = vmatprep.subr.mxu0 0.0
        %4046 = vmatpush2.msra.mxu0 0.0
        %4047 = vmatprep.subr.mxu0 0.0
        %4048 = vmatpush2.msra.mxu0 0.0
        %4049 = vmatprep.subr.mxu0 0.0
        %4050 = vmatpush2.msra.mxu0 0.0
        %4051 = vmatprep.subr.mxu0 0.0
        %4052 = vmatpush2.msra.mxu0 0.0
        %4053 = vmatprep.subr.mxu0 0.0
        %4054 = vmatpush2.msra.mxu0 0.0
        %4055 = vmatprep.subr.mxu0 0.0
        %4056 = vmatpush2.msra.mxu0 0.0
        %4057 = vmatprep.subr.mxu0 0.0
        %4058 = vmatpush2.msra.mxu0 0.0
        %4059 = vmatprep.subr.mxu0 0.0
        %4060 = vmatpush2.msra.mxu0 0.0
        %4061 = vmatprep.mubr.f32.mxu0 0.0
        %4062 = vmatmul.mubr.f32.gmra.mxu0 %v3992
        %v4063 = vpop.f32.mrf.mxu0
        %v4064 = vadd.f32 0.0, %v4063
        %v4065 = vpop.f32.mrf.mxu0
        %v4066 = vadd.f32 0.0, %v4065
        %4067 = vmatprep.mubr.f32.mxu0 0.0
        %4068 = vmatmul.mubr.f32.gmra.mxu0 %v3995
        %v4069 = vpop.f32.mrf.mxu0
        %v4070 = vadd.f32 0.0, %v4069
        %v4071 = vpop.f32.mrf.mxu0
        %v4072 = vadd.f32 0.0, %v4071
        %4073 = vdwg.mxu0
        %4074 = vrot.lane.b32.xlu0 %v3329, 126
        %v4075 = vpop.permute.xlu0 %4074
        %4076 = vrot.lane.b32.xlu0 %v3330, 126
        %v4077 = vpop.permute.xlu0 %4076
        %4078 = vrot.lane.b32.xlu0 %v3336, 126
        %v4079 = vpop.permute.xlu0 %4078
        %4080 = vrot.lane.b32.xlu0 %v3331, 126
        %v4081 = vpop.permute.xlu0 %4080
        %4082 = vrot.lane.b32.xlu0 %v3332, 126
        %v4083 = vpop.permute.xlu0 %4082
        %4084 = vrot.lane.b32.xlu0 %v3337, 126
        %v4085 = vpop.permute.xlu0 %4084
        %v4086 = vsel %vm1029, %v4075, %v4077
        %v4087 = vsel %vm1029, %v4077, %v4079
        %v4088 = vsel %vm1029, %v4081, %v4083
        %v4089 = vsel %vm1029, %v4083, %v4085
        %v4095 = vsel %vm1326, %v3966, 0
        %v4098 = vsel %vm1326, %v3967, 0
        %4100 = vmatprep.subr.mxu0 0.0
        %4101 = vmatpush1.msra.mxu0 0.0
        %4102 = vmatprep.subr.mxu0 0.0
        %4103 = vmatpush1.msra.mxu0 0.0
        %4104 = vmatprep.subr.mxu0 0.0
        %4105 = vmatpush1.msra.mxu0 0.0
        %4106 = vmatprep.subr.mxu0 0.0
        %4107 = vmatpush1.msra.mxu0 0.0
        %4108 = vmatprep.subr.mxu0 0.0
        %4109 = vmatpush1.msra.mxu0 0.0
        %4110 = vmatprep.subr.mxu0 0.0
        %4111 = vmatpush1.msra.mxu0 0.0
        %4112 = vmatprep.subr.mxu0 0.0
        %4113 = vmatpush1.msra.mxu0 0.0
        %4114 = vmatprep.subr.mxu0 0.0
        %4115 = vmatpush1.msra.mxu0 0.0
        %4116 = vmatprep.subr.mxu0 0.0
        %4117 = vmatpush1.msra.mxu0 0.0
        %4118 = vmatprep.subr.mxu0 0.0
        %4119 = vmatpush1.msra.mxu0 0.0
        %4120 = vmatprep.subr.mxu0 0.0
        %4121 = vmatpush1.msra.mxu0 0.0
        %4122 = vmatprep.subr.mxu0 0.0
        %4123 = vmatpush1.msra.mxu0 0.0
        %4124 = vmatprep.subr.mxu0 0.0
        %4125 = vmatpush1.msra.mxu0 0.0
        %4126 = vmatprep.subr.mxu0 0.0
        %4127 = vmatpush1.msra.mxu0 0.0
        %4128 = vmatprep.subr.mxu0 %v4089
        %4129 = vmatpush1.msra.mxu0 %v4088
        %4130 = vmatprep.subr.mxu0 %v4087
        %4131 = vmatpush1.msra.mxu0 %v4086
        %4132 = vmatprep.subr.mxu0 0.0
        %4133 = vmatpush2.msra.mxu0 0.0
        %4134 = vmatprep.subr.mxu0 0.0
        %4135 = vmatpush2.msra.mxu0 0.0
        %4136 = vmatprep.subr.mxu0 0.0
        %4137 = vmatpush2.msra.mxu0 0.0
        %4138 = vmatprep.subr.mxu0 0.0
        %4139 = vmatpush2.msra.mxu0 0.0
        %4140 = vmatprep.subr.mxu0 0.0
        %4141 = vmatpush2.msra.mxu0 0.0
        %4142 = vmatprep.subr.mxu0 0.0
        %4143 = vmatpush2.msra.mxu0 0.0
        %4144 = vmatprep.subr.mxu0 0.0
        %4145 = vmatpush2.msra.mxu0 0.0
        %4146 = vmatprep.subr.mxu0 0.0
        %4147 = vmatpush2.msra.mxu0 0.0
        %4148 = vmatprep.subr.mxu0 0.0
        %4149 = vmatpush2.msra.mxu0 0.0
        %4150 = vmatprep.subr.mxu0 0.0
        %4151 = vmatpush2.msra.mxu0 0.0
        %4152 = vmatprep.subr.mxu0 0.0
        %4153 = vmatpush2.msra.mxu0 0.0
        %4154 = vmatprep.subr.mxu0 0.0
        %4155 = vmatpush2.msra.mxu0 0.0
        %4156 = vmatprep.subr.mxu0 0.0
        %4157 = vmatpush2.msra.mxu0 0.0
        %4158 = vmatprep.subr.mxu0 0.0
        %4159 = vmatpush2.msra.mxu0 0.0
        %4160 = vmatprep.subr.mxu0 0.0
        %4161 = vmatpush2.msra.mxu0 0.0
        %4162 = vmatprep.subr.mxu0 0.0
        %4163 = vmatpush2.msra.mxu0 0.0
        %4164 = vmatprep.mubr.f32.mxu0 0.0
        %4165 = vmatmul.mubr.f32.gmra.mxu0 %v4095
        %v4166 = vpop.f32.mrf.mxu0
        %v4167 = vadd.f32 %v4064, %v4166
        %v4168 = vpop.f32.mrf.mxu0
        %v4169 = vadd.f32 %v4066, %v4168
        %4170 = vmatprep.mubr.f32.mxu0 0.0
        %4171 = vmatmul.mubr.f32.gmra.mxu0 %v4098
        %v4172 = vpop.f32.mrf.mxu0
        %v4173 = vadd.f32 %v4070, %v4172
        %v4174 = vpop.f32.mrf.mxu0
        %v4175 = vadd.f32 %v4072, %v4174
        %4176 = vdwg.mxu0
        %s4177 = scalar_lea.vmem %s2, 416
        %v4178 = vld [vmem:[%s4177] sm:$0xff]
        %v4179 = vld [vmem:[%s4177 + $0x8] sm:$0xff]
        %4180 = vrot.lane.b32.xlu0 %v3329, 94
        %v4181 = vpop.permute.xlu0 %4180
        %4182 = vrot.lane.b32.xlu0 %v3330, 94
        %v4183 = vpop.permute.xlu0 %4182
        %4184 = vrot.lane.b32.xlu0 %v3336, 94
        %v4185 = vpop.permute.xlu0 %4184
        %4186 = vrot.lane.b32.xlu0 %v3331, 94
        %v4187 = vpop.permute.xlu0 %4186
        %4188 = vrot.lane.b32.xlu0 %v3332, 94
        %v4189 = vpop.permute.xlu0 %4188
        %4190 = vrot.lane.b32.xlu0 %v3337, 94
        %v4191 = vpop.permute.xlu0 %4190
        %v4192 = vsel %vm1126, %v4181, %v4183
        %v4193 = vsel %vm1126, %v4183, %v4185
        %v4194 = vsel %vm1126, %v4187, %v4189
        %v4195 = vsel %vm1126, %v4189, %v4191
        %v4201 = vsel %vm1326, %v4178, 0
        %v4204 = vsel %vm1326, %v4179, 0
        %4206 = vmatprep.subr.mxu0 0.0
        %4207 = vmatpush1.msra.mxu0 0.0
        %4208 = vmatprep.subr.mxu0 0.0
        %4209 = vmatpush1.msra.mxu0 0.0
        %4210 = vmatprep.subr.mxu0 0.0
        %4211 = vmatpush1.msra.mxu0 0.0
        %4212 = vmatprep.subr.mxu0 0.0
        %4213 = vmatpush1.msra.mxu0 0.0
        %4214 = vmatprep.subr.mxu0 0.0
        %4215 = vmatpush1.msra.mxu0 0.0
        %4216 = vmatprep.subr.mxu0 0.0
        %4217 = vmatpush1.msra.mxu0 0.0
        %4218 = vmatprep.subr.mxu0 0.0
        %4219 = vmatpush1.msra.mxu0 0.0
        %4220 = vmatprep.subr.mxu0 0.0
        %4221 = vmatpush1.msra.mxu0 0.0
        %4222 = vmatprep.subr.mxu0 0.0
        %4223 = vmatpush1.msra.mxu0 0.0
        %4224 = vmatprep.subr.mxu0 0.0
        %4225 = vmatpush1.msra.mxu0 0.0
        %4226 = vmatprep.subr.mxu0 0.0
        %4227 = vmatpush1.msra.mxu0 0.0
        %4228 = vmatprep.subr.mxu0 0.0
        %4229 = vmatpush1.msra.mxu0 0.0
        %4230 = vmatprep.subr.mxu0 0.0
        %4231 = vmatpush1.msra.mxu0 0.0
        %4232 = vmatprep.subr.mxu0 0.0
        %4233 = vmatpush1.msra.mxu0 0.0
        %4234 = vmatprep.subr.mxu0 %v4195
        %4235 = vmatpush1.msra.mxu0 %v4194
        %4236 = vmatprep.subr.mxu0 %v4193
        %4237 = vmatpush1.msra.mxu0 %v4192
        %4238 = vmatprep.subr.mxu0 0.0
        %4239 = vmatpush2.msra.mxu0 0.0
        %4240 = vmatprep.subr.mxu0 0.0
        %4241 = vmatpush2.msra.mxu0 0.0
        %4242 = vmatprep.subr.mxu0 0.0
        %4243 = vmatpush2.msra.mxu0 0.0
        %4244 = vmatprep.subr.mxu0 0.0
        %4245 = vmatpush2.msra.mxu0 0.0
        %4246 = vmatprep.subr.mxu0 0.0
        %4247 = vmatpush2.msra.mxu0 0.0
        %4248 = vmatprep.subr.mxu0 0.0
        %4249 = vmatpush2.msra.mxu0 0.0
        %4250 = vmatprep.subr.mxu0 0.0
        %4251 = vmatpush2.msra.mxu0 0.0
        %4252 = vmatprep.subr.mxu0 0.0
        %4253 = vmatpush2.msra.mxu0 0.0
        %4254 = vmatprep.subr.mxu0 0.0
        %4255 = vmatpush2.msra.mxu0 0.0
        %4256 = vmatprep.subr.mxu0 0.0
        %4257 = vmatpush2.msra.mxu0 0.0
        %4258 = vmatprep.subr.mxu0 0.0
        %4259 = vmatpush2.msra.mxu0 0.0
        %4260 = vmatprep.subr.mxu0 0.0
        %4261 = vmatpush2.msra.mxu0 0.0
        %4262 = vmatprep.subr.mxu0 0.0
        %4263 = vmatpush2.msra.mxu0 0.0
        %4264 = vmatprep.subr.mxu0 0.0
        %4265 = vmatpush2.msra.mxu0 0.0
        %4266 = vmatprep.subr.mxu0 0.0
        %4267 = vmatpush2.msra.mxu0 0.0
        %4268 = vmatprep.subr.mxu0 0.0
        %4269 = vmatpush2.msra.mxu0 0.0
        %4270 = vmatprep.mubr.f32.mxu0 0.0
        %4271 = vmatmul.mubr.f32.gmra.mxu0 %v4201
        %v4272 = vpop.f32.mrf.mxu0
        %v4273 = vadd.f32 0.0, %v4272
        %v4274 = vpop.f32.mrf.mxu0
        %v4275 = vadd.f32 0.0, %v4274
        %4276 = vmatprep.mubr.f32.mxu0 0.0
        %4277 = vmatmul.mubr.f32.gmra.mxu0 %v4204
        %v4278 = vpop.f32.mrf.mxu0
        %v4279 = vadd.f32 0.0, %v4278
        %v4280 = vpop.f32.mrf.mxu0
        %v4281 = vadd.f32 0.0, %v4280
        %4282 = vdwg.mxu0
        %v4283 = vadd.f32 %v4167, %v4273
        %v4284 = vadd.f32 %v4169, %v4275
        %v4285 = vadd.f32 %v4173, %v4279
        %v4286 = vadd.f32 %v4175, %v4281
        %v4287 = vmul.f32 %v3639, %v278
        %v4288 = vmul.f32 %v3640, %v279
        %v4289 = vmul.f32 %v3641, %v278
        %v4290 = vmul.f32 %v3642, %v279
        %v4291 = vadd.f32 %v4287, %v3961
        %v4292 = vadd.f32 %v4288, %v3962
        %v4293 = vadd.f32 %v4289, %v3963
        %v4294 = vadd.f32 %v4290, %v3964
        %v4295 = vmul.f32 %v4283, %v284
        %v4296 = vmul.f32 %v4284, %v285
        %v4297 = vmul.f32 %v4285, %v284
        %v4298 = vmul.f32 %v4286, %v285
        %v4299 = vadd.f32 %v4291, %v4295
        %v4300 = vadd.f32 %v4292, %v4296
        %v4301 = vadd.f32 %v4293, %v4297
        %v4302 = vadd.f32 %v4294, %v4298
        %4303 = vset.pattern.permute.xlu0 3
        %4304 = vperm.xlu0 %4303, %v303
        %v4305 = vpop.permute.xlu0 %4304
        %4307 = vset.pattern.permute.xlu0 3
        %4308 = vperm.xlu0 %4307, %v304
        %v4309 = vpop.permute.xlu0 %4308
        %v4311 = vadd.f32 %v4299, %v4305
        %v4312 = vadd.f32 %v4300, %v4305
        %v4313 = vadd.f32 %v4301, %v4309
        %v4314 = vadd.f32 %v4302, %v4309
        %v4315 = vmax.f32 %v4311, 0.0
        %v4316 = vmax.f32 %v4312, 0.0
        %v4317 = vmax.f32 %v4313, 0.0
        %v4318 = vmax.f32 %v4314, 0.0
        %4323 = vrot.lane.b32.xlu0 %v4315, 17
        %v4324 = vpop.permute.xlu0 %4323
        %4325 = vrot.lane.b32.xlu0 %v4316, 17
        %v4326 = vpop.permute.xlu0 %4325
        %4327 = vrot.lane.b32.xlu0 %v4317, 17
        %v4328 = vpop.permute.xlu0 %4327
        %4329 = vrot.lane.b32.xlu0 %v4318, 17
        %v4330 = vpop.permute.xlu0 %4329
        %v4331 = vsel %vm290, %v4324, %v4326
        %v4332 = vsel %vm290, %v4328, %v4330
        %4339 = vst.msk [vmem:[#allocation4] sm:$0xff] %vm1282, %v4324
        %4340 = vst [vmem:[#allocation4 + $0x8] sm:$0xff] %v4331
        %4341 = vst.msk [vmem:[#allocation4 + $0x10] sm:$0xff] %vm290, %v4326
        %4342 = vst.msk [vmem:[#allocation4 + $0x18] sm:$0xff] %vm1282, %v4328
        %4343 = vst [vmem:[#allocation4 + $0x20] sm:$0xff] %v4332
        %4344 = vst.msk [vmem:[#allocation4 + $0x28] sm:$0xff] %vm290, %v4330
        %v4345 = vld [vmem:[#allocation4] sm:$0xff]
        %v4346 = vld [vmem:[#allocation4 + $0x8] sm:$0xff]
        %v4347 = vld [vmem:[#allocation4 + $0x18] sm:$0xff]
        %v4348 = vld [vmem:[#allocation4 + $0x20] sm:$0xff]
        %s4349 = scalar_lea.vmem %s2, 432
        %v4350 = vld [vmem:[%s4349] sm:$0xff]
        %v4351 = vld [vmem:[%s4349 + $0x8] sm:$0xff]
        %v4352 = vld [vmem:[#allocation4 + $0x10] sm:$0xff]
        %v4353 = vld [vmem:[#allocation4 + $0x28] sm:$0xff]
        %s4354 = scalar_lea.vmem %s2, 480
        %v4355 = vld [vmem:[%s4354] sm:$0xff]
        %v4356 = vld [vmem:[%s4354 + $0x8] sm:$0xff]
        %4363 = vrot.lane.b32.xlu0 %v4345, 112
        %v4364 = vpop.permute.xlu0 %4363
        %4365 = vrot.lane.b32.xlu0 %v4346, 112
        %v4366 = vpop.permute.xlu0 %4365
        %4367 = vrot.lane.b32.xlu0 %v4352, 112
        %v4368 = vpop.permute.xlu0 %4367
        %4369 = vrot.lane.b32.xlu0 %v4347, 112
        %v4370 = vpop.permute.xlu0 %4369
        %4371 = vrot.lane.b32.xlu0 %v4348, 112
        %v4372 = vpop.permute.xlu0 %4371
        %4373 = vrot.lane.b32.xlu0 %v4353, 112
        %v4374 = vpop.permute.xlu0 %4373
        %v4375 = vsel %vm355, %v4364, %v4366
        %v4376 = vsel %vm355, %v4366, %v4368
        %v4377 = vsel %vm355, %v4370, %v4372
        %v4378 = vsel %vm355, %v4372, %v4374
        %v4384 = vsel %vm1326, %v4355, 0
        %v4387 = vsel %vm1326, %v4356, 0
        %4389 = vmatprep.subr.mxu0 0.0
        %4390 = vmatpush1.msra.mxu0 0.0
        %4391 = vmatprep.subr.mxu0 0.0
        %4392 = vmatpush1.msra.mxu0 0.0
        %4393 = vmatprep.subr.mxu0 0.0
        %4394 = vmatpush1.msra.mxu0 0.0
        %4395 = vmatprep.subr.mxu0 0.0
        %4396 = vmatpush1.msra.mxu0 0.0
        %4397 = vmatprep.subr.mxu0 0.0
        %4398 = vmatpush1.msra.mxu0 0.0
        %4399 = vmatprep.subr.mxu0 0.0
        %4400 = vmatpush1.msra.mxu0 0.0
        %4401 = vmatprep.subr.mxu0 0.0
        %4402 = vmatpush1.msra.mxu0 0.0
        %4403 = vmatprep.subr.mxu0 0.0
        %4404 = vmatpush1.msra.mxu0 0.0
        %4405 = vmatprep.subr.mxu0 0.0
        %4406 = vmatpush1.msra.mxu0 0.0
        %4407 = vmatprep.subr.mxu0 0.0
        %4408 = vmatpush1.msra.mxu0 0.0
        %4409 = vmatprep.subr.mxu0 0.0
        %4410 = vmatpush1.msra.mxu0 0.0
        %4411 = vmatprep.subr.mxu0 0.0
        %4412 = vmatpush1.msra.mxu0 0.0
        %4413 = vmatprep.subr.mxu0 0.0
        %4414 = vmatpush1.msra.mxu0 0.0
        %4415 = vmatprep.subr.mxu0 0.0
        %4416 = vmatpush1.msra.mxu0 0.0
        %4417 = vmatprep.subr.mxu0 %v4378
        %4418 = vmatpush1.msra.mxu0 %v4377
        %4419 = vmatprep.subr.mxu0 %v4376
        %4420 = vmatpush1.msra.mxu0 %v4375
        %4421 = vmatprep.subr.mxu0 0.0
        %4422 = vmatpush2.msra.mxu0 0.0
        %4423 = vmatprep.subr.mxu0 0.0
        %4424 = vmatpush2.msra.mxu0 0.0
        %4425 = vmatprep.subr.mxu0 0.0
        %4426 = vmatpush2.msra.mxu0 0.0
        %4427 = vmatprep.subr.mxu0 0.0
        %4428 = vmatpush2.msra.mxu0 0.0
        %4429 = vmatprep.subr.mxu0 0.0
        %4430 = vmatpush2.msra.mxu0 0.0
        %4431 = vmatprep.subr.mxu0 0.0
        %4432 = vmatpush2.msra.mxu0 0.0
        %4433 = vmatprep.subr.mxu0 0.0
        %4434 = vmatpush2.msra.mxu0 0.0
        %4435 = vmatprep.subr.mxu0 0.0
        %4436 = vmatpush2.msra.mxu0 0.0
        %4437 = vmatprep.subr.mxu0 0.0
        %4438 = vmatpush2.msra.mxu0 0.0
        %4439 = vmatprep.subr.mxu0 0.0
        %4440 = vmatpush2.msra.mxu0 0.0
        %4441 = vmatprep.subr.mxu0 0.0
        %4442 = vmatpush2.msra.mxu0 0.0
        %4443 = vmatprep.subr.mxu0 0.0
        %4444 = vmatpush2.msra.mxu0 0.0
        %4445 = vmatprep.subr.mxu0 0.0
        %4446 = vmatpush2.msra.mxu0 0.0
        %4447 = vmatprep.subr.mxu0 0.0
        %4448 = vmatpush2.msra.mxu0 0.0
        %4449 = vmatprep.subr.mxu0 0.0
        %4450 = vmatpush2.msra.mxu0 0.0
        %4451 = vmatprep.subr.mxu0 0.0
        %4452 = vmatpush2.msra.mxu0 0.0
        %4453 = vmatprep.mubr.f32.mxu0 0.0
        %4454 = vmatmul.mubr.f32.gmra.mxu0 %v4384
        %v4455 = vpop.f32.mrf.mxu0
        %v4456 = vadd.f32 0.0, %v4455
        %v4457 = vpop.f32.mrf.mxu0
        %v4458 = vadd.f32 0.0, %v4457
        %4459 = vmatprep.mubr.f32.mxu0 0.0
        %4460 = vmatmul.mubr.f32.gmra.mxu0 %v4387
        %v4461 = vpop.f32.mrf.mxu0
        %v4462 = vadd.f32 0.0, %v4461
        %v4463 = vpop.f32.mrf.mxu0
        %v4464 = vadd.f32 0.0, %v4463
        %4465 = vdwg.mxu0
        %v4467 = vsel %vm1326, %v4350, 0
        %v4470 = vsel %vm1326, %v4351, 0
        %4472 = vmatprep.subr.mxu0 0.0
        %4473 = vmatpush1.msra.mxu0 0.0
        %4474 = vmatprep.subr.mxu0 0.0
        %4475 = vmatpush1.msra.mxu0 0.0
        %4476 = vmatprep.subr.mxu0 0.0
        %4477 = vmatpush1.msra.mxu0 0.0
        %4478 = vmatprep.subr.mxu0 0.0
        %4479 = vmatpush1.msra.mxu0 0.0
        %4480 = vmatprep.subr.mxu0 0.0
        %4481 = vmatpush1.msra.mxu0 0.0
        %4482 = vmatprep.subr.mxu0 0.0
        %4483 = vmatpush1.msra.mxu0 0.0
        %4484 = vmatprep.subr.mxu0 0.0
        %4485 = vmatpush1.msra.mxu0 0.0
        %4486 = vmatprep.subr.mxu0 0.0
        %4487 = vmatpush1.msra.mxu0 0.0
        %4488 = vmatprep.subr.mxu0 0.0
        %4489 = vmatpush1.msra.mxu0 0.0
        %4490 = vmatprep.subr.mxu0 0.0
        %4491 = vmatpush1.msra.mxu0 0.0
        %4492 = vmatprep.subr.mxu0 0.0
        %4493 = vmatpush1.msra.mxu0 0.0
        %4494 = vmatprep.subr.mxu0 0.0
        %4495 = vmatpush1.msra.mxu0 0.0
        %4496 = vmatprep.subr.mxu0 0.0
        %4497 = vmatpush1.msra.mxu0 0.0
        %4498 = vmatprep.subr.mxu0 0.0
        %4499 = vmatpush1.msra.mxu0 0.0
        %4500 = vmatprep.subr.mxu0 %v4348
        %4501 = vmatpush1.msra.mxu0 %v4347
        %4502 = vmatprep.subr.mxu0 %v4346
        %4503 = vmatpush1.msra.mxu0 %v4345
        %4504 = vmatprep.subr.mxu0 0.0
        %4505 = vmatpush2.msra.mxu0 0.0
        %4506 = vmatprep.subr.mxu0 0.0
        %4507 = vmatpush2.msra.mxu0 0.0
        %4508 = vmatprep.subr.mxu0 0.0
        %4509 = vmatpush2.msra.mxu0 0.0
        %4510 = vmatprep.subr.mxu0 0.0
        %4511 = vmatpush2.msra.mxu0 0.0
        %4512 = vmatprep.subr.mxu0 0.0
        %4513 = vmatpush2.msra.mxu0 0.0
        %4514 = vmatprep.subr.mxu0 0.0
        %4515 = vmatpush2.msra.mxu0 0.0
        %4516 = vmatprep.subr.mxu0 0.0
        %4517 = vmatpush2.msra.mxu0 0.0
        %4518 = vmatprep.subr.mxu0 0.0
        %4519 = vmatpush2.msra.mxu0 0.0
        %4520 = vmatprep.subr.mxu0 0.0
        %4521 = vmatpush2.msra.mxu0 0.0
        %4522 = vmatprep.subr.mxu0 0.0
        %4523 = vmatpush2.msra.mxu0 0.0
        %4524 = vmatprep.subr.mxu0 0.0
        %4525 = vmatpush2.msra.mxu0 0.0
        %4526 = vmatprep.subr.mxu0 0.0
        %4527 = vmatpush2.msra.mxu0 0.0
        %4528 = vmatprep.subr.mxu0 0.0
        %4529 = vmatpush2.msra.mxu0 0.0
        %4530 = vmatprep.subr.mxu0 0.0
        %4531 = vmatpush2.msra.mxu0 0.0
        %4532 = vmatprep.subr.mxu0 0.0
        %4533 = vmatpush2.msra.mxu0 0.0
        %4534 = vmatprep.subr.mxu0 0.0
        %4535 = vmatpush2.msra.mxu0 0.0
        %4536 = vmatprep.mubr.f32.mxu0 0.0
        %4537 = vmatmul.mubr.f32.gmra.mxu0 %v4467
        %v4538 = vpop.f32.mrf.mxu0
        %v4539 = vadd.f32 %v4456, %v4538
        %v4540 = vpop.f32.mrf.mxu0
        %v4541 = vadd.f32 %v4458, %v4540
        %4542 = vmatprep.mubr.f32.mxu0 0.0
        %4543 = vmatmul.mubr.f32.gmra.mxu0 %v4470
        %v4544 = vpop.f32.mrf.mxu0
        %v4545 = vadd.f32 %v4462, %v4544
        %v4546 = vpop.f32.mrf.mxu0
        %v4547 = vadd.f32 %v4464, %v4546
        %4548 = vdwg.mxu0
        %s4549 = scalar_lea.vmem %s2, 528
        %v4550 = vld [vmem:[%s4549] sm:$0xff]
        %v4551 = vld [vmem:[%s4549 + $0x8] sm:$0xff]
        %4552 = vrot.lane.b32.xlu0 %v4345, 96
        %v4553 = vpop.permute.xlu0 %4552
        %4554 = vrot.lane.b32.xlu0 %v4346, 96
        %v4555 = vpop.permute.xlu0 %4554
        %4556 = vrot.lane.b32.xlu0 %v4352, 96
        %v4557 = vpop.permute.xlu0 %4556
        %4558 = vrot.lane.b32.xlu0 %v4347, 96
        %v4559 = vpop.permute.xlu0 %4558
        %4560 = vrot.lane.b32.xlu0 %v4348, 96
        %v4561 = vpop.permute.xlu0 %4560
        %4562 = vrot.lane.b32.xlu0 %v4353, 96
        %v4563 = vpop.permute.xlu0 %4562
        %v4564 = vsel %vm536, %v4553, %v4555
        %v4565 = vsel %vm536, %v4555, %v4557
        %v4566 = vsel %vm536, %v4559, %v4561
        %v4567 = vsel %vm536, %v4561, %v4563
        %v4573 = vsel %vm1326, %v4550, 0
        %v4576 = vsel %vm1326, %v4551, 0
        %4578 = vmatprep.subr.mxu0 0.0
        %4579 = vmatpush1.msra.mxu0 0.0
        %4580 = vmatprep.subr.mxu0 0.0
        %4581 = vmatpush1.msra.mxu0 0.0
        %4582 = vmatprep.subr.mxu0 0.0
        %4583 = vmatpush1.msra.mxu0 0.0
        %4584 = vmatprep.subr.mxu0 0.0
        %4585 = vmatpush1.msra.mxu0 0.0
        %4586 = vmatprep.subr.mxu0 0.0
        %4587 = vmatpush1.msra.mxu0 0.0
        %4588 = vmatprep.subr.mxu0 0.0
        %4589 = vmatpush1.msra.mxu0 0.0
        %4590 = vmatprep.subr.mxu0 0.0
        %4591 = vmatpush1.msra.mxu0 0.0
        %4592 = vmatprep.subr.mxu0 0.0
        %4593 = vmatpush1.msra.mxu0 0.0
        %4594 = vmatprep.subr.mxu0 0.0
        %4595 = vmatpush1.msra.mxu0 0.0
        %4596 = vmatprep.subr.mxu0 0.0
        %4597 = vmatpush1.msra.mxu0 0.0
        %4598 = vmatprep.subr.mxu0 0.0
        %4599 = vmatpush1.msra.mxu0 0.0
        %4600 = vmatprep.subr.mxu0 0.0
        %4601 = vmatpush1.msra.mxu0 0.0
        %4602 = vmatprep.subr.mxu0 0.0
        %4603 = vmatpush1.msra.mxu0 0.0
        %4604 = vmatprep.subr.mxu0 0.0
        %4605 = vmatpush1.msra.mxu0 0.0
        %4606 = vmatprep.subr.mxu0 %v4567
        %4607 = vmatpush1.msra.mxu0 %v4566
        %4608 = vmatprep.subr.mxu0 %v4565
        %4609 = vmatpush1.msra.mxu0 %v4564
        %4610 = vmatprep.subr.mxu0 0.0
        %4611 = vmatpush2.msra.mxu0 0.0
        %4612 = vmatprep.subr.mxu0 0.0
        %4613 = vmatpush2.msra.mxu0 0.0
        %4614 = vmatprep.subr.mxu0 0.0
        %4615 = vmatpush2.msra.mxu0 0.0
        %4616 = vmatprep.subr.mxu0 0.0
        %4617 = vmatpush2.msra.mxu0 0.0
        %4618 = vmatprep.subr.mxu0 0.0
        %4619 = vmatpush2.msra.mxu0 0.0
        %4620 = vmatprep.subr.mxu0 0.0
        %4621 = vmatpush2.msra.mxu0 0.0
        %4622 = vmatprep.subr.mxu0 0.0
        %4623 = vmatpush2.msra.mxu0 0.0
        %4624 = vmatprep.subr.mxu0 0.0
        %4625 = vmatpush2.msra.mxu0 0.0
        %4626 = vmatprep.subr.mxu0 0.0
        %4627 = vmatpush2.msra.mxu0 0.0
        %4628 = vmatprep.subr.mxu0 0.0
        %4629 = vmatpush2.msra.mxu0 0.0
        %4630 = vmatprep.subr.mxu0 0.0
        %4631 = vmatpush2.msra.mxu0 0.0
        %4632 = vmatprep.subr.mxu0 0.0
        %4633 = vmatpush2.msra.mxu0 0.0
        %4634 = vmatprep.subr.mxu0 0.0
        %4635 = vmatpush2.msra.mxu0 0.0
        %4636 = vmatprep.subr.mxu0 0.0
        %4637 = vmatpush2.msra.mxu0 0.0
        %4638 = vmatprep.subr.mxu0 0.0
        %4639 = vmatpush2.msra.mxu0 0.0
        %4640 = vmatprep.subr.mxu0 0.0
        %4641 = vmatpush2.msra.mxu0 0.0
        %4642 = vmatprep.mubr.f32.mxu0 0.0
        %4643 = vmatmul.mubr.f32.gmra.mxu0 %v4573
        %v4644 = vpop.f32.mrf.mxu0
        %v4645 = vadd.f32 0.0, %v4644
        %v4646 = vpop.f32.mrf.mxu0
        %v4647 = vadd.f32 0.0, %v4646
        %4648 = vmatprep.mubr.f32.mxu0 0.0
        %4649 = vmatmul.mubr.f32.gmra.mxu0 %v4576
        %v4650 = vpop.f32.mrf.mxu0
        %v4651 = vadd.f32 0.0, %v4650
        %v4652 = vpop.f32.mrf.mxu0
        %v4653 = vadd.f32 0.0, %v4652
        %4654 = vdwg.mxu0
        %v4655 = vadd.f32 %v4539, %v4645
        %v4656 = vadd.f32 %v4541, %v4647
        %v4657 = vadd.f32 %v4545, %v4651
        %v4658 = vadd.f32 %v4547, %v4653
        %s4659 = scalar_lea.vmem %s2, 448
        %v4660 = vld [vmem:[%s4659] sm:$0xff]
        %v4661 = vld [vmem:[%s4659 + $0x8] sm:$0xff]
        %s4662 = scalar_lea.vmem %s2, 496
        %v4663 = vld [vmem:[%s4662] sm:$0xff]
        %v4664 = vld [vmem:[%s4662 + $0x8] sm:$0xff]
        %4665 = vrot.lane.b32.xlu0 %v4345, 111
        %v4666 = vpop.permute.xlu0 %4665
        %4667 = vrot.lane.b32.xlu0 %v4346, 111
        %v4668 = vpop.permute.xlu0 %4667
        %4669 = vrot.lane.b32.xlu0 %v4352, 111
        %v4670 = vpop.permute.xlu0 %4669
        %4671 = vrot.lane.b32.xlu0 %v4347, 111
        %v4672 = vpop.permute.xlu0 %4671
        %4673 = vrot.lane.b32.xlu0 %v4348, 111
        %v4674 = vpop.permute.xlu0 %4673
        %4675 = vrot.lane.b32.xlu0 %v4353, 111
        %v4676 = vpop.permute.xlu0 %4675
        %v4677 = vsel %vm640, %v4666, %v4668
        %v4678 = vsel %vm640, %v4668, %v4670
        %v4679 = vsel %vm640, %v4672, %v4674
        %v4680 = vsel %vm640, %v4674, %v4676
        %v4686 = vsel %vm1326, %v4663, 0
        %v4689 = vsel %vm1326, %v4664, 0
        %4691 = vmatprep.subr.mxu0 0.0
        %4692 = vmatpush1.msra.mxu0 0.0
        %4693 = vmatprep.subr.mxu0 0.0
        %4694 = vmatpush1.msra.mxu0 0.0
        %4695 = vmatprep.subr.mxu0 0.0
        %4696 = vmatpush1.msra.mxu0 0.0
        %4697 = vmatprep.subr.mxu0 0.0
        %4698 = vmatpush1.msra.mxu0 0.0
        %4699 = vmatprep.subr.mxu0 0.0
        %4700 = vmatpush1.msra.mxu0 0.0
        %4701 = vmatprep.subr.mxu0 0.0
        %4702 = vmatpush1.msra.mxu0 0.0
        %4703 = vmatprep.subr.mxu0 0.0
        %4704 = vmatpush1.msra.mxu0 0.0
        %4705 = vmatprep.subr.mxu0 0.0
        %4706 = vmatpush1.msra.mxu0 0.0
        %4707 = vmatprep.subr.mxu0 0.0
        %4708 = vmatpush1.msra.mxu0 0.0
        %4709 = vmatprep.subr.mxu0 0.0
        %4710 = vmatpush1.msra.mxu0 0.0
        %4711 = vmatprep.subr.mxu0 0.0
        %4712 = vmatpush1.msra.mxu0 0.0
        %4713 = vmatprep.subr.mxu0 0.0
        %4714 = vmatpush1.msra.mxu0 0.0
        %4715 = vmatprep.subr.mxu0 0.0
        %4716 = vmatpush1.msra.mxu0 0.0
        %4717 = vmatprep.subr.mxu0 0.0
        %4718 = vmatpush1.msra.mxu0 0.0
        %4719 = vmatprep.subr.mxu0 %v4680
        %4720 = vmatpush1.msra.mxu0 %v4679
        %4721 = vmatprep.subr.mxu0 %v4678
        %4722 = vmatpush1.msra.mxu0 %v4677
        %4723 = vmatprep.subr.mxu0 0.0
        %4724 = vmatpush2.msra.mxu0 0.0
        %4725 = vmatprep.subr.mxu0 0.0
        %4726 = vmatpush2.msra.mxu0 0.0
        %4727 = vmatprep.subr.mxu0 0.0
        %4728 = vmatpush2.msra.mxu0 0.0
        %4729 = vmatprep.subr.mxu0 0.0
        %4730 = vmatpush2.msra.mxu0 0.0
        %4731 = vmatprep.subr.mxu0 0.0
        %4732 = vmatpush2.msra.mxu0 0.0
        %4733 = vmatprep.subr.mxu0 0.0
        %4734 = vmatpush2.msra.mxu0 0.0
        %4735 = vmatprep.subr.mxu0 0.0
        %4736 = vmatpush2.msra.mxu0 0.0
        %4737 = vmatprep.subr.mxu0 0.0
        %4738 = vmatpush2.msra.mxu0 0.0
        %4739 = vmatprep.subr.mxu0 0.0
        %4740 = vmatpush2.msra.mxu0 0.0
        %4741 = vmatprep.subr.mxu0 0.0
        %4742 = vmatpush2.msra.mxu0 0.0
        %4743 = vmatprep.subr.mxu0 0.0
        %4744 = vmatpush2.msra.mxu0 0.0
        %4745 = vmatprep.subr.mxu0 0.0
        %4746 = vmatpush2.msra.mxu0 0.0
        %4747 = vmatprep.subr.mxu0 0.0
        %4748 = vmatpush2.msra.mxu0 0.0
        %4749 = vmatprep.subr.mxu0 0.0
        %4750 = vmatpush2.msra.mxu0 0.0
        %4751 = vmatprep.subr.mxu0 0.0
        %4752 = vmatpush2.msra.mxu0 0.0
        %4753 = vmatprep.subr.mxu0 0.0
        %4754 = vmatpush2.msra.mxu0 0.0
        %4755 = vmatprep.mubr.f32.mxu0 0.0
        %4756 = vmatmul.mubr.f32.gmra.mxu0 %v4686
        %v4757 = vpop.f32.mrf.mxu0
        %v4758 = vadd.f32 0.0, %v4757
        %v4759 = vpop.f32.mrf.mxu0
        %v4760 = vadd.f32 0.0, %v4759
        %4761 = vmatprep.mubr.f32.mxu0 0.0
        %4762 = vmatmul.mubr.f32.gmra.mxu0 %v4689
        %v4763 = vpop.f32.mrf.mxu0
        %v4764 = vadd.f32 0.0, %v4763
        %v4765 = vpop.f32.mrf.mxu0
        %v4766 = vadd.f32 0.0, %v4765
        %4767 = vdwg.mxu0
        %4768 = vrot.lane.b32.xlu0 %v4345, 127
        %v4769 = vpop.permute.xlu0 %4768
        %4770 = vrot.lane.b32.xlu0 %v4346, 127
        %v4771 = vpop.permute.xlu0 %4770
        %4772 = vrot.lane.b32.xlu0 %v4352, 127
        %v4773 = vpop.permute.xlu0 %4772
        %4774 = vrot.lane.b32.xlu0 %v4347, 127
        %v4775 = vpop.permute.xlu0 %4774
        %4776 = vrot.lane.b32.xlu0 %v4348, 127
        %v4777 = vpop.permute.xlu0 %4776
        %4778 = vrot.lane.b32.xlu0 %v4353, 127
        %v4779 = vpop.permute.xlu0 %4778
        %v4780 = vsel %vm734, %v4769, %v4771
        %v4781 = vsel %vm734, %v4771, %v4773
        %v4782 = vsel %vm734, %v4775, %v4777
        %v4783 = vsel %vm734, %v4777, %v4779
        %v4789 = vsel %vm1326, %v4660, 0
        %v4792 = vsel %vm1326, %v4661, 0
        %4794 = vmatprep.subr.mxu0 0.0
        %4795 = vmatpush1.msra.mxu0 0.0
        %4796 = vmatprep.subr.mxu0 0.0
        %4797 = vmatpush1.msra.mxu0 0.0
        %4798 = vmatprep.subr.mxu0 0.0
        %4799 = vmatpush1.msra.mxu0 0.0
        %4800 = vmatprep.subr.mxu0 0.0
        %4801 = vmatpush1.msra.mxu0 0.0
        %4802 = vmatprep.subr.mxu0 0.0
        %4803 = vmatpush1.msra.mxu0 0.0
        %4804 = vmatprep.subr.mxu0 0.0
        %4805 = vmatpush1.msra.mxu0 0.0
        %4806 = vmatprep.subr.mxu0 0.0
        %4807 = vmatpush1.msra.mxu0 0.0
        %4808 = vmatprep.subr.mxu0 0.0
        %4809 = vmatpush1.msra.mxu0 0.0
        %4810 = vmatprep.subr.mxu0 0.0
        %4811 = vmatpush1.msra.mxu0 0.0
        %4812 = vmatprep.subr.mxu0 0.0
        %4813 = vmatpush1.msra.mxu0 0.0
        %4814 = vmatprep.subr.mxu0 0.0
        %4815 = vmatpush1.msra.mxu0 0.0
        %4816 = vmatprep.subr.mxu0 0.0
        %4817 = vmatpush1.msra.mxu0 0.0
        %4818 = vmatprep.subr.mxu0 0.0
        %4819 = vmatpush1.msra.mxu0 0.0
        %4820 = vmatprep.subr.mxu0 0.0
        %4821 = vmatpush1.msra.mxu0 0.0
        %4822 = vmatprep.subr.mxu0 %v4783
        %4823 = vmatpush1.msra.mxu0 %v4782
        %4824 = vmatprep.subr.mxu0 %v4781
        %4825 = vmatpush1.msra.mxu0 %v4780
        %4826 = vmatprep.subr.mxu0 0.0
        %4827 = vmatpush2.msra.mxu0 0.0
        %4828 = vmatprep.subr.mxu0 0.0
        %4829 = vmatpush2.msra.mxu0 0.0
        %4830 = vmatprep.subr.mxu0 0.0
        %4831 = vmatpush2.msra.mxu0 0.0
        %4832 = vmatprep.subr.mxu0 0.0
        %4833 = vmatpush2.msra.mxu0 0.0
        %4834 = vmatprep.subr.mxu0 0.0
        %4835 = vmatpush2.msra.mxu0 0.0
        %4836 = vmatprep.subr.mxu0 0.0
        %4837 = vmatpush2.msra.mxu0 0.0
        %4838 = vmatprep.subr.mxu0 0.0
        %4839 = vmatpush2.msra.mxu0 0.0
        %4840 = vmatprep.subr.mxu0 0.0
        %4841 = vmatpush2.msra.mxu0 0.0
        %4842 = vmatprep.subr.mxu0 0.0
        %4843 = vmatpush2.msra.mxu0 0.0
        %4844 = vmatprep.subr.mxu0 0.0
        %4845 = vmatpush2.msra.mxu0 0.0
        %4846 = vmatprep.subr.mxu0 0.0
        %4847 = vmatpush2.msra.mxu0 0.0
        %4848 = vmatprep.subr.mxu0 0.0
        %4849 = vmatpush2.msra.mxu0 0.0
        %4850 = vmatprep.subr.mxu0 0.0
        %4851 = vmatpush2.msra.mxu0 0.0
        %4852 = vmatprep.subr.mxu0 0.0
        %4853 = vmatpush2.msra.mxu0 0.0
        %4854 = vmatprep.subr.mxu0 0.0
        %4855 = vmatpush2.msra.mxu0 0.0
        %4856 = vmatprep.subr.mxu0 0.0
        %4857 = vmatpush2.msra.mxu0 0.0
        %4858 = vmatprep.mubr.f32.mxu0 0.0
        %4859 = vmatmul.mubr.f32.gmra.mxu0 %v4789
        %v4860 = vpop.f32.mrf.mxu0
        %v4861 = vadd.f32 %v4758, %v4860
        %v4862 = vpop.f32.mrf.mxu0
        %v4863 = vadd.f32 %v4760, %v4862
        %4864 = vmatprep.mubr.f32.mxu0 0.0
        %4865 = vmatmul.mubr.f32.gmra.mxu0 %v4792
        %v4866 = vpop.f32.mrf.mxu0
        %v4867 = vadd.f32 %v4764, %v4866
        %v4868 = vpop.f32.mrf.mxu0
        %v4869 = vadd.f32 %v4766, %v4868
        %4870 = vdwg.mxu0
        %s4871 = scalar_lea.vmem %s2, 544
        %v4872 = vld [vmem:[%s4871] sm:$0xff]
        %v4873 = vld [vmem:[%s4871 + $0x8] sm:$0xff]
        %4874 = vrot.lane.b32.xlu0 %v4345, 95
        %v4875 = vpop.permute.xlu0 %4874
        %4876 = vrot.lane.b32.xlu0 %v4346, 95
        %v4877 = vpop.permute.xlu0 %4876
        %4878 = vrot.lane.b32.xlu0 %v4352, 95
        %v4879 = vpop.permute.xlu0 %4878
        %4880 = vrot.lane.b32.xlu0 %v4347, 95
        %v4881 = vpop.permute.xlu0 %4880
        %4882 = vrot.lane.b32.xlu0 %v4348, 95
        %v4883 = vpop.permute.xlu0 %4882
        %4884 = vrot.lane.b32.xlu0 %v4353, 95
        %v4885 = vpop.permute.xlu0 %4884
        %v4886 = vsel %vm831, %v4875, %v4877
        %v4887 = vsel %vm831, %v4877, %v4879
        %v4888 = vsel %vm831, %v4881, %v4883
        %v4889 = vsel %vm831, %v4883, %v4885
        %v4895 = vsel %vm1326, %v4872, 0
        %v4898 = vsel %vm1326, %v4873, 0
        %4900 = vmatprep.subr.mxu0 0.0
        %4901 = vmatpush1.msra.mxu0 0.0
        %4902 = vmatprep.subr.mxu0 0.0
        %4903 = vmatpush1.msra.mxu0 0.0
        %4904 = vmatprep.subr.mxu0 0.0
        %4905 = vmatpush1.msra.mxu0 0.0
        %4906 = vmatprep.subr.mxu0 0.0
        %4907 = vmatpush1.msra.mxu0 0.0
        %4908 = vmatprep.subr.mxu0 0.0
        %4909 = vmatpush1.msra.mxu0 0.0
        %4910 = vmatprep.subr.mxu0 0.0
        %4911 = vmatpush1.msra.mxu0 0.0
        %4912 = vmatprep.subr.mxu0 0.0
        %4913 = vmatpush1.msra.mxu0 0.0
        %4914 = vmatprep.subr.mxu0 0.0
        %4915 = vmatpush1.msra.mxu0 0.0
        %4916 = vmatprep.subr.mxu0 0.0
        %4917 = vmatpush1.msra.mxu0 0.0
        %4918 = vmatprep.subr.mxu0 0.0
        %4919 = vmatpush1.msra.mxu0 0.0
        %4920 = vmatprep.subr.mxu0 0.0
        %4921 = vmatpush1.msra.mxu0 0.0
        %4922 = vmatprep.subr.mxu0 0.0
        %4923 = vmatpush1.msra.mxu0 0.0
        %4924 = vmatprep.subr.mxu0 0.0
        %4925 = vmatpush1.msra.mxu0 0.0
        %4926 = vmatprep.subr.mxu0 0.0
        %4927 = vmatpush1.msra.mxu0 0.0
        %4928 = vmatprep.subr.mxu0 %v4889
        %4929 = vmatpush1.msra.mxu0 %v4888
        %4930 = vmatprep.subr.mxu0 %v4887
        %4931 = vmatpush1.msra.mxu0 %v4886
        %4932 = vmatprep.subr.mxu0 0.0
        %4933 = vmatpush2.msra.mxu0 0.0
        %4934 = vmatprep.subr.mxu0 0.0
        %4935 = vmatpush2.msra.mxu0 0.0
        %4936 = vmatprep.subr.mxu0 0.0
        %4937 = vmatpush2.msra.mxu0 0.0
        %4938 = vmatprep.subr.mxu0 0.0
        %4939 = vmatpush2.msra.mxu0 0.0
        %4940 = vmatprep.subr.mxu0 0.0
        %4941 = vmatpush2.msra.mxu0 0.0
        %4942 = vmatprep.subr.mxu0 0.0
        %4943 = vmatpush2.msra.mxu0 0.0
        %4944 = vmatprep.subr.mxu0 0.0
        %4945 = vmatpush2.msra.mxu0 0.0
        %4946 = vmatprep.subr.mxu0 0.0
        %4947 = vmatpush2.msra.mxu0 0.0
        %4948 = vmatprep.subr.mxu0 0.0
        %4949 = vmatpush2.msra.mxu0 0.0
        %4950 = vmatprep.subr.mxu0 0.0
        %4951 = vmatpush2.msra.mxu0 0.0
        %4952 = vmatprep.subr.mxu0 0.0
        %4953 = vmatpush2.msra.mxu0 0.0
        %4954 = vmatprep.subr.mxu0 0.0
        %4955 = vmatpush2.msra.mxu0 0.0
        %4956 = vmatprep.subr.mxu0 0.0
        %4957 = vmatpush2.msra.mxu0 0.0
        %4958 = vmatprep.subr.mxu0 0.0
        %4959 = vmatpush2.msra.mxu0 0.0
        %4960 = vmatprep.subr.mxu0 0.0
        %4961 = vmatpush2.msra.mxu0 0.0
        %4962 = vmatprep.subr.mxu0 0.0
        %4963 = vmatpush2.msra.mxu0 0.0
        %4964 = vmatprep.mubr.f32.mxu0 0.0
        %4965 = vmatmul.mubr.f32.gmra.mxu0 %v4895
        %v4966 = vpop.f32.mrf.mxu0
        %v4967 = vadd.f32 0.0, %v4966
        %v4968 = vpop.f32.mrf.mxu0
        %v4969 = vadd.f32 0.0, %v4968
        %4970 = vmatprep.mubr.f32.mxu0 0.0
        %4971 = vmatmul.mubr.f32.gmra.mxu0 %v4898
        %v4972 = vpop.f32.mrf.mxu0
        %v4973 = vadd.f32 0.0, %v4972
        %v4974 = vpop.f32.mrf.mxu0
        %v4975 = vadd.f32 0.0, %v4974
        %4976 = vdwg.mxu0
        %v4977 = vadd.f32 %v4861, %v4967
        %v4978 = vadd.f32 %v4863, %v4969
        %v4979 = vadd.f32 %v4867, %v4973
        %v4980 = vadd.f32 %v4869, %v4975
        %s4981 = scalar_lea.vmem %s2, 464
        %v4982 = vld [vmem:[%s4981] sm:$0xff]
        %v4983 = vld [vmem:[%s4981 + $0x8] sm:$0xff]
        %s4984 = scalar_lea.vmem %s2, 512
        %v4985 = vld [vmem:[%s4984] sm:$0xff]
        %v4986 = vld [vmem:[%s4984 + $0x8] sm:$0xff]
        %4987 = vrot.lane.b32.xlu0 %v4345, 110
        %v4988 = vpop.permute.xlu0 %4987
        %4989 = vrot.lane.b32.xlu0 %v4346, 110
        %v4990 = vpop.permute.xlu0 %4989
        %4991 = vrot.lane.b32.xlu0 %v4352, 110
        %v4992 = vpop.permute.xlu0 %4991
        %4993 = vrot.lane.b32.xlu0 %v4347, 110
        %v4994 = vpop.permute.xlu0 %4993
        %4995 = vrot.lane.b32.xlu0 %v4348, 110
        %v4996 = vpop.permute.xlu0 %4995
        %4997 = vrot.lane.b32.xlu0 %v4353, 110
        %v4998 = vpop.permute.xlu0 %4997
        %v4999 = vsel %vm935, %v4988, %v4990
        %v5000 = vsel %vm935, %v4990, %v4992
        %v5001 = vsel %vm935, %v4994, %v4996
        %v5002 = vsel %vm935, %v4996, %v4998
        %v5008 = vsel %vm1326, %v4985, 0
        %v5011 = vsel %vm1326, %v4986, 0
        %5013 = vmatprep.subr.mxu0 0.0
        %5014 = vmatpush1.msra.mxu0 0.0
        %5015 = vmatprep.subr.mxu0 0.0
        %5016 = vmatpush1.msra.mxu0 0.0
        %5017 = vmatprep.subr.mxu0 0.0
        %5018 = vmatpush1.msra.mxu0 0.0
        %5019 = vmatprep.subr.mxu0 0.0
        %5020 = vmatpush1.msra.mxu0 0.0
        %5021 = vmatprep.subr.mxu0 0.0
        %5022 = vmatpush1.msra.mxu0 0.0
        %5023 = vmatprep.subr.mxu0 0.0
        %5024 = vmatpush1.msra.mxu0 0.0
        %5025 = vmatprep.subr.mxu0 0.0
        %5026 = vmatpush1.msra.mxu0 0.0
        %5027 = vmatprep.subr.mxu0 0.0
        %5028 = vmatpush1.msra.mxu0 0.0
        %5029 = vmatprep.subr.mxu0 0.0
        %5030 = vmatpush1.msra.mxu0 0.0
        %5031 = vmatprep.subr.mxu0 0.0
        %5032 = vmatpush1.msra.mxu0 0.0
        %5033 = vmatprep.subr.mxu0 0.0
        %5034 = vmatpush1.msra.mxu0 0.0
        %5035 = vmatprep.subr.mxu0 0.0
        %5036 = vmatpush1.msra.mxu0 0.0
        %5037 = vmatprep.subr.mxu0 0.0
        %5038 = vmatpush1.msra.mxu0 0.0
        %5039 = vmatprep.subr.mxu0 0.0
        %5040 = vmatpush1.msra.mxu0 0.0
        %5041 = vmatprep.subr.mxu0 %v5002
        %5042 = vmatpush1.msra.mxu0 %v5001
        %5043 = vmatprep.subr.mxu0 %v5000
        %5044 = vmatpush1.msra.mxu0 %v4999
        %5045 = vmatprep.subr.mxu0 0.0
        %5046 = vmatpush2.msra.mxu0 0.0
        %5047 = vmatprep.subr.mxu0 0.0
        %5048 = vmatpush2.msra.mxu0 0.0
        %5049 = vmatprep.subr.mxu0 0.0
        %5050 = vmatpush2.msra.mxu0 0.0
        %5051 = vmatprep.subr.mxu0 0.0
        %5052 = vmatpush2.msra.mxu0 0.0
        %5053 = vmatprep.subr.mxu0 0.0
        %5054 = vmatpush2.msra.mxu0 0.0
        %5055 = vmatprep.subr.mxu0 0.0
        %5056 = vmatpush2.msra.mxu0 0.0
        %5057 = vmatprep.subr.mxu0 0.0
        %5058 = vmatpush2.msra.mxu0 0.0
        %5059 = vmatprep.subr.mxu0 0.0
        %5060 = vmatpush2.msra.mxu0 0.0
        %5061 = vmatprep.subr.mxu0 0.0
        %5062 = vmatpush2.msra.mxu0 0.0
        %5063 = vmatprep.subr.mxu0 0.0
        %5064 = vmatpush2.msra.mxu0 0.0
        %5065 = vmatprep.subr.mxu0 0.0
        %5066 = vmatpush2.msra.mxu0 0.0
        %5067 = vmatprep.subr.mxu0 0.0
        %5068 = vmatpush2.msra.mxu0 0.0
        %5069 = vmatprep.subr.mxu0 0.0
        %5070 = vmatpush2.msra.mxu0 0.0
        %5071 = vmatprep.subr.mxu0 0.0
        %5072 = vmatpush2.msra.mxu0 0.0
        %5073 = vmatprep.subr.mxu0 0.0
        %5074 = vmatpush2.msra.mxu0 0.0
        %5075 = vmatprep.subr.mxu0 0.0
        %5076 = vmatpush2.msra.mxu0 0.0
        %5077 = vmatprep.mubr.f32.mxu0 0.0
        %5078 = vmatmul.mubr.f32.gmra.mxu0 %v5008
        %v5079 = vpop.f32.mrf.mxu0
        %v5080 = vadd.f32 0.0, %v5079
        %v5081 = vpop.f32.mrf.mxu0
        %v5082 = vadd.f32 0.0, %v5081
        %5083 = vmatprep.mubr.f32.mxu0 0.0
        %5084 = vmatmul.mubr.f32.gmra.mxu0 %v5011
        %v5085 = vpop.f32.mrf.mxu0
        %v5086 = vadd.f32 0.0, %v5085
        %v5087 = vpop.f32.mrf.mxu0
        %v5088 = vadd.f32 0.0, %v5087
        %5089 = vdwg.mxu0
        %5090 = vrot.lane.b32.xlu0 %v4345, 126
        %v5091 = vpop.permute.xlu0 %5090
        %5092 = vrot.lane.b32.xlu0 %v4346, 126
        %v5093 = vpop.permute.xlu0 %5092
        %5094 = vrot.lane.b32.xlu0 %v4352, 126
        %v5095 = vpop.permute.xlu0 %5094
        %5096 = vrot.lane.b32.xlu0 %v4347, 126
        %v5097 = vpop.permute.xlu0 %5096
        %5098 = vrot.lane.b32.xlu0 %v4348, 126
        %v5099 = vpop.permute.xlu0 %5098
        %5100 = vrot.lane.b32.xlu0 %v4353, 126
        %v5101 = vpop.permute.xlu0 %5100
        %v5102 = vsel %vm1029, %v5091, %v5093
        %v5103 = vsel %vm1029, %v5093, %v5095
        %v5104 = vsel %vm1029, %v5097, %v5099
        %v5105 = vsel %vm1029, %v5099, %v5101
        %v5111 = vsel %vm1326, %v4982, 0
        %v5114 = vsel %vm1326, %v4983, 0
        %5116 = vmatprep.subr.mxu0 0.0
        %5117 = vmatpush1.msra.mxu0 0.0
        %5118 = vmatprep.subr.mxu0 0.0
        %5119 = vmatpush1.msra.mxu0 0.0
        %5120 = vmatprep.subr.mxu0 0.0
        %5121 = vmatpush1.msra.mxu0 0.0
        %5122 = vmatprep.subr.mxu0 0.0
        %5123 = vmatpush1.msra.mxu0 0.0
        %5124 = vmatprep.subr.mxu0 0.0
        %5125 = vmatpush1.msra.mxu0 0.0
        %5126 = vmatprep.subr.mxu0 0.0
        %5127 = vmatpush1.msra.mxu0 0.0
        %5128 = vmatprep.subr.mxu0 0.0
        %5129 = vmatpush1.msra.mxu0 0.0
        %5130 = vmatprep.subr.mxu0 0.0
        %5131 = vmatpush1.msra.mxu0 0.0
        %5132 = vmatprep.subr.mxu0 0.0
        %5133 = vmatpush1.msra.mxu0 0.0
        %5134 = vmatprep.subr.mxu0 0.0
        %5135 = vmatpush1.msra.mxu0 0.0
        %5136 = vmatprep.subr.mxu0 0.0
        %5137 = vmatpush1.msra.mxu0 0.0
        %5138 = vmatprep.subr.mxu0 0.0
        %5139 = vmatpush1.msra.mxu0 0.0
        %5140 = vmatprep.subr.mxu0 0.0
        %5141 = vmatpush1.msra.mxu0 0.0
        %5142 = vmatprep.subr.mxu0 0.0
        %5143 = vmatpush1.msra.mxu0 0.0
        %5144 = vmatprep.subr.mxu0 %v5105
        %5145 = vmatpush1.msra.mxu0 %v5104
        %5146 = vmatprep.subr.mxu0 %v5103
        %5147 = vmatpush1.msra.mxu0 %v5102
        %5148 = vmatprep.subr.mxu0 0.0
        %5149 = vmatpush2.msra.mxu0 0.0
        %5150 = vmatprep.subr.mxu0 0.0
        %5151 = vmatpush2.msra.mxu0 0.0
        %5152 = vmatprep.subr.mxu0 0.0
        %5153 = vmatpush2.msra.mxu0 0.0
        %5154 = vmatprep.subr.mxu0 0.0
        %5155 = vmatpush2.msra.mxu0 0.0
        %5156 = vmatprep.subr.mxu0 0.0
        %5157 = vmatpush2.msra.mxu0 0.0
        %5158 = vmatprep.subr.mxu0 0.0
        %5159 = vmatpush2.msra.mxu0 0.0
        %5160 = vmatprep.subr.mxu0 0.0
        %5161 = vmatpush2.msra.mxu0 0.0
        %5162 = vmatprep.subr.mxu0 0.0
        %5163 = vmatpush2.msra.mxu0 0.0
        %5164 = vmatprep.subr.mxu0 0.0
        %5165 = vmatpush2.msra.mxu0 0.0
        %5166 = vmatprep.subr.mxu0 0.0
        %5167 = vmatpush2.msra.mxu0 0.0
        %5168 = vmatprep.subr.mxu0 0.0
        %5169 = vmatpush2.msra.mxu0 0.0
        %5170 = vmatprep.subr.mxu0 0.0
        %5171 = vmatpush2.msra.mxu0 0.0
        %5172 = vmatprep.subr.mxu0 0.0
        %5173 = vmatpush2.msra.mxu0 0.0
        %5174 = vmatprep.subr.mxu0 0.0
        %5175 = vmatpush2.msra.mxu0 0.0
        %5176 = vmatprep.subr.mxu0 0.0
        %5177 = vmatpush2.msra.mxu0 0.0
        %5178 = vmatprep.subr.mxu0 0.0
        %5179 = vmatpush2.msra.mxu0 0.0
        %5180 = vmatprep.mubr.f32.mxu0 0.0
        %5181 = vmatmul.mubr.f32.gmra.mxu0 %v5111
        %v5182 = vpop.f32.mrf.mxu0
        %v5183 = vadd.f32 %v5080, %v5182
        %v5184 = vpop.f32.mrf.mxu0
        %v5185 = vadd.f32 %v5082, %v5184
        %5186 = vmatprep.mubr.f32.mxu0 0.0
        %5187 = vmatmul.mubr.f32.gmra.mxu0 %v5114
        %v5188 = vpop.f32.mrf.mxu0
        %v5189 = vadd.f32 %v5086, %v5188
        %v5190 = vpop.f32.mrf.mxu0
        %v5191 = vadd.f32 %v5088, %v5190
        %5192 = vdwg.mxu0
        %s5193 = scalar_lea.vmem %s2, 560
        %v5194 = vld [vmem:[%s5193] sm:$0xff]
        %v5195 = vld [vmem:[%s5193 + $0x8] sm:$0xff]
        %5196 = vrot.lane.b32.xlu0 %v4345, 94
        %v5197 = vpop.permute.xlu0 %5196
        %5198 = vrot.lane.b32.xlu0 %v4346, 94
        %v5199 = vpop.permute.xlu0 %5198
        %5200 = vrot.lane.b32.xlu0 %v4352, 94
        %v5201 = vpop.permute.xlu0 %5200
        %5202 = vrot.lane.b32.xlu0 %v4347, 94
        %v5203 = vpop.permute.xlu0 %5202
        %5204 = vrot.lane.b32.xlu0 %v4348, 94
        %v5205 = vpop.permute.xlu0 %5204
        %5206 = vrot.lane.b32.xlu0 %v4353, 94
        %v5207 = vpop.permute.xlu0 %5206
        %v5208 = vsel %vm1126, %v5197, %v5199
        %v5209 = vsel %vm1126, %v5199, %v5201
        %v5210 = vsel %vm1126, %v5203, %v5205
        %v5211 = vsel %vm1126, %v5205, %v5207
        %v5217 = vsel %vm1326, %v5194, 0
        %v5220 = vsel %vm1326, %v5195, 0
        %5222 = vmatprep.subr.mxu0 0.0
        %5223 = vmatpush1.msra.mxu0 0.0
        %5224 = vmatprep.subr.mxu0 0.0
        %5225 = vmatpush1.msra.mxu0 0.0
        %5226 = vmatprep.subr.mxu0 0.0
        %5227 = vmatpush1.msra.mxu0 0.0
        %5228 = vmatprep.subr.mxu0 0.0
        %5229 = vmatpush1.msra.mxu0 0.0
        %5230 = vmatprep.subr.mxu0 0.0
        %5231 = vmatpush1.msra.mxu0 0.0
        %5232 = vmatprep.subr.mxu0 0.0
        %5233 = vmatpush1.msra.mxu0 0.0
        %5234 = vmatprep.subr.mxu0 0.0
        %5235 = vmatpush1.msra.mxu0 0.0
        %5236 = vmatprep.subr.mxu0 0.0
        %5237 = vmatpush1.msra.mxu0 0.0
        %5238 = vmatprep.subr.mxu0 0.0
        %5239 = vmatpush1.msra.mxu0 0.0
        %5240 = vmatprep.subr.mxu0 0.0
        %5241 = vmatpush1.msra.mxu0 0.0
        %5242 = vmatprep.subr.mxu0 0.0
        %5243 = vmatpush1.msra.mxu0 0.0
        %5244 = vmatprep.subr.mxu0 0.0
        %5245 = vmatpush1.msra.mxu0 0.0
        %5246 = vmatprep.subr.mxu0 0.0
        %5247 = vmatpush1.msra.mxu0 0.0
        %5248 = vmatprep.subr.mxu0 0.0
        %5249 = vmatpush1.msra.mxu0 0.0
        %5250 = vmatprep.subr.mxu0 %v5211
        %5251 = vmatpush1.msra.mxu0 %v5210
        %5252 = vmatprep.subr.mxu0 %v5209
        %5253 = vmatpush1.msra.mxu0 %v5208
        %5254 = vmatprep.subr.mxu0 0.0
        %5255 = vmatpush2.msra.mxu0 0.0
        %5256 = vmatprep.subr.mxu0 0.0
        %5257 = vmatpush2.msra.mxu0 0.0
        %5258 = vmatprep.subr.mxu0 0.0
        %5259 = vmatpush2.msra.mxu0 0.0
        %5260 = vmatprep.subr.mxu0 0.0
        %5261 = vmatpush2.msra.mxu0 0.0
        %5262 = vmatprep.subr.mxu0 0.0
        %5263 = vmatpush2.msra.mxu0 0.0
        %5264 = vmatprep.subr.mxu0 0.0
        %5265 = vmatpush2.msra.mxu0 0.0
        %5266 = vmatprep.subr.mxu0 0.0
        %5267 = vmatpush2.msra.mxu0 0.0
        %5268 = vmatprep.subr.mxu0 0.0
        %5269 = vmatpush2.msra.mxu0 0.0
        %5270 = vmatprep.subr.mxu0 0.0
        %5271 = vmatpush2.msra.mxu0 0.0
        %5272 = vmatprep.subr.mxu0 0.0
        %5273 = vmatpush2.msra.mxu0 0.0
        %5274 = vmatprep.subr.mxu0 0.0
        %5275 = vmatpush2.msra.mxu0 0.0
        %5276 = vmatprep.subr.mxu0 0.0
        %5277 = vmatpush2.msra.mxu0 0.0
        %5278 = vmatprep.subr.mxu0 0.0
        %5279 = vmatpush2.msra.mxu0 0.0
        %5280 = vmatprep.subr.mxu0 0.0
        %5281 = vmatpush2.msra.mxu0 0.0
        %5282 = vmatprep.subr.mxu0 0.0
        %5283 = vmatpush2.msra.mxu0 0.0
        %5284 = vmatprep.subr.mxu0 0.0
        %5285 = vmatpush2.msra.mxu0 0.0
        %5286 = vmatprep.mubr.f32.mxu0 0.0
        %5287 = vmatmul.mubr.f32.gmra.mxu0 %v5217
        %v5288 = vpop.f32.mrf.mxu0
        %v5289 = vadd.f32 0.0, %v5288
        %v5290 = vpop.f32.mrf.mxu0
        %v5291 = vadd.f32 0.0, %v5290
        %5292 = vmatprep.mubr.f32.mxu0 0.0
        %5293 = vmatmul.mubr.f32.gmra.mxu0 %v5220
        %v5294 = vpop.f32.mrf.mxu0
        %v5295 = vadd.f32 0.0, %v5294
        %v5296 = vpop.f32.mrf.mxu0
        %v5297 = vadd.f32 0.0, %v5296
        %5298 = vdwg.mxu0
        %v5299 = vadd.f32 %v5183, %v5289
        %v5300 = vadd.f32 %v5185, %v5291
        %v5301 = vadd.f32 %v5189, %v5295
        %v5302 = vadd.f32 %v5191, %v5297
        %v5303 = vmul.f32 %v4655, %v278
        %v5304 = vmul.f32 %v4656, %v279
        %v5305 = vmul.f32 %v4657, %v278
        %v5306 = vmul.f32 %v4658, %v279
        %v5307 = vadd.f32 %v5303, %v4977
        %v5308 = vadd.f32 %v5304, %v4978
        %v5309 = vadd.f32 %v5305, %v4979
        %v5310 = vadd.f32 %v5306, %v4980
        %v5311 = vmul.f32 %v5299, %v284
        %v5312 = vmul.f32 %v5300, %v285
        %v5313 = vmul.f32 %v5301, %v284
        %v5314 = vmul.f32 %v5302, %v285
        %v5315 = vadd.f32 %v5307, %v5311
        %v5316 = vadd.f32 %v5308, %v5312
        %v5317 = vadd.f32 %v5309, %v5313
        %v5318 = vadd.f32 %v5310, %v5314
        %5319 = vset.pattern.permute.xlu0 4
        %5320 = vperm.xlu0 %5319, %v303
        %v5321 = vpop.permute.xlu0 %5320
        %5323 = vset.pattern.permute.xlu0 4
        %5324 = vperm.xlu0 %5323, %v304
        %v5325 = vpop.permute.xlu0 %5324
        %v5327 = vadd.f32 %v5315, %v5321
        %v5328 = vadd.f32 %v5316, %v5321
        %v5329 = vadd.f32 %v5317, %v5325
        %v5330 = vadd.f32 %v5318, %v5325
        %v5331 = vmax.f32 %v5327, 0.0
        %v5332 = vmax.f32 %v5328, 0.0
        %v5333 = vmax.f32 %v5329, 0.0
        %v5334 = vmax.f32 %v5330, 0.0
        %v5335 = vadd.f32 %v5331, %v3299
        %v5336 = vadd.f32 %v5332, %v3300
        %v5337 = vadd.f32 %v5333, %v3301
        %v5338 = vadd.f32 %v5334, %v3302
        %v5339 = vmax.f32 %v5335, 0.0
        %v5340 = vmax.f32 %v5336, 0.0
        %v5341 = vmax.f32 %v5337, 0.0
        %v5342 = vmax.f32 %v5338, 0.0
      $region49: #{drn_forward.1} parent=39 // loop_footer
        %s1257 = sadd.s32 1, %s1253
      $region50: #{drn_forward.1} parent=39 // loop_footer_branch
        %1252 = sbr.rel target = $region46
      $region51: #{drn_forward.1} parent=39 // loop_exit
        _
      %5347 = vrot.lane.b32.xlu0 %v1258, 17
      %v5348 = vpop.permute.xlu0 %5347
      %5349 = vrot.lane.b32.xlu0 %v1259, 17
      %v5350 = vpop.permute.xlu0 %5349
      %5351 = vrot.lane.b32.xlu0 %v1260, 17
      %v5352 = vpop.permute.xlu0 %5351
      %5353 = vrot.lane.b32.xlu0 %v1261, 17
      %v5354 = vpop.permute.xlu0 %5353
      %v5355 = vsel %vm290, %v5348, %v5350
      %v5356 = vsel %vm290, %v5352, %v5354
      %vm5363 = vcmask 1047688
      %5364 = vst.msk [vmem:[#allocation4] sm:$0xff] %vm5363, %v5348
      %5365 = vst [vmem:[#allocation4 + $0x8] sm:$0xff] %v5355
      %5366 = vst.msk [vmem:[#allocation4 + $0x10] sm:$0xff] %vm290, %v5350
      %5367 = vst.msk [vmem:[#allocation4 + $0x18] sm:$0xff] %vm5363, %v5352
      %5368 = vst [vmem:[#allocation4 + $0x20] sm:$0xff] %v5356
      %5369 = vst.msk [vmem:[#allocation4 + $0x28] sm:$0xff] %vm290, %v5354
      %v5370 = vld [vmem:[#allocation4] sm:$0xff]
      %v5371 = vld [vmem:[#allocation4 + $0x8] sm:$0xff]
      %v5372 = vld [vmem:[#allocation4 + $0x18] sm:$0xff]
      %v5373 = vld [vmem:[#allocation4 + $0x20] sm:$0xff]
      %v5374 = vld [vmem:[%s3] sm:$0xff]
      %v5375 = vld [vmem:[#allocation4 + $0x10] sm:$0xff]
      %v5376 = vld [vmem:[#allocation4 + $0x28] sm:$0xff]
      %s5377 = scalar_lea.vmem %s3, 24
      %v5378 = vld [vmem:[%s5377] sm:$0xff]
      %5385 = vrot.lane.b32.xlu0 %v5370, 112
      %v5386 = vpop.permute.xlu0 %5385
      %5387 = vrot.lane.b32.xlu0 %v5371, 112
      %v5388 = vpop.permute.xlu0 %5387
      %5389 = vrot.lane.b32.xlu0 %v5375, 112
      %v5390 = vpop.permute.xlu0 %5389
      %5391 = vrot.lane.b32.xlu0 %v5372, 112
      %v5392 = vpop.permute.xlu0 %5391
      %5393 = vrot.lane.b32.xlu0 %v5373, 112
      %v5394 = vpop.permute.xlu0 %5393
      %5395 = vrot.lane.b32.xlu0 %v5376, 112
      %v5396 = vpop.permute.xlu0 %5395
      %v5397 = vsel %vm355, %v5386, %v5388
      %v5398 = vsel %vm355, %v5388, %v5390
      %v5399 = vsel %vm355, %v5392, %v5394
      %v5400 = vsel %vm355, %v5394, %v5396
      %vm5405 = vcmask 130048
      %v5407 = vsel %vm5405, %v5378, 0
      %5409 = vmatprep.subr.mxu0 0.0
      %5410 = vmatpush1.msra.mxu0 0.0
      %5411 = vmatprep.subr.mxu0 0.0
      %5412 = vmatpush1.msra.mxu0 0.0
      %5413 = vmatprep.subr.mxu0 0.0
      %5414 = vmatpush1.msra.mxu0 0.0
      %5415 = vmatprep.subr.mxu0 0.0
      %5416 = vmatpush1.msra.mxu0 0.0
      %5417 = vmatprep.subr.mxu0 0.0
      %5418 = vmatpush1.msra.mxu0 0.0
      %5419 = vmatprep.subr.mxu0 0.0
      %5420 = vmatpush1.msra.mxu0 0.0
      %5421 = vmatprep.subr.mxu0 0.0
      %5422 = vmatpush1.msra.mxu0 0.0
      %5423 = vmatprep.subr.mxu0 0.0
      %5424 = vmatpush1.msra.mxu0 0.0
      %5425 = vmatprep.subr.mxu0 0.0
      %5426 = vmatpush1.msra.mxu0 0.0
      %5427 = vmatprep.subr.mxu0 0.0
      %5428 = vmatpush1.msra.mxu0 0.0
      %5429 = vmatprep.subr.mxu0 0.0
      %5430 = vmatpush1.msra.mxu0 0.0
      %5431 = vmatprep.subr.mxu0 0.0
      %5432 = vmatpush1.msra.mxu0 0.0
      %5433 = vmatprep.subr.mxu0 0.0
      %5434 = vmatpush1.msra.mxu0 0.0
      %5435 = vmatprep.subr.mxu0 0.0
      %5436 = vmatpush1.msra.mxu0 0.0
      %5437 = vmatprep.subr.mxu0 %v5400
      %5438 = vmatpush1.msra.mxu0 %v5399
      %5439 = vmatprep.subr.mxu0 %v5398
      %5440 = vmatpush1.msra.mxu0 %v5397
      %5441 = vmatprep.subr.mxu0 0.0
      %5442 = vmatpush2.msra.mxu0 0.0
      %5443 = vmatprep.subr.mxu0 0.0
      %5444 = vmatpush2.msra.mxu0 0.0
      %5445 = vmatprep.subr.mxu0 0.0
      %5446 = vmatpush2.msra.mxu0 0.0
      %5447 = vmatprep.subr.mxu0 0.0
      %5448 = vmatpush2.msra.mxu0 0.0
      %5449 = vmatprep.subr.mxu0 0.0
      %5450 = vmatpush2.msra.mxu0 0.0
      %5451 = vmatprep.subr.mxu0 0.0
      %5452 = vmatpush2.msra.mxu0 0.0
      %5453 = vmatprep.subr.mxu0 0.0
      %5454 = vmatpush2.msra.mxu0 0.0
      %5455 = vmatprep.subr.mxu0 0.0
      %5456 = vmatpush2.msra.mxu0 0.0
      %5457 = vmatprep.subr.mxu0 0.0
      %5458 = vmatpush2.msra.mxu0 0.0
      %5459 = vmatprep.subr.mxu0 0.0
      %5460 = vmatpush2.msra.mxu0 0.0
      %5461 = vmatprep.subr.mxu0 0.0
      %5462 = vmatpush2.msra.mxu0 0.0
      %5463 = vmatprep.subr.mxu0 0.0
      %5464 = vmatpush2.msra.mxu0 0.0
      %5465 = vmatprep.subr.mxu0 0.0
      %5466 = vmatpush2.msra.mxu0 0.0
      %5467 = vmatprep.subr.mxu0 0.0
      %5468 = vmatpush2.msra.mxu0 0.0
      %5469 = vmatprep.subr.mxu0 0.0
      %5470 = vmatpush2.msra.mxu0 0.0
      %5471 = vmatprep.subr.mxu0 0.0
      %5472 = vmatpush2.msra.mxu0 0.0
      %5473 = vmatprep.mubr.f32.mxu0 0.0
      %5474 = vmatmul.mubr.f32.gmra.mxu0 %v5407
      %v5475 = vpop.f32.mrf.mxu0
      %v5476 = vadd.f32 0.0, %v5475
      %v5477 = vpop.f32.mrf.mxu0
      %v5478 = vadd.f32 0.0, %v5477
      %5479 = vdwg.mxu0
      %v5481 = vsel %vm5405, %v5374, 0
      %5483 = vmatprep.subr.mxu0 0.0
      %5484 = vmatpush1.msra.mxu0 0.0
      %5485 = vmatprep.subr.mxu0 0.0
      %5486 = vmatpush1.msra.mxu0 0.0
      %5487 = vmatprep.subr.mxu0 0.0
      %5488 = vmatpush1.msra.mxu0 0.0
      %5489 = vmatprep.subr.mxu0 0.0
      %5490 = vmatpush1.msra.mxu0 0.0
      %5491 = vmatprep.subr.mxu0 0.0
      %5492 = vmatpush1.msra.mxu0 0.0
      %5493 = vmatprep.subr.mxu0 0.0
      %5494 = vmatpush1.msra.mxu0 0.0
      %5495 = vmatprep.subr.mxu0 0.0
      %5496 = vmatpush1.msra.mxu0 0.0
      %5497 = vmatprep.subr.mxu0 0.0
      %5498 = vmatpush1.msra.mxu0 0.0
      %5499 = vmatprep.subr.mxu0 0.0
      %5500 = vmatpush1.msra.mxu0 0.0
      %5501 = vmatprep.subr.mxu0 0.0
      %5502 = vmatpush1.msra.mxu0 0.0
      %5503 = vmatprep.subr.mxu0 0.0
      %5504 = vmatpush1.msra.mxu0 0.0
      %5505 = vmatprep.subr.mxu0 0.0
      %5506 = vmatpush1.msra.mxu0 0.0
      %5507 = vmatprep.subr.mxu0 0.0
      %5508 = vmatpush1.msra.mxu0 0.0
      %5509 = vmatprep.subr.mxu0 0.0
      %5510 = vmatpush1.msra.mxu0 0.0
      %5511 = vmatprep.subr.mxu0 %v5373
      %5512 = vmatpush1.msra.mxu0 %v5372
      %5513 = vmatprep.subr.mxu0 %v5371
      %5514 = vmatpush1.msra.mxu0 %v5370
      %5515 = vmatprep.subr.mxu0 0.0
      %5516 = vmatpush2.msra.mxu0 0.0
      %5517 = vmatprep.subr.mxu0 0.0
      %5518 = vmatpush2.msra.mxu0 0.0
      %5519 = vmatprep.subr.mxu0 0.0
      %5520 = vmatpush2.msra.mxu0 0.0
      %5521 = vmatprep.subr.mxu0 0.0
      %5522 = vmatpush2.msra.mxu0 0.0
      %5523 = vmatprep.subr.mxu0 0.0
      %5524 = vmatpush2.msra.mxu0 0.0
      %5525 = vmatprep.subr.mxu0 0.0
      %5526 = vmatpush2.msra.mxu0 0.0
      %5527 = vmatprep.subr.mxu0 0.0
      %5528 = vmatpush2.msra.mxu0 0.0
      %5529 = vmatprep.subr.mxu0 0.0
      %5530 = vmatpush2.msra.mxu0 0.0
      %5531 = vmatprep.subr.mxu0 0.0
      %5532 = vmatpush2.msra.mxu0 0.0
      %5533 = vmatprep.subr.mxu0 0.0
      %5534 = vmatpush2.msra.mxu0 0.0
      %5535 = vmatprep.subr.mxu0 0.0
      %5536 = vmatpush2.msra.mxu0 0.0
      %5537 = vmatprep.subr.mxu0 0.0
      %5538 = vmatpush2.msra.mxu0 0.0
      %5539 = vmatprep.subr.mxu0 0.0
      %5540 = vmatpush2.msra.mxu0 0.0
      %5541 = vmatprep.subr.mxu0 0.0
      %5542 = vmatpush2.msra.mxu0 0.0
      %5543 = vmatprep.subr.mxu0 0.0
      %5544 = vmatpush2.msra.mxu0 0.0
      %5545 = vmatprep.subr.mxu0 0.0
      %5546 = vmatpush2.msra.mxu0 0.0
      %5547 = vmatprep.mubr.f32.mxu0 0.0
      %5548 = vmatmul.mubr.f32.gmra.mxu0 %v5481
      %v5549 = vpop.f32.mrf.mxu0
      %v5550 = vadd.f32 %v5476, %v5549
      %v5551 = vpop.f32.mrf.mxu0
      %v5552 = vadd.f32 %v5478, %v5551
      %5553 = vdwg.mxu0
      %s5554 = scalar_lea.vmem %s3, 48
      %v5555 = vld [vmem:[%s5554] sm:$0xff]
      %5556 = vrot.lane.b32.xlu0 %v5370, 96
      %v5557 = vpop.permute.xlu0 %5556
      %5558 = vrot.lane.b32.xlu0 %v5371, 96
      %v5559 = vpop.permute.xlu0 %5558
      %5560 = vrot.lane.b32.xlu0 %v5375, 96
      %v5561 = vpop.permute.xlu0 %5560
      %5562 = vrot.lane.b32.xlu0 %v5372, 96
      %v5563 = vpop.permute.xlu0 %5562
      %5564 = vrot.lane.b32.xlu0 %v5373, 96
      %v5565 = vpop.permute.xlu0 %5564
      %5566 = vrot.lane.b32.xlu0 %v5376, 96
      %v5567 = vpop.permute.xlu0 %5566
      %v5568 = vsel %vm536, %v5557, %v5559
      %v5569 = vsel %vm536, %v5559, %v5561
      %v5570 = vsel %vm536, %v5563, %v5565
      %v5571 = vsel %vm536, %v5565, %v5567
      %v5577 = vsel %vm5405, %v5555, 0
      %5579 = vmatprep.subr.mxu0 0.0
      %5580 = vmatpush1.msra.mxu0 0.0
      %5581 = vmatprep.subr.mxu0 0.0
      %5582 = vmatpush1.msra.mxu0 0.0
      %5583 = vmatprep.subr.mxu0 0.0
      %5584 = vmatpush1.msra.mxu0 0.0
      %5585 = vmatprep.subr.mxu0 0.0
      %5586 = vmatpush1.msra.mxu0 0.0
      %5587 = vmatprep.subr.mxu0 0.0
      %5588 = vmatpush1.msra.mxu0 0.0
      %5589 = vmatprep.subr.mxu0 0.0
      %5590 = vmatpush1.msra.mxu0 0.0
      %5591 = vmatprep.subr.mxu0 0.0
      %5592 = vmatpush1.msra.mxu0 0.0
      %5593 = vmatprep.subr.mxu0 0.0
      %5594 = vmatpush1.msra.mxu0 0.0
      %5595 = vmatprep.subr.mxu0 0.0
      %5596 = vmatpush1.msra.mxu0 0.0
      %5597 = vmatprep.subr.mxu0 0.0
      %5598 = vmatpush1.msra.mxu0 0.0
      %5599 = vmatprep.subr.mxu0 0.0
      %5600 = vmatpush1.msra.mxu0 0.0
      %5601 = vmatprep.subr.mxu0 0.0
      %5602 = vmatpush1.msra.mxu0 0.0
      %5603 = vmatprep.subr.mxu0 0.0
      %5604 = vmatpush1.msra.mxu0 0.0
      %5605 = vmatprep.subr.mxu0 0.0
      %5606 = vmatpush1.msra.mxu0 0.0
      %5607 = vmatprep.subr.mxu0 %v5571
      %5608 = vmatpush1.msra.mxu0 %v5570
      %5609 = vmatprep.subr.mxu0 %v5569
      %5610 = vmatpush1.msra.mxu0 %v5568
      %5611 = vmatprep.subr.mxu0 0.0
      %5612 = vmatpush2.msra.mxu0 0.0
      %5613 = vmatprep.subr.mxu0 0.0
      %5614 = vmatpush2.msra.mxu0 0.0
      %5615 = vmatprep.subr.mxu0 0.0
      %5616 = vmatpush2.msra.mxu0 0.0
      %5617 = vmatprep.subr.mxu0 0.0
      %5618 = vmatpush2.msra.mxu0 0.0
      %5619 = vmatprep.subr.mxu0 0.0
      %5620 = vmatpush2.msra.mxu0 0.0
      %5621 = vmatprep.subr.mxu0 0.0
      %5622 = vmatpush2.msra.mxu0 0.0
      %5623 = vmatprep.subr.mxu0 0.0
      %5624 = vmatpush2.msra.mxu0 0.0
      %5625 = vmatprep.subr.mxu0 0.0
      %5626 = vmatpush2.msra.mxu0 0.0
      %5627 = vmatprep.subr.mxu0 0.0
      %5628 = vmatpush2.msra.mxu0 0.0
      %5629 = vmatprep.subr.mxu0 0.0
      %5630 = vmatpush2.msra.mxu0 0.0
      %5631 = vmatprep.subr.mxu0 0.0
      %5632 = vmatpush2.msra.mxu0 0.0
      %5633 = vmatprep.subr.mxu0 0.0
      %5634 = vmatpush2.msra.mxu0 0.0
      %5635 = vmatprep.subr.mxu0 0.0
      %5636 = vmatpush2.msra.mxu0 0.0
      %5637 = vmatprep.subr.mxu0 0.0
      %5638 = vmatpush2.msra.mxu0 0.0
      %5639 = vmatprep.subr.mxu0 0.0
      %5640 = vmatpush2.msra.mxu0 0.0
      %5641 = vmatprep.subr.mxu0 0.0
      %5642 = vmatpush2.msra.mxu0 0.0
      %5643 = vmatprep.mubr.f32.mxu0 0.0
      %5644 = vmatmul.mubr.f32.gmra.mxu0 %v5577
      %v5645 = vpop.f32.mrf.mxu0
      %v5646 = vadd.f32 0.0, %v5645
      %v5647 = vpop.f32.mrf.mxu0
      %v5648 = vadd.f32 0.0, %v5647
      %5649 = vdwg.mxu0
      %v5650 = vadd.f32 %v5550, %v5646
      %v5651 = vadd.f32 %v5552, %v5648
      %s5652 = scalar_lea.vmem %s3, 8
      %v5653 = vld [vmem:[%s5652] sm:$0xff]
      %s5654 = scalar_lea.vmem %s3, 32
      %v5655 = vld [vmem:[%s5654] sm:$0xff]
      %5656 = vrot.lane.b32.xlu0 %v5370, 111
      %v5657 = vpop.permute.xlu0 %5656
      %5658 = vrot.lane.b32.xlu0 %v5371, 111
      %v5659 = vpop.permute.xlu0 %5658
      %5660 = vrot.lane.b32.xlu0 %v5375, 111
      %v5661 = vpop.permute.xlu0 %5660
      %5662 = vrot.lane.b32.xlu0 %v5372, 111
      %v5663 = vpop.permute.xlu0 %5662
      %5664 = vrot.lane.b32.xlu0 %v5373, 111
      %v5665 = vpop.permute.xlu0 %5664
      %5666 = vrot.lane.b32.xlu0 %v5376, 111
      %v5667 = vpop.permute.xlu0 %5666
      %v5668 = vsel %vm640, %v5657, %v5659
      %v5669 = vsel %vm640, %v5659, %v5661
      %v5670 = vsel %vm640, %v5663, %v5665
      %v5671 = vsel %vm640, %v5665, %v5667
      %v5677 = vsel %vm5405, %v5655, 0
      %5679 = vmatprep.subr.mxu0 0.0
      %5680 = vmatpush1.msra.mxu0 0.0
      %5681 = vmatprep.subr.mxu0 0.0
      %5682 = vmatpush1.msra.mxu0 0.0
      %5683 = vmatprep.subr.mxu0 0.0
      %5684 = vmatpush1.msra.mxu0 0.0
      %5685 = vmatprep.subr.mxu0 0.0
      %5686 = vmatpush1.msra.mxu0 0.0
      %5687 = vmatprep.subr.mxu0 0.0
      %5688 = vmatpush1.msra.mxu0 0.0
      %5689 = vmatprep.subr.mxu0 0.0
      %5690 = vmatpush1.msra.mxu0 0.0
      %5691 = vmatprep.subr.mxu0 0.0
      %5692 = vmatpush1.msra.mxu0 0.0
      %5693 = vmatprep.subr.mxu0 0.0
      %5694 = vmatpush1.msra.mxu0 0.0
      %5695 = vmatprep.subr.mxu0 0.0
      %5696 = vmatpush1.msra.mxu0 0.0
      %5697 = vmatprep.subr.mxu0 0.0
      %5698 = vmatpush1.msra.mxu0 0.0
      %5699 = vmatprep.subr.mxu0 0.0
      %5700 = vmatpush1.msra.mxu0 0.0
      %5701 = vmatprep.subr.mxu0 0.0
      %5702 = vmatpush1.msra.mxu0 0.0
      %5703 = vmatprep.subr.mxu0 0.0
      %5704 = vmatpush1.msra.mxu0 0.0
      %5705 = vmatprep.subr.mxu0 0.0
      %5706 = vmatpush1.msra.mxu0 0.0
      %5707 = vmatprep.subr.mxu0 %v5671
      %5708 = vmatpush1.msra.mxu0 %v5670
      %5709 = vmatprep.subr.mxu0 %v5669
      %5710 = vmatpush1.msra.mxu0 %v5668
      %5711 = vmatprep.subr.mxu0 0.0
      %5712 = vmatpush2.msra.mxu0 0.0
      %5713 = vmatprep.subr.mxu0 0.0
      %5714 = vmatpush2.msra.mxu0 0.0
      %5715 = vmatprep.subr.mxu0 0.0
      %5716 = vmatpush2.msra.mxu0 0.0
      %5717 = vmatprep.subr.mxu0 0.0
      %5718 = vmatpush2.msra.mxu0 0.0
      %5719 = vmatprep.subr.mxu0 0.0
      %5720 = vmatpush2.msra.mxu0 0.0
      %5721 = vmatprep.subr.mxu0 0.0
      %5722 = vmatpush2.msra.mxu0 0.0
      %5723 = vmatprep.subr.mxu0 0.0
      %5724 = vmatpush2.msra.mxu0 0.0
      %5725 = vmatprep.subr.mxu0 0.0
      %5726 = vmatpush2.msra.mxu0 0.0
      %5727 = vmatprep.subr.mxu0 0.0
      %5728 = vmatpush2.msra.mxu0 0.0
      %5729 = vmatprep.subr.mxu0 0.0
      %5730 = vmatpush2.msra.mxu0 0.0
      %5731 = vmatprep.subr.mxu0 0.0
      %5732 = vmatpush2.msra.mxu0 0.0
      %5733 = vmatprep.subr.mxu0 0.0
      %5734 = vmatpush2.msra.mxu0 0.0
      %5735 = vmatprep.subr.mxu0 0.0
      %5736 = vmatpush2.msra.mxu0 0.0
      %5737 = vmatprep.subr.mxu0 0.0
      %5738 = vmatpush2.msra.mxu0 0.0
      %5739 = vmatprep.subr.mxu0 0.0
      %5740 = vmatpush2.msra.mxu0 0.0
      %5741 = vmatprep.subr.mxu0 0.0
      %5742 = vmatpush2.msra.mxu0 0.0
      %5743 = vmatprep.mubr.f32.mxu0 0.0
      %5744 = vmatmul.mubr.f32.gmra.mxu0 %v5677
      %v5745 = vpop.f32.mrf.mxu0
      %v5746 = vadd.f32 0.0, %v5745
      %v5747 = vpop.f32.mrf.mxu0
      %v5748 = vadd.f32 0.0, %v5747
      %5749 = vdwg.mxu0
      %5750 = vrot.lane.b32.xlu0 %v5370, 127
      %v5751 = vpop.permute.xlu0 %5750
      %5752 = vrot.lane.b32.xlu0 %v5371, 127
      %v5753 = vpop.permute.xlu0 %5752
      %5754 = vrot.lane.b32.xlu0 %v5375, 127
      %v5755 = vpop.permute.xlu0 %5754
      %5756 = vrot.lane.b32.xlu0 %v5372, 127
      %v5757 = vpop.permute.xlu0 %5756
      %5758 = vrot.lane.b32.xlu0 %v5373, 127
      %v5759 = vpop.permute.xlu0 %5758
      %5760 = vrot.lane.b32.xlu0 %v5376, 127
      %v5761 = vpop.permute.xlu0 %5760
      %v5762 = vsel %vm734, %v5751, %v5753
      %v5763 = vsel %vm734, %v5753, %v5755
      %v5764 = vsel %vm734, %v5757, %v5759
      %v5765 = vsel %vm734, %v5759, %v5761
      %v5771 = vsel %vm5405, %v5653, 0
      %5773 = vmatprep.subr.mxu0 0.0
      %5774 = vmatpush1.msra.mxu0 0.0
      %5775 = vmatprep.subr.mxu0 0.0
      %5776 = vmatpush1.msra.mxu0 0.0
      %5777 = vmatprep.subr.mxu0 0.0
      %5778 = vmatpush1.msra.mxu0 0.0
      %5779 = vmatprep.subr.mxu0 0.0
      %5780 = vmatpush1.msra.mxu0 0.0
      %5781 = vmatprep.subr.mxu0 0.0
      %5782 = vmatpush1.msra.mxu0 0.0
      %5783 = vmatprep.subr.mxu0 0.0
      %5784 = vmatpush1.msra.mxu0 0.0
      %5785 = vmatprep.subr.mxu0 0.0
      %5786 = vmatpush1.msra.mxu0 0.0
      %5787 = vmatprep.subr.mxu0 0.0
      %5788 = vmatpush1.msra.mxu0 0.0
      %5789 = vmatprep.subr.mxu0 0.0
      %5790 = vmatpush1.msra.mxu0 0.0
      %5791 = vmatprep.subr.mxu0 0.0
      %5792 = vmatpush1.msra.mxu0 0.0
      %5793 = vmatprep.subr.mxu0 0.0
      %5794 = vmatpush1.msra.mxu0 0.0
      %5795 = vmatprep.subr.mxu0 0.0
      %5796 = vmatpush1.msra.mxu0 0.0
      %5797 = vmatprep.subr.mxu0 0.0
      %5798 = vmatpush1.msra.mxu0 0.0
      %5799 = vmatprep.subr.mxu0 0.0
      %5800 = vmatpush1.msra.mxu0 0.0
      %5801 = vmatprep.subr.mxu0 %v5765
      %5802 = vmatpush1.msra.mxu0 %v5764
      %5803 = vmatprep.subr.mxu0 %v5763
      %5804 = vmatpush1.msra.mxu0 %v5762
      %5805 = vmatprep.subr.mxu0 0.0
      %5806 = vmatpush2.msra.mxu0 0.0
      %5807 = vmatprep.subr.mxu0 0.0
      %5808 = vmatpush2.msra.mxu0 0.0
      %5809 = vmatprep.subr.mxu0 0.0
      %5810 = vmatpush2.msra.mxu0 0.0
      %5811 = vmatprep.subr.mxu0 0.0
      %5812 = vmatpush2.msra.mxu0 0.0
      %5813 = vmatprep.subr.mxu0 0.0
      %5814 = vmatpush2.msra.mxu0 0.0
      %5815 = vmatprep.subr.mxu0 0.0
      %5816 = vmatpush2.msra.mxu0 0.0
      %5817 = vmatprep.subr.mxu0 0.0
      %5818 = vmatpush2.msra.mxu0 0.0
      %5819 = vmatprep.subr.mxu0 0.0
      %5820 = vmatpush2.msra.mxu0 0.0
      %5821 = vmatprep.subr.mxu0 0.0
      %5822 = vmatpush2.msra.mxu0 0.0
      %5823 = vmatprep.subr.mxu0 0.0
      %5824 = vmatpush2.msra.mxu0 0.0
      %5825 = vmatprep.subr.mxu0 0.0
      %5826 = vmatpush2.msra.mxu0 0.0
      %5827 = vmatprep.subr.mxu0 0.0
      %5828 = vmatpush2.msra.mxu0 0.0
      %5829 = vmatprep.subr.mxu0 0.0
      %5830 = vmatpush2.msra.mxu0 0.0
      %5831 = vmatprep.subr.mxu0 0.0
      %5832 = vmatpush2.msra.mxu0 0.0
      %5833 = vmatprep.subr.mxu0 0.0
      %5834 = vmatpush2.msra.mxu0 0.0
      %5835 = vmatprep.subr.mxu0 0.0
      %5836 = vmatpush2.msra.mxu0 0.0
      %5837 = vmatprep.mubr.f32.mxu0 0.0
      %5838 = vmatmul.mubr.f32.gmra.mxu0 %v5771
      %v5839 = vpop.f32.mrf.mxu0
      %v5840 = vadd.f32 %v5746, %v5839
      %v5841 = vpop.f32.mrf.mxu0
      %v5842 = vadd.f32 %v5748, %v5841
      %5843 = vdwg.mxu0
      %s5844 = scalar_lea.vmem %s3, 56
      %v5845 = vld [vmem:[%s5844] sm:$0xff]
      %5846 = vrot.lane.b32.xlu0 %v5370, 95
      %v5847 = vpop.permute.xlu0 %5846
      %5848 = vrot.lane.b32.xlu0 %v5371, 95
      %v5849 = vpop.permute.xlu0 %5848
      %5850 = vrot.lane.b32.xlu0 %v5375, 95
      %v5851 = vpop.permute.xlu0 %5850
      %5852 = vrot.lane.b32.xlu0 %v5372, 95
      %v5853 = vpop.permute.xlu0 %5852
      %5854 = vrot.lane.b32.xlu0 %v5373, 95
      %v5855 = vpop.permute.xlu0 %5854
      %5856 = vrot.lane.b32.xlu0 %v5376, 95
      %v5857 = vpop.permute.xlu0 %5856
      %v5858 = vsel %vm831, %v5847, %v5849
      %v5859 = vsel %vm831, %v5849, %v5851
      %v5860 = vsel %vm831, %v5853, %v5855
      %v5861 = vsel %vm831, %v5855, %v5857
      %v5867 = vsel %vm5405, %v5845, 0
      %5869 = vmatprep.subr.mxu0 0.0
      %5870 = vmatpush1.msra.mxu0 0.0
      %5871 = vmatprep.subr.mxu0 0.0
      %5872 = vmatpush1.msra.mxu0 0.0
      %5873 = vmatprep.subr.mxu0 0.0
      %5874 = vmatpush1.msra.mxu0 0.0
      %5875 = vmatprep.subr.mxu0 0.0
      %5876 = vmatpush1.msra.mxu0 0.0
      %5877 = vmatprep.subr.mxu0 0.0
      %5878 = vmatpush1.msra.mxu0 0.0
      %5879 = vmatprep.subr.mxu0 0.0
      %5880 = vmatpush1.msra.mxu0 0.0
      %5881 = vmatprep.subr.mxu0 0.0
      %5882 = vmatpush1.msra.mxu0 0.0
      %5883 = vmatprep.subr.mxu0 0.0
      %5884 = vmatpush1.msra.mxu0 0.0
      %5885 = vmatprep.subr.mxu0 0.0
      %5886 = vmatpush1.msra.mxu0 0.0
      %5887 = vmatprep.subr.mxu0 0.0
      %5888 = vmatpush1.msra.mxu0 0.0
      %5889 = vmatprep.subr.mxu0 0.0
      %5890 = vmatpush1.msra.mxu0 0.0
      %5891 = vmatprep.subr.mxu0 0.0
      %5892 = vmatpush1.msra.mxu0 0.0
      %5893 = vmatprep.subr.mxu0 0.0
      %5894 = vmatpush1.msra.mxu0 0.0
      %5895 = vmatprep.subr.mxu0 0.0
      %5896 = vmatpush1.msra.mxu0 0.0
      %5897 = vmatprep.subr.mxu0 %v5861
      %5898 = vmatpush1.msra.mxu0 %v5860
      %5899 = vmatprep.subr.mxu0 %v5859
      %5900 = vmatpush1.msra.mxu0 %v5858
      %5901 = vmatprep.subr.mxu0 0.0
      %5902 = vmatpush2.msra.mxu0 0.0
      %5903 = vmatprep.subr.mxu0 0.0
      %5904 = vmatpush2.msra.mxu0 0.0
      %5905 = vmatprep.subr.mxu0 0.0
      %5906 = vmatpush2.msra.mxu0 0.0
      %5907 = vmatprep.subr.mxu0 0.0
      %5908 = vmatpush2.msra.mxu0 0.0
      %5909 = vmatprep.subr.mxu0 0.0
      %5910 = vmatpush2.msra.mxu0 0.0
      %5911 = vmatprep.subr.mxu0 0.0
      %5912 = vmatpush2.msra.mxu0 0.0
      %5913 = vmatprep.subr.mxu0 0.0
      %5914 = vmatpush2.msra.mxu0 0.0
      %5915 = vmatprep.subr.mxu0 0.0
      %5916 = vmatpush2.msra.mxu0 0.0
      %5917 = vmatprep.subr.mxu0 0.0
      %5918 = vmatpush2.msra.mxu0 0.0
      %5919 = vmatprep.subr.mxu0 0.0
      %5920 = vmatpush2.msra.mxu0 0.0
      %5921 = vmatprep.subr.mxu0 0.0
      %5922 = vmatpush2.msra.mxu0 0.0
      %5923 = vmatprep.subr.mxu0 0.0
      %5924 = vmatpush2.msra.mxu0 0.0
      %5925 = vmatprep.subr.mxu0 0.0
      %5926 = vmatpush2.msra.mxu0 0.0
      %5927 = vmatprep.subr.mxu0 0.0
      %5928 = vmatpush2.msra.mxu0 0.0
      %5929 = vmatprep.subr.mxu0 0.0
      %5930 = vmatpush2.msra.mxu0 0.0
      %5931 = vmatprep.subr.mxu0 0.0
      %5932 = vmatpush2.msra.mxu0 0.0
      %5933 = vmatprep.mubr.f32.mxu0 0.0
      %5934 = vmatmul.mubr.f32.gmra.mxu0 %v5867
      %v5935 = vpop.f32.mrf.mxu0
      %v5936 = vadd.f32 0.0, %v5935
      %v5937 = vpop.f32.mrf.mxu0
      %v5938 = vadd.f32 0.0, %v5937
      %5939 = vdwg.mxu0
      %v5940 = vadd.f32 %v5840, %v5936
      %v5941 = vadd.f32 %v5842, %v5938
      %s5942 = scalar_lea.vmem %s3, 16
      %v5943 = vld [vmem:[%s5942] sm:$0xff]
      %s5944 = scalar_lea.vmem %s3, 40
      %v5945 = vld [vmem:[%s5944] sm:$0xff]
      %5946 = vrot.lane.b32.xlu0 %v5370, 110
      %v5947 = vpop.permute.xlu0 %5946
      %5948 = vrot.lane.b32.xlu0 %v5371, 110
      %v5949 = vpop.permute.xlu0 %5948
      %5950 = vrot.lane.b32.xlu0 %v5375, 110
      %v5951 = vpop.permute.xlu0 %5950
      %5952 = vrot.lane.b32.xlu0 %v5372, 110
      %v5953 = vpop.permute.xlu0 %5952
      %5954 = vrot.lane.b32.xlu0 %v5373, 110
      %v5955 = vpop.permute.xlu0 %5954
      %5956 = vrot.lane.b32.xlu0 %v5376, 110
      %v5957 = vpop.permute.xlu0 %5956
      %v5958 = vsel %vm935, %v5947, %v5949
      %v5959 = vsel %vm935, %v5949, %v5951
      %v5960 = vsel %vm935, %v5953, %v5955
      %v5961 = vsel %vm935, %v5955, %v5957
      %v5967 = vsel %vm5405, %v5945, 0
      %5969 = vmatprep.subr.mxu0 0.0
      %5970 = vmatpush1.msra.mxu0 0.0
      %5971 = vmatprep.subr.mxu0 0.0
      %5972 = vmatpush1.msra.mxu0 0.0
      %5973 = vmatprep.subr.mxu0 0.0
      %5974 = vmatpush1.msra.mxu0 0.0
      %5975 = vmatprep.subr.mxu0 0.0
      %5976 = vmatpush1.msra.mxu0 0.0
      %5977 = vmatprep.subr.mxu0 0.0
      %5978 = vmatpush1.msra.mxu0 0.0
      %5979 = vmatprep.subr.mxu0 0.0
      %5980 = vmatpush1.msra.mxu0 0.0
      %5981 = vmatprep.subr.mxu0 0.0
      %5982 = vmatpush1.msra.mxu0 0.0
      %5983 = vmatprep.subr.mxu0 0.0
      %5984 = vmatpush1.msra.mxu0 0.0
      %5985 = vmatprep.subr.mxu0 0.0
      %5986 = vmatpush1.msra.mxu0 0.0
      %5987 = vmatprep.subr.mxu0 0.0
      %5988 = vmatpush1.msra.mxu0 0.0
      %5989 = vmatprep.subr.mxu0 0.0
      %5990 = vmatpush1.msra.mxu0 0.0
      %5991 = vmatprep.subr.mxu0 0.0
      %5992 = vmatpush1.msra.mxu0 0.0
      %5993 = vmatprep.subr.mxu0 0.0
      %5994 = vmatpush1.msra.mxu0 0.0
      %5995 = vmatprep.subr.mxu0 0.0
      %5996 = vmatpush1.msra.mxu0 0.0
      %5997 = vmatprep.subr.mxu0 %v5961
      %5998 = vmatpush1.msra.mxu0 %v5960
      %5999 = vmatprep.subr.mxu0 %v5959
      %6000 = vmatpush1.msra.mxu0 %v5958
      %6001 = vmatprep.subr.mxu0 0.0
      %6002 = vmatpush2.msra.mxu0 0.0
      %6003 = vmatprep.subr.mxu0 0.0
      %6004 = vmatpush2.msra.mxu0 0.0
      %6005 = vmatprep.subr.mxu0 0.0
      %6006 = vmatpush2.msra.mxu0 0.0
      %6007 = vmatprep.subr.mxu0 0.0
      %6008 = vmatpush2.msra.mxu0 0.0
      %6009 = vmatprep.subr.mxu0 0.0
      %6010 = vmatpush2.msra.mxu0 0.0
      %6011 = vmatprep.subr.mxu0 0.0
      %6012 = vmatpush2.msra.mxu0 0.0
      %6013 = vmatprep.subr.mxu0 0.0
      %6014 = vmatpush2.msra.mxu0 0.0
      %6015 = vmatprep.subr.mxu0 0.0
      %6016 = vmatpush2.msra.mxu0 0.0
      %6017 = vmatprep.subr.mxu0 0.0
      %6018 = vmatpush2.msra.mxu0 0.0
      %6019 = vmatprep.subr.mxu0 0.0
      %6020 = vmatpush2.msra.mxu0 0.0
      %6021 = vmatprep.subr.mxu0 0.0
      %6022 = vmatpush2.msra.mxu0 0.0
      %6023 = vmatprep.subr.mxu0 0.0
      %6024 = vmatpush2.msra.mxu0 0.0
      %6025 = vmatprep.subr.mxu0 0.0
      %6026 = vmatpush2.msra.mxu0 0.0
      %6027 = vmatprep.subr.mxu0 0.0
      %6028 = vmatpush2.msra.mxu0 0.0
      %6029 = vmatprep.subr.mxu0 0.0
      %6030 = vmatpush2.msra.mxu0 0.0
      %6031 = vmatprep.subr.mxu0 0.0
      %6032 = vmatpush2.msra.mxu0 0.0
      %6033 = vmatprep.mubr.f32.mxu0 0.0
      %6034 = vmatmul.mubr.f32.gmra.mxu0 %v5967
      %v6035 = vpop.f32.mrf.mxu0
      %v6036 = vadd.f32 0.0, %v6035
      %v6037 = vpop.f32.mrf.mxu0
      %v6038 = vadd.f32 0.0, %v6037
      %6039 = vdwg.mxu0
      %6040 = vrot.lane.b32.xlu0 %v5370, 126
      %v6041 = vpop.permute.xlu0 %6040
      %6042 = vrot.lane.b32.xlu0 %v5371, 126
      %v6043 = vpop.permute.xlu0 %6042
      %6044 = vrot.lane.b32.xlu0 %v5375, 126
      %v6045 = vpop.permute.xlu0 %6044
      %6046 = vrot.lane.b32.xlu0 %v5372, 126
      %v6047 = vpop.permute.xlu0 %6046
      %6048 = vrot.lane.b32.xlu0 %v5373, 126
      %v6049 = vpop.permute.xlu0 %6048
      %6050 = vrot.lane.b32.xlu0 %v5376, 126
      %v6051 = vpop.permute.xlu0 %6050
      %v6052 = vsel %vm1029, %v6041, %v6043
      %v6053 = vsel %vm1029, %v6043, %v6045
      %v6054 = vsel %vm1029, %v6047, %v6049
      %v6055 = vsel %vm1029, %v6049, %v6051
      %v6061 = vsel %vm5405, %v5943, 0
      %6063 = vmatprep.subr.mxu0 0.0
      %6064 = vmatpush1.msra.mxu0 0.0
      %6065 = vmatprep.subr.mxu0 0.0
      %6066 = vmatpush1.msra.mxu0 0.0
      %6067 = vmatprep.subr.mxu0 0.0
      %6068 = vmatpush1.msra.mxu0 0.0
      %6069 = vmatprep.subr.mxu0 0.0
      %6070 = vmatpush1.msra.mxu0 0.0
      %6071 = vmatprep.subr.mxu0 0.0
      %6072 = vmatpush1.msra.mxu0 0.0
      %6073 = vmatprep.subr.mxu0 0.0
      %6074 = vmatpush1.msra.mxu0 0.0
      %6075 = vmatprep.subr.mxu0 0.0
      %6076 = vmatpush1.msra.mxu0 0.0
      %6077 = vmatprep.subr.mxu0 0.0
      %6078 = vmatpush1.msra.mxu0 0.0
      %6079 = vmatprep.subr.mxu0 0.0
      %6080 = vmatpush1.msra.mxu0 0.0
      %6081 = vmatprep.subr.mxu0 0.0
      %6082 = vmatpush1.msra.mxu0 0.0
      %6083 = vmatprep.subr.mxu0 0.0
      %6084 = vmatpush1.msra.mxu0 0.0
      %6085 = vmatprep.subr.mxu0 0.0
      %6086 = vmatpush1.msra.mxu0 0.0
      %6087 = vmatprep.subr.mxu0 0.0
      %6088 = vmatpush1.msra.mxu0 0.0
      %6089 = vmatprep.subr.mxu0 0.0
      %6090 = vmatpush1.msra.mxu0 0.0
      %6091 = vmatprep.subr.mxu0 %v6055
      %6092 = vmatpush1.msra.mxu0 %v6054
      %6093 = vmatprep.subr.mxu0 %v6053
      %6094 = vmatpush1.msra.mxu0 %v6052
      %6095 = vmatprep.subr.mxu0 0.0
      %6096 = vmatpush2.msra.mxu0 0.0
      %6097 = vmatprep.subr.mxu0 0.0
      %6098 = vmatpush2.msra.mxu0 0.0
      %6099 = vmatprep.subr.mxu0 0.0
      %6100 = vmatpush2.msra.mxu0 0.0
      %6101 = vmatprep.subr.mxu0 0.0
      %6102 = vmatpush2.msra.mxu0 0.0
      %6103 = vmatprep.subr.mxu0 0.0
      %6104 = vmatpush2.msra.mxu0 0.0
      %6105 = vmatprep.subr.mxu0 0.0
      %6106 = vmatpush2.msra.mxu0 0.0
      %6107 = vmatprep.subr.mxu0 0.0
      %6108 = vmatpush2.msra.mxu0 0.0
      %6109 = vmatprep.subr.mxu0 0.0
      %6110 = vmatpush2.msra.mxu0 0.0
      %6111 = vmatprep.subr.mxu0 0.0
      %6112 = vmatpush2.msra.mxu0 0.0
      %6113 = vmatprep.subr.mxu0 0.0
      %6114 = vmatpush2.msra.mxu0 0.0
      %6115 = vmatprep.subr.mxu0 0.0
      %6116 = vmatpush2.msra.mxu0 0.0
      %6117 = vmatprep.subr.mxu0 0.0
      %6118 = vmatpush2.msra.mxu0 0.0
      %6119 = vmatprep.subr.mxu0 0.0
      %6120 = vmatpush2.msra.mxu0 0.0
      %6121 = vmatprep.subr.mxu0 0.0
      %6122 = vmatpush2.msra.mxu0 0.0
      %6123 = vmatprep.subr.mxu0 0.0
      %6124 = vmatpush2.msra.mxu0 0.0
      %6125 = vmatprep.subr.mxu0 0.0
      %6126 = vmatpush2.msra.mxu0 0.0
      %6127 = vmatprep.mubr.f32.mxu0 0.0
      %6128 = vmatmul.mubr.f32.gmra.mxu0 %v6061
      %v6129 = vpop.f32.mrf.mxu0
      %v6130 = vadd.f32 %v6036, %v6129
      %v6131 = vpop.f32.mrf.mxu0
      %v6132 = vadd.f32 %v6038, %v6131
      %6133 = vdwg.mxu0
      %s6134 = scalar_lea.vmem %s3, 64
      %v6135 = vld [vmem:[%s6134] sm:$0xff]
      %6136 = vrot.lane.b32.xlu0 %v5370, 94
      %v6137 = vpop.permute.xlu0 %6136
      %6138 = vrot.lane.b32.xlu0 %v5371, 94
      %v6139 = vpop.permute.xlu0 %6138
      %6140 = vrot.lane.b32.xlu0 %v5375, 94
      %v6141 = vpop.permute.xlu0 %6140
      %6142 = vrot.lane.b32.xlu0 %v5372, 94
      %v6143 = vpop.permute.xlu0 %6142
      %6144 = vrot.lane.b32.xlu0 %v5373, 94
      %v6145 = vpop.permute.xlu0 %6144
      %6146 = vrot.lane.b32.xlu0 %v5376, 94
      %v6147 = vpop.permute.xlu0 %6146
      %v6148 = vsel %vm1126, %v6137, %v6139
      %v6149 = vsel %vm1126, %v6139, %v6141
      %v6150 = vsel %vm1126, %v6143, %v6145
      %v6151 = vsel %vm1126, %v6145, %v6147
      %v6157 = vsel %vm5405, %v6135, 0
      %6159 = vmatprep.subr.mxu0 0.0
      %6160 = vmatpush1.msra.mxu0 0.0
      %6161 = vmatprep.subr.mxu0 0.0
      %6162 = vmatpush1.msra.mxu0 0.0
      %6163 = vmatprep.subr.mxu0 0.0
      %6164 = vmatpush1.msra.mxu0 0.0
      %6165 = vmatprep.subr.mxu0 0.0
      %6166 = vmatpush1.msra.mxu0 0.0
      %6167 = vmatprep.subr.mxu0 0.0
      %6168 = vmatpush1.msra.mxu0 0.0
      %6169 = vmatprep.subr.mxu0 0.0
      %6170 = vmatpush1.msra.mxu0 0.0
      %6171 = vmatprep.subr.mxu0 0.0
      %6172 = vmatpush1.msra.mxu0 0.0
      %6173 = vmatprep.subr.mxu0 0.0
      %6174 = vmatpush1.msra.mxu0 0.0
      %6175 = vmatprep.subr.mxu0 0.0
      %6176 = vmatpush1.msra.mxu0 0.0
      %6177 = vmatprep.subr.mxu0 0.0
      %6178 = vmatpush1.msra.mxu0 0.0
      %6179 = vmatprep.subr.mxu0 0.0
      %6180 = vmatpush1.msra.mxu0 0.0
      %6181 = vmatprep.subr.mxu0 0.0
      %6182 = vmatpush1.msra.mxu0 0.0
      %6183 = vmatprep.subr.mxu0 0.0
      %6184 = vmatpush1.msra.mxu0 0.0
      %6185 = vmatprep.subr.mxu0 0.0
      %6186 = vmatpush1.msra.mxu0 0.0
      %6187 = vmatprep.subr.mxu0 %v6151
      %6188 = vmatpush1.msra.mxu0 %v6150
      %6189 = vmatprep.subr.mxu0 %v6149
      %6190 = vmatpush1.msra.mxu0 %v6148
      %6191 = vmatprep.subr.mxu0 0.0
      %6192 = vmatpush2.msra.mxu0 0.0
      %6193 = vmatprep.subr.mxu0 0.0
      %6194 = vmatpush2.msra.mxu0 0.0
      %6195 = vmatprep.subr.mxu0 0.0
      %6196 = vmatpush2.msra.mxu0 0.0
      %6197 = vmatprep.subr.mxu0 0.0
      %6198 = vmatpush2.msra.mxu0 0.0
      %6199 = vmatprep.subr.mxu0 0.0
      %6200 = vmatpush2.msra.mxu0 0.0
      %6201 = vmatprep.subr.mxu0 0.0
      %6202 = vmatpush2.msra.mxu0 0.0
      %6203 = vmatprep.subr.mxu0 0.0
      %6204 = vmatpush2.msra.mxu0 0.0
      %6205 = vmatprep.subr.mxu0 0.0
      %6206 = vmatpush2.msra.mxu0 0.0
      %6207 = vmatprep.subr.mxu0 0.0
      %6208 = vmatpush2.msra.mxu0 0.0
      %6209 = vmatprep.subr.mxu0 0.0
      %6210 = vmatpush2.msra.mxu0 0.0
      %6211 = vmatprep.subr.mxu0 0.0
      %6212 = vmatpush2.msra.mxu0 0.0
      %6213 = vmatprep.subr.mxu0 0.0
      %6214 = vmatpush2.msra.mxu0 0.0
      %6215 = vmatprep.subr.mxu0 0.0
      %6216 = vmatpush2.msra.mxu0 0.0
      %6217 = vmatprep.subr.mxu0 0.0
      %6218 = vmatpush2.msra.mxu0 0.0
      %6219 = vmatprep.subr.mxu0 0.0
      %6220 = vmatpush2.msra.mxu0 0.0
      %6221 = vmatprep.subr.mxu0 0.0
      %6222 = vmatpush2.msra.mxu0 0.0
      %6223 = vmatprep.mubr.f32.mxu0 0.0
      %6224 = vmatmul.mubr.f32.gmra.mxu0 %v6157
      %v6225 = vpop.f32.mrf.mxu0
      %v6226 = vadd.f32 0.0, %v6225
      %v6227 = vpop.f32.mrf.mxu0
      %v6228 = vadd.f32 0.0, %v6227
      %6229 = vdwg.mxu0
      %v6230 = vadd.f32 %v6130, %v6226
      %v6231 = vadd.f32 %v6132, %v6228
      %v6232 = vmul.f32 %v5650, %v278
      %v6233 = vmul.f32 %v5651, %v279
      %v6234 = vadd.f32 %v6232, %v5940
      %v6235 = vadd.f32 %v6233, %v5941
      %v6236 = vmul.f32 %v6230, %v284
      %v6237 = vmul.f32 %v6231, %v285
      %v6238 = vadd.f32 %v6234, %v6236
      %v6239 = vadd.f32 %v6235, %v6237
      %6240 = vset.pattern.permute.xlu0 5
      %6241 = vperm.xlu0 %6240, %v303
      %v6242 = vpop.permute.xlu0 %6241
      %v6244 = vadd.f32 %v6238, %v6242
      %v6245 = vadd.f32 %v6239, %v6242
      %v6247 = vadd.f32 %v6244, %v302
      %v6248 = vadd.f32 %v6245, %v306
      %v6251 = vcombine.low %v6247, %v6248
      %6253 = vst [vmem:[%s246] sm:$0x77] %v6251
      %6254 = vst [vmem:[#allocation2] sm:$0x77] %v6251
      %p6255 = scmp.lt.s32.totalorder %s20, 1
      %s6256 = scalar_select %p6255, %s20, 1
      %p6257 = scmp.lt.s32.totalorder %s21, 2
      %s6258 = scalar_select %p6257, %s21, 2
      %s6259 = smul.addr %s6258, 2
      %s6260 = smul.addr %s6256, 6
      %s6261 = sadd.s32 %s6259, %s6260
      %s6262 = smul.addr %s6261, 4
      %s6263 = scalar_lea.vmem %s5, %s6262
      // Predicated region
      $region52: #{drn_forward.1} parent=39 // pred_check
        %p6264 = pneg %p158
      $region53: #{drn_forward.1} parent=39 // pred_check_branch
        %6266 = sbr.rel (%p6264) target = $region55
      $region54: #{drn_forward.1} parent=39 // pred_region
        _
      $region55: #{drn_forward.1} parent=39 // pred_fallthru
        _
    $region40: #{drn_forward.1} parent=5 // pred_fallthru
      _
    %p6267 = scmp.le.s32.totalorder 2, %s11
    // Predicated region
    $region56: #{drn_forward.1} parent=5 // pred_check
      %p6268 = pneg %p6267
    $region57: #{drn_forward.1} parent=5 // pred_check_branch
      %6270 = sbr.rel (%p6268) target = $region59
    $region58: #{drn_forward.1} parent=5 // pred_region
      %s6271 = ssub.s32 %s11, 2
      // Predicated region
      $region60: #{drn_forward.1} parent=58 // pred_check
        %p6272 = pneg %p164
      $region61: #{drn_forward.1} parent=58 // pred_check_branch
        %6274 = sbr.rel (%p6272) target = $region63
      $region62: #{drn_forward.1} parent=58 // pred_region
        %p6275 = scmp.lt.s32.totalorder %s22, 1
        %s6276 = scalar_select %p6275, %s22, 1
        %p6277 = scmp.lt.s32.totalorder %s23, 2
        %s6278 = scalar_select %p6277, %s23, 2
        %s6279 = smul.addr %s6278, 2
        %s6280 = smul.addr %s6276, 6
        %s6281 = sadd.s32 %s6279, %s6280
        %s6282 = smul.addr %s6281, 4
        %s6283 = scalar_lea.vmem %s5, %s6282
      $region63: #{drn_forward.1} parent=58 // pred_fallthru
        _
    $region59: #{drn_forward.1} parent=5 // pred_fallthru
      _
  $region6: #{drn_forward.1} parent=0 // loop_footer
    %s15 = sadd.s32 1, %s11
  $region7: #{drn_forward.1} parent=0 // loop_footer_branch
    %10 = sbr.rel target = $region3
  $region8: #{drn_forward.1} parent=0 // loop_exit
    _

</llo_original>
